<compile_context>
chip_gen: v7x
topology: tpu7x:2x2x1
jax: 0.10.0
libtpu: 0.0.40
codegen_flags: <defaults>
</compile_context>

<pallas_src>
import jax
import jax.numpy as jnp
from jax import lax
from jax.experimental import pallas as pl
from jax.experimental.pallas import tpu as pltpu

_FC1_TK = 256  # K-tile for the (gridded) fc1 matmul


def _round_up(a, b):
    return (a + b - 1) // b * b


# --------------------------------------------------------------------------- #
# Fused conv + bias + ReLU + 2x2 maxpool kernel (one grid step per image)
# --------------------------------------------------------------------------- #

def _conv_relu_pool_kernel(p_ref, w_ref, b_ref, o_ref):
    """p_ref: (4, K, S) bf16 patches, S = OH2*OW2, axis 0 = the four (row, col)
    parities of the 2x2 pool window.  w_ref: (OC, K) bf16.  b_ref: (OC, 1) f32.
    o_ref: (OC, S) f32 pooled output with the spatial dims dense on lanes."""
    w = w_ref[...]
    # Four MXU matmuls = the four conv outputs of each 2x2 pooling window.
    y00 = jnp.dot(w, p_ref[0], preferred_element_type=jnp.float32)
    y01 = jnp.dot(w, p_ref[1], preferred_element_type=jnp.float32)
    y10 = jnp.dot(w, p_ref[2], preferred_element_type=jnp.float32)
    y11 = jnp.dot(w, p_ref[3], preferred_element_type=jnp.float32)
    # max-pool then bias+ReLU (== relu(conv+bias) then pool: bias is per-channel
    # constant and ReLU is monotone).  Epilogue math stays f32 (v5e-safe).
    y = jnp.maximum(jnp.maximum(y00, y01), jnp.maximum(y10, y11))
    o_ref[...] = jnp.maximum(y + b_ref[...], 0.0).astype(o_ref.dtype)


def conv_relu_pool(x, wm, b2d, kh, kw, oc):
    """x: (N, C, H, W) f32 NCHW.  wm: (OC, C*KH*KW) bf16 (patch-ordered).
    b2d: (OC, 1) f32.  Returns pooled activation (N, OC, OH//2, OW//2) f32 NCHW."""
    n, c, h, w = x.shape
    oh, ow = h - kh + 1, w - kw + 1
    oh2, ow2 = oh // 2, ow // 2
    k = c * kh * kw
    s = oh2 * ow2

    # Patch extraction via an XLA conv (no gather, no per-forward weight reshuffle).
    p = lax.conv_general_dilated_patches(
        x.astype(jnp.bfloat16), filter_shape=(kh, kw),
        window_strides=(1, 1), padding="VALID")                 # (N, K, OH, OW) bf16
    # Pre-split by (row parity, column parity) of the 2x2 pool window; floor-mode
    # pooling drops the odd tail row/column automatically via the slice bounds.
    p00 = p[:, :, 0:2 * oh2:2, 0:2 * ow2:2]                      # (N, K, OH2, OW2)
    p01 = p[:, :, 0:2 * oh2:2, 1:2 * ow2:2]
    p10 = p[:, :, 1:2 * oh2:2, 0:2 * ow2:2]
    p11 = p[:, :, 1:2 * oh2:2, 1:2 * ow2:2]
    pk = jnp.stack([p00, p01, p10, p11], axis=1).reshape(n, 4, k, s)

    out = pl.pallas_call(
        _conv_relu_pool_kernel,
        out_shape=jax.ShapeDtypeStruct((n, oc, s), jnp.float32),
        grid_spec=pltpu.PrefetchScalarGridSpec(
            num_scalar_prefetch=0,
            grid=(n,),
            in_specs=[
                pl.BlockSpec((None, 4, k, s), lambda i: (i, 0, 0, 0)),
                pl.BlockSpec((oc, k), lambda i: (0, 0)),
                pl.BlockSpec((oc, 1), lambda i: (0, 0)),
            ],
            out_specs=pl.BlockSpec((None, oc, s), lambda i: (i, 0, 0)),
        ),
        compiler_params=pltpu.CompilerParams(
            dimension_semantics=("parallel",)),
    )(pk, wm, b2d)

    # (N, OC, OH2*OW2) -> (N, OC, OH2, OW2): pure reshape, already NCHW order.
    return out.reshape(n, oc, oh2, ow2)


# --------------------------------------------------------------------------- #
# Fused fc1 -> ReLU -> fc2 -> ReLU -> fc3 kernel (fc1 K-tiled, VMEM accumulator)
# --------------------------------------------------------------------------- #

def _fc_fused_kernel(x_ref, w1_ref, b1_ref, w2_ref, b2_ref, w3_ref, b3_ref,
                     o_ref, acc_ref):
    k = pl.program_id(0)

    @pl.when(k == 0)
    def _():
        acc_ref[...] = jnp.zeros_like(acc_ref)

    acc_ref[...] += jnp.dot(x_ref[...], w1_ref[...],
                            preferred_element_type=jnp.float32)

    @pl.when(k == pl.num_programs(0) - 1)
    def _():
        h1 = jnp.maximum(acc_ref[...] + b1_ref[...], 0.0)             # (M, 120) f32
        h2 = jnp.dot(h1.astype(jnp.bfloat16), w2_ref[...],
                     preferred_element_type=jnp.float32) + b2_ref[...]
        h2 = jnp.maximum(h2, 0.0)                                     # (M, 84) f32
        o = jnp.dot(h2.astype(jnp.bfloat16), w3_ref[...],
                    preferred_element_type=jnp.float32) + b3_ref[...]
        o_ref[...] = o.astype(o_ref.dtype)                            # (M, 2)


def fc_head(x_flat, w1, b1, w2, b2, w3, b3):
    """x_flat: (N, F) f32.  w1: (Fp, 120) bf16 (pre-padded, K-major).  w2: (120, 84)
    bf16.  w3: (84, 2) bf16.  b*: (1, n) f32.  Returns (N, 2) f32."""
    n, f = x_flat.shape
    fp = w1.shape[0]
    assert fp % _FC1_TK == 0
    mp = _round_up(n, 8)                                  # full sublane tile of rows
    x_p = jnp.pad(x_flat.astype(jnp.bfloat16), ((0, mp - n), (0, fp - f)))

    h1, h2, no = w1.shape[1], w2.shape[1], w3.shape[1]
    out = pl.pallas_call(
        _fc_fused_kernel,
        out_shape=jax.ShapeDtypeStruct((mp, no), jnp.float32),
        grid_spec=pltpu.PrefetchScalarGridSpec(
            num_scalar_prefetch=0,
            grid=(fp // _FC1_TK,),
            in_specs=[
                pl.BlockSpec((mp, _FC1_TK), lambda k: (0, k)),
                pl.BlockSpec((_FC1_TK, h1), lambda k: (k, 0)),
                pl.BlockSpec((1, h1), lambda k: (0, 0)),
                pl.BlockSpec((h1, h2), lambda k: (0, 0)),
                pl.BlockSpec((1, h2), lambda k: (0, 0)),
                pl.BlockSpec((h2, no), lambda k: (0, 0)),
                pl.BlockSpec((1, no), lambda k: (0, 0)),
            ],
            out_specs=pl.BlockSpec((mp, no), lambda k: (0, 0)),
            scratch_shapes=[pltpu.VMEM((mp, h1), jnp.float32)],
        ),
        compiler_params=pltpu.CompilerParams(
            dimension_semantics=("arbitrary",)),
    )(x_p, w1, b1, w2, b2, w3, b3)
    return out[:n]


# --------------------------------------------------------------------------- #
# Parameter init (PyTorch-style) and one-time pre-processing
# --------------------------------------------------------------------------- #

def _uniform(key, shape, fan_in):
    bound = 1.0 / jnp.sqrt(jnp.float32(fan_in))
    return jax.random.uniform(key, shape, jnp.float32, -bound, bound)


def init_params(key, fc1_in):
    ks = jax.random.split(key, 10)
    p = {}
    p["conv1_w"] = _uniform(ks[0], (5, 1, 2, 100), 1 * 2 * 100)
    p["conv1_b"] = _uniform(ks[1], (5,), 1 * 2 * 100)
    p["conv2_w"] = _uniform(ks[2], (10, 5, 2, 100), 5 * 2 * 100)
    p["conv2_b"] = _uniform(ks[3], (10,), 5 * 2 * 100)
    p["fc1_w"] = _uniform(ks[4], (120, fc1_in), fc1_in)
    p["fc1_b"] = _uniform(ks[5], (120,), fc1_in)
    p["fc2_w"] = _uniform(ks[6], (84, 120), 120)
    p["fc2_b"] = _uniform(ks[7], (84,), 120)
    p["fc3_w"] = _uniform(ks[8], (2, 84), 84)
    p["fc3_b"] = _uniform(ks[9], (2,), 84)
    return p


def _patch_order_weight(w):
    """(OC, C, KH, KW) torch-layout weight -> (OC, C*KH*KW) flattened with the SAME
    feature ordering that conv_general_dilated_patches produces for activations
    (ordering-consistent by construction)."""
    oc, c, kh, kw = w.shape
    wp = lax.conv_general_dilated_patches(
        w, filter_shape=(kh, kw), window_strides=(1, 1), padding="VALID")
    return wp.reshape(oc, c * kh * kw)


def prepare_params(raw):
    """One-time weight pre-processing: flatten/transpose/pad + bf16 cast."""
    bf = jnp.bfloat16
    f = raw["fc1_w"].shape[1]
    fp = _round_up(f, _FC1_TK)
    w1 = jnp.pad(raw["fc1_w"].T, ((0, fp - f), (0, 0)))   # (Fp, 120)
    return {
        "conv1_wm": _patch_order_weight(raw["conv1_w"]).astype(bf),
        "conv1_b2": raw["conv1_b"].reshape(-1, 1),
        "conv2_wm": _patch_order_weight(raw["conv2_w"]).astype(bf),
        "conv2_b2": raw["conv2_b"].reshape(-1, 1),
        "fc1_wkn": w1.astype(bf),
        "fc1_b2": raw["fc1_b"].reshape(1, -1),
        "fc2_wkn": raw["fc2_w"].T.astype(bf),
        "fc2_b2": raw["fc2_b"].reshape(1, -1),
        "fc3_wkn": raw["fc3_w"].T.astype(bf),
        "fc3_b2": raw["fc3_b"].reshape(1, -1),
    }


# --------------------------------------------------------------------------- #
# Forward pass (Pallas) and pure-XLA reference
# --------------------------------------------------------------------------- #

def net_forward(p, x):
    # x: (N, 1, H, W) f32 NCHW
    x = conv_relu_pool(x, p["conv1_wm"], p["conv1_b2"], 2, 100, 5)
    x = conv_relu_pool(x, p["conv2_wm"], p["conv2_b2"], 2, 100, 10)
    x = x.reshape(x.shape[0], -1)                          # torch.flatten(x, 1), NCHW order
    return fc_head(x, p["fc1_wkn"], p["fc1_b2"], p["fc2_wkn"], p["fc2_b2"],
                   p["fc3_wkn"], p["fc3_b2"])


def net_reference(raw, x):
    """Independent XLA path (lax.conv / reduce_window / jnp.dot) with the same bf16
    matmul-input rounding as the Pallas path (f32 accumulation everywhere)."""
    bf = jnp.bfloat16

    def conv_relu_pool_ref(v, w, b):
        y = lax.conv_general_dilated(
            v.astype(bf), w.astype(bf), window_strides=(1, 1), padding="VALID",
            dimension_numbers=("NCHW", "OIHW", "NCHW"),
            preferred_element_type=jnp.float32)
        y = jnp.maximum(y + b.reshape(1, -1, 1, 1), 0.0)
        return lax.reduce_window(y, -jnp.inf, lax.max,
                                 (1, 1, 2, 2), (1, 1, 2, 2), "VALID")

    def fc(v, w, b, relu):
        y = jnp.dot(v.astype(bf), w.T.astype(bf),
                    preferred_element_type=jnp.float32) + b
        return jnp.maximum(y, 0.0) if relu else y

    x = conv_relu_pool_ref(x, raw["conv1_w"], raw["conv1_b"])
    x = conv_relu_pool_ref(x, raw["conv2_w"], raw["conv2_b"])
    x = x.reshape(x.shape[0], -1)
    x = fc(x, raw["fc1_w"], raw["fc1_b"], True)
    x = fc(x, raw["fc2_w"], raw["fc2_b"], True)
    return fc(x, raw["fc3_w"], raw["fc3_b"], False)


def flatten_size(h, w):
    h1, w1 = (h - 2 + 1) // 2, (w - 100 + 1) // 2
    h2, w2 = (h1 - 2 + 1) // 2, (w1 - 100 + 1) // 2
    return 10 * h2 * w2


if __name__ == "__main__":
    N, C, H, W = 2, 1, 12, 512          # small shapes consistent with kernel size (2, 100)
    fc1_in = flatten_size(H, W)         # = 1060 at these shapes (see TODO above)

    key = jax.random.PRNGKey(0)
    k_par, k_x = jax.random.split(key)
    raw = init_params(k_par, fc1_in)
    params = prepare_params(raw)
    x = jax.random.normal(k_x, (N, C, H, W), jnp.float32)

    out = jax.block_until_ready(jax.jit(net_forward)(params, x))
    assert out.shape == (N, 2) and out.dtype == jnp.float32

    ref = jax.block_until_ready(jax.jit(net_reference)(raw, x))
    err = float(jnp.max(jnp.abs(out - ref)))
    assert err < 2e-2, f"Pallas output mismatch vs XLA reference: max|diff|={err}"

    print("KERNEL_OK")
</pallas_src>

<mosaic_0001>
module attributes {stable_mosaic.version = 11 : i64} {
  func.func @_conv_relu_pool_kernel(%arg0: i32, %arg1: memref<1x4x200x1030xbf16, #tpu.memory_space<vmem>>, %arg2: memref<5x200xbf16, #tpu.memory_space<vmem>>, %arg3: memref<5x1xf32, #tpu.memory_space<vmem>>, %arg4: memref<1x5x1030xf32, #tpu.memory_space<vmem>>) attributes {dimension_semantics = [#tpu.dimension_semantics<parallel>], iteration_bounds = array<i64: 2>, scalar_prefetch = 0 : i64, scratch_operands = 0 : i64, tpu.core_type = #tpu.core_type<tc>, window_params = [{transform_indices = @transform_0, window_bounds = array<i64: 1, 4, 200, 1030>}, {pipeline_mode = #tpu.pipeline_mode<synchronous>, transform_indices = @transform_1, window_bounds = array<i64: 5, 200>}, {pipeline_mode = #tpu.pipeline_mode<synchronous>, transform_indices = @transform_2, window_bounds = array<i64: 5, 1>}, {transform_indices = @transform_3, window_bounds = array<i64: 1, 5, 1030>}]} {
    %c0 = arith.constant 0 : index
    %c0_0 = arith.constant 0 : index
    %0 = vector.load %arg2[%c0, %c0_0] : memref<5x200xbf16, #tpu.memory_space<vmem>>, vector<5x200xbf16>
    %c0_1 = arith.constant 0 : index
    %c0_2 = arith.constant 0 : index
    %c0_3 = arith.constant 0 : index
    %c0_4 = arith.constant 0 : index
    %1 = vector.load %arg1[%c0_1, %c0_2, %c0_3, %c0_4] : memref<1x4x200x1030xbf16, #tpu.memory_space<vmem>>, vector<1x1x200x1030xbf16>
    %2 = vector.shape_cast %1 : vector<1x1x200x1030xbf16> to vector<200x1030xbf16>
    %cst = arith.constant dense<0.000000e+00> : vector<5x1030xf32>
    %3 = tpu.matmul %0, %2, %cst {dimension_numbers = #tpu.dot_dimension_numbers<[1], [0], [0], [1], [0, 0, 1, 1], [], []>} : vector<5x200xbf16>, vector<200x1030xbf16>, vector<5x1030xf32> -> vector<5x1030xf32>
    %c0_5 = arith.constant 0 : index
    %c1 = arith.constant 1 : index
    %c0_6 = arith.constant 0 : index
    %c0_7 = arith.constant 0 : index
    %4 = vector.load %arg1[%c0_5, %c1, %c0_6, %c0_7] : memref<1x4x200x1030xbf16, #tpu.memory_space<vmem>>, vector<1x1x200x1030xbf16>
    %5 = vector.shape_cast %4 : vector<1x1x200x1030xbf16> to vector<200x1030xbf16>
    %cst_8 = arith.constant dense<0.000000e+00> : vector<5x1030xf32>
    %6 = tpu.matmul %0, %5, %cst_8 {dimension_numbers = #tpu.dot_dimension_numbers<[1], [0], [0], [1], [0, 0, 1, 1], [], []>} : vector<5x200xbf16>, vector<200x1030xbf16>, vector<5x1030xf32> -> vector<5x1030xf32>
    %c0_9 = arith.constant 0 : index
    %c2 = arith.constant 2 : index
    %c0_10 = arith.constant 0 : index
    %c0_11 = arith.constant 0 : index
    %7 = vector.load %arg1[%c0_9, %c2, %c0_10, %c0_11] : memref<1x4x200x1030xbf16, #tpu.memory_space<vmem>>, vector<1x1x200x1030xbf16>
    %8 = vector.shape_cast %7 : vector<1x1x200x1030xbf16> to vector<200x1030xbf16>
    %cst_12 = arith.constant dense<0.000000e+00> : vector<5x1030xf32>
    %9 = tpu.matmul %0, %8, %cst_12 {dimension_numbers = #tpu.dot_dimension_numbers<[1], [0], [0], [1], [0, 0, 1, 1], [], []>} : vector<5x200xbf16>, vector<200x1030xbf16>, vector<5x1030xf32> -> vector<5x1030xf32>
    %c0_13 = arith.constant 0 : index
    %c3 = arith.constant 3 : index
    %c0_14 = arith.constant 0 : index
    %c0_15 = arith.constant 0 : index
    %10 = vector.load %arg1[%c0_13, %c3, %c0_14, %c0_15] : memref<1x4x200x1030xbf16, #tpu.memory_space<vmem>>, vector<1x1x200x1030xbf16>
    %11 = vector.shape_cast %10 : vector<1x1x200x1030xbf16> to vector<200x1030xbf16>
    %cst_16 = arith.constant dense<0.000000e+00> : vector<5x1030xf32>
    %12 = tpu.matmul %0, %11, %cst_16 {dimension_numbers = #tpu.dot_dimension_numbers<[1], [0], [0], [1], [0, 0, 1, 1], [], []>} : vector<5x200xbf16>, vector<200x1030xbf16>, vector<5x1030xf32> -> vector<5x1030xf32>
    %13 = arith.maximumf %3, %6 : vector<5x1030xf32>
    %14 = arith.maximumf %9, %12 : vector<5x1030xf32>
    %15 = arith.maximumf %13, %14 : vector<5x1030xf32>
    %c0_17 = arith.constant 0 : index
    %c0_18 = arith.constant 0 : index
    %16 = vector.load %arg3[%c0_17, %c0_18] : memref<5x1xf32, #tpu.memory_space<vmem>>, vector<5x1xf32>
    %17 = vector.broadcast %16 : vector<5x1xf32> to vector<5x1030xf32>
    %18 = arith.addf %15, %17 : vector<5x1030xf32>
    %cst_19 = arith.constant 0.000000e+00 : f32
    %19 = vector.broadcast %cst_19 : f32 to vector<5x1030xf32>
    %20 = arith.maximumf %18, %19 : vector<5x1030xf32>
    %c0_20 = arith.constant 0 : index
    %c0_21 = arith.constant 0 : index
    %c0_22 = arith.constant 0 : index
    %21 = vector.load %arg4[%c0_20, %c0_21, %c0_22] : memref<1x5x1030xf32, #tpu.memory_space<vmem>>, vector<1x5x1030xf32>
    %22 = vector.shape_cast %21 : vector<1x5x1030xf32> to vector<5x1030xf32>
    %23 = vector.shape_cast %20 : vector<5x1030xf32> to vector<1x5x1030xf32>
    tpu.vector_store %arg4[%c0_20, %c0_21, %c0_22], %23 {strides = array<i32>} : memref<1x5x1030xf32, #tpu.memory_space<vmem>>, vector<1x5x1030xf32>,
    return
  }
  func.func @transform_0(%arg0: i32) -> (i32, i32, i32, i32) {
    %c0_i32 = arith.constant 0 : i32
    %c0_i32_0 = arith.constant 0 : i32
    %c0_i32_1 = arith.constant 0 : i32
    %c0_i32_2 = arith.constant 0 : i32
    return %arg0, %c0_i32, %c0_i32_0, %c0_i32_1 : i32, i32, i32, i32
  }
  func.func @transform_1(%arg0: i32) -> (i32, i32) {
    %c0_i32 = arith.constant 0 : i32
    %c0_i32_0 = arith.constant 0 : i32
    %c0_i32_1 = arith.constant 0 : i32
    return %c0_i32, %c0_i32_0 : i32, i32
  }
  func.func @transform_2(%arg0: i32) -> (i32, i32) {
    %c0_i32 = arith.constant 0 : i32
    %c0_i32_0 = arith.constant 0 : i32
    %c0_i32_1 = arith.constant 0 : i32
    return %c0_i32, %c0_i32_0 : i32, i32
  }
  func.func @transform_3(%arg0: i32) -> (i32, i32, i32) {
    %c0_i32 = arith.constant 0 : i32
    %c0_i32_0 = arith.constant 0 : i32
    %c0_i32_1 = arith.constant 0 : i32
    return %arg0, %c0_i32, %c0_i32_0 : i32, i32, i32
  }
}

module attributes {stable_mosaic.version = 11 : i64} {
  func.func @_conv_relu_pool_kernel(%arg0: i32, %arg1: memref<1x4x1000x106xbf16, #tpu.memory_space<vmem>>, %arg2: memref<10x1000xbf16, #tpu.memory_space<vmem>>, %arg3: memref<10x1xf32, #tpu.memory_space<vmem>>, %arg4: memref<1x10x106xf32, #tpu.memory_space<vmem>>) attributes {dimension_semantics = [#tpu.dimension_semantics<parallel>], iteration_bounds = array<i64: 2>, scalar_prefetch = 0 : i64, scratch_operands = 0 : i64, tpu.core_type = #tpu.core_type<tc>, window_params = [{transform_indices = @transform_0, window_bounds = array<i64: 1, 4, 1000, 106>}, {pipeline_mode = #tpu.pipeline_mode<synchronous>, transform_indices = @transform_1, window_bounds = array<i64: 10, 1000>}, {pipeline_mode = #tpu.pipeline_mode<synchronous>, transform_indices = @transform_2, window_bounds = array<i64: 10, 1>}, {transform_indices = @transform_3, window_bounds = array<i64: 1, 10, 106>}]} {
    %c0 = arith.constant 0 : index
    %c0_0 = arith.constant 0 : index
    %0 = vector.load %arg2[%c0, %c0_0] : memref<10x1000xbf16, #tpu.memory_space<vmem>>, vector<10x1000xbf16>
    %c0_1 = arith.constant 0 : index
    %c0_2 = arith.constant 0 : index
    %c0_3 = arith.constant 0 : index
    %c0_4 = arith.constant 0 : index
    %1 = vector.load %arg1[%c0_1, %c0_2, %c0_3, %c0_4] : memref<1x4x1000x106xbf16, #tpu.memory_space<vmem>>, vector<1x1x1000x106xbf16>
    %2 = vector.shape_cast %1 : vector<1x1x1000x106xbf16> to vector<1000x106xbf16>
    %cst = arith.constant dense<0.000000e+00> : vector<10x106xf32>
    %3 = tpu.matmul %0, %2, %cst {dimension_numbers = #tpu.dot_dimension_numbers<[1], [0], [0], [1], [0, 0, 1, 1], [], []>} : vector<10x1000xbf16>, vector<1000x106xbf16>, vector<10x106xf32> -> vector<10x106xf32>
    %c0_5 = arith.constant 0 : index
    %c1 = arith.constant 1 : index
    %c0_6 = arith.constant 0 : index
    %c0_7 = arith.constant 0 : index
    %4 = vector.load %arg1[%c0_5, %c1, %c0_6, %c0_7] : memref<1x4x1000x106xbf16, #tpu.memory_space<vmem>>, vector<1x1x1000x106xbf16>
    %5 = vector.shape_cast %4 : vector<1x1x1000x106xbf16> to vector<1000x106xbf16>
    %cst_8 = arith.constant dense<0.000000e+00> : vector<10x106xf32>
    %6 = tpu.matmul %0, %5, %cst_8 {dimension_numbers = #tpu.dot_dimension_numbers<[1], [0], [0], [1], [0, 0, 1, 1], [], []>} : vector<10x1000xbf16>, vector<1000x106xbf16>, vector<10x106xf32> -> vector<10x106xf32>
    %c0_9 = arith.constant 0 : index
    %c2 = arith.constant 2 : index
    %c0_10 = arith.constant 0 : index
    %c0_11 = arith.constant 0 : index
    %7 = vector.load %arg1[%c0_9, %c2, %c0_10, %c0_11] : memref<1x4x1000x106xbf16, #tpu.memory_space<vmem>>, vector<1x1x1000x106xbf16>
    %8 = vector.shape_cast %7 : vector<1x1x1000x106xbf16> to vector<1000x106xbf16>
    %cst_12 = arith.constant dense<0.000000e+00> : vector<10x106xf32>
    %9 = tpu.matmul %0, %8, %cst_12 {dimension_numbers = #tpu.dot_dimension_numbers<[1], [0], [0], [1], [0, 0, 1, 1], [], []>} : vector<10x1000xbf16>, vector<1000x106xbf16>, vector<10x106xf32> -> vector<10x106xf32>
    %c0_13 = arith.constant 0 : index
    %c3 = arith.constant 3 : index
    %c0_14 = arith.constant 0 : index
    %c0_15 = arith.constant 0 : index
    %10 = vector.load %arg1[%c0_13, %c3, %c0_14, %c0_15] : memref<1x4x1000x106xbf16, #tpu.memory_space<vmem>>, vector<1x1x1000x106xbf16>
    %11 = vector.shape_cast %10 : vector<1x1x1000x106xbf16> to vector<1000x106xbf16>
    %cst_16 = arith.constant dense<0.000000e+00> : vector<10x106xf32>
    %12 = tpu.matmul %0, %11, %cst_16 {dimension_numbers = #tpu.dot_dimension_numbers<[1], [0], [0], [1], [0, 0, 1, 1], [], []>} : vector<10x1000xbf16>, vector<1000x106xbf16>, vector<10x106xf32> -> vector<10x106xf32>
    %13 = arith.maximumf %3, %6 : vector<10x106xf32>
    %14 = arith.maximumf %9, %12 : vector<10x106xf32>
    %15 = arith.maximumf %13, %14 : vector<10x106xf32>
    %c0_17 = arith.constant 0 : index
    %c0_18 = arith.constant 0 : index
    %16 = vector.load %arg3[%c0_17, %c0_18] : memref<10x1xf32, #tpu.memory_space<vmem>>, vector<10x1xf32>
    %17 = vector.broadcast %16 : vector<10x1xf32> to vector<10x106xf32>
    %18 = arith.addf %15, %17 : vector<10x106xf32>
    %cst_19 = arith.constant 0.000000e+00 : f32
    %19 = vector.broadcast %cst_19 : f32 to vector<10x106xf32>
    %20 = arith.maximumf %18, %19 : vector<10x106xf32>
    %c0_20 = arith.constant 0 : index
    %c0_21 = arith.constant 0 : index
    %c0_22 = arith.constant 0 : index
    %21 = vector.load %arg4[%c0_20, %c0_21, %c0_22] : memref<1x10x106xf32, #tpu.memory_space<vmem>>, vector<1x10x106xf32>
    %22 = vector.shape_cast %21 : vector<1x10x106xf32> to vector<10x106xf32>
    %23 = vector.shape_cast %20 : vector<10x106xf32> to vector<1x10x106xf32>
    tpu.vector_store %arg4[%c0_20, %c0_21, %c0_22], %23 {strides = array<i32>} : memref<1x10x106xf32, #tpu.memory_space<vmem>>, vector<1x10x106xf32>,
    return
  }
  func.func @transform_0(%arg0: i32) -> (i32, i32, i32, i32) {
    %c0_i32 = arith.constant 0 : i32
    %c0_i32_0 = arith.constant 0 : i32
    %c0_i32_1 = arith.constant 0 : i32
    %c0_i32_2 = arith.constant 0 : i32
    return %arg0, %c0_i32, %c0_i32_0, %c0_i32_1 : i32, i32, i32, i32
  }
  func.func @transform_1(%arg0: i32) -> (i32, i32) {
    %c0_i32 = arith.constant 0 : i32
    %c0_i32_0 = arith.constant 0 : i32
    %c0_i32_1 = arith.constant 0 : i32
    return %c0_i32, %c0_i32_0 : i32, i32
  }
  func.func @transform_2(%arg0: i32) -> (i32, i32) {
    %c0_i32 = arith.constant 0 : i32
    %c0_i32_0 = arith.constant 0 : i32
    %c0_i32_1 = arith.constant 0 : i32
    return %c0_i32, %c0_i32_0 : i32, i32
  }
  func.func @transform_3(%arg0: i32) -> (i32, i32, i32) {
    %c0_i32 = arith.constant 0 : i32
    %c0_i32_0 = arith.constant 0 : i32
    %c0_i32_1 = arith.constant 0 : i32
    return %arg0, %c0_i32, %c0_i32_0 : i32, i32, i32
  }
}

module attributes {stable_mosaic.version = 11 : i64} {
  func.func @_fc_fused_kernel(%arg0: i32, %arg1: memref<8x256xbf16, #tpu.memory_space<vmem>>, %arg2: memref<256x120xbf16, #tpu.memory_space<vmem>>, %arg3: memref<1x120xf32, #tpu.memory_space<vmem>>, %arg4: memref<120x84xbf16, #tpu.memory_space<vmem>>, %arg5: memref<1x84xf32, #tpu.memory_space<vmem>>, %arg6: memref<84x2xbf16, #tpu.memory_space<vmem>>, %arg7: memref<1x2xf32, #tpu.memory_space<vmem>>, %arg8: memref<8x2xf32, #tpu.memory_space<vmem>>, %arg9: memref<8x120xf32, #tpu.memory_space<vmem>>) attributes {dimension_semantics = [#tpu.dimension_semantics<arbitrary>], iteration_bounds = array<i64: 5>, scalar_prefetch = 0 : i64, scratch_operands = 1 : i64, tpu.core_type = #tpu.core_type<tc>, window_params = [{transform_indices = @transform_0, window_bounds = array<i64: 8, 256>}, {transform_indices = @transform_1, window_bounds = array<i64: 256, 120>}, {pipeline_mode = #tpu.pipeline_mode<synchronous>, transform_indices = @transform_2, window_bounds = array<i64: 1, 120>}, {pipeline_mode = #tpu.pipeline_mode<synchronous>, transform_indices = @transform_3, window_bounds = array<i64: 120, 84>}, {pipeline_mode = #tpu.pipeline_mode<synchronous>, transform_indices = @transform_4, window_bounds = array<i64: 1, 84>}, {pipeline_mode = #tpu.pipeline_mode<synchronous>, transform_indices = @transform_5, window_bounds = array<i64: 84, 2>}, {pipeline_mode = #tpu.pipeline_mode<synchronous>, transform_indices = @transform_6, window_bounds = array<i64: 1, 2>}, {pipeline_mode = #tpu.pipeline_mode<synchronous>, transform_indices = @transform_7, window_bounds = array<i64: 8, 2>}]} {
    %c0_i32 = arith.constant 0 : i32
    %0 = arith.cmpi eq, %arg0, %c0_i32 : i32
    %1 = arith.extui %0 : i1 to i32
    %c0_i32_0 = arith.constant 0 : i32
    %2 = arith.cmpi ne, %1, %c0_i32_0 : i32
    scf.if %2 {
      %cst_9 = arith.constant 0.000000e+00 : f32
      %12 = vector.broadcast %cst_9 : f32 to vector<8x120xf32>
      %c0_10 = arith.constant 0 : index
      %c0_11 = arith.constant 0 : index
      %13 = vector.load %arg9[%c0_10, %c0_11] : memref<8x120xf32, #tpu.memory_space<vmem>>, vector<8x120xf32>
      tpu.vector_store %arg9[%c0_10, %c0_11], %12 {strides = array<i32>} : memref<8x120xf32, #tpu.memory_space<vmem>>, vector<8x120xf32>,
    } else {
    }
    %c0 = arith.constant 0 : index
    %c0_1 = arith.constant 0 : index
    %3 = vector.load %arg9[%c0, %c0_1] : memref<8x120xf32, #tpu.memory_space<vmem>>, vector<8x120xf32>
    %c0_2 = arith.constant 0 : index
    %c0_3 = arith.constant 0 : index
    %4 = vector.load %arg1[%c0_2, %c0_3] : memref<8x256xbf16, #tpu.memory_space<vmem>>, vector<8x256xbf16>
    %c0_4 = arith.constant 0 : index
    %c0_5 = arith.constant 0 : index
    %5 = vector.load %arg2[%c0_4, %c0_5] : memref<256x120xbf16, #tpu.memory_space<vmem>>, vector<256x120xbf16>
    %cst = arith.constant dense<0.000000e+00> : vector<8x120xf32>
    %6 = tpu.matmul %4, %5, %cst {dimension_numbers = #tpu.dot_dimension_numbers<[1], [0], [0], [1], [0, 0, 1, 1], [], []>} : vector<8x256xbf16>, vector<256x120xbf16>, vector<8x120xf32> -> vector<8x120xf32>
    %7 = arith.addf %3, %6 : vector<8x120xf32>
    %c0_6 = arith.constant 0 : index
    %c0_7 = arith.constant 0 : index
    %8 = vector.load %arg9[%c0_6, %c0_7] : memref<8x120xf32, #tpu.memory_space<vmem>>, vector<8x120xf32>
    tpu.vector_store %arg9[%c0_6, %c0_7], %7 {strides = array<i32>} : memref<8x120xf32, #tpu.memory_space<vmem>>, vector<8x120xf32>,
    %c4_i32 = arith.constant 4 : i32
    %9 = arith.cmpi eq, %arg0, %c4_i32 : i32
    %10 = arith.extui %9 : i1 to i32
    %c0_i32_8 = arith.constant 0 : i32
    %11 = arith.cmpi ne, %10, %c0_i32_8 : i32
    scf.if %11 {
      %c0_9 = arith.constant 0 : index
      %c0_10 = arith.constant 0 : index
      %12 = vector.load %arg9[%c0_9, %c0_10] : memref<8x120xf32, #tpu.memory_space<vmem>>, vector<8x120xf32>
      %c0_11 = arith.constant 0 : index
      %c0_12 = arith.constant 0 : index
      %13 = vector.load %arg3[%c0_11, %c0_12] : memref<1x120xf32, #tpu.memory_space<vmem>>, vector<1x120xf32>
      %14 = vector.broadcast %13 : vector<1x120xf32> to vector<8x120xf32>
      %15 = arith.addf %12, %14 : vector<8x120xf32>
      %cst_13 = arith.constant 0.000000e+00 : f32
      %16 = vector.broadcast %cst_13 : f32 to vector<8x120xf32>
      %17 = arith.maximumf %15, %16 : vector<8x120xf32>
      %18 = arith.truncf %17 : vector<8x120xf32> to vector<8x120xbf16>
      %c0_14 = arith.constant 0 : index
      %c0_15 = arith.constant 0 : index
      %19 = vector.load %arg4[%c0_14, %c0_15] : memref<120x84xbf16, #tpu.memory_space<vmem>>, vector<120x84xbf16>
      %cst_16 = arith.constant dense<0.000000e+00> : vector<8x84xf32>
      %20 = tpu.matmul %18, %19, %cst_16 {dimension_numbers = #tpu.dot_dimension_numbers<[1], [0], [0], [1], [0, 0, 1, 1], [], []>} : vector<8x120xbf16>, vector<120x84xbf16>, vector<8x84xf32> -> vector<8x84xf32>
      %c0_17 = arith.constant 0 : index
      %c0_18 = arith.constant 0 : index
      %21 = vector.load %arg5[%c0_17, %c0_18] : memref<1x84xf32, #tpu.memory_space<vmem>>, vector<1x84xf32>
      %22 = vector.broadcast %21 : vector<1x84xf32> to vector<8x84xf32>
      %23 = arith.addf %20, %22 : vector<8x84xf32>
      %cst_19 = arith.constant 0.000000e+00 : f32
      %24 = vector.broadcast %cst_19 : f32 to vector<8x84xf32>
      %25 = arith.maximumf %23, %24 : vector<8x84xf32>
      %26 = arith.truncf %25 : vector<8x84xf32> to vector<8x84xbf16>
      %c0_20 = arith.constant 0 : index
      %c0_21 = arith.constant 0 : index
      %27 = vector.load %arg6[%c0_20, %c0_21] : memref<84x2xbf16, #tpu.memory_space<vmem>>, vector<84x2xbf16>
      %cst_22 = arith.constant dense<0.000000e+00> : vector<8x2xf32>
      %28 = tpu.matmul %26, %27, %cst_22 {dimension_numbers = #tpu.dot_dimension_numbers<[1], [0], [0], [1], [0, 0, 1, 1], [], []>} : vector<8x84xbf16>, vector<84x2xbf16>, vector<8x2xf32> -> vector<8x2xf32>
      %c0_23 = arith.constant 0 : index
      %c0_24 = arith.constant 0 : index
      %29 = vector.load %arg7[%c0_23, %c0_24] : memref<1x2xf32, #tpu.memory_space<vmem>>, vector<1x2xf32>
      %30 = vector.broadcast %29 : vector<1x2xf32> to vector<8x2xf32>
      %31 = arith.addf %28, %30 : vector<8x2xf32>
      %c0_25 = arith.constant 0 : index
      %c0_26 = arith.constant 0 : index
      %32 = vector.load %arg8[%c0_25, %c0_26] : memref<8x2xf32, #tpu.memory_space<vmem>>, vector<8x2xf32>
      tpu.vector_store %arg8[%c0_25, %c0_26], %31 {strides = array<i32>} : memref<8x2xf32, #tpu.memory_space<vmem>>, vector<8x2xf32>,
    } else {
    }
    return
  }
  func.func @transform_0(%arg0: i32) -> (i32, i32) {
    %c0_i32 = arith.constant 0 : i32
    %c0_i32_0 = arith.constant 0 : i32
    return %c0_i32, %arg0 : i32, i32
  }
  func.func @transform_1(%arg0: i32) -> (i32, i32) {
    %c0_i32 = arith.constant 0 : i32
    %c0_i32_0 = arith.constant 0 : i32
    return %arg0, %c0_i32 : i32, i32
  }
  func.func @transform_2(%arg0: i32) -> (i32, i32) {
    %c0_i32 = arith.constant 0 : i32
    %c0_i32_0 = arith.constant 0 : i32
    %c0_i32_1 = arith.constant 0 : i32
    return %c0_i32, %c0_i32_0 : i32, i32
  }
  func.func @transform_3(%arg0: i32) -> (i32, i32) {
    %c0_i32 = arith.constant 0 : i32
    %c0_i32_0 = arith.constant 0 : i32
    %c0_i32_1 = arith.constant 0 : i32
    return %c0_i32, %c0_i32_0 : i32, i32
  }
  func.func @transform_4(%arg0: i32) -> (i32, i32) {
    %c0_i32 = arith.constant 0 : i32
    %c0_i32_0 = arith.constant 0 : i32
    %c0_i32_1 = arith.constant 0 : i32
    return %c0_i32, %c0_i32_0 : i32, i32
  }
  func.func @transform_5(%arg0: i32) -> (i32, i32) {
    %c0_i32 = arith.constant 0 : i32
    %c0_i32_0 = arith.constant 0 : i32
    %c0_i32_1 = arith.constant 0 : i32
    return %c0_i32, %c0_i32_0 : i32, i32
  }
  func.func @transform_6(%arg0: i32) -> (i32, i32) {
    %c0_i32 = arith.constant 0 : i32
    %c0_i32_0 = arith.constant 0 : i32
    %c0_i32_1 = arith.constant 0 : i32
    return %c0_i32, %c0_i32_0 : i32, i32
  }
  func.func @transform_7(%arg0: i32) -> (i32, i32) {
    %c0_i32 = arith.constant 0 : i32
    %c0_i32_0 = arith.constant 0 : i32
    %c0_i32_1 = arith.constant 0 : i32
    return %c0_i32, %c0_i32_0 : i32, i32
  }
}

</mosaic_0001>

<llo_original>
// kernel: net_forward.3
$region0: #{net_forward.3}
  #allocation0 [shape = 'u32[]', space=smem, size = 0x4, offset = 0x4, fixed_abs, tag = 'smem constant byte address 0x4 - core index']
  #allocation1 [shape = 'u32[144,128]{1,0:T(1,128)}', space=vmem, size = 0x12000, scoped, tag = 'internal scratch']
  %s0 = inlined_call_operand.vmem [shape: bf16[2,4,200,1030], index: 0, kind: input, shape index: {}]
  %s1 = inlined_call_operand.vmem [shape: bf16[5,200], index: 1, kind: input, shape index: {}]
  %s2 = inlined_call_operand.vmem [shape: f32[5,1], index: 2, kind: input, shape index: {}]
  %s3 = inlined_call_operand.vmem [shape: f32[2,5,1030], index: 3, kind: output, shape index: {}]
  %s4 = sld [smem:[#allocation0]]
  $region45: #{net_forward.3} parent=0
    _
  %s6 = ssub.s32 1, %s4
  %s7 = scalar_select 0, %s6, %s4
  loop: start=0, step=1, limit=4
  $region2: #{net_forward.3} parent=0 // loop_pre_header
    _
  $region3: #{net_forward.3} parent=0 // loop_header
    %s9 = sphi 0, %s13
    %p10 = scmp.ge.s32.totalorder %s9, 4
    %s19 = sphi 0, %s21
    %s22 = sphi 0, %s19
    %s23 = sphi 0, %s22
    %s39 = sphi 0, %s23
    %s43 = sphi 0, %s43
    %s45 = sphi 0, %s43
    %s46 = sphi 0, %s45
    %s60 = sphi 0, %s46
    %s64 = sphi 0, %s64
    %s66 = sphi 0, %s64
    %s67 = sphi 0, %s66
    %s81 = sphi 0, %s67
    %s87 = sphi 0, %s89
    %s90 = sphi 0, %s87
    %s91 = sphi 0, %s90
    %s107 = sphi 0, %s91
  $region4: #{net_forward.3} parent=0 // loop_header_branch
    %12 = sbr.rel (%p10) target = $region8
  $region5: #{net_forward.3} parent=0 // loop_body
    %s14 = ssub.s32 %s9, 1
    %s15 = ssub.s32 %s9, 2
    %s16 = sadd.s32 %s9, 1
    %s17 = ssub.s32 %s9, %s16
    %p18 = scmp.eq.s32.totalorder %s17, 0
    %s20 = sadd.s32 %s19, 1
    %s21 = scalar_select %p18, %s19, %s20
    %p24 = pneg %p18
    %p25 = scmp.eq.s32.totalorder %s9, 1
    %p26 = por %p24, %p25
    %p27 = scmp.ne.s32.totalorder %s19, %s22
    %p28 = scmp.eq.s32.totalorder %s9, 0
    %p29 = por %p27, %p28
    %p30 = scmp.ne.s32.totalorder %s19, %s22
    %p31 = scmp.eq.s32.totalorder %s14, 1
    %p32 = por %p30, %p31
    %p33 = scmp.ne.s32.totalorder %s22, %s23
    %p34 = scmp.eq.s32.totalorder %s14, 0
    %p35 = por %p33, %p34
    %p36 = scmp.ne.s32.totalorder %s22, %s23
    %p37 = scmp.eq.s32.totalorder %s15, 1
    %p38 = por %p36, %p37
    %p40 = scmp.ne.s32.totalorder %s23, %s39
    %p41 = scmp.eq.s32.totalorder %s15, 0
    %p42 = por %p40, %p41
    %s44 = sadd.s32 %s43, 1
    %p47 = scmp.eq.s32.totalorder %s9, 1
    %p48 = scmp.ne.s32.totalorder %s43, %s45
    %p49 = scmp.eq.s32.totalorder %s9, 0
    %p50 = por %p48, %p49
    %p51 = scmp.ne.s32.totalorder %s43, %s45
    %p52 = scmp.eq.s32.totalorder %s14, 1
    %p53 = por %p51, %p52
    %p54 = scmp.ne.s32.totalorder %s45, %s46
    %p55 = scmp.eq.s32.totalorder %s14, 0
    %p56 = por %p54, %p55
    %p57 = scmp.ne.s32.totalorder %s45, %s46
    %p58 = scmp.eq.s32.totalorder %s15, 1
    %p59 = por %p57, %p58
    %p61 = scmp.ne.s32.totalorder %s46, %s60
    %p62 = scmp.eq.s32.totalorder %s15, 0
    %p63 = por %p61, %p62
    %s65 = sadd.s32 %s64, 1
    %p68 = scmp.eq.s32.totalorder %s9, 1
    %p69 = scmp.ne.s32.totalorder %s64, %s66
    %p70 = scmp.eq.s32.totalorder %s9, 0
    %p71 = por %p69, %p70
    %p72 = scmp.ne.s32.totalorder %s64, %s66
    %p73 = scmp.eq.s32.totalorder %s14, 1
    %p74 = por %p72, %p73
    %p75 = scmp.ne.s32.totalorder %s66, %s67
    %p76 = scmp.eq.s32.totalorder %s14, 0
    %p77 = por %p75, %p76
    %p78 = scmp.ne.s32.totalorder %s66, %s67
    %p79 = scmp.eq.s32.totalorder %s15, 1
    %p80 = por %p78, %p79
    %p82 = scmp.ne.s32.totalorder %s67, %s81
    %p83 = scmp.eq.s32.totalorder %s15, 0
    %p84 = por %p82, %p83
    %s85 = ssub.s32 %s9, %s16
    %p86 = scmp.eq.s32.totalorder %s85, 0
    %s88 = sadd.s32 %s87, 1
    %s89 = scalar_select %p86, %s87, %s88
    %p92 = pneg %p86
    %p93 = scmp.eq.s32.totalorder %s9, 1
    %p94 = por %p92, %p93
    %p95 = scmp.ne.s32.totalorder %s87, %s90
    %p96 = scmp.eq.s32.totalorder %s9, 0
    %p97 = por %p95, %p96
    %p98 = scmp.ne.s32.totalorder %s87, %s90
    %p99 = scmp.eq.s32.totalorder %s14, 1
    %p100 = por %p98, %p99
    %p101 = scmp.ne.s32.totalorder %s90, %s91
    %p102 = scmp.eq.s32.totalorder %s14, 0
    %p103 = por %p101, %p102
    %p104 = scmp.ne.s32.totalorder %s90, %s91
    %p105 = scmp.eq.s32.totalorder %s15, 1
    %p106 = por %p104, %p105
    %p108 = scmp.ne.s32.totalorder %s91, %s107
    %p109 = scmp.eq.s32.totalorder %s15, 0
    %p110 = por %p108, %p109
    %p111 = scmp.le.s32.totalorder 1, %s9
    %p112 = scmp.lt.s32.totalorder %s9, 3
    %p113 = pnand %p111, %p112
    %p114 = pneg %p113
    // Predicated region
    $region9: #{net_forward.3} parent=5 // pred_check
      _
    $region10: #{net_forward.3} parent=5 // pred_check_branch
      %116 = sbr.rel (%p113) target = $region12
    $region11: #{net_forward.3} parent=5 // pred_region
      %s117 = ssub.s32 %s9, 1
      // Predicated region
      $region13: #{net_forward.3} parent=11 // pred_check
        %p118 = pneg %p56
      $region14: #{net_forward.3} parent=11 // pred_check_branch
        %120 = sbr.rel (%p118) target = $region16
      $region15: #{net_forward.3} parent=11 // pred_region
        _
      $region16: #{net_forward.3} parent=11 // pred_fallthru
        _
      // Predicated region
      $region17: #{net_forward.3} parent=11 // pred_check
        %p121 = pneg %p77
      $region18: #{net_forward.3} parent=11 // pred_check_branch
        %123 = sbr.rel (%p121) target = $region20
      $region19: #{net_forward.3} parent=11 // pred_region
        _
      $region20: #{net_forward.3} parent=11 // pred_fallthru
        _
    $region12: #{net_forward.3} parent=5 // pred_fallthru
      _
    %p124 = scmp.lt.s32.totalorder %s9, 2
    // Predicated region
    $region21: #{net_forward.3} parent=5 // pred_check
      %p125 = pneg %p124
    $region22: #{net_forward.3} parent=5 // pred_check_branch
      %127 = sbr.rel (%p125) target = $region24
    $region23: #{net_forward.3} parent=5 // pred_region
      // Predicated region
      $region25: #{net_forward.3} parent=23 // pred_check
        %p128 = pneg %p29
      $region26: #{net_forward.3} parent=23 // pred_check_branch
        %130 = sbr.rel (%p128) target = $region28
      $region27: #{net_forward.3} parent=23 // pred_region
        %p131 = scmp.lt.s32.totalorder %s9, 1
        %s132 = scalar_select %p131, %s9, 1
        %s133 = smul.addr %s132, 900
        %s134 = smul.addr %s133, 4
        %s135 = scalar_lea.vmem %s0, %s134
      $region28: #{net_forward.3} parent=23 // pred_fallthru
        _
    $region24: #{net_forward.3} parent=5 // pred_fallthru
      _
    %p136 = scmp.le.s32.totalorder 1, %s9
    %p137 = scmp.lt.s32.totalorder %s9, 3
    %p138 = pnand %p136, %p137
    %p139 = pneg %p138
    // Predicated region
    $region29: #{net_forward.3} parent=5 // pred_check
      _
    $region30: #{net_forward.3} parent=5 // pred_check_branch
      %141 = sbr.rel (%p138) target = $region32
    $region31: #{net_forward.3} parent=5 // pred_region
      %s142 = ssub.s32 %s9, 1
      %p143 = scmp.lt.s32.totalorder %s14, 1
      %s144 = scalar_select %p143, %s14, 1
      %s145 = smul.addr %s144, 900
      %s146 = smul.addr %s145, 4
      %s147 = scalar_lea.vmem %s0, %s146
      %p148 = pneg %p35
      %p149 = pneg %p32
      %p150 = pneg %p56
      %p151 = pneg %p53
      %p152 = pneg %p77
      %p153 = pneg %p74
      %p154 = pneg %p103
      %p155 = pneg %p100
      %p156 = scmp.lt.s32.totalorder %s14, 1
      %s157 = scalar_select %p156, %s14, 1
      %s158 = smul.addr %s157, 9
      %s159 = smul.addr %s158, 8
      %s160 = scalar_lea.vmem %s3, %s159
      %p161 = scmp.lt.s32.totalorder %s14, 1
      %s162 = scalar_select %p161, %s14, 1
      %s163 = smul.addr %s162, 900
      %s164 = smul.addr %s163, 4
      %s165 = scalar_lea.vmem %s0, %s164
      %p166 = scmp.lt.s32.totalorder %s14, 1
      %s167 = scalar_select %p166, %s14, 1
      %s168 = smul.addr %s167, 9
      %s169 = smul.addr %s168, 8
      %s170 = scalar_lea.vmem %s3, %s169
      %v172 = vld [vmem:[%s1] sm:$0x77]
      %v173 = vld [vmem:[%s165] sm:$0xff]
      %v174 = vld [vmem:[%s165 + $0x8] sm:$0xff]
      %v175 = vld [vmem:[%s165 + $0x10] sm:$0xff]
      %v176 = vld [vmem:[%s165 + $0x18] sm:$0xff]
      %v177 = vld [vmem:[%s165 + $0x20] sm:$0xf]
      %v178 = vld [vmem:[%s165 + $0x24] sm:$0xff]
      %v179 = vld [vmem:[%s165 + $0x2c] sm:$0xff]
      %v180 = vld [vmem:[%s165 + $0x34] sm:$0xff]
      %v181 = vld [vmem:[%s165 + $0x3c] sm:$0xff]
      %v182 = vld [vmem:[%s165 + $0x44] sm:$0xf]
      %v183 = vld [vmem:[%s165 + $0x48] sm:$0xff]
      %v184 = vld [vmem:[%s165 + $0x50] sm:$0xff]
      %v185 = vld [vmem:[%s165 + $0x58] sm:$0xff]
      %v186 = vld [vmem:[%s165 + $0x60] sm:$0xff]
      %v187 = vld [vmem:[%s165 + $0x68] sm:$0xf]
      %v188 = vld [vmem:[%s165 + $0x6c] sm:$0xff]
      %v189 = vld [vmem:[%s165 + $0x74] sm:$0xff]
      %v190 = vld [vmem:[%s165 + $0x7c] sm:$0xff]
      %v191 = vld [vmem:[%s165 + $0x84] sm:$0xff]
      %v192 = vld [vmem:[%s165 + $0x8c] sm:$0xf]
      %v193 = vld [vmem:[%s165 + $0x90] sm:$0xff]
      %v194 = vld [vmem:[%s165 + $0x98] sm:$0xff]
      %v195 = vld [vmem:[%s165 + $0xa0] sm:$0xff]
      %v196 = vld [vmem:[%s165 + $0xa8] sm:$0xff]
      %v197 = vld [vmem:[%s165 + $0xb0] sm:$0xf]
      %v198 = vld [vmem:[%s165 + $0xb4] sm:$0xff]
      %v199 = vld [vmem:[%s165 + $0xbc] sm:$0xff]
      %v200 = vld [vmem:[%s165 + $0xc4] sm:$0xff]
      %v201 = vld [vmem:[%s165 + $0xcc] sm:$0xff]
      %v202 = vld [vmem:[%s165 + $0xd4] sm:$0xf]
      %v203 = vld [vmem:[%s165 + $0xd8] sm:$0xff]
      %v204 = vld [vmem:[%s165 + $0xe0] sm:$0xff]
      %v205 = vld [vmem:[%s165 + $0xe8] sm:$0xff]
      %v206 = vld [vmem:[%s165 + $0xf0] sm:$0xff]
      %v207 = vld [vmem:[%s165 + $0xf8] sm:$0xf]
      %v208 = vld [vmem:[%s165 + $0xfc] sm:$0xff]
      %v209 = vld [vmem:[%s165 + $0x104] sm:$0xff]
      %v210 = vld [vmem:[%s165 + $0x10c] sm:$0xff]
      %v211 = vld [vmem:[%s165 + $0x114] sm:$0xff]
      %v212 = vld [vmem:[%s165 + $0x11c] sm:$0xf]
      %v213 = vld [vmem:[%s165 + $0x120] sm:$0xff]
      %v214 = vld [vmem:[%s165 + $0x128] sm:$0xff]
      %v215 = vld [vmem:[%s165 + $0x130] sm:$0xff]
      %v216 = vld [vmem:[%s165 + $0x138] sm:$0xff]
      %v217 = vld [vmem:[%s165 + $0x140] sm:$0xf]
      %v218 = vld [vmem:[%s165 + $0x144] sm:$0xff]
      %v219 = vld [vmem:[%s165 + $0x14c] sm:$0xff]
      %v220 = vld [vmem:[%s165 + $0x154] sm:$0xff]
      %v221 = vld [vmem:[%s165 + $0x15c] sm:$0xff]
      %v222 = vld [vmem:[%s165 + $0x164] sm:$0xf]
      %v223 = vld [vmem:[%s165 + $0x168] sm:$0xff]
      %v224 = vld [vmem:[%s165 + $0x170] sm:$0xff]
      %v225 = vld [vmem:[%s165 + $0x178] sm:$0xff]
      %v226 = vld [vmem:[%s165 + $0x180] sm:$0xff]
      %v227 = vld [vmem:[%s165 + $0x188] sm:$0xf]
      %v228 = vld [vmem:[%s165 + $0x18c] sm:$0xff]
      %v229 = vld [vmem:[%s165 + $0x194] sm:$0xff]
      %v230 = vld [vmem:[%s165 + $0x19c] sm:$0xff]
      %v231 = vld [vmem:[%s165 + $0x1a4] sm:$0xff]
      %v232 = vld [vmem:[%s165 + $0x1ac] sm:$0xf]
      %v233 = vld [vmem:[%s165 + $0x1b0] sm:$0xff]
      %v234 = vld [vmem:[%s165 + $0x1b8] sm:$0xff]
      %v235 = vld [vmem:[%s165 + $0x1c0] sm:$0xff]
      %v236 = vld [vmem:[%s165 + $0x1c8] sm:$0xff]
      %v237 = vld [vmem:[%s165 + $0x1d0] sm:$0xf]
      %v238 = vld [vmem:[%s165 + $0x1d4] sm:$0xff]
      %v239 = vld [vmem:[%s165 + $0x1dc] sm:$0xff]
      %v240 = vld [vmem:[%s165 + $0x1e4] sm:$0xff]
      %v241 = vld [vmem:[%s165 + $0x1ec] sm:$0xff]
      %v242 = vld [vmem:[%s165 + $0x1f4] sm:$0xf]
      %v243 = vld [vmem:[%s165 + $0x1f8] sm:$0xff]
      %v244 = vld [vmem:[%s165 + $0x200] sm:$0xff]
      %v245 = vld [vmem:[%s165 + $0x208] sm:$0xff]
      %v246 = vld [vmem:[%s165 + $0x210] sm:$0xff]
      %v247 = vld [vmem:[%s165 + $0x218] sm:$0xf]
      %v248 = vld [vmem:[%s165 + $0x21c] sm:$0xff]
      %v249 = vld [vmem:[%s165 + $0x224] sm:$0xff]
      %v250 = vld [vmem:[%s165 + $0x22c] sm:$0xff]
      %v251 = vld [vmem:[%s165 + $0x234] sm:$0xff]
      %v252 = vld [vmem:[%s165 + $0x23c] sm:$0xf]
      %v253 = vld [vmem:[%s165 + $0x240] sm:$0xff]
      %v254 = vld [vmem:[%s165 + $0x248] sm:$0xff]
      %v255 = vld [vmem:[%s165 + $0x250] sm:$0xff]
      %v256 = vld [vmem:[%s165 + $0x258] sm:$0xff]
      %v257 = vld [vmem:[%s165 + $0x260] sm:$0xf]
      %v258 = vld [vmem:[%s165 + $0x264] sm:$0xff]
      %v259 = vld [vmem:[%s165 + $0x26c] sm:$0xff]
      %v260 = vld [vmem:[%s165 + $0x274] sm:$0xff]
      %v261 = vld [vmem:[%s165 + $0x27c] sm:$0xff]
      %v262 = vld [vmem:[%s165 + $0x284] sm:$0xf]
      %v263 = vld [vmem:[%s165 + $0x288] sm:$0xff]
      %v264 = vld [vmem:[%s165 + $0x290] sm:$0xff]
      %v265 = vld [vmem:[%s165 + $0x298] sm:$0xff]
      %v266 = vld [vmem:[%s165 + $0x2a0] sm:$0xff]
      %v267 = vld [vmem:[%s165 + $0x2a8] sm:$0xf]
      %v268 = vld [vmem:[%s165 + $0x2ac] sm:$0xff]
      %v269 = vld [vmem:[%s165 + $0x2b4] sm:$0xff]
      %v270 = vld [vmem:[%s165 + $0x2bc] sm:$0xff]
      %v271 = vld [vmem:[%s165 + $0x2c4] sm:$0xff]
      %v272 = vld [vmem:[%s165 + $0x2cc] sm:$0xf]
      %v273 = vld [vmem:[%s165 + $0x2d0] sm:$0xff]
      %v274 = vld [vmem:[%s165 + $0x2d8] sm:$0xff]
      %v275 = vld [vmem:[%s165 + $0x2e0] sm:$0xff]
      %v276 = vld [vmem:[%s165 + $0x2e8] sm:$0xff]
      %v277 = vld [vmem:[%s165 + $0x2f0] sm:$0xf]
      %v278 = vld [vmem:[%s165 + $0x2f4] sm:$0xff]
      %v279 = vld [vmem:[%s165 + $0x2fc] sm:$0xff]
      %v280 = vld [vmem:[%s165 + $0x304] sm:$0xff]
      %v281 = vld [vmem:[%s165 + $0x30c] sm:$0xff]
      %v282 = vld [vmem:[%s165 + $0x314] sm:$0xf]
      %v283 = vld [vmem:[%s165 + $0x318] sm:$0xff]
      %v284 = vld [vmem:[%s165 + $0x320] sm:$0xff]
      %v285 = vld [vmem:[%s165 + $0x328] sm:$0xff]
      %v286 = vld [vmem:[%s165 + $0x330] sm:$0xff]
      %v287 = vld [vmem:[%s165 + $0x338] sm:$0xf]
      %v288 = vld [vmem:[%s165 + $0x33c] sm:$0xff]
      %v289 = vld [vmem:[%s165 + $0x344] sm:$0xff]
      %v290 = vld [vmem:[%s165 + $0x34c] sm:$0xff]
      %v291 = vld [vmem:[%s165 + $0x354] sm:$0xff]
      %v292 = vld [vmem:[%s165 + $0x35c] sm:$0xf]
      %v293 = vld [vmem:[%s165 + $0x360] sm:$0xff]
      %v294 = vld [vmem:[%s165 + $0x368] sm:$0xff]
      %v295 = vld [vmem:[%s165 + $0x370] sm:$0xff]
      %v296 = vld [vmem:[%s165 + $0x378] sm:$0xff]
      %v297 = vld [vmem:[%s165 + $0x380] sm:$0xf]
      %v299 = vunpack.c.l.b16 %v172
      %v300 = vunpack.c.h.b16 %v172
      %v301 = vpack.c.b16 %v299, %v299
      %v302 = vpack.c.b16 %v300, %v300
      %v429 = vunpack.c.l.b16 %v173
      %v430 = vunpack.c.h.b16 %v173
      %v431 = vunpack.c.l.b16 %v174
      %v432 = vunpack.c.h.b16 %v174
      %v433 = vunpack.c.l.b16 %v175
      %v434 = vunpack.c.h.b16 %v175
      %v435 = vunpack.c.l.b16 %v176
      %v436 = vunpack.c.h.b16 %v176
      %v437 = vunpack.c.l.b16 %v177
      %v438 = vunpack.c.l.b16 %v178
      %v439 = vunpack.c.h.b16 %v178
      %v440 = vunpack.c.l.b16 %v179
      %v441 = vunpack.c.h.b16 %v179
      %v442 = vunpack.c.l.b16 %v180
      %v443 = vunpack.c.h.b16 %v180
      %v444 = vunpack.c.l.b16 %v181
      %v445 = vunpack.c.h.b16 %v181
      %v446 = vunpack.c.l.b16 %v182
      %v447 = vunpack.c.l.b16 %v183
      %v448 = vunpack.c.h.b16 %v183
      %v449 = vunpack.c.l.b16 %v184
      %v450 = vunpack.c.h.b16 %v184
      %v451 = vunpack.c.l.b16 %v185
      %v452 = vunpack.c.h.b16 %v185
      %v453 = vunpack.c.l.b16 %v186
      %v454 = vunpack.c.h.b16 %v186
      %v455 = vunpack.c.l.b16 %v187
      %v456 = vunpack.c.l.b16 %v188
      %v457 = vunpack.c.h.b16 %v188
      %v458 = vunpack.c.l.b16 %v189
      %v459 = vunpack.c.h.b16 %v189
      %v460 = vunpack.c.l.b16 %v190
      %v461 = vunpack.c.h.b16 %v190
      %v462 = vunpack.c.l.b16 %v191
      %v463 = vunpack.c.h.b16 %v191
      %v464 = vunpack.c.l.b16 %v192
      %v465 = vunpack.c.l.b16 %v193
      %v466 = vunpack.c.h.b16 %v193
      %v467 = vunpack.c.l.b16 %v194
      %v468 = vunpack.c.h.b16 %v194
      %v469 = vunpack.c.l.b16 %v195
      %v470 = vunpack.c.h.b16 %v195
      %v471 = vunpack.c.l.b16 %v196
      %v472 = vunpack.c.h.b16 %v196
      %v473 = vunpack.c.l.b16 %v197
      %v474 = vunpack.c.l.b16 %v198
      %v475 = vunpack.c.h.b16 %v198
      %v476 = vunpack.c.l.b16 %v199
      %v477 = vunpack.c.h.b16 %v199
      %v478 = vunpack.c.l.b16 %v200
      %v479 = vunpack.c.h.b16 %v200
      %v480 = vunpack.c.l.b16 %v201
      %v481 = vunpack.c.h.b16 %v201
      %v482 = vunpack.c.l.b16 %v202
      %v483 = vunpack.c.l.b16 %v203
      %v484 = vunpack.c.h.b16 %v203
      %v485 = vunpack.c.l.b16 %v204
      %v486 = vunpack.c.h.b16 %v204
      %v487 = vunpack.c.l.b16 %v205
      %v488 = vunpack.c.h.b16 %v205
      %v489 = vunpack.c.l.b16 %v206
      %v490 = vunpack.c.h.b16 %v206
      %v491 = vunpack.c.l.b16 %v207
      %v492 = vunpack.c.l.b16 %v208
      %v493 = vunpack.c.h.b16 %v208
      %v494 = vunpack.c.l.b16 %v209
      %v495 = vunpack.c.h.b16 %v209
      %v496 = vunpack.c.l.b16 %v210
      %v497 = vunpack.c.h.b16 %v210
      %v498 = vunpack.c.l.b16 %v211
      %v499 = vunpack.c.h.b16 %v211
      %v500 = vunpack.c.l.b16 %v212
      %v501 = vunpack.c.l.b16 %v213
      %v502 = vunpack.c.h.b16 %v213
      %v503 = vunpack.c.l.b16 %v214
      %v504 = vunpack.c.h.b16 %v214
      %v505 = vunpack.c.l.b16 %v215
      %v506 = vunpack.c.h.b16 %v215
      %v507 = vunpack.c.l.b16 %v216
      %v508 = vunpack.c.h.b16 %v216
      %v509 = vunpack.c.l.b16 %v217
      %v510 = vunpack.c.l.b16 %v218
      %v511 = vunpack.c.h.b16 %v218
      %v512 = vunpack.c.l.b16 %v219
      %v513 = vunpack.c.h.b16 %v219
      %v514 = vunpack.c.l.b16 %v220
      %v515 = vunpack.c.h.b16 %v220
      %v516 = vunpack.c.l.b16 %v221
      %v517 = vunpack.c.h.b16 %v221
      %v518 = vunpack.c.l.b16 %v222
      %v519 = vunpack.c.l.b16 %v223
      %v520 = vunpack.c.h.b16 %v223
      %v521 = vunpack.c.l.b16 %v224
      %v522 = vunpack.c.h.b16 %v224
      %v523 = vunpack.c.l.b16 %v225
      %v524 = vunpack.c.h.b16 %v225
      %v525 = vunpack.c.l.b16 %v226
      %v526 = vunpack.c.h.b16 %v226
      %v527 = vunpack.c.l.b16 %v227
      %v528 = vunpack.c.l.b16 %v228
      %v529 = vunpack.c.h.b16 %v228
      %v530 = vunpack.c.l.b16 %v229
      %v531 = vunpack.c.h.b16 %v229
      %v532 = vunpack.c.l.b16 %v230
      %v533 = vunpack.c.h.b16 %v230
      %v534 = vunpack.c.l.b16 %v231
      %v535 = vunpack.c.h.b16 %v231
      %v536 = vunpack.c.l.b16 %v232
      %v537 = vunpack.c.l.b16 %v233
      %v538 = vunpack.c.h.b16 %v233
      %v539 = vunpack.c.l.b16 %v234
      %v540 = vunpack.c.h.b16 %v234
      %v541 = vunpack.c.l.b16 %v235
      %v542 = vunpack.c.h.b16 %v235
      %v543 = vunpack.c.l.b16 %v236
      %v544 = vunpack.c.h.b16 %v236
      %v545 = vunpack.c.l.b16 %v237
      %v546 = vunpack.c.l.b16 %v238
      %v547 = vunpack.c.h.b16 %v238
      %v548 = vunpack.c.l.b16 %v239
      %v549 = vunpack.c.h.b16 %v239
      %v550 = vunpack.c.l.b16 %v240
      %v551 = vunpack.c.h.b16 %v240
      %v552 = vunpack.c.l.b16 %v241
      %v553 = vunpack.c.h.b16 %v241
      %v554 = vunpack.c.l.b16 %v242
      %v555 = vunpack.c.l.b16 %v243
      %v556 = vunpack.c.h.b16 %v243
      %v557 = vunpack.c.l.b16 %v244
      %v558 = vunpack.c.h.b16 %v244
      %v559 = vunpack.c.l.b16 %v245
      %v560 = vunpack.c.h.b16 %v245
      %v561 = vunpack.c.l.b16 %v246
      %v562 = vunpack.c.h.b16 %v246
      %v563 = vunpack.c.l.b16 %v247
      %v564 = vunpack.c.l.b16 %v248
      %v565 = vunpack.c.h.b16 %v248
      %v566 = vunpack.c.l.b16 %v249
      %v567 = vunpack.c.h.b16 %v249
      %v568 = vunpack.c.l.b16 %v250
      %v569 = vunpack.c.h.b16 %v250
      %v570 = vunpack.c.l.b16 %v251
      %v571 = vunpack.c.h.b16 %v251
      %v572 = vunpack.c.l.b16 %v252
      %v573 = vunpack.c.l.b16 %v253
      %v574 = vunpack.c.h.b16 %v253
      %v575 = vunpack.c.l.b16 %v254
      %v576 = vunpack.c.h.b16 %v254
      %v577 = vunpack.c.l.b16 %v255
      %v578 = vunpack.c.h.b16 %v255
      %v579 = vunpack.c.l.b16 %v256
      %v580 = vunpack.c.h.b16 %v256
      %v581 = vunpack.c.l.b16 %v257
      %v582 = vunpack.c.l.b16 %v258
      %v583 = vunpack.c.h.b16 %v258
      %v584 = vunpack.c.l.b16 %v259
      %v585 = vunpack.c.h.b16 %v259
      %v586 = vunpack.c.l.b16 %v260
      %v587 = vunpack.c.h.b16 %v260
      %v588 = vunpack.c.l.b16 %v261
      %v589 = vunpack.c.h.b16 %v261
      %v590 = vunpack.c.l.b16 %v262
      %v591 = vunpack.c.l.b16 %v263
      %v592 = vunpack.c.h.b16 %v263
      %v593 = vunpack.c.l.b16 %v264
      %v594 = vunpack.c.h.b16 %v264
      %v595 = vunpack.c.l.b16 %v265
      %v596 = vunpack.c.h.b16 %v265
      %v597 = vunpack.c.l.b16 %v266
      %v598 = vunpack.c.h.b16 %v266
      %v599 = vunpack.c.l.b16 %v267
      %v600 = vunpack.c.l.b16 %v268
      %v601 = vunpack.c.h.b16 %v268
      %v602 = vunpack.c.l.b16 %v269
      %v603 = vunpack.c.h.b16 %v269
      %v604 = vunpack.c.l.b16 %v270
      %v605 = vunpack.c.h.b16 %v270
      %v606 = vunpack.c.l.b16 %v271
      %v607 = vunpack.c.h.b16 %v271
      %v608 = vunpack.c.l.b16 %v272
      %v609 = vunpack.c.l.b16 %v273
      %v610 = vunpack.c.h.b16 %v273
      %v611 = vunpack.c.l.b16 %v274
      %v612 = vunpack.c.h.b16 %v274
      %v613 = vunpack.c.l.b16 %v275
      %v614 = vunpack.c.h.b16 %v275
      %v615 = vunpack.c.l.b16 %v276
      %v616 = vunpack.c.h.b16 %v276
      %v617 = vunpack.c.l.b16 %v277
      %v618 = vunpack.c.l.b16 %v278
      %v619 = vunpack.c.h.b16 %v278
      %v620 = vunpack.c.l.b16 %v279
      %v621 = vunpack.c.h.b16 %v279
      %v622 = vunpack.c.l.b16 %v280
      %v623 = vunpack.c.h.b16 %v280
      %v624 = vunpack.c.l.b16 %v281
      %v625 = vunpack.c.h.b16 %v281
      %v626 = vunpack.c.l.b16 %v282
      %v627 = vunpack.c.l.b16 %v283
      %v628 = vunpack.c.h.b16 %v283
      %v629 = vunpack.c.l.b16 %v284
      %v630 = vunpack.c.h.b16 %v284
      %v631 = vunpack.c.l.b16 %v285
      %v632 = vunpack.c.h.b16 %v285
      %v633 = vunpack.c.l.b16 %v286
      %v634 = vunpack.c.h.b16 %v286
      %v635 = vunpack.c.l.b16 %v287
      %v636 = vunpack.c.l.b16 %v288
      %v637 = vunpack.c.h.b16 %v288
      %v638 = vunpack.c.l.b16 %v289
      %v639 = vunpack.c.h.b16 %v289
      %v640 = vunpack.c.l.b16 %v290
      %v641 = vunpack.c.h.b16 %v290
      %v642 = vunpack.c.l.b16 %v291
      %v643 = vunpack.c.h.b16 %v291
      %v644 = vunpack.c.l.b16 %v292
      %v645 = vunpack.c.l.b16 %v293
      %v646 = vunpack.c.h.b16 %v293
      %v647 = vunpack.c.l.b16 %v294
      %v648 = vunpack.c.h.b16 %v294
      %v649 = vunpack.c.l.b16 %v295
      %v650 = vunpack.c.h.b16 %v295
      %v651 = vunpack.c.l.b16 %v296
      %v652 = vunpack.c.h.b16 %v296
      %v653 = vunpack.c.l.b16 %v297
      %v654 = vpack.c.b16 %v438, %v429
      %v655 = vpack.c.b16 %v439, %v430
      %v656 = vpack.c.b16 %v440, %v431
      %v657 = vpack.c.b16 %v441, %v432
      %v658 = vpack.c.b16 %v442, %v433
      %v659 = vpack.c.b16 %v443, %v434
      %v660 = vpack.c.b16 %v444, %v435
      %v661 = vpack.c.b16 %v445, %v436
      %v662 = vpack.c.b16 %v446, %v437
      %v663 = vpack.c.b16 %v456, %v447
      %v664 = vpack.c.b16 %v457, %v448
      %v665 = vpack.c.b16 %v458, %v449
      %v666 = vpack.c.b16 %v459, %v450
      %v667 = vpack.c.b16 %v460, %v451
      %v668 = vpack.c.b16 %v461, %v452
      %v669 = vpack.c.b16 %v462, %v453
      %v670 = vpack.c.b16 %v463, %v454
      %v671 = vpack.c.b16 %v464, %v455
      %v672 = vpack.c.b16 %v474, %v465
      %v673 = vpack.c.b16 %v475, %v466
      %v674 = vpack.c.b16 %v476, %v467
      %v675 = vpack.c.b16 %v477, %v468
      %v676 = vpack.c.b16 %v478, %v469
      %v677 = vpack.c.b16 %v479, %v470
      %v678 = vpack.c.b16 %v480, %v471
      %v679 = vpack.c.b16 %v481, %v472
      %v680 = vpack.c.b16 %v482, %v473
      %v681 = vpack.c.b16 %v492, %v483
      %v682 = vpack.c.b16 %v493, %v484
      %v683 = vpack.c.b16 %v494, %v485
      %v684 = vpack.c.b16 %v495, %v486
      %v685 = vpack.c.b16 %v496, %v487
      %v686 = vpack.c.b16 %v497, %v488
      %v687 = vpack.c.b16 %v498, %v489
      %v688 = vpack.c.b16 %v499, %v490
      %v689 = vpack.c.b16 %v500, %v491
      %v690 = vpack.c.b16 %v510, %v501
      %v691 = vpack.c.b16 %v511, %v502
      %v692 = vpack.c.b16 %v512, %v503
      %v693 = vpack.c.b16 %v513, %v504
      %v694 = vpack.c.b16 %v514, %v505
      %v695 = vpack.c.b16 %v515, %v506
      %v696 = vpack.c.b16 %v516, %v507
      %v697 = vpack.c.b16 %v517, %v508
      %v698 = vpack.c.b16 %v518, %v509
      %v699 = vpack.c.b16 %v528, %v519
      %v700 = vpack.c.b16 %v529, %v520
      %v701 = vpack.c.b16 %v530, %v521
      %v702 = vpack.c.b16 %v531, %v522
      %v703 = vpack.c.b16 %v532, %v523
      %v704 = vpack.c.b16 %v533, %v524
      %v705 = vpack.c.b16 %v534, %v525
      %v706 = vpack.c.b16 %v535, %v526
      %v707 = vpack.c.b16 %v536, %v527
      %v708 = vpack.c.b16 %v546, %v537
      %v709 = vpack.c.b16 %v547, %v538
      %v710 = vpack.c.b16 %v548, %v539
      %v711 = vpack.c.b16 %v549, %v540
      %v712 = vpack.c.b16 %v550, %v541
      %v713 = vpack.c.b16 %v551, %v542
      %v714 = vpack.c.b16 %v552, %v543
      %v715 = vpack.c.b16 %v553, %v544
      %v716 = vpack.c.b16 %v554, %v545
      %v717 = vpack.c.b16 %v564, %v555
      %v718 = vpack.c.b16 %v565, %v556
      %v719 = vpack.c.b16 %v566, %v557
      %v720 = vpack.c.b16 %v567, %v558
      %v721 = vpack.c.b16 %v568, %v559
      %v722 = vpack.c.b16 %v569, %v560
      %v723 = vpack.c.b16 %v570, %v561
      %v724 = vpack.c.b16 %v571, %v562
      %v725 = vpack.c.b16 %v572, %v563
      %v726 = vpack.c.b16 %v582, %v573
      %v727 = vpack.c.b16 %v583, %v574
      %v728 = vpack.c.b16 %v584, %v575
      %v729 = vpack.c.b16 %v585, %v576
      %v730 = vpack.c.b16 %v586, %v577
      %v731 = vpack.c.b16 %v587, %v578
      %v732 = vpack.c.b16 %v588, %v579
      %v733 = vpack.c.b16 %v589, %v580
      %v734 = vpack.c.b16 %v590, %v581
      %v735 = vpack.c.b16 %v600, %v591
      %v736 = vpack.c.b16 %v601, %v592
      %v737 = vpack.c.b16 %v602, %v593
      %v738 = vpack.c.b16 %v603, %v594
      %v739 = vpack.c.b16 %v604, %v595
      %v740 = vpack.c.b16 %v605, %v596
      %v741 = vpack.c.b16 %v606, %v597
      %v742 = vpack.c.b16 %v607, %v598
      %v743 = vpack.c.b16 %v608, %v599
      %v744 = vpack.c.b16 %v618, %v609
      %v745 = vpack.c.b16 %v619, %v610
      %v746 = vpack.c.b16 %v620, %v611
      %v747 = vpack.c.b16 %v621, %v612
      %v748 = vpack.c.b16 %v622, %v613
      %v749 = vpack.c.b16 %v623, %v614
      %v750 = vpack.c.b16 %v624, %v615
      %v751 = vpack.c.b16 %v625, %v616
      %v752 = vpack.c.b16 %v626, %v617
      %v753 = vpack.c.b16 %v636, %v627
      %v754 = vpack.c.b16 %v637, %v628
      %v755 = vpack.c.b16 %v638, %v629
      %v756 = vpack.c.b16 %v639, %v630
      %v757 = vpack.c.b16 %v640, %v631
      %v758 = vpack.c.b16 %v641, %v632
      %v759 = vpack.c.b16 %v642, %v633
      %v760 = vpack.c.b16 %v643, %v634
      %v761 = vpack.c.b16 %v644, %v635
      %v762 = vpack.c.b16 %v645, %v645
      %v763 = vpack.c.b16 %v646, %v646
      %v764 = vpack.c.b16 %v647, %v647
      %v765 = vpack.c.b16 %v648, %v648
      %v766 = vpack.c.b16 %v649, %v649
      %v767 = vpack.c.b16 %v650, %v650
      %v768 = vpack.c.b16 %v651, %v651
      %v769 = vpack.c.b16 %v652, %v652
      %v770 = vpack.c.b16 %v653, %v653
      %vm879 = vcmask 588800
      %v881 = vsel %vm879, %v302, 0
      %vm883 = vcmask 1043456
      %v885 = vsel %vm883, %v762, 0
      %v888 = vsel %vm883, %v763, 0
      %v891 = vsel %vm883, %v764, 0
      %v894 = vsel %vm883, %v765, 0
      %v897 = vsel %vm883, %v766, 0
      %v900 = vsel %vm883, %v767, 0
      %v903 = vsel %vm883, %v768, 0
      %v906 = vsel %vm883, %v769, 0
      %v909 = vsel %vm883, %v770, 0
      %911 = vmatprep.subr.bf16.mxu0 %v655
      %912 = vmatpush1.bf16.msra.mxu0 %v654
      %913 = vmatprep.subr.bf16.mxu0 %v664
      %914 = vmatpush1.bf16.msra.mxu0 %v663
      %915 = vmatprep.subr.bf16.mxu0 %v673
      %916 = vmatpush1.bf16.msra.mxu0 %v672
      %917 = vmatprep.subr.bf16.mxu0 %v682
      %918 = vmatpush1.bf16.msra.mxu0 %v681
      %919 = vmatprep.subr.bf16.mxu0 %v691
      %920 = vmatpush1.bf16.msra.mxu0 %v690
      %921 = vmatprep.subr.bf16.mxu0 %v700
      %922 = vmatpush1.bf16.msra.mxu0 %v699
      %923 = vmatprep.subr.bf16.mxu0 %v709
      %924 = vmatpush1.bf16.msra.mxu0 %v708
      %925 = vmatprep.subr.bf16.mxu0 %v718
      %926 = vmatpush1.bf16.msra.mxu0 %v717
      %927 = vmatprep.subr.bf16.mxu0 %v727
      %928 = vmatpush1.bf16.msra.mxu0 %v726
      %929 = vmatprep.subr.bf16.mxu0 %v736
      %930 = vmatpush1.bf16.msra.mxu0 %v735
      %931 = vmatprep.subr.bf16.mxu0 %v745
      %932 = vmatpush1.bf16.msra.mxu0 %v744
      %933 = vmatprep.subr.bf16.mxu0 %v754
      %934 = vmatpush1.bf16.msra.mxu0 %v753
      %935 = vmatprep.subr.bf16.mxu0 %v888
      %936 = vmatpush1.bf16.msra.mxu0 %v885
      %937 = vmatprep.subr.bf16.mxu0 0
      %938 = vmatpush1.bf16.msra.mxu0 0
      %939 = vmatprep.subr.bf16.mxu0 0
      %940 = vmatpush1.bf16.msra.mxu0 0
      %941 = vmatprep.subr.bf16.mxu0 0
      %942 = vmatpush1.bf16.msra.mxu0 0
      %943 = vmatprep.mubr.bf16.mxu0 %v881
      %944 = vmatmul.mubr.bf16.gmra.mrb[0].mxu0 %v301
      %v945 = vpop.f32.mrb[0].mxu0
      %v946 = vadd.f32 0.0, %v945
      %v947 = vpop.f32.mrb[0].mxu0
      %v948 = vadd.f32 0.0, %v947
      %v949 = vpop.f32.mrb[0].mxu0
      %v950 = vpop.f32.mrb[0].mxu0
      %951 = vdwg.mxu0
      %952 = vmatprep.subr.bf16.mxu0 %v657
      %953 = vmatpush1.bf16.msra.mxu0 %v656
      %954 = vmatprep.subr.bf16.mxu0 %v666
      %955 = vmatpush1.bf16.msra.mxu0 %v665
      %956 = vmatprep.subr.bf16.mxu0 %v675
      %957 = vmatpush1.bf16.msra.mxu0 %v674
      %958 = vmatprep.subr.bf16.mxu0 %v684
      %959 = vmatpush1.bf16.msra.mxu0 %v683
      %960 = vmatprep.subr.bf16.mxu0 %v693
      %961 = vmatpush1.bf16.msra.mxu0 %v692
      %962 = vmatprep.subr.bf16.mxu0 %v702
      %963 = vmatpush1.bf16.msra.mxu0 %v701
      %964 = vmatprep.subr.bf16.mxu0 %v711
      %965 = vmatpush1.bf16.msra.mxu0 %v710
      %966 = vmatprep.subr.bf16.mxu0 %v720
      %967 = vmatpush1.bf16.msra.mxu0 %v719
      %968 = vmatprep.subr.bf16.mxu0 %v729
      %969 = vmatpush1.bf16.msra.mxu0 %v728
      %970 = vmatprep.subr.bf16.mxu0 %v738
      %971 = vmatpush1.bf16.msra.mxu0 %v737
      %972 = vmatprep.subr.bf16.mxu0 %v747
      %973 = vmatpush1.bf16.msra.mxu0 %v746
      %974 = vmatprep.subr.bf16.mxu0 %v756
      %975 = vmatpush1.bf16.msra.mxu0 %v755
      %976 = vmatprep.subr.bf16.mxu0 %v894
      %977 = vmatpush1.bf16.msra.mxu0 %v891
      %978 = vmatprep.subr.bf16.mxu0 0
      %979 = vmatpush1.bf16.msra.mxu0 0
      %980 = vmatprep.subr.bf16.mxu0 0
      %981 = vmatpush1.bf16.msra.mxu0 0
      %982 = vmatprep.subr.bf16.mxu0 0
      %983 = vmatpush1.bf16.msra.mxu0 0
      %984 = vmatprep.mubr.bf16.mxu0 %v881
      %985 = vmatmul.mubr.bf16.gmra.mrb[0].mxu0 %v301
      %v986 = vpop.f32.mrb[0].mxu0
      %v987 = vadd.f32 0.0, %v986
      %v988 = vpop.f32.mrb[0].mxu0
      %v989 = vadd.f32 0.0, %v988
      %v990 = vpop.f32.mrb[0].mxu0
      %v991 = vpop.f32.mrb[0].mxu0
      %992 = vdwg.mxu0
      %993 = vmatprep.subr.bf16.mxu0 %v659
      %994 = vmatpush1.bf16.msra.mxu0 %v658
      %995 = vmatprep.subr.bf16.mxu0 %v668
      %996 = vmatpush1.bf16.msra.mxu0 %v667
      %997 = vmatprep.subr.bf16.mxu0 %v677
      %998 = vmatpush1.bf16.msra.mxu0 %v676
      %999 = vmatprep.subr.bf16.mxu0 %v686
      %1000 = vmatpush1.bf16.msra.mxu0 %v685
      %1001 = vmatprep.subr.bf16.mxu0 %v695
      %1002 = vmatpush1.bf16.msra.mxu0 %v694
      %1003 = vmatprep.subr.bf16.mxu0 %v704
      %1004 = vmatpush1.bf16.msra.mxu0 %v703
      %1005 = vmatprep.subr.bf16.mxu0 %v713
      %1006 = vmatpush1.bf16.msra.mxu0 %v712
      %1007 = vmatprep.subr.bf16.mxu0 %v722
      %1008 = vmatpush1.bf16.msra.mxu0 %v721
      %1009 = vmatprep.subr.bf16.mxu0 %v731
      %1010 = vmatpush1.bf16.msra.mxu0 %v730
      %1011 = vmatprep.subr.bf16.mxu0 %v740
      %1012 = vmatpush1.bf16.msra.mxu0 %v739
      %1013 = vmatprep.subr.bf16.mxu0 %v749
      %1014 = vmatpush1.bf16.msra.mxu0 %v748
      %1015 = vmatprep.subr.bf16.mxu0 %v758
      %1016 = vmatpush1.bf16.msra.mxu0 %v757
      %1017 = vmatprep.subr.bf16.mxu0 %v900
      %1018 = vmatpush1.bf16.msra.mxu0 %v897
      %1019 = vmatprep.subr.bf16.mxu0 0
      %1020 = vmatpush1.bf16.msra.mxu0 0
      %1021 = vmatprep.subr.bf16.mxu0 0
      %1022 = vmatpush1.bf16.msra.mxu0 0
      %1023 = vmatprep.subr.bf16.mxu0 0
      %1024 = vmatpush1.bf16.msra.mxu0 0
      %1025 = vmatprep.mubr.bf16.mxu0 %v881
      %1026 = vmatmul.mubr.bf16.gmra.mrb[0].mxu0 %v301
      %v1027 = vpop.f32.mrb[0].mxu0
      %v1028 = vadd.f32 0.0, %v1027
      %v1029 = vpop.f32.mrb[0].mxu0
      %v1030 = vadd.f32 0.0, %v1029
      %v1031 = vpop.f32.mrb[0].mxu0
      %v1032 = vpop.f32.mrb[0].mxu0
      %1033 = vdwg.mxu0
      %1034 = vmatprep.subr.bf16.mxu0 %v661
      %1035 = vmatpush1.bf16.msra.mxu0 %v660
      %1036 = vmatprep.subr.bf16.mxu0 %v670
      %1037 = vmatpush1.bf16.msra.mxu0 %v669
      %1038 = vmatprep.subr.bf16.mxu0 %v679
      %1039 = vmatpush1.bf16.msra.mxu0 %v678
      %1040 = vmatprep.subr.bf16.mxu0 %v688
      %1041 = vmatpush1.bf16.msra.mxu0 %v687
      %1042 = vmatprep.subr.bf16.mxu0 %v697
      %1043 = vmatpush1.bf16.msra.mxu0 %v696
      %1044 = vmatprep.subr.bf16.mxu0 %v706
      %1045 = vmatpush1.bf16.msra.mxu0 %v705
      %1046 = vmatprep.subr.bf16.mxu0 %v715
      %1047 = vmatpush1.bf16.msra.mxu0 %v714
      %1048 = vmatprep.subr.bf16.mxu0 %v724
      %1049 = vmatpush1.bf16.msra.mxu0 %v723
      %1050 = vmatprep.subr.bf16.mxu0 %v733
      %1051 = vmatpush1.bf16.msra.mxu0 %v732
      %1052 = vmatprep.subr.bf16.mxu0 %v742
      %1053 = vmatpush1.bf16.msra.mxu0 %v741
      %1054 = vmatprep.subr.bf16.mxu0 %v751
      %1055 = vmatpush1.bf16.msra.mxu0 %v750
      %1056 = vmatprep.subr.bf16.mxu0 %v760
      %1057 = vmatpush1.bf16.msra.mxu0 %v759
      %1058 = vmatprep.subr.bf16.mxu0 %v906
      %1059 = vmatpush1.bf16.msra.mxu0 %v903
      %1060 = vmatprep.subr.bf16.mxu0 0
      %1061 = vmatpush1.bf16.msra.mxu0 0
      %1062 = vmatprep.subr.bf16.mxu0 0
      %1063 = vmatpush1.bf16.msra.mxu0 0
      %1064 = vmatprep.subr.bf16.mxu0 0
      %1065 = vmatpush1.bf16.msra.mxu0 0
      %1066 = vmatprep.mubr.bf16.mxu0 %v881
      %1067 = vmatmul.mubr.bf16.gmra.mrb[0].mxu0 %v301
      %v1068 = vpop.f32.mrb[0].mxu0
      %v1069 = vadd.f32 0.0, %v1068
      %v1070 = vpop.f32.mrb[0].mxu0
      %v1071 = vadd.f32 0.0, %v1070
      %v1072 = vpop.f32.mrb[0].mxu0
      %v1073 = vpop.f32.mrb[0].mxu0
      %1074 = vdwg.mxu0
      %1075 = vmatprep.subr.bf16.mxu0 0
      %1076 = vmatpush1.bf16.msra.mxu0 %v662
      %1077 = vmatprep.subr.bf16.mxu0 0
      %1078 = vmatpush1.bf16.msra.mxu0 %v671
      %1079 = vmatprep.subr.bf16.mxu0 0
      %1080 = vmatpush1.bf16.msra.mxu0 %v680
      %1081 = vmatprep.subr.bf16.mxu0 0
      %1082 = vmatpush1.bf16.msra.mxu0 %v689
      %1083 = vmatprep.subr.bf16.mxu0 0
      %1084 = vmatpush1.bf16.msra.mxu0 %v698
      %1085 = vmatprep.subr.bf16.mxu0 0
      %1086 = vmatpush1.bf16.msra.mxu0 %v707
      %1087 = vmatprep.subr.bf16.mxu0 0
      %1088 = vmatpush1.bf16.msra.mxu0 %v716
      %1089 = vmatprep.subr.bf16.mxu0 0
      %1090 = vmatpush1.bf16.msra.mxu0 %v725
      %1091 = vmatprep.subr.bf16.mxu0 0
      %1092 = vmatpush1.bf16.msra.mxu0 %v734
      %1093 = vmatprep.subr.bf16.mxu0 0
      %1094 = vmatpush1.bf16.msra.mxu0 %v743
      %1095 = vmatprep.subr.bf16.mxu0 0
      %1096 = vmatpush1.bf16.msra.mxu0 %v752
      %1097 = vmatprep.subr.bf16.mxu0 0
      %1098 = vmatpush1.bf16.msra.mxu0 %v761
      %1099 = vmatprep.subr.bf16.mxu0 0
      %1100 = vmatpush1.bf16.msra.mxu0 %v909
      %1101 = vmatprep.subr.bf16.mxu0 0
      %1102 = vmatpush1.bf16.msra.mxu0 0
      %1103 = vmatprep.subr.bf16.mxu0 0
      %1104 = vmatpush1.bf16.msra.mxu0 0
      %1105 = vmatprep.subr.bf16.mxu0 0
      %1106 = vmatpush1.bf16.msra.mxu0 0
      %1107 = vmatprep.mubr.bf16.mxu0 %v881
      %1108 = vmatmul.mubr.bf16.gmra.mrb[0].mxu0 %v301
      %v1109 = vpop.f32.mrb[0].mxu0
      %v1110 = vadd.f32 0.0, %v1109
      %v1111 = vpop.f32.mrb[0].mxu0
      %v1112 = vpop.f32.mrb[0].mxu0
      %v1113 = vpop.f32.mrb[0].mxu0
      %1114 = vdwg.mxu0
      %s1115 = scalar_lea.vmem %s165, 900
      %v1116 = vld [vmem:[%s1115] sm:$0xff]
      %v1117 = vld [vmem:[%s1115 + $0x8] sm:$0xff]
      %v1118 = vld [vmem:[%s1115 + $0x10] sm:$0xff]
      %v1119 = vld [vmem:[%s1115 + $0x18] sm:$0xff]
      %v1120 = vld [vmem:[%s1115 + $0x20] sm:$0xf]
      %v1121 = vld [vmem:[%s1115 + $0x24] sm:$0xff]
      %v1122 = vld [vmem:[%s1115 + $0x2c] sm:$0xff]
      %v1123 = vld [vmem:[%s1115 + $0x34] sm:$0xff]
      %v1124 = vld [vmem:[%s1115 + $0x3c] sm:$0xff]
      %v1125 = vld [vmem:[%s1115 + $0x44] sm:$0xf]
      %v1126 = vld [vmem:[%s1115 + $0x48] sm:$0xff]
      %v1127 = vld [vmem:[%s1115 + $0x50] sm:$0xff]
      %v1128 = vld [vmem:[%s1115 + $0x58] sm:$0xff]
      %v1129 = vld [vmem:[%s1115 + $0x60] sm:$0xff]
      %v1130 = vld [vmem:[%s1115 + $0x68] sm:$0xf]
      %v1131 = vld [vmem:[%s1115 + $0x6c] sm:$0xff]
      %v1132 = vld [vmem:[%s1115 + $0x74] sm:$0xff]
      %v1133 = vld [vmem:[%s1115 + $0x7c] sm:$0xff]
      %v1134 = vld [vmem:[%s1115 + $0x84] sm:$0xff]
      %v1135 = vld [vmem:[%s1115 + $0x8c] sm:$0xf]
      %v1136 = vld [vmem:[%s1115 + $0x90] sm:$0xff]
      %v1137 = vld [vmem:[%s1115 + $0x98] sm:$0xff]
      %v1138 = vld [vmem:[%s1115 + $0xa0] sm:$0xff]
      %v1139 = vld [vmem:[%s1115 + $0xa8] sm:$0xff]
      %v1140 = vld [vmem:[%s1115 + $0xb0] sm:$0xf]
      %v1141 = vld [vmem:[%s1115 + $0xb4] sm:$0xff]
      %v1142 = vld [vmem:[%s1115 + $0xbc] sm:$0xff]
      %v1143 = vld [vmem:[%s1115 + $0xc4] sm:$0xff]
      %v1144 = vld [vmem:[%s1115 + $0xcc] sm:$0xff]
      %v1145 = vld [vmem:[%s1115 + $0xd4] sm:$0xf]
      %v1146 = vld [vmem:[%s1115 + $0xd8] sm:$0xff]
      %v1147 = vld [vmem:[%s1115 + $0xe0] sm:$0xff]
      %v1148 = vld [vmem:[%s1115 + $0xe8] sm:$0xff]
      %v1149 = vld [vmem:[%s1115 + $0xf0] sm:$0xff]
      %v1150 = vld [vmem:[%s1115 + $0xf8] sm:$0xf]
      %v1151 = vld [vmem:[%s1115 + $0xfc] sm:$0xff]
      %v1152 = vld [vmem:[%s1115 + $0x104] sm:$0xff]
      %v1153 = vld [vmem:[%s1115 + $0x10c] sm:$0xff]
      %v1154 = vld [vmem:[%s1115 + $0x114] sm:$0xff]
      %v1155 = vld [vmem:[%s1115 + $0x11c] sm:$0xf]
      %v1156 = vld [vmem:[%s1115 + $0x120] sm:$0xff]
      %v1157 = vld [vmem:[%s1115 + $0x128] sm:$0xff]
      %v1158 = vld [vmem:[%s1115 + $0x130] sm:$0xff]
      %v1159 = vld [vmem:[%s1115 + $0x138] sm:$0xff]
      %v1160 = vld [vmem:[%s1115 + $0x140] sm:$0xf]
      %v1161 = vld [vmem:[%s1115 + $0x144] sm:$0xff]
      %v1162 = vld [vmem:[%s1115 + $0x14c] sm:$0xff]
      %v1163 = vld [vmem:[%s1115 + $0x154] sm:$0xff]
      %v1164 = vld [vmem:[%s1115 + $0x15c] sm:$0xff]
      %v1165 = vld [vmem:[%s1115 + $0x164] sm:$0xf]
      %v1166 = vld [vmem:[%s1115 + $0x168] sm:$0xff]
      %v1167 = vld [vmem:[%s1115 + $0x170] sm:$0xff]
      %v1168 = vld [vmem:[%s1115 + $0x178] sm:$0xff]
      %v1169 = vld [vmem:[%s1115 + $0x180] sm:$0xff]
      %v1170 = vld [vmem:[%s1115 + $0x188] sm:$0xf]
      %v1171 = vld [vmem:[%s1115 + $0x18c] sm:$0xff]
      %v1172 = vld [vmem:[%s1115 + $0x194] sm:$0xff]
      %v1173 = vld [vmem:[%s1115 + $0x19c] sm:$0xff]
      %v1174 = vld [vmem:[%s1115 + $0x1a4] sm:$0xff]
      %v1175 = vld [vmem:[%s1115 + $0x1ac] sm:$0xf]
      %v1176 = vld [vmem:[%s1115 + $0x1b0] sm:$0xff]
      %v1177 = vld [vmem:[%s1115 + $0x1b8] sm:$0xff]
      %v1178 = vld [vmem:[%s1115 + $0x1c0] sm:$0xff]
      %v1179 = vld [vmem:[%s1115 + $0x1c8] sm:$0xff]
      %v1180 = vld [vmem:[%s1115 + $0x1d0] sm:$0xf]
      %v1181 = vld [vmem:[%s1115 + $0x1d4] sm:$0xff]
      %v1182 = vld [vmem:[%s1115 + $0x1dc] sm:$0xff]
      %v1183 = vld [vmem:[%s1115 + $0x1e4] sm:$0xff]
      %v1184 = vld [vmem:[%s1115 + $0x1ec] sm:$0xff]
      %v1185 = vld [vmem:[%s1115 + $0x1f4] sm:$0xf]
      %v1186 = vld [vmem:[%s1115 + $0x1f8] sm:$0xff]
      %v1187 = vld [vmem:[%s1115 + $0x200] sm:$0xff]
      %v1188 = vld [vmem:[%s1115 + $0x208] sm:$0xff]
      %v1189 = vld [vmem:[%s1115 + $0x210] sm:$0xff]
      %v1190 = vld [vmem:[%s1115 + $0x218] sm:$0xf]
      %v1191 = vld [vmem:[%s1115 + $0x21c] sm:$0xff]
      %v1192 = vld [vmem:[%s1115 + $0x224] sm:$0xff]
      %v1193 = vld [vmem:[%s1115 + $0x22c] sm:$0xff]
      %v1194 = vld [vmem:[%s1115 + $0x234] sm:$0xff]
      %v1195 = vld [vmem:[%s1115 + $0x23c] sm:$0xf]
      %v1196 = vld [vmem:[%s1115 + $0x240] sm:$0xff]
      %v1197 = vld [vmem:[%s1115 + $0x248] sm:$0xff]
      %v1198 = vld [vmem:[%s1115 + $0x250] sm:$0xff]
      %v1199 = vld [vmem:[%s1115 + $0x258] sm:$0xff]
      %v1200 = vld [vmem:[%s1115 + $0x260] sm:$0xf]
      %v1201 = vld [vmem:[%s1115 + $0x264] sm:$0xff]
      %v1202 = vld [vmem:[%s1115 + $0x26c] sm:$0xff]
      %v1203 = vld [vmem:[%s1115 + $0x274] sm:$0xff]
      %v1204 = vld [vmem:[%s1115 + $0x27c] sm:$0xff]
      %v1205 = vld [vmem:[%s1115 + $0x284] sm:$0xf]
      %v1206 = vld [vmem:[%s1115 + $0x288] sm:$0xff]
      %v1207 = vld [vmem:[%s1115 + $0x290] sm:$0xff]
      %v1208 = vld [vmem:[%s1115 + $0x298] sm:$0xff]
      %v1209 = vld [vmem:[%s1115 + $0x2a0] sm:$0xff]
      %v1210 = vld [vmem:[%s1115 + $0x2a8] sm:$0xf]
      %v1211 = vld [vmem:[%s1115 + $0x2ac] sm:$0xff]
      %v1212 = vld [vmem:[%s1115 + $0x2b4] sm:$0xff]
      %v1213 = vld [vmem:[%s1115 + $0x2bc] sm:$0xff]
      %v1214 = vld [vmem:[%s1115 + $0x2c4] sm:$0xff]
      %v1215 = vld [vmem:[%s1115 + $0x2cc] sm:$0xf]
      %v1216 = vld [vmem:[%s1115 + $0x2d0] sm:$0xff]
      %v1217 = vld [vmem:[%s1115 + $0x2d8] sm:$0xff]
      %v1218 = vld [vmem:[%s1115 + $0x2e0] sm:$0xff]
      %v1219 = vld [vmem:[%s1115 + $0x2e8] sm:$0xff]
      %v1220 = vld [vmem:[%s1115 + $0x2f0] sm:$0xf]
      %v1221 = vld [vmem:[%s1115 + $0x2f4] sm:$0xff]
      %v1222 = vld [vmem:[%s1115 + $0x2fc] sm:$0xff]
      %v1223 = vld [vmem:[%s1115 + $0x304] sm:$0xff]
      %v1224 = vld [vmem:[%s1115 + $0x30c] sm:$0xff]
      %v1225 = vld [vmem:[%s1115 + $0x314] sm:$0xf]
      %v1226 = vld [vmem:[%s1115 + $0x318] sm:$0xff]
      %v1227 = vld [vmem:[%s1115 + $0x320] sm:$0xff]
      %v1228 = vld [vmem:[%s1115 + $0x328] sm:$0xff]
      %v1229 = vld [vmem:[%s1115 + $0x330] sm:$0xff]
      %v1230 = vld [vmem:[%s1115 + $0x338] sm:$0xf]
      %v1231 = vld [vmem:[%s1115 + $0x33c] sm:$0xff]
      %v1232 = vld [vmem:[%s1115 + $0x344] sm:$0xff]
      %v1233 = vld [vmem:[%s1115 + $0x34c] sm:$0xff]
      %v1234 = vld [vmem:[%s1115 + $0x354] sm:$0xff]
      %v1235 = vld [vmem:[%s1115 + $0x35c] sm:$0xf]
      %v1236 = vld [vmem:[%s1115 + $0x360] sm:$0xff]
      %v1237 = vld [vmem:[%s1115 + $0x368] sm:$0xff]
      %v1238 = vld [vmem:[%s1115 + $0x370] sm:$0xff]
      %v1239 = vld [vmem:[%s1115 + $0x378] sm:$0xff]
      %v1240 = vld [vmem:[%s1115 + $0x380] sm:$0xf]
      %v1366 = vunpack.c.l.b16 %v1116
      %v1367 = vunpack.c.h.b16 %v1116
      %v1368 = vunpack.c.l.b16 %v1117
      %v1369 = vunpack.c.h.b16 %v1117
      %v1370 = vunpack.c.l.b16 %v1118
      %v1371 = vunpack.c.h.b16 %v1118
      %v1372 = vunpack.c.l.b16 %v1119
      %v1373 = vunpack.c.h.b16 %v1119
      %v1374 = vunpack.c.l.b16 %v1120
      %v1375 = vunpack.c.l.b16 %v1121
      %v1376 = vunpack.c.h.b16 %v1121
      %v1377 = vunpack.c.l.b16 %v1122
      %v1378 = vunpack.c.h.b16 %v1122
      %v1379 = vunpack.c.l.b16 %v1123
      %v1380 = vunpack.c.h.b16 %v1123
      %v1381 = vunpack.c.l.b16 %v1124
      %v1382 = vunpack.c.h.b16 %v1124
      %v1383 = vunpack.c.l.b16 %v1125
      %v1384 = vunpack.c.l.b16 %v1126
      %v1385 = vunpack.c.h.b16 %v1126
      %v1386 = vunpack.c.l.b16 %v1127
      %v1387 = vunpack.c.h.b16 %v1127
      %v1388 = vunpack.c.l.b16 %v1128
      %v1389 = vunpack.c.h.b16 %v1128
      %v1390 = vunpack.c.l.b16 %v1129
      %v1391 = vunpack.c.h.b16 %v1129
      %v1392 = vunpack.c.l.b16 %v1130
      %v1393 = vunpack.c.l.b16 %v1131
      %v1394 = vunpack.c.h.b16 %v1131
      %v1395 = vunpack.c.l.b16 %v1132
      %v1396 = vunpack.c.h.b16 %v1132
      %v1397 = vunpack.c.l.b16 %v1133
      %v1398 = vunpack.c.h.b16 %v1133
      %v1399 = vunpack.c.l.b16 %v1134
      %v1400 = vunpack.c.h.b16 %v1134
      %v1401 = vunpack.c.l.b16 %v1135
      %v1402 = vunpack.c.l.b16 %v1136
      %v1403 = vunpack.c.h.b16 %v1136
      %v1404 = vunpack.c.l.b16 %v1137
      %v1405 = vunpack.c.h.b16 %v1137
      %v1406 = vunpack.c.l.b16 %v1138
      %v1407 = vunpack.c.h.b16 %v1138
      %v1408 = vunpack.c.l.b16 %v1139
      %v1409 = vunpack.c.h.b16 %v1139
      %v1410 = vunpack.c.l.b16 %v1140
      %v1411 = vunpack.c.l.b16 %v1141
      %v1412 = vunpack.c.h.b16 %v1141
      %v1413 = vunpack.c.l.b16 %v1142
      %v1414 = vunpack.c.h.b16 %v1142
      %v1415 = vunpack.c.l.b16 %v1143
      %v1416 = vunpack.c.h.b16 %v1143
      %v1417 = vunpack.c.l.b16 %v1144
      %v1418 = vunpack.c.h.b16 %v1144
      %v1419 = vunpack.c.l.b16 %v1145
      %v1420 = vunpack.c.l.b16 %v1146
      %v1421 = vunpack.c.h.b16 %v1146
      %v1422 = vunpack.c.l.b16 %v1147
      %v1423 = vunpack.c.h.b16 %v1147
      %v1424 = vunpack.c.l.b16 %v1148
      %v1425 = vunpack.c.h.b16 %v1148
      %v1426 = vunpack.c.l.b16 %v1149
      %v1427 = vunpack.c.h.b16 %v1149
      %v1428 = vunpack.c.l.b16 %v1150
      %v1429 = vunpack.c.l.b16 %v1151
      %v1430 = vunpack.c.h.b16 %v1151
      %v1431 = vunpack.c.l.b16 %v1152
      %v1432 = vunpack.c.h.b16 %v1152
      %v1433 = vunpack.c.l.b16 %v1153
      %v1434 = vunpack.c.h.b16 %v1153
      %v1435 = vunpack.c.l.b16 %v1154
      %v1436 = vunpack.c.h.b16 %v1154
      %v1437 = vunpack.c.l.b16 %v1155
      %v1438 = vunpack.c.l.b16 %v1156
      %v1439 = vunpack.c.h.b16 %v1156
      %v1440 = vunpack.c.l.b16 %v1157
      %v1441 = vunpack.c.h.b16 %v1157
      %v1442 = vunpack.c.l.b16 %v1158
      %v1443 = vunpack.c.h.b16 %v1158
      %v1444 = vunpack.c.l.b16 %v1159
      %v1445 = vunpack.c.h.b16 %v1159
      %v1446 = vunpack.c.l.b16 %v1160
      %v1447 = vunpack.c.l.b16 %v1161
      %v1448 = vunpack.c.h.b16 %v1161
      %v1449 = vunpack.c.l.b16 %v1162
      %v1450 = vunpack.c.h.b16 %v1162
      %v1451 = vunpack.c.l.b16 %v1163
      %v1452 = vunpack.c.h.b16 %v1163
      %v1453 = vunpack.c.l.b16 %v1164
      %v1454 = vunpack.c.h.b16 %v1164
      %v1455 = vunpack.c.l.b16 %v1165
      %v1456 = vunpack.c.l.b16 %v1166
      %v1457 = vunpack.c.h.b16 %v1166
      %v1458 = vunpack.c.l.b16 %v1167
      %v1459 = vunpack.c.h.b16 %v1167
      %v1460 = vunpack.c.l.b16 %v1168
      %v1461 = vunpack.c.h.b16 %v1168
      %v1462 = vunpack.c.l.b16 %v1169
      %v1463 = vunpack.c.h.b16 %v1169
      %v1464 = vunpack.c.l.b16 %v1170
      %v1465 = vunpack.c.l.b16 %v1171
      %v1466 = vunpack.c.h.b16 %v1171
      %v1467 = vunpack.c.l.b16 %v1172
      %v1468 = vunpack.c.h.b16 %v1172
      %v1469 = vunpack.c.l.b16 %v1173
      %v1470 = vunpack.c.h.b16 %v1173
      %v1471 = vunpack.c.l.b16 %v1174
      %v1472 = vunpack.c.h.b16 %v1174
      %v1473 = vunpack.c.l.b16 %v1175
      %v1474 = vunpack.c.l.b16 %v1176
      %v1475 = vunpack.c.h.b16 %v1176
      %v1476 = vunpack.c.l.b16 %v1177
      %v1477 = vunpack.c.h.b16 %v1177
      %v1478 = vunpack.c.l.b16 %v1178
      %v1479 = vunpack.c.h.b16 %v1178
      %v1480 = vunpack.c.l.b16 %v1179
      %v1481 = vunpack.c.h.b16 %v1179
      %v1482 = vunpack.c.l.b16 %v1180
      %v1483 = vunpack.c.l.b16 %v1181
      %v1484 = vunpack.c.h.b16 %v1181
      %v1485 = vunpack.c.l.b16 %v1182
      %v1486 = vunpack.c.h.b16 %v1182
      %v1487 = vunpack.c.l.b16 %v1183
      %v1488 = vunpack.c.h.b16 %v1183
      %v1489 = vunpack.c.l.b16 %v1184
      %v1490 = vunpack.c.h.b16 %v1184
      %v1491 = vunpack.c.l.b16 %v1185
      %v1492 = vunpack.c.l.b16 %v1186
      %v1493 = vunpack.c.h.b16 %v1186
      %v1494 = vunpack.c.l.b16 %v1187
      %v1495 = vunpack.c.h.b16 %v1187
      %v1496 = vunpack.c.l.b16 %v1188
      %v1497 = vunpack.c.h.b16 %v1188
      %v1498 = vunpack.c.l.b16 %v1189
      %v1499 = vunpack.c.h.b16 %v1189
      %v1500 = vunpack.c.l.b16 %v1190
      %v1501 = vunpack.c.l.b16 %v1191
      %v1502 = vunpack.c.h.b16 %v1191
      %v1503 = vunpack.c.l.b16 %v1192
      %v1504 = vunpack.c.h.b16 %v1192
      %v1505 = vunpack.c.l.b16 %v1193
      %v1506 = vunpack.c.h.b16 %v1193
      %v1507 = vunpack.c.l.b16 %v1194
      %v1508 = vunpack.c.h.b16 %v1194
      %v1509 = vunpack.c.l.b16 %v1195
      %v1510 = vunpack.c.l.b16 %v1196
      %v1511 = vunpack.c.h.b16 %v1196
      %v1512 = vunpack.c.l.b16 %v1197
      %v1513 = vunpack.c.h.b16 %v1197
      %v1514 = vunpack.c.l.b16 %v1198
      %v1515 = vunpack.c.h.b16 %v1198
      %v1516 = vunpack.c.l.b16 %v1199
      %v1517 = vunpack.c.h.b16 %v1199
      %v1518 = vunpack.c.l.b16 %v1200
      %v1519 = vunpack.c.l.b16 %v1201
      %v1520 = vunpack.c.h.b16 %v1201
      %v1521 = vunpack.c.l.b16 %v1202
      %v1522 = vunpack.c.h.b16 %v1202
      %v1523 = vunpack.c.l.b16 %v1203
      %v1524 = vunpack.c.h.b16 %v1203
      %v1525 = vunpack.c.l.b16 %v1204
      %v1526 = vunpack.c.h.b16 %v1204
      %v1527 = vunpack.c.l.b16 %v1205
      %v1528 = vunpack.c.l.b16 %v1206
      %v1529 = vunpack.c.h.b16 %v1206
      %v1530 = vunpack.c.l.b16 %v1207
      %v1531 = vunpack.c.h.b16 %v1207
      %v1532 = vunpack.c.l.b16 %v1208
      %v1533 = vunpack.c.h.b16 %v1208
      %v1534 = vunpack.c.l.b16 %v1209
      %v1535 = vunpack.c.h.b16 %v1209
      %v1536 = vunpack.c.l.b16 %v1210
      %v1537 = vunpack.c.l.b16 %v1211
      %v1538 = vunpack.c.h.b16 %v1211
      %v1539 = vunpack.c.l.b16 %v1212
      %v1540 = vunpack.c.h.b16 %v1212
      %v1541 = vunpack.c.l.b16 %v1213
      %v1542 = vunpack.c.h.b16 %v1213
      %v1543 = vunpack.c.l.b16 %v1214
      %v1544 = vunpack.c.h.b16 %v1214
      %v1545 = vunpack.c.l.b16 %v1215
      %v1546 = vunpack.c.l.b16 %v1216
      %v1547 = vunpack.c.h.b16 %v1216
      %v1548 = vunpack.c.l.b16 %v1217
      %v1549 = vunpack.c.h.b16 %v1217
      %v1550 = vunpack.c.l.b16 %v1218
      %v1551 = vunpack.c.h.b16 %v1218
      %v1552 = vunpack.c.l.b16 %v1219
      %v1553 = vunpack.c.h.b16 %v1219
      %v1554 = vunpack.c.l.b16 %v1220
      %v1555 = vunpack.c.l.b16 %v1221
      %v1556 = vunpack.c.h.b16 %v1221
      %v1557 = vunpack.c.l.b16 %v1222
      %v1558 = vunpack.c.h.b16 %v1222
      %v1559 = vunpack.c.l.b16 %v1223
      %v1560 = vunpack.c.h.b16 %v1223
      %v1561 = vunpack.c.l.b16 %v1224
      %v1562 = vunpack.c.h.b16 %v1224
      %v1563 = vunpack.c.l.b16 %v1225
      %v1564 = vunpack.c.l.b16 %v1226
      %v1565 = vunpack.c.h.b16 %v1226
      %v1566 = vunpack.c.l.b16 %v1227
      %v1567 = vunpack.c.h.b16 %v1227
      %v1568 = vunpack.c.l.b16 %v1228
      %v1569 = vunpack.c.h.b16 %v1228
      %v1570 = vunpack.c.l.b16 %v1229
      %v1571 = vunpack.c.h.b16 %v1229
      %v1572 = vunpack.c.l.b16 %v1230
      %v1573 = vunpack.c.l.b16 %v1231
      %v1574 = vunpack.c.h.b16 %v1231
      %v1575 = vunpack.c.l.b16 %v1232
      %v1576 = vunpack.c.h.b16 %v1232
      %v1577 = vunpack.c.l.b16 %v1233
      %v1578 = vunpack.c.h.b16 %v1233
      %v1579 = vunpack.c.l.b16 %v1234
      %v1580 = vunpack.c.h.b16 %v1234
      %v1581 = vunpack.c.l.b16 %v1235
      %v1582 = vunpack.c.l.b16 %v1236
      %v1583 = vunpack.c.h.b16 %v1236
      %v1584 = vunpack.c.l.b16 %v1237
      %v1585 = vunpack.c.h.b16 %v1237
      %v1586 = vunpack.c.l.b16 %v1238
      %v1587 = vunpack.c.h.b16 %v1238
      %v1588 = vunpack.c.l.b16 %v1239
      %v1589 = vunpack.c.h.b16 %v1239
      %v1590 = vunpack.c.l.b16 %v1240
      %v1591 = vpack.c.b16 %v1375, %v1366
      %v1592 = vpack.c.b16 %v1376, %v1367
      %v1593 = vpack.c.b16 %v1377, %v1368
      %v1594 = vpack.c.b16 %v1378, %v1369
      %v1595 = vpack.c.b16 %v1379, %v1370
      %v1596 = vpack.c.b16 %v1380, %v1371
      %v1597 = vpack.c.b16 %v1381, %v1372
      %v1598 = vpack.c.b16 %v1382, %v1373
      %v1599 = vpack.c.b16 %v1383, %v1374
      %v1600 = vpack.c.b16 %v1393, %v1384
      %v1601 = vpack.c.b16 %v1394, %v1385
      %v1602 = vpack.c.b16 %v1395, %v1386
      %v1603 = vpack.c.b16 %v1396, %v1387
      %v1604 = vpack.c.b16 %v1397, %v1388
      %v1605 = vpack.c.b16 %v1398, %v1389
      %v1606 = vpack.c.b16 %v1399, %v1390
      %v1607 = vpack.c.b16 %v1400, %v1391
      %v1608 = vpack.c.b16 %v1401, %v1392
      %v1609 = vpack.c.b16 %v1411, %v1402
      %v1610 = vpack.c.b16 %v1412, %v1403
      %v1611 = vpack.c.b16 %v1413, %v1404
      %v1612 = vpack.c.b16 %v1414, %v1405
      %v1613 = vpack.c.b16 %v1415, %v1406
      %v1614 = vpack.c.b16 %v1416, %v1407
      %v1615 = vpack.c.b16 %v1417, %v1408
      %v1616 = vpack.c.b16 %v1418, %v1409
      %v1617 = vpack.c.b16 %v1419, %v1410
      %v1618 = vpack.c.b16 %v1429, %v1420
      %v1619 = vpack.c.b16 %v1430, %v1421
      %v1620 = vpack.c.b16 %v1431, %v1422
      %v1621 = vpack.c.b16 %v1432, %v1423
      %v1622 = vpack.c.b16 %v1433, %v1424
      %v1623 = vpack.c.b16 %v1434, %v1425
      %v1624 = vpack.c.b16 %v1435, %v1426
      %v1625 = vpack.c.b16 %v1436, %v1427
      %v1626 = vpack.c.b16 %v1437, %v1428
      %v1627 = vpack.c.b16 %v1447, %v1438
      %v1628 = vpack.c.b16 %v1448, %v1439
      %v1629 = vpack.c.b16 %v1449, %v1440
      %v1630 = vpack.c.b16 %v1450, %v1441
      %v1631 = vpack.c.b16 %v1451, %v1442
      %v1632 = vpack.c.b16 %v1452, %v1443
      %v1633 = vpack.c.b16 %v1453, %v1444
      %v1634 = vpack.c.b16 %v1454, %v1445
      %v1635 = vpack.c.b16 %v1455, %v1446
      %v1636 = vpack.c.b16 %v1465, %v1456
      %v1637 = vpack.c.b16 %v1466, %v1457
      %v1638 = vpack.c.b16 %v1467, %v1458
      %v1639 = vpack.c.b16 %v1468, %v1459
      %v1640 = vpack.c.b16 %v1469, %v1460
      %v1641 = vpack.c.b16 %v1470, %v1461
      %v1642 = vpack.c.b16 %v1471, %v1462
      %v1643 = vpack.c.b16 %v1472, %v1463
      %v1644 = vpack.c.b16 %v1473, %v1464
      %v1645 = vpack.c.b16 %v1483, %v1474
      %v1646 = vpack.c.b16 %v1484, %v1475
      %v1647 = vpack.c.b16 %v1485, %v1476
      %v1648 = vpack.c.b16 %v1486, %v1477
      %v1649 = vpack.c.b16 %v1487, %v1478
      %v1650 = vpack.c.b16 %v1488, %v1479
      %v1651 = vpack.c.b16 %v1489, %v1480
      %v1652 = vpack.c.b16 %v1490, %v1481
      %v1653 = vpack.c.b16 %v1491, %v1482
      %v1654 = vpack.c.b16 %v1501, %v1492
      %v1655 = vpack.c.b16 %v1502, %v1493
      %v1656 = vpack.c.b16 %v1503, %v1494
      %v1657 = vpack.c.b16 %v1504, %v1495
      %v1658 = vpack.c.b16 %v1505, %v1496
      %v1659 = vpack.c.b16 %v1506, %v1497
      %v1660 = vpack.c.b16 %v1507, %v1498
      %v1661 = vpack.c.b16 %v1508, %v1499
      %v1662 = vpack.c.b16 %v1509, %v1500
      %v1663 = vpack.c.b16 %v1519, %v1510
      %v1664 = vpack.c.b16 %v1520, %v1511
      %v1665 = vpack.c.b16 %v1521, %v1512
      %v1666 = vpack.c.b16 %v1522, %v1513
      %v1667 = vpack.c.b16 %v1523, %v1514
      %v1668 = vpack.c.b16 %v1524, %v1515
      %v1669 = vpack.c.b16 %v1525, %v1516
      %v1670 = vpack.c.b16 %v1526, %v1517
      %v1671 = vpack.c.b16 %v1527, %v1518
      %v1672 = vpack.c.b16 %v1537, %v1528
      %v1673 = vpack.c.b16 %v1538, %v1529
      %v1674 = vpack.c.b16 %v1539, %v1530
      %v1675 = vpack.c.b16 %v1540, %v1531
      %v1676 = vpack.c.b16 %v1541, %v1532
      %v1677 = vpack.c.b16 %v1542, %v1533
      %v1678 = vpack.c.b16 %v1543, %v1534
      %v1679 = vpack.c.b16 %v1544, %v1535
      %v1680 = vpack.c.b16 %v1545, %v1536
      %v1681 = vpack.c.b16 %v1555, %v1546
      %v1682 = vpack.c.b16 %v1556, %v1547
      %v1683 = vpack.c.b16 %v1557, %v1548
      %v1684 = vpack.c.b16 %v1558, %v1549
      %v1685 = vpack.c.b16 %v1559, %v1550
      %v1686 = vpack.c.b16 %v1560, %v1551
      %v1687 = vpack.c.b16 %v1561, %v1552
      %v1688 = vpack.c.b16 %v1562, %v1553
      %v1689 = vpack.c.b16 %v1563, %v1554
      %v1690 = vpack.c.b16 %v1573, %v1564
      %v1691 = vpack.c.b16 %v1574, %v1565
      %v1692 = vpack.c.b16 %v1575, %v1566
      %v1693 = vpack.c.b16 %v1576, %v1567
      %v1694 = vpack.c.b16 %v1577, %v1568
      %v1695 = vpack.c.b16 %v1578, %v1569
      %v1696 = vpack.c.b16 %v1579, %v1570
      %v1697 = vpack.c.b16 %v1580, %v1571
      %v1698 = vpack.c.b16 %v1581, %v1572
      %v1699 = vpack.c.b16 %v1582, %v1582
      %v1700 = vpack.c.b16 %v1583, %v1583
      %v1701 = vpack.c.b16 %v1584, %v1584
      %v1702 = vpack.c.b16 %v1585, %v1585
      %v1703 = vpack.c.b16 %v1586, %v1586
      %v1704 = vpack.c.b16 %v1587, %v1587
      %v1705 = vpack.c.b16 %v1588, %v1588
      %v1706 = vpack.c.b16 %v1589, %v1589
      %v1707 = vpack.c.b16 %v1590, %v1590
      %v1817 = vsel %vm883, %v1699, 0
      %v1820 = vsel %vm883, %v1700, 0
      %v1823 = vsel %vm883, %v1701, 0
      %v1826 = vsel %vm883, %v1702, 0
      %v1829 = vsel %vm883, %v1703, 0
      %v1832 = vsel %vm883, %v1704, 0
      %v1835 = vsel %vm883, %v1705, 0
      %v1838 = vsel %vm883, %v1706, 0
      %v1841 = vsel %vm883, %v1707, 0
      %1843 = vmatprep.subr.bf16.mxu0 %v1592
      %1844 = vmatpush1.bf16.msra.mxu0 %v1591
      %1845 = vmatprep.subr.bf16.mxu0 %v1601
      %1846 = vmatpush1.bf16.msra.mxu0 %v1600
      %1847 = vmatprep.subr.bf16.mxu0 %v1610
      %1848 = vmatpush1.bf16.msra.mxu0 %v1609
      %1849 = vmatprep.subr.bf16.mxu0 %v1619
      %1850 = vmatpush1.bf16.msra.mxu0 %v1618
      %1851 = vmatprep.subr.bf16.mxu0 %v1628
      %1852 = vmatpush1.bf16.msra.mxu0 %v1627
      %1853 = vmatprep.subr.bf16.mxu0 %v1637
      %1854 = vmatpush1.bf16.msra.mxu0 %v1636
      %1855 = vmatprep.subr.bf16.mxu0 %v1646
      %1856 = vmatpush1.bf16.msra.mxu0 %v1645
      %1857 = vmatprep.subr.bf16.mxu0 %v1655
      %1858 = vmatpush1.bf16.msra.mxu0 %v1654
      %1859 = vmatprep.subr.bf16.mxu0 %v1664
      %1860 = vmatpush1.bf16.msra.mxu0 %v1663
      %1861 = vmatprep.subr.bf16.mxu0 %v1673
      %1862 = vmatpush1.bf16.msra.mxu0 %v1672
      %1863 = vmatprep.subr.bf16.mxu0 %v1682
      %1864 = vmatpush1.bf16.msra.mxu0 %v1681
      %1865 = vmatprep.subr.bf16.mxu0 %v1691
      %1866 = vmatpush1.bf16.msra.mxu0 %v1690
      %1867 = vmatprep.subr.bf16.mxu0 %v1820
      %1868 = vmatpush1.bf16.msra.mxu0 %v1817
      %1869 = vmatprep.subr.bf16.mxu0 0
      %1870 = vmatpush1.bf16.msra.mxu0 0
      %1871 = vmatprep.subr.bf16.mxu0 0
      %1872 = vmatpush1.bf16.msra.mxu0 0
      %1873 = vmatprep.subr.bf16.mxu0 0
      %1874 = vmatpush1.bf16.msra.mxu0 0
      %1875 = vmatprep.mubr.bf16.mxu0 %v881
      %1876 = vmatmul.mubr.bf16.gmra.mrb[0].mxu0 %v301
      %v1877 = vpop.f32.mrb[0].mxu0
      %v1878 = vadd.f32 0.0, %v1877
      %v1879 = vpop.f32.mrb[0].mxu0
      %v1880 = vadd.f32 0.0, %v1879
      %v1881 = vpop.f32.mrb[0].mxu0
      %v1882 = vpop.f32.mrb[0].mxu0
      %1883 = vdwg.mxu0
      %1884 = vmatprep.subr.bf16.mxu0 %v1594
      %1885 = vmatpush1.bf16.msra.mxu0 %v1593
      %1886 = vmatprep.subr.bf16.mxu0 %v1603
      %1887 = vmatpush1.bf16.msra.mxu0 %v1602
      %1888 = vmatprep.subr.bf16.mxu0 %v1612
      %1889 = vmatpush1.bf16.msra.mxu0 %v1611
      %1890 = vmatprep.subr.bf16.mxu0 %v1621
      %1891 = vmatpush1.bf16.msra.mxu0 %v1620
      %1892 = vmatprep.subr.bf16.mxu0 %v1630
      %1893 = vmatpush1.bf16.msra.mxu0 %v1629
      %1894 = vmatprep.subr.bf16.mxu0 %v1639
      %1895 = vmatpush1.bf16.msra.mxu0 %v1638
      %1896 = vmatprep.subr.bf16.mxu0 %v1648
      %1897 = vmatpush1.bf16.msra.mxu0 %v1647
      %1898 = vmatprep.subr.bf16.mxu0 %v1657
      %1899 = vmatpush1.bf16.msra.mxu0 %v1656
      %1900 = vmatprep.subr.bf16.mxu0 %v1666
      %1901 = vmatpush1.bf16.msra.mxu0 %v1665
      %1902 = vmatprep.subr.bf16.mxu0 %v1675
      %1903 = vmatpush1.bf16.msra.mxu0 %v1674
      %1904 = vmatprep.subr.bf16.mxu0 %v1684
      %1905 = vmatpush1.bf16.msra.mxu0 %v1683
      %1906 = vmatprep.subr.bf16.mxu0 %v1693
      %1907 = vmatpush1.bf16.msra.mxu0 %v1692
      %1908 = vmatprep.subr.bf16.mxu0 %v1826
      %1909 = vmatpush1.bf16.msra.mxu0 %v1823
      %1910 = vmatprep.subr.bf16.mxu0 0
      %1911 = vmatpush1.bf16.msra.mxu0 0
      %1912 = vmatprep.subr.bf16.mxu0 0
      %1913 = vmatpush1.bf16.msra.mxu0 0
      %1914 = vmatprep.subr.bf16.mxu0 0
      %1915 = vmatpush1.bf16.msra.mxu0 0
      %1916 = vmatprep.mubr.bf16.mxu0 %v881
      %1917 = vmatmul.mubr.bf16.gmra.mrb[0].mxu0 %v301
      %v1918 = vpop.f32.mrb[0].mxu0
      %v1919 = vadd.f32 0.0, %v1918
      %v1920 = vpop.f32.mrb[0].mxu0
      %v1921 = vadd.f32 0.0, %v1920
      %v1922 = vpop.f32.mrb[0].mxu0
      %v1923 = vpop.f32.mrb[0].mxu0
      %1924 = vdwg.mxu0
      %1925 = vmatprep.subr.bf16.mxu0 %v1596
      %1926 = vmatpush1.bf16.msra.mxu0 %v1595
      %1927 = vmatprep.subr.bf16.mxu0 %v1605
      %1928 = vmatpush1.bf16.msra.mxu0 %v1604
      %1929 = vmatprep.subr.bf16.mxu0 %v1614
      %1930 = vmatpush1.bf16.msra.mxu0 %v1613
      %1931 = vmatprep.subr.bf16.mxu0 %v1623
      %1932 = vmatpush1.bf16.msra.mxu0 %v1622
      %1933 = vmatprep.subr.bf16.mxu0 %v1632
      %1934 = vmatpush1.bf16.msra.mxu0 %v1631
      %1935 = vmatprep.subr.bf16.mxu0 %v1641
      %1936 = vmatpush1.bf16.msra.mxu0 %v1640
      %1937 = vmatprep.subr.bf16.mxu0 %v1650
      %1938 = vmatpush1.bf16.msra.mxu0 %v1649
      %1939 = vmatprep.subr.bf16.mxu0 %v1659
      %1940 = vmatpush1.bf16.msra.mxu0 %v1658
      %1941 = vmatprep.subr.bf16.mxu0 %v1668
      %1942 = vmatpush1.bf16.msra.mxu0 %v1667
      %1943 = vmatprep.subr.bf16.mxu0 %v1677
      %1944 = vmatpush1.bf16.msra.mxu0 %v1676
      %1945 = vmatprep.subr.bf16.mxu0 %v1686
      %1946 = vmatpush1.bf16.msra.mxu0 %v1685
      %1947 = vmatprep.subr.bf16.mxu0 %v1695
      %1948 = vmatpush1.bf16.msra.mxu0 %v1694
      %1949 = vmatprep.subr.bf16.mxu0 %v1832
      %1950 = vmatpush1.bf16.msra.mxu0 %v1829
      %1951 = vmatprep.subr.bf16.mxu0 0
      %1952 = vmatpush1.bf16.msra.mxu0 0
      %1953 = vmatprep.subr.bf16.mxu0 0
      %1954 = vmatpush1.bf16.msra.mxu0 0
      %1955 = vmatprep.subr.bf16.mxu0 0
      %1956 = vmatpush1.bf16.msra.mxu0 0
      %1957 = vmatprep.mubr.bf16.mxu0 %v881
      %1958 = vmatmul.mubr.bf16.gmra.mrb[0].mxu0 %v301
      %v1959 = vpop.f32.mrb[0].mxu0
      %v1960 = vadd.f32 0.0, %v1959
      %v1961 = vpop.f32.mrb[0].mxu0
      %v1962 = vadd.f32 0.0, %v1961
      %v1963 = vpop.f32.mrb[0].mxu0
      %v1964 = vpop.f32.mrb[0].mxu0
      %1965 = vdwg.mxu0
      %1966 = vmatprep.subr.bf16.mxu0 %v1598
      %1967 = vmatpush1.bf16.msra.mxu0 %v1597
      %1968 = vmatprep.subr.bf16.mxu0 %v1607
      %1969 = vmatpush1.bf16.msra.mxu0 %v1606
      %1970 = vmatprep.subr.bf16.mxu0 %v1616
      %1971 = vmatpush1.bf16.msra.mxu0 %v1615
      %1972 = vmatprep.subr.bf16.mxu0 %v1625
      %1973 = vmatpush1.bf16.msra.mxu0 %v1624
      %1974 = vmatprep.subr.bf16.mxu0 %v1634
      %1975 = vmatpush1.bf16.msra.mxu0 %v1633
      %1976 = vmatprep.subr.bf16.mxu0 %v1643
      %1977 = vmatpush1.bf16.msra.mxu0 %v1642
      %1978 = vmatprep.subr.bf16.mxu0 %v1652
      %1979 = vmatpush1.bf16.msra.mxu0 %v1651
      %1980 = vmatprep.subr.bf16.mxu0 %v1661
      %1981 = vmatpush1.bf16.msra.mxu0 %v1660
      %1982 = vmatprep.subr.bf16.mxu0 %v1670
      %1983 = vmatpush1.bf16.msra.mxu0 %v1669
      %1984 = vmatprep.subr.bf16.mxu0 %v1679
      %1985 = vmatpush1.bf16.msra.mxu0 %v1678
      %1986 = vmatprep.subr.bf16.mxu0 %v1688
      %1987 = vmatpush1.bf16.msra.mxu0 %v1687
      %1988 = vmatprep.subr.bf16.mxu0 %v1697
      %1989 = vmatpush1.bf16.msra.mxu0 %v1696
      %1990 = vmatprep.subr.bf16.mxu0 %v1838
      %1991 = vmatpush1.bf16.msra.mxu0 %v1835
      %1992 = vmatprep.subr.bf16.mxu0 0
      %1993 = vmatpush1.bf16.msra.mxu0 0
      %1994 = vmatprep.subr.bf16.mxu0 0
      %1995 = vmatpush1.bf16.msra.mxu0 0
      %1996 = vmatprep.subr.bf16.mxu0 0
      %1997 = vmatpush1.bf16.msra.mxu0 0
      %1998 = vmatprep.mubr.bf16.mxu0 %v881
      %1999 = vmatmul.mubr.bf16.gmra.mrb[0].mxu0 %v301
      %v2000 = vpop.f32.mrb[0].mxu0
      %v2001 = vadd.f32 0.0, %v2000
      %v2002 = vpop.f32.mrb[0].mxu0
      %v2003 = vadd.f32 0.0, %v2002
      %v2004 = vpop.f32.mrb[0].mxu0
      %v2005 = vpop.f32.mrb[0].mxu0
      %2006 = vdwg.mxu0
      %2007 = vmatprep.subr.bf16.mxu0 0
      %2008 = vmatpush1.bf16.msra.mxu0 %v1599
      %2009 = vmatprep.subr.bf16.mxu0 0
      %2010 = vmatpush1.bf16.msra.mxu0 %v1608
      %2011 = vmatprep.subr.bf16.mxu0 0
      %2012 = vmatpush1.bf16.msra.mxu0 %v1617
      %2013 = vmatprep.subr.bf16.mxu0 0
      %2014 = vmatpush1.bf16.msra.mxu0 %v1626
      %2015 = vmatprep.subr.bf16.mxu0 0
      %2016 = vmatpush1.bf16.msra.mxu0 %v1635
      %2017 = vmatprep.subr.bf16.mxu0 0
      %2018 = vmatpush1.bf16.msra.mxu0 %v1644
      %2019 = vmatprep.subr.bf16.mxu0 0
      %2020 = vmatpush1.bf16.msra.mxu0 %v1653
      %2021 = vmatprep.subr.bf16.mxu0 0
      %2022 = vmatpush1.bf16.msra.mxu0 %v1662
      %2023 = vmatprep.subr.bf16.mxu0 0
      %2024 = vmatpush1.bf16.msra.mxu0 %v1671
      %2025 = vmatprep.subr.bf16.mxu0 0
      %2026 = vmatpush1.bf16.msra.mxu0 %v1680
      %2027 = vmatprep.subr.bf16.mxu0 0
      %2028 = vmatpush1.bf16.msra.mxu0 %v1689
      %2029 = vmatprep.subr.bf16.mxu0 0
      %2030 = vmatpush1.bf16.msra.mxu0 %v1698
      %2031 = vmatprep.subr.bf16.mxu0 0
      %2032 = vmatpush1.bf16.msra.mxu0 %v1841
      %2033 = vmatprep.subr.bf16.mxu0 0
      %2034 = vmatpush1.bf16.msra.mxu0 0
      %2035 = vmatprep.subr.bf16.mxu0 0
      %2036 = vmatpush1.bf16.msra.mxu0 0
      %2037 = vmatprep.subr.bf16.mxu0 0
      %2038 = vmatpush1.bf16.msra.mxu0 0
      %2039 = vmatprep.mubr.bf16.mxu0 %v881
      %2040 = vmatmul.mubr.bf16.gmra.mrb[0].mxu0 %v301
      %v2041 = vpop.f32.mrb[0].mxu0
      %v2042 = vadd.f32 0.0, %v2041
      %v2043 = vpop.f32.mrb[0].mxu0
      %v2044 = vpop.f32.mrb[0].mxu0
      %v2045 = vpop.f32.mrb[0].mxu0
      %2046 = vdwg.mxu0
      %s2047 = scalar_lea.vmem %s165, 1800
      %v2048 = vld [vmem:[%s2047] sm:$0xff]
      %v2049 = vld [vmem:[%s2047 + $0x8] sm:$0xff]
      %v2050 = vld [vmem:[%s2047 + $0x10] sm:$0xff]
      %v2051 = vld [vmem:[%s2047 + $0x18] sm:$0xff]
      %v2052 = vld [vmem:[%s2047 + $0x20] sm:$0xf]
      %v2053 = vld [vmem:[%s2047 + $0x24] sm:$0xff]
      %v2054 = vld [vmem:[%s2047 + $0x2c] sm:$0xff]
      %v2055 = vld [vmem:[%s2047 + $0x34] sm:$0xff]
      %v2056 = vld [vmem:[%s2047 + $0x3c] sm:$0xff]
      %v2057 = vld [vmem:[%s2047 + $0x44] sm:$0xf]
      %v2058 = vld [vmem:[%s2047 + $0x48] sm:$0xff]
      %v2059 = vld [vmem:[%s2047 + $0x50] sm:$0xff]
      %v2060 = vld [vmem:[%s2047 + $0x58] sm:$0xff]
      %v2061 = vld [vmem:[%s2047 + $0x60] sm:$0xff]
      %v2062 = vld [vmem:[%s2047 + $0x68] sm:$0xf]
      %v2063 = vld [vmem:[%s2047 + $0x6c] sm:$0xff]
      %v2064 = vld [vmem:[%s2047 + $0x74] sm:$0xff]
      %v2065 = vld [vmem:[%s2047 + $0x7c] sm:$0xff]
      %v2066 = vld [vmem:[%s2047 + $0x84] sm:$0xff]
      %v2067 = vld [vmem:[%s2047 + $0x8c] sm:$0xf]
      %v2068 = vld [vmem:[%s2047 + $0x90] sm:$0xff]
      %v2069 = vld [vmem:[%s2047 + $0x98] sm:$0xff]
      %v2070 = vld [vmem:[%s2047 + $0xa0] sm:$0xff]
      %v2071 = vld [vmem:[%s2047 + $0xa8] sm:$0xff]
      %v2072 = vld [vmem:[%s2047 + $0xb0] sm:$0xf]
      %v2073 = vld [vmem:[%s2047 + $0xb4] sm:$0xff]
      %v2074 = vld [vmem:[%s2047 + $0xbc] sm:$0xff]
      %v2075 = vld [vmem:[%s2047 + $0xc4] sm:$0xff]
      %v2076 = vld [vmem:[%s2047 + $0xcc] sm:$0xff]
      %v2077 = vld [vmem:[%s2047 + $0xd4] sm:$0xf]
      %v2078 = vld [vmem:[%s2047 + $0xd8] sm:$0xff]
      %v2079 = vld [vmem:[%s2047 + $0xe0] sm:$0xff]
      %v2080 = vld [vmem:[%s2047 + $0xe8] sm:$0xff]
      %v2081 = vld [vmem:[%s2047 + $0xf0] sm:$0xff]
      %v2082 = vld [vmem:[%s2047 + $0xf8] sm:$0xf]
      %v2083 = vld [vmem:[%s2047 + $0xfc] sm:$0xff]
      %v2084 = vld [vmem:[%s2047 + $0x104] sm:$0xff]
      %v2085 = vld [vmem:[%s2047 + $0x10c] sm:$0xff]
      %v2086 = vld [vmem:[%s2047 + $0x114] sm:$0xff]
      %v2087 = vld [vmem:[%s2047 + $0x11c] sm:$0xf]
      %v2088 = vld [vmem:[%s2047 + $0x120] sm:$0xff]
      %v2089 = vld [vmem:[%s2047 + $0x128] sm:$0xff]
      %v2090 = vld [vmem:[%s2047 + $0x130] sm:$0xff]
      %v2091 = vld [vmem:[%s2047 + $0x138] sm:$0xff]
      %v2092 = vld [vmem:[%s2047 + $0x140] sm:$0xf]
      %v2093 = vld [vmem:[%s2047 + $0x144] sm:$0xff]
      %v2094 = vld [vmem:[%s2047 + $0x14c] sm:$0xff]
      %v2095 = vld [vmem:[%s2047 + $0x154] sm:$0xff]
      %v2096 = vld [vmem:[%s2047 + $0x15c] sm:$0xff]
      %v2097 = vld [vmem:[%s2047 + $0x164] sm:$0xf]
      %v2098 = vld [vmem:[%s2047 + $0x168] sm:$0xff]
      %v2099 = vld [vmem:[%s2047 + $0x170] sm:$0xff]
      %v2100 = vld [vmem:[%s2047 + $0x178] sm:$0xff]
      %v2101 = vld [vmem:[%s2047 + $0x180] sm:$0xff]
      %v2102 = vld [vmem:[%s2047 + $0x188] sm:$0xf]
      %v2103 = vld [vmem:[%s2047 + $0x18c] sm:$0xff]
      %v2104 = vld [vmem:[%s2047 + $0x194] sm:$0xff]
      %v2105 = vld [vmem:[%s2047 + $0x19c] sm:$0xff]
      %v2106 = vld [vmem:[%s2047 + $0x1a4] sm:$0xff]
      %v2107 = vld [vmem:[%s2047 + $0x1ac] sm:$0xf]
      %v2108 = vld [vmem:[%s2047 + $0x1b0] sm:$0xff]
      %v2109 = vld [vmem:[%s2047 + $0x1b8] sm:$0xff]
      %v2110 = vld [vmem:[%s2047 + $0x1c0] sm:$0xff]
      %v2111 = vld [vmem:[%s2047 + $0x1c8] sm:$0xff]
      %v2112 = vld [vmem:[%s2047 + $0x1d0] sm:$0xf]
      %v2113 = vld [vmem:[%s2047 + $0x1d4] sm:$0xff]
      %v2114 = vld [vmem:[%s2047 + $0x1dc] sm:$0xff]
      %v2115 = vld [vmem:[%s2047 + $0x1e4] sm:$0xff]
      %v2116 = vld [vmem:[%s2047 + $0x1ec] sm:$0xff]
      %v2117 = vld [vmem:[%s2047 + $0x1f4] sm:$0xf]
      %v2118 = vld [vmem:[%s2047 + $0x1f8] sm:$0xff]
      %v2119 = vld [vmem:[%s2047 + $0x200] sm:$0xff]
      %v2120 = vld [vmem:[%s2047 + $0x208] sm:$0xff]
      %v2121 = vld [vmem:[%s2047 + $0x210] sm:$0xff]
      %v2122 = vld [vmem:[%s2047 + $0x218] sm:$0xf]
      %v2123 = vld [vmem:[%s2047 + $0x21c] sm:$0xff]
      %v2124 = vld [vmem:[%s2047 + $0x224] sm:$0xff]
      %v2125 = vld [vmem:[%s2047 + $0x22c] sm:$0xff]
      %v2126 = vld [vmem:[%s2047 + $0x234] sm:$0xff]
      %v2127 = vld [vmem:[%s2047 + $0x23c] sm:$0xf]
      %v2128 = vld [vmem:[%s2047 + $0x240] sm:$0xff]
      %v2129 = vld [vmem:[%s2047 + $0x248] sm:$0xff]
      %v2130 = vld [vmem:[%s2047 + $0x250] sm:$0xff]
      %v2131 = vld [vmem:[%s2047 + $0x258] sm:$0xff]
      %v2132 = vld [vmem:[%s2047 + $0x260] sm:$0xf]
      %v2133 = vld [vmem:[%s2047 + $0x264] sm:$0xff]
      %v2134 = vld [vmem:[%s2047 + $0x26c] sm:$0xff]
      %v2135 = vld [vmem:[%s2047 + $0x274] sm:$0xff]
      %v2136 = vld [vmem:[%s2047 + $0x27c] sm:$0xff]
      %v2137 = vld [vmem:[%s2047 + $0x284] sm:$0xf]
      %v2138 = vld [vmem:[%s2047 + $0x288] sm:$0xff]
      %v2139 = vld [vmem:[%s2047 + $0x290] sm:$0xff]
      %v2140 = vld [vmem:[%s2047 + $0x298] sm:$0xff]
      %v2141 = vld [vmem:[%s2047 + $0x2a0] sm:$0xff]
      %v2142 = vld [vmem:[%s2047 + $0x2a8] sm:$0xf]
      %v2143 = vld [vmem:[%s2047 + $0x2ac] sm:$0xff]
      %v2144 = vld [vmem:[%s2047 + $0x2b4] sm:$0xff]
      %v2145 = vld [vmem:[%s2047 + $0x2bc] sm:$0xff]
      %v2146 = vld [vmem:[%s2047 + $0x2c4] sm:$0xff]
      %v2147 = vld [vmem:[%s2047 + $0x2cc] sm:$0xf]
      %v2148 = vld [vmem:[%s2047 + $0x2d0] sm:$0xff]
      %v2149 = vld [vmem:[%s2047 + $0x2d8] sm:$0xff]
      %v2150 = vld [vmem:[%s2047 + $0x2e0] sm:$0xff]
      %v2151 = vld [vmem:[%s2047 + $0x2e8] sm:$0xff]
      %v2152 = vld [vmem:[%s2047 + $0x2f0] sm:$0xf]
      %v2153 = vld [vmem:[%s2047 + $0x2f4] sm:$0xff]
      %v2154 = vld [vmem:[%s2047 + $0x2fc] sm:$0xff]
      %v2155 = vld [vmem:[%s2047 + $0x304] sm:$0xff]
      %v2156 = vld [vmem:[%s2047 + $0x30c] sm:$0xff]
      %v2157 = vld [vmem:[%s2047 + $0x314] sm:$0xf]
      %v2158 = vld [vmem:[%s2047 + $0x318] sm:$0xff]
      %v2159 = vld [vmem:[%s2047 + $0x320] sm:$0xff]
      %v2160 = vld [vmem:[%s2047 + $0x328] sm:$0xff]
      %v2161 = vld [vmem:[%s2047 + $0x330] sm:$0xff]
      %v2162 = vld [vmem:[%s2047 + $0x338] sm:$0xf]
      %v2163 = vld [vmem:[%s2047 + $0x33c] sm:$0xff]
      %v2164 = vld [vmem:[%s2047 + $0x344] sm:$0xff]
      %v2165 = vld [vmem:[%s2047 + $0x34c] sm:$0xff]
      %v2166 = vld [vmem:[%s2047 + $0x354] sm:$0xff]
      %v2167 = vld [vmem:[%s2047 + $0x35c] sm:$0xf]
      %v2168 = vld [vmem:[%s2047 + $0x360] sm:$0xff]
      %v2169 = vld [vmem:[%s2047 + $0x368] sm:$0xff]
      %v2170 = vld [vmem:[%s2047 + $0x370] sm:$0xff]
      %v2171 = vld [vmem:[%s2047 + $0x378] sm:$0xff]
      %v2172 = vld [vmem:[%s2047 + $0x380] sm:$0xf]
      %v2298 = vunpack.c.l.b16 %v2048
      %v2299 = vunpack.c.h.b16 %v2048
      %v2300 = vunpack.c.l.b16 %v2049
      %v2301 = vunpack.c.h.b16 %v2049
      %v2302 = vunpack.c.l.b16 %v2050
      %v2303 = vunpack.c.h.b16 %v2050
      %v2304 = vunpack.c.l.b16 %v2051
      %v2305 = vunpack.c.h.b16 %v2051
      %v2306 = vunpack.c.l.b16 %v2052
      %v2307 = vunpack.c.l.b16 %v2053
      %v2308 = vunpack.c.h.b16 %v2053
      %v2309 = vunpack.c.l.b16 %v2054
      %v2310 = vunpack.c.h.b16 %v2054
      %v2311 = vunpack.c.l.b16 %v2055
      %v2312 = vunpack.c.h.b16 %v2055
      %v2313 = vunpack.c.l.b16 %v2056
      %v2314 = vunpack.c.h.b16 %v2056
      %v2315 = vunpack.c.l.b16 %v2057
      %v2316 = vunpack.c.l.b16 %v2058
      %v2317 = vunpack.c.h.b16 %v2058
      %v2318 = vunpack.c.l.b16 %v2059
      %v2319 = vunpack.c.h.b16 %v2059
      %v2320 = vunpack.c.l.b16 %v2060
      %v2321 = vunpack.c.h.b16 %v2060
      %v2322 = vunpack.c.l.b16 %v2061
      %v2323 = vunpack.c.h.b16 %v2061
      %v2324 = vunpack.c.l.b16 %v2062
      %v2325 = vunpack.c.l.b16 %v2063
      %v2326 = vunpack.c.h.b16 %v2063
      %v2327 = vunpack.c.l.b16 %v2064
      %v2328 = vunpack.c.h.b16 %v2064
      %v2329 = vunpack.c.l.b16 %v2065
      %v2330 = vunpack.c.h.b16 %v2065
      %v2331 = vunpack.c.l.b16 %v2066
      %v2332 = vunpack.c.h.b16 %v2066
      %v2333 = vunpack.c.l.b16 %v2067
      %v2334 = vunpack.c.l.b16 %v2068
      %v2335 = vunpack.c.h.b16 %v2068
      %v2336 = vunpack.c.l.b16 %v2069
      %v2337 = vunpack.c.h.b16 %v2069
      %v2338 = vunpack.c.l.b16 %v2070
      %v2339 = vunpack.c.h.b16 %v2070
      %v2340 = vunpack.c.l.b16 %v2071
      %v2341 = vunpack.c.h.b16 %v2071
      %v2342 = vunpack.c.l.b16 %v2072
      %v2343 = vunpack.c.l.b16 %v2073
      %v2344 = vunpack.c.h.b16 %v2073
      %v2345 = vunpack.c.l.b16 %v2074
      %v2346 = vunpack.c.h.b16 %v2074
      %v2347 = vunpack.c.l.b16 %v2075
      %v2348 = vunpack.c.h.b16 %v2075
      %v2349 = vunpack.c.l.b16 %v2076
      %v2350 = vunpack.c.h.b16 %v2076
      %v2351 = vunpack.c.l.b16 %v2077
      %v2352 = vunpack.c.l.b16 %v2078
      %v2353 = vunpack.c.h.b16 %v2078
      %v2354 = vunpack.c.l.b16 %v2079
      %v2355 = vunpack.c.h.b16 %v2079
      %v2356 = vunpack.c.l.b16 %v2080
      %v2357 = vunpack.c.h.b16 %v2080
      %v2358 = vunpack.c.l.b16 %v2081
      %v2359 = vunpack.c.h.b16 %v2081
      %v2360 = vunpack.c.l.b16 %v2082
      %v2361 = vunpack.c.l.b16 %v2083
      %v2362 = vunpack.c.h.b16 %v2083
      %v2363 = vunpack.c.l.b16 %v2084
      %v2364 = vunpack.c.h.b16 %v2084
      %v2365 = vunpack.c.l.b16 %v2085
      %v2366 = vunpack.c.h.b16 %v2085
      %v2367 = vunpack.c.l.b16 %v2086
      %v2368 = vunpack.c.h.b16 %v2086
      %v2369 = vunpack.c.l.b16 %v2087
      %v2370 = vunpack.c.l.b16 %v2088
      %v2371 = vunpack.c.h.b16 %v2088
      %v2372 = vunpack.c.l.b16 %v2089
      %v2373 = vunpack.c.h.b16 %v2089
      %v2374 = vunpack.c.l.b16 %v2090
      %v2375 = vunpack.c.h.b16 %v2090
      %v2376 = vunpack.c.l.b16 %v2091
      %v2377 = vunpack.c.h.b16 %v2091
      %v2378 = vunpack.c.l.b16 %v2092
      %v2379 = vunpack.c.l.b16 %v2093
      %v2380 = vunpack.c.h.b16 %v2093
      %v2381 = vunpack.c.l.b16 %v2094
      %v2382 = vunpack.c.h.b16 %v2094
      %v2383 = vunpack.c.l.b16 %v2095
      %v2384 = vunpack.c.h.b16 %v2095
      %v2385 = vunpack.c.l.b16 %v2096
      %v2386 = vunpack.c.h.b16 %v2096
      %v2387 = vunpack.c.l.b16 %v2097
      %v2388 = vunpack.c.l.b16 %v2098
      %v2389 = vunpack.c.h.b16 %v2098
      %v2390 = vunpack.c.l.b16 %v2099
      %v2391 = vunpack.c.h.b16 %v2099
      %v2392 = vunpack.c.l.b16 %v2100
      %v2393 = vunpack.c.h.b16 %v2100
      %v2394 = vunpack.c.l.b16 %v2101
      %v2395 = vunpack.c.h.b16 %v2101
      %v2396 = vunpack.c.l.b16 %v2102
      %v2397 = vunpack.c.l.b16 %v2103
      %v2398 = vunpack.c.h.b16 %v2103
      %v2399 = vunpack.c.l.b16 %v2104
      %v2400 = vunpack.c.h.b16 %v2104
      %v2401 = vunpack.c.l.b16 %v2105
      %v2402 = vunpack.c.h.b16 %v2105
      %v2403 = vunpack.c.l.b16 %v2106
      %v2404 = vunpack.c.h.b16 %v2106
      %v2405 = vunpack.c.l.b16 %v2107
      %v2406 = vunpack.c.l.b16 %v2108
      %v2407 = vunpack.c.h.b16 %v2108
      %v2408 = vunpack.c.l.b16 %v2109
      %v2409 = vunpack.c.h.b16 %v2109
      %v2410 = vunpack.c.l.b16 %v2110
      %v2411 = vunpack.c.h.b16 %v2110
      %v2412 = vunpack.c.l.b16 %v2111
      %v2413 = vunpack.c.h.b16 %v2111
      %v2414 = vunpack.c.l.b16 %v2112
      %v2415 = vunpack.c.l.b16 %v2113
      %v2416 = vunpack.c.h.b16 %v2113
      %v2417 = vunpack.c.l.b16 %v2114
      %v2418 = vunpack.c.h.b16 %v2114
      %v2419 = vunpack.c.l.b16 %v2115
      %v2420 = vunpack.c.h.b16 %v2115
      %v2421 = vunpack.c.l.b16 %v2116
      %v2422 = vunpack.c.h.b16 %v2116
      %v2423 = vunpack.c.l.b16 %v2117
      %v2424 = vunpack.c.l.b16 %v2118
      %v2425 = vunpack.c.h.b16 %v2118
      %v2426 = vunpack.c.l.b16 %v2119
      %v2427 = vunpack.c.h.b16 %v2119
      %v2428 = vunpack.c.l.b16 %v2120
      %v2429 = vunpack.c.h.b16 %v2120
      %v2430 = vunpack.c.l.b16 %v2121
      %v2431 = vunpack.c.h.b16 %v2121
      %v2432 = vunpack.c.l.b16 %v2122
      %v2433 = vunpack.c.l.b16 %v2123
      %v2434 = vunpack.c.h.b16 %v2123
      %v2435 = vunpack.c.l.b16 %v2124
      %v2436 = vunpack.c.h.b16 %v2124
      %v2437 = vunpack.c.l.b16 %v2125
      %v2438 = vunpack.c.h.b16 %v2125
      %v2439 = vunpack.c.l.b16 %v2126
      %v2440 = vunpack.c.h.b16 %v2126
      %v2441 = vunpack.c.l.b16 %v2127
      %v2442 = vunpack.c.l.b16 %v2128
      %v2443 = vunpack.c.h.b16 %v2128
      %v2444 = vunpack.c.l.b16 %v2129
      %v2445 = vunpack.c.h.b16 %v2129
      %v2446 = vunpack.c.l.b16 %v2130
      %v2447 = vunpack.c.h.b16 %v2130
      %v2448 = vunpack.c.l.b16 %v2131
      %v2449 = vunpack.c.h.b16 %v2131
      %v2450 = vunpack.c.l.b16 %v2132
      %v2451 = vunpack.c.l.b16 %v2133
      %v2452 = vunpack.c.h.b16 %v2133
      %v2453 = vunpack.c.l.b16 %v2134
      %v2454 = vunpack.c.h.b16 %v2134
      %v2455 = vunpack.c.l.b16 %v2135
      %v2456 = vunpack.c.h.b16 %v2135
      %v2457 = vunpack.c.l.b16 %v2136
      %v2458 = vunpack.c.h.b16 %v2136
      %v2459 = vunpack.c.l.b16 %v2137
      %v2460 = vunpack.c.l.b16 %v2138
      %v2461 = vunpack.c.h.b16 %v2138
      %v2462 = vunpack.c.l.b16 %v2139
      %v2463 = vunpack.c.h.b16 %v2139
      %v2464 = vunpack.c.l.b16 %v2140
      %v2465 = vunpack.c.h.b16 %v2140
      %v2466 = vunpack.c.l.b16 %v2141
      %v2467 = vunpack.c.h.b16 %v2141
      %v2468 = vunpack.c.l.b16 %v2142
      %v2469 = vunpack.c.l.b16 %v2143
      %v2470 = vunpack.c.h.b16 %v2143
      %v2471 = vunpack.c.l.b16 %v2144
      %v2472 = vunpack.c.h.b16 %v2144
      %v2473 = vunpack.c.l.b16 %v2145
      %v2474 = vunpack.c.h.b16 %v2145
      %v2475 = vunpack.c.l.b16 %v2146
      %v2476 = vunpack.c.h.b16 %v2146
      %v2477 = vunpack.c.l.b16 %v2147
      %v2478 = vunpack.c.l.b16 %v2148
      %v2479 = vunpack.c.h.b16 %v2148
      %v2480 = vunpack.c.l.b16 %v2149
      %v2481 = vunpack.c.h.b16 %v2149
      %v2482 = vunpack.c.l.b16 %v2150
      %v2483 = vunpack.c.h.b16 %v2150
      %v2484 = vunpack.c.l.b16 %v2151
      %v2485 = vunpack.c.h.b16 %v2151
      %v2486 = vunpack.c.l.b16 %v2152
      %v2487 = vunpack.c.l.b16 %v2153
      %v2488 = vunpack.c.h.b16 %v2153
      %v2489 = vunpack.c.l.b16 %v2154
      %v2490 = vunpack.c.h.b16 %v2154
      %v2491 = vunpack.c.l.b16 %v2155
      %v2492 = vunpack.c.h.b16 %v2155
      %v2493 = vunpack.c.l.b16 %v2156
      %v2494 = vunpack.c.h.b16 %v2156
      %v2495 = vunpack.c.l.b16 %v2157
      %v2496 = vunpack.c.l.b16 %v2158
      %v2497 = vunpack.c.h.b16 %v2158
      %v2498 = vunpack.c.l.b16 %v2159
      %v2499 = vunpack.c.h.b16 %v2159
      %v2500 = vunpack.c.l.b16 %v2160
      %v2501 = vunpack.c.h.b16 %v2160
      %v2502 = vunpack.c.l.b16 %v2161
      %v2503 = vunpack.c.h.b16 %v2161
      %v2504 = vunpack.c.l.b16 %v2162
      %v2505 = vunpack.c.l.b16 %v2163
      %v2506 = vunpack.c.h.b16 %v2163
      %v2507 = vunpack.c.l.b16 %v2164
      %v2508 = vunpack.c.h.b16 %v2164
      %v2509 = vunpack.c.l.b16 %v2165
      %v2510 = vunpack.c.h.b16 %v2165
      %v2511 = vunpack.c.l.b16 %v2166
      %v2512 = vunpack.c.h.b16 %v2166
      %v2513 = vunpack.c.l.b16 %v2167
      %v2514 = vunpack.c.l.b16 %v2168
      %v2515 = vunpack.c.h.b16 %v2168
      %v2516 = vunpack.c.l.b16 %v2169
      %v2517 = vunpack.c.h.b16 %v2169
      %v2518 = vunpack.c.l.b16 %v2170
      %v2519 = vunpack.c.h.b16 %v2170
      %v2520 = vunpack.c.l.b16 %v2171
      %v2521 = vunpack.c.h.b16 %v2171
      %v2522 = vunpack.c.l.b16 %v2172
      %v2523 = vpack.c.b16 %v2307, %v2298
      %v2524 = vpack.c.b16 %v2308, %v2299
      %v2525 = vpack.c.b16 %v2309, %v2300
      %v2526 = vpack.c.b16 %v2310, %v2301
      %v2527 = vpack.c.b16 %v2311, %v2302
      %v2528 = vpack.c.b16 %v2312, %v2303
      %v2529 = vpack.c.b16 %v2313, %v2304
      %v2530 = vpack.c.b16 %v2314, %v2305
      %v2531 = vpack.c.b16 %v2315, %v2306
      %v2532 = vpack.c.b16 %v2325, %v2316
      %v2533 = vpack.c.b16 %v2326, %v2317
      %v2534 = vpack.c.b16 %v2327, %v2318
      %v2535 = vpack.c.b16 %v2328, %v2319
      %v2536 = vpack.c.b16 %v2329, %v2320
      %v2537 = vpack.c.b16 %v2330, %v2321
      %v2538 = vpack.c.b16 %v2331, %v2322
      %v2539 = vpack.c.b16 %v2332, %v2323
      %v2540 = vpack.c.b16 %v2333, %v2324
      %v2541 = vpack.c.b16 %v2343, %v2334
      %v2542 = vpack.c.b16 %v2344, %v2335
      %v2543 = vpack.c.b16 %v2345, %v2336
      %v2544 = vpack.c.b16 %v2346, %v2337
      %v2545 = vpack.c.b16 %v2347, %v2338
      %v2546 = vpack.c.b16 %v2348, %v2339
      %v2547 = vpack.c.b16 %v2349, %v2340
      %v2548 = vpack.c.b16 %v2350, %v2341
      %v2549 = vpack.c.b16 %v2351, %v2342
      %v2550 = vpack.c.b16 %v2361, %v2352
      %v2551 = vpack.c.b16 %v2362, %v2353
      %v2552 = vpack.c.b16 %v2363, %v2354
      %v2553 = vpack.c.b16 %v2364, %v2355
      %v2554 = vpack.c.b16 %v2365, %v2356
      %v2555 = vpack.c.b16 %v2366, %v2357
      %v2556 = vpack.c.b16 %v2367, %v2358
      %v2557 = vpack.c.b16 %v2368, %v2359
      %v2558 = vpack.c.b16 %v2369, %v2360
      %v2559 = vpack.c.b16 %v2379, %v2370
      %v2560 = vpack.c.b16 %v2380, %v2371
      %v2561 = vpack.c.b16 %v2381, %v2372
      %v2562 = vpack.c.b16 %v2382, %v2373
      %v2563 = vpack.c.b16 %v2383, %v2374
      %v2564 = vpack.c.b16 %v2384, %v2375
      %v2565 = vpack.c.b16 %v2385, %v2376
      %v2566 = vpack.c.b16 %v2386, %v2377
      %v2567 = vpack.c.b16 %v2387, %v2378
      %v2568 = vpack.c.b16 %v2397, %v2388
      %v2569 = vpack.c.b16 %v2398, %v2389
      %v2570 = vpack.c.b16 %v2399, %v2390
      %v2571 = vpack.c.b16 %v2400, %v2391
      %v2572 = vpack.c.b16 %v2401, %v2392
      %v2573 = vpack.c.b16 %v2402, %v2393
      %v2574 = vpack.c.b16 %v2403, %v2394
      %v2575 = vpack.c.b16 %v2404, %v2395
      %v2576 = vpack.c.b16 %v2405, %v2396
      %v2577 = vpack.c.b16 %v2415, %v2406
      %v2578 = vpack.c.b16 %v2416, %v2407
      %v2579 = vpack.c.b16 %v2417, %v2408
      %v2580 = vpack.c.b16 %v2418, %v2409
      %v2581 = vpack.c.b16 %v2419, %v2410
      %v2582 = vpack.c.b16 %v2420, %v2411
      %v2583 = vpack.c.b16 %v2421, %v2412
      %v2584 = vpack.c.b16 %v2422, %v2413
      %v2585 = vpack.c.b16 %v2423, %v2414
      %v2586 = vpack.c.b16 %v2433, %v2424
      %v2587 = vpack.c.b16 %v2434, %v2425
      %v2588 = vpack.c.b16 %v2435, %v2426
      %v2589 = vpack.c.b16 %v2436, %v2427
      %v2590 = vpack.c.b16 %v2437, %v2428
      %v2591 = vpack.c.b16 %v2438, %v2429
      %v2592 = vpack.c.b16 %v2439, %v2430
      %v2593 = vpack.c.b16 %v2440, %v2431
      %v2594 = vpack.c.b16 %v2441, %v2432
      %v2595 = vpack.c.b16 %v2451, %v2442
      %v2596 = vpack.c.b16 %v2452, %v2443
      %v2597 = vpack.c.b16 %v2453, %v2444
      %v2598 = vpack.c.b16 %v2454, %v2445
      %v2599 = vpack.c.b16 %v2455, %v2446
      %v2600 = vpack.c.b16 %v2456, %v2447
      %v2601 = vpack.c.b16 %v2457, %v2448
      %v2602 = vpack.c.b16 %v2458, %v2449
      %v2603 = vpack.c.b16 %v2459, %v2450
      %v2604 = vpack.c.b16 %v2469, %v2460
      %v2605 = vpack.c.b16 %v2470, %v2461
      %v2606 = vpack.c.b16 %v2471, %v2462
      %v2607 = vpack.c.b16 %v2472, %v2463
      %v2608 = vpack.c.b16 %v2473, %v2464
      %v2609 = vpack.c.b16 %v2474, %v2465
      %v2610 = vpack.c.b16 %v2475, %v2466
      %v2611 = vpack.c.b16 %v2476, %v2467
      %v2612 = vpack.c.b16 %v2477, %v2468
      %v2613 = vpack.c.b16 %v2487, %v2478
      %v2614 = vpack.c.b16 %v2488, %v2479
      %v2615 = vpack.c.b16 %v2489, %v2480
      %v2616 = vpack.c.b16 %v2490, %v2481
      %v2617 = vpack.c.b16 %v2491, %v2482
      %v2618 = vpack.c.b16 %v2492, %v2483
      %v2619 = vpack.c.b16 %v2493, %v2484
      %v2620 = vpack.c.b16 %v2494, %v2485
      %v2621 = vpack.c.b16 %v2495, %v2486
      %v2622 = vpack.c.b16 %v2505, %v2496
      %v2623 = vpack.c.b16 %v2506, %v2497
      %v2624 = vpack.c.b16 %v2507, %v2498
      %v2625 = vpack.c.b16 %v2508, %v2499
      %v2626 = vpack.c.b16 %v2509, %v2500
      %v2627 = vpack.c.b16 %v2510, %v2501
      %v2628 = vpack.c.b16 %v2511, %v2502
      %v2629 = vpack.c.b16 %v2512, %v2503
      %v2630 = vpack.c.b16 %v2513, %v2504
      %v2631 = vpack.c.b16 %v2514, %v2514
      %v2632 = vpack.c.b16 %v2515, %v2515
      %v2633 = vpack.c.b16 %v2516, %v2516
      %v2634 = vpack.c.b16 %v2517, %v2517
      %v2635 = vpack.c.b16 %v2518, %v2518
      %v2636 = vpack.c.b16 %v2519, %v2519
      %v2637 = vpack.c.b16 %v2520, %v2520
      %v2638 = vpack.c.b16 %v2521, %v2521
      %v2639 = vpack.c.b16 %v2522, %v2522
      %v2749 = vsel %vm883, %v2631, 0
      %v2752 = vsel %vm883, %v2632, 0
      %v2755 = vsel %vm883, %v2633, 0
      %v2758 = vsel %vm883, %v2634, 0
      %v2761 = vsel %vm883, %v2635, 0
      %v2764 = vsel %vm883, %v2636, 0
      %v2767 = vsel %vm883, %v2637, 0
      %v2770 = vsel %vm883, %v2638, 0
      %v2773 = vsel %vm883, %v2639, 0
      %2775 = vmatprep.subr.bf16.mxu0 %v2524
      %2776 = vmatpush1.bf16.msra.mxu0 %v2523
      %2777 = vmatprep.subr.bf16.mxu0 %v2533
      %2778 = vmatpush1.bf16.msra.mxu0 %v2532
      %2779 = vmatprep.subr.bf16.mxu0 %v2542
      %2780 = vmatpush1.bf16.msra.mxu0 %v2541
      %2781 = vmatprep.subr.bf16.mxu0 %v2551
      %2782 = vmatpush1.bf16.msra.mxu0 %v2550
      %2783 = vmatprep.subr.bf16.mxu0 %v2560
      %2784 = vmatpush1.bf16.msra.mxu0 %v2559
      %2785 = vmatprep.subr.bf16.mxu0 %v2569
      %2786 = vmatpush1.bf16.msra.mxu0 %v2568
      %2787 = vmatprep.subr.bf16.mxu0 %v2578
      %2788 = vmatpush1.bf16.msra.mxu0 %v2577
      %2789 = vmatprep.subr.bf16.mxu0 %v2587
      %2790 = vmatpush1.bf16.msra.mxu0 %v2586
      %2791 = vmatprep.subr.bf16.mxu0 %v2596
      %2792 = vmatpush1.bf16.msra.mxu0 %v2595
      %2793 = vmatprep.subr.bf16.mxu0 %v2605
      %2794 = vmatpush1.bf16.msra.mxu0 %v2604
      %2795 = vmatprep.subr.bf16.mxu0 %v2614
      %2796 = vmatpush1.bf16.msra.mxu0 %v2613
      %2797 = vmatprep.subr.bf16.mxu0 %v2623
      %2798 = vmatpush1.bf16.msra.mxu0 %v2622
      %2799 = vmatprep.subr.bf16.mxu0 %v2752
      %2800 = vmatpush1.bf16.msra.mxu0 %v2749
      %2801 = vmatprep.subr.bf16.mxu0 0
      %2802 = vmatpush1.bf16.msra.mxu0 0
      %2803 = vmatprep.subr.bf16.mxu0 0
      %2804 = vmatpush1.bf16.msra.mxu0 0
      %2805 = vmatprep.subr.bf16.mxu0 0
      %2806 = vmatpush1.bf16.msra.mxu0 0
      %2807 = vmatprep.mubr.bf16.mxu0 %v881
      %2808 = vmatmul.mubr.bf16.gmra.mrb[0].mxu0 %v301
      %v2809 = vpop.f32.mrb[0].mxu0
      %v2810 = vadd.f32 0.0, %v2809
      %v2811 = vpop.f32.mrb[0].mxu0
      %v2812 = vadd.f32 0.0, %v2811
      %v2813 = vpop.f32.mrb[0].mxu0
      %v2814 = vpop.f32.mrb[0].mxu0
      %2815 = vdwg.mxu0
      %2816 = vmatprep.subr.bf16.mxu0 %v2526
      %2817 = vmatpush1.bf16.msra.mxu0 %v2525
      %2818 = vmatprep.subr.bf16.mxu0 %v2535
      %2819 = vmatpush1.bf16.msra.mxu0 %v2534
      %2820 = vmatprep.subr.bf16.mxu0 %v2544
      %2821 = vmatpush1.bf16.msra.mxu0 %v2543
      %2822 = vmatprep.subr.bf16.mxu0 %v2553
      %2823 = vmatpush1.bf16.msra.mxu0 %v2552
      %2824 = vmatprep.subr.bf16.mxu0 %v2562
      %2825 = vmatpush1.bf16.msra.mxu0 %v2561
      %2826 = vmatprep.subr.bf16.mxu0 %v2571
      %2827 = vmatpush1.bf16.msra.mxu0 %v2570
      %2828 = vmatprep.subr.bf16.mxu0 %v2580
      %2829 = vmatpush1.bf16.msra.mxu0 %v2579
      %2830 = vmatprep.subr.bf16.mxu0 %v2589
      %2831 = vmatpush1.bf16.msra.mxu0 %v2588
      %2832 = vmatprep.subr.bf16.mxu0 %v2598
      %2833 = vmatpush1.bf16.msra.mxu0 %v2597
      %2834 = vmatprep.subr.bf16.mxu0 %v2607
      %2835 = vmatpush1.bf16.msra.mxu0 %v2606
      %2836 = vmatprep.subr.bf16.mxu0 %v2616
      %2837 = vmatpush1.bf16.msra.mxu0 %v2615
      %2838 = vmatprep.subr.bf16.mxu0 %v2625
      %2839 = vmatpush1.bf16.msra.mxu0 %v2624
      %2840 = vmatprep.subr.bf16.mxu0 %v2758
      %2841 = vmatpush1.bf16.msra.mxu0 %v2755
      %2842 = vmatprep.subr.bf16.mxu0 0
      %2843 = vmatpush1.bf16.msra.mxu0 0
      %2844 = vmatprep.subr.bf16.mxu0 0
      %2845 = vmatpush1.bf16.msra.mxu0 0
      %2846 = vmatprep.subr.bf16.mxu0 0
      %2847 = vmatpush1.bf16.msra.mxu0 0
      %2848 = vmatprep.mubr.bf16.mxu0 %v881
      %2849 = vmatmul.mubr.bf16.gmra.mrb[0].mxu0 %v301
      %v2850 = vpop.f32.mrb[0].mxu0
      %v2851 = vadd.f32 0.0, %v2850
      %v2852 = vpop.f32.mrb[0].mxu0
      %v2853 = vadd.f32 0.0, %v2852
      %v2854 = vpop.f32.mrb[0].mxu0
      %v2855 = vpop.f32.mrb[0].mxu0
      %2856 = vdwg.mxu0
      %2857 = vmatprep.subr.bf16.mxu0 %v2528
      %2858 = vmatpush1.bf16.msra.mxu0 %v2527
      %2859 = vmatprep.subr.bf16.mxu0 %v2537
      %2860 = vmatpush1.bf16.msra.mxu0 %v2536
      %2861 = vmatprep.subr.bf16.mxu0 %v2546
      %2862 = vmatpush1.bf16.msra.mxu0 %v2545
      %2863 = vmatprep.subr.bf16.mxu0 %v2555
      %2864 = vmatpush1.bf16.msra.mxu0 %v2554
      %2865 = vmatprep.subr.bf16.mxu0 %v2564
      %2866 = vmatpush1.bf16.msra.mxu0 %v2563
      %2867 = vmatprep.subr.bf16.mxu0 %v2573
      %2868 = vmatpush1.bf16.msra.mxu0 %v2572
      %2869 = vmatprep.subr.bf16.mxu0 %v2582
      %2870 = vmatpush1.bf16.msra.mxu0 %v2581
      %2871 = vmatprep.subr.bf16.mxu0 %v2591
      %2872 = vmatpush1.bf16.msra.mxu0 %v2590
      %2873 = vmatprep.subr.bf16.mxu0 %v2600
      %2874 = vmatpush1.bf16.msra.mxu0 %v2599
      %2875 = vmatprep.subr.bf16.mxu0 %v2609
      %2876 = vmatpush1.bf16.msra.mxu0 %v2608
      %2877 = vmatprep.subr.bf16.mxu0 %v2618
      %2878 = vmatpush1.bf16.msra.mxu0 %v2617
      %2879 = vmatprep.subr.bf16.mxu0 %v2627
      %2880 = vmatpush1.bf16.msra.mxu0 %v2626
      %2881 = vmatprep.subr.bf16.mxu0 %v2764
      %2882 = vmatpush1.bf16.msra.mxu0 %v2761
      %2883 = vmatprep.subr.bf16.mxu0 0
      %2884 = vmatpush1.bf16.msra.mxu0 0
      %2885 = vmatprep.subr.bf16.mxu0 0
      %2886 = vmatpush1.bf16.msra.mxu0 0
      %2887 = vmatprep.subr.bf16.mxu0 0
      %2888 = vmatpush1.bf16.msra.mxu0 0
      %2889 = vmatprep.mubr.bf16.mxu0 %v881
      %2890 = vmatmul.mubr.bf16.gmra.mrb[0].mxu0 %v301
      %v2891 = vpop.f32.mrb[0].mxu0
      %v2892 = vadd.f32 0.0, %v2891
      %v2893 = vpop.f32.mrb[0].mxu0
      %v2894 = vadd.f32 0.0, %v2893
      %v2895 = vpop.f32.mrb[0].mxu0
      %v2896 = vpop.f32.mrb[0].mxu0
      %2897 = vdwg.mxu0
      %2898 = vmatprep.subr.bf16.mxu0 %v2530
      %2899 = vmatpush1.bf16.msra.mxu0 %v2529
      %2900 = vmatprep.subr.bf16.mxu0 %v2539
      %2901 = vmatpush1.bf16.msra.mxu0 %v2538
      %2902 = vmatprep.subr.bf16.mxu0 %v2548
      %2903 = vmatpush1.bf16.msra.mxu0 %v2547
      %2904 = vmatprep.subr.bf16.mxu0 %v2557
      %2905 = vmatpush1.bf16.msra.mxu0 %v2556
      %2906 = vmatprep.subr.bf16.mxu0 %v2566
      %2907 = vmatpush1.bf16.msra.mxu0 %v2565
      %2908 = vmatprep.subr.bf16.mxu0 %v2575
      %2909 = vmatpush1.bf16.msra.mxu0 %v2574
      %2910 = vmatprep.subr.bf16.mxu0 %v2584
      %2911 = vmatpush1.bf16.msra.mxu0 %v2583
      %2912 = vmatprep.subr.bf16.mxu0 %v2593
      %2913 = vmatpush1.bf16.msra.mxu0 %v2592
      %2914 = vmatprep.subr.bf16.mxu0 %v2602
      %2915 = vmatpush1.bf16.msra.mxu0 %v2601
      %2916 = vmatprep.subr.bf16.mxu0 %v2611
      %2917 = vmatpush1.bf16.msra.mxu0 %v2610
      %2918 = vmatprep.subr.bf16.mxu0 %v2620
      %2919 = vmatpush1.bf16.msra.mxu0 %v2619
      %2920 = vmatprep.subr.bf16.mxu0 %v2629
      %2921 = vmatpush1.bf16.msra.mxu0 %v2628
      %2922 = vmatprep.subr.bf16.mxu0 %v2770
      %2923 = vmatpush1.bf16.msra.mxu0 %v2767
      %2924 = vmatprep.subr.bf16.mxu0 0
      %2925 = vmatpush1.bf16.msra.mxu0 0
      %2926 = vmatprep.subr.bf16.mxu0 0
      %2927 = vmatpush1.bf16.msra.mxu0 0
      %2928 = vmatprep.subr.bf16.mxu0 0
      %2929 = vmatpush1.bf16.msra.mxu0 0
      %2930 = vmatprep.mubr.bf16.mxu0 %v881
      %2931 = vmatmul.mubr.bf16.gmra.mrb[0].mxu0 %v301
      %v2932 = vpop.f32.mrb[0].mxu0
      %v2933 = vadd.f32 0.0, %v2932
      %v2934 = vpop.f32.mrb[0].mxu0
      %v2935 = vadd.f32 0.0, %v2934
      %v2936 = vpop.f32.mrb[0].mxu0
      %v2937 = vpop.f32.mrb[0].mxu0
      %2938 = vdwg.mxu0
      %2939 = vmatprep.subr.bf16.mxu0 0
      %2940 = vmatpush1.bf16.msra.mxu0 %v2531
      %2941 = vmatprep.subr.bf16.mxu0 0
      %2942 = vmatpush1.bf16.msra.mxu0 %v2540
      %2943 = vmatprep.subr.bf16.mxu0 0
      %2944 = vmatpush1.bf16.msra.mxu0 %v2549
      %2945 = vmatprep.subr.bf16.mxu0 0
      %2946 = vmatpush1.bf16.msra.mxu0 %v2558
      %2947 = vmatprep.subr.bf16.mxu0 0
      %2948 = vmatpush1.bf16.msra.mxu0 %v2567
      %2949 = vmatprep.subr.bf16.mxu0 0
      %2950 = vmatpush1.bf16.msra.mxu0 %v2576
      %2951 = vmatprep.subr.bf16.mxu0 0
      %2952 = vmatpush1.bf16.msra.mxu0 %v2585
      %2953 = vmatprep.subr.bf16.mxu0 0
      %2954 = vmatpush1.bf16.msra.mxu0 %v2594
      %2955 = vmatprep.subr.bf16.mxu0 0
      %2956 = vmatpush1.bf16.msra.mxu0 %v2603
      %2957 = vmatprep.subr.bf16.mxu0 0
      %2958 = vmatpush1.bf16.msra.mxu0 %v2612
      %2959 = vmatprep.subr.bf16.mxu0 0
      %2960 = vmatpush1.bf16.msra.mxu0 %v2621
      %2961 = vmatprep.subr.bf16.mxu0 0
      %2962 = vmatpush1.bf16.msra.mxu0 %v2630
      %2963 = vmatprep.subr.bf16.mxu0 0
      %2964 = vmatpush1.bf16.msra.mxu0 %v2773
      %2965 = vmatprep.subr.bf16.mxu0 0
      %2966 = vmatpush1.bf16.msra.mxu0 0
      %2967 = vmatprep.subr.bf16.mxu0 0
      %2968 = vmatpush1.bf16.msra.mxu0 0
      %2969 = vmatprep.subr.bf16.mxu0 0
      %2970 = vmatpush1.bf16.msra.mxu0 0
      %2971 = vmatprep.mubr.bf16.mxu0 %v881
      %2972 = vmatmul.mubr.bf16.gmra.mrb[0].mxu0 %v301
      %v2973 = vpop.f32.mrb[0].mxu0
      %v2974 = vadd.f32 0.0, %v2973
      %v2975 = vpop.f32.mrb[0].mxu0
      %v2976 = vpop.f32.mrb[0].mxu0
      %v2977 = vpop.f32.mrb[0].mxu0
      %2978 = vdwg.mxu0
      %s2979 = scalar_lea.vmem %s165, 2700
      %v2980 = vld [vmem:[%s2979] sm:$0xff]
      %v2981 = vld [vmem:[%s2979 + $0x8] sm:$0xff]
      %v2982 = vld [vmem:[%s2979 + $0x10] sm:$0xff]
      %v2983 = vld [vmem:[%s2979 + $0x18] sm:$0xff]
      %v2984 = vld [vmem:[%s2979 + $0x20] sm:$0xf]
      %v2985 = vld [vmem:[%s2979 + $0x24] sm:$0xff]
      %v2986 = vld [vmem:[%s2979 + $0x2c] sm:$0xff]
      %v2987 = vld [vmem:[%s2979 + $0x34] sm:$0xff]
      %v2988 = vld [vmem:[%s2979 + $0x3c] sm:$0xff]
      %v2989 = vld [vmem:[%s2979 + $0x44] sm:$0xf]
      %v2990 = vld [vmem:[%s2979 + $0x48] sm:$0xff]
      %v2991 = vld [vmem:[%s2979 + $0x50] sm:$0xff]
      %v2992 = vld [vmem:[%s2979 + $0x58] sm:$0xff]
      %v2993 = vld [vmem:[%s2979 + $0x60] sm:$0xff]
      %v2994 = vld [vmem:[%s2979 + $0x68] sm:$0xf]
      %v2995 = vld [vmem:[%s2979 + $0x6c] sm:$0xff]
      %v2996 = vld [vmem:[%s2979 + $0x74] sm:$0xff]
      %v2997 = vld [vmem:[%s2979 + $0x7c] sm:$0xff]
      %v2998 = vld [vmem:[%s2979 + $0x84] sm:$0xff]
      %v2999 = vld [vmem:[%s2979 + $0x8c] sm:$0xf]
      %v3000 = vld [vmem:[%s2979 + $0x90] sm:$0xff]
      %v3001 = vld [vmem:[%s2979 + $0x98] sm:$0xff]
      %v3002 = vld [vmem:[%s2979 + $0xa0] sm:$0xff]
      %v3003 = vld [vmem:[%s2979 + $0xa8] sm:$0xff]
      %v3004 = vld [vmem:[%s2979 + $0xb0] sm:$0xf]
      %v3005 = vld [vmem:[%s2979 + $0xb4] sm:$0xff]
      %v3006 = vld [vmem:[%s2979 + $0xbc] sm:$0xff]
      %v3007 = vld [vmem:[%s2979 + $0xc4] sm:$0xff]
      %v3008 = vld [vmem:[%s2979 + $0xcc] sm:$0xff]
      %v3009 = vld [vmem:[%s2979 + $0xd4] sm:$0xf]
      %v3010 = vld [vmem:[%s2979 + $0xd8] sm:$0xff]
      %v3011 = vld [vmem:[%s2979 + $0xe0] sm:$0xff]
      %v3012 = vld [vmem:[%s2979 + $0xe8] sm:$0xff]
      %v3013 = vld [vmem:[%s2979 + $0xf0] sm:$0xff]
      %v3014 = vld [vmem:[%s2979 + $0xf8] sm:$0xf]
      %v3015 = vld [vmem:[%s2979 + $0xfc] sm:$0xff]
      %v3016 = vld [vmem:[%s2979 + $0x104] sm:$0xff]
      %v3017 = vld [vmem:[%s2979 + $0x10c] sm:$0xff]
      %v3018 = vld [vmem:[%s2979 + $0x114] sm:$0xff]
      %v3019 = vld [vmem:[%s2979 + $0x11c] sm:$0xf]
      %v3020 = vld [vmem:[%s2979 + $0x120] sm:$0xff]
      %v3021 = vld [vmem:[%s2979 + $0x128] sm:$0xff]
      %v3022 = vld [vmem:[%s2979 + $0x130] sm:$0xff]
      %v3023 = vld [vmem:[%s2979 + $0x138] sm:$0xff]
      %v3024 = vld [vmem:[%s2979 + $0x140] sm:$0xf]
      %v3025 = vld [vmem:[%s2979 + $0x144] sm:$0xff]
      %v3026 = vld [vmem:[%s2979 + $0x14c] sm:$0xff]
      %v3027 = vld [vmem:[%s2979 + $0x154] sm:$0xff]
      %v3028 = vld [vmem:[%s2979 + $0x15c] sm:$0xff]
      %v3029 = vld [vmem:[%s2979 + $0x164] sm:$0xf]
      %v3030 = vld [vmem:[%s2979 + $0x168] sm:$0xff]
      %v3031 = vld [vmem:[%s2979 + $0x170] sm:$0xff]
      %v3032 = vld [vmem:[%s2979 + $0x178] sm:$0xff]
      %v3033 = vld [vmem:[%s2979 + $0x180] sm:$0xff]
      %v3034 = vld [vmem:[%s2979 + $0x188] sm:$0xf]
      %v3035 = vld [vmem:[%s2979 + $0x18c] sm:$0xff]
      %v3036 = vld [vmem:[%s2979 + $0x194] sm:$0xff]
      %v3037 = vld [vmem:[%s2979 + $0x19c] sm:$0xff]
      %v3038 = vld [vmem:[%s2979 + $0x1a4] sm:$0xff]
      %v3039 = vld [vmem:[%s2979 + $0x1ac] sm:$0xf]
      %v3040 = vld [vmem:[%s2979 + $0x1b0] sm:$0xff]
      %v3041 = vld [vmem:[%s2979 + $0x1b8] sm:$0xff]
      %v3042 = vld [vmem:[%s2979 + $0x1c0] sm:$0xff]
      %v3043 = vld [vmem:[%s2979 + $0x1c8] sm:$0xff]
      %v3044 = vld [vmem:[%s2979 + $0x1d0] sm:$0xf]
      %v3045 = vld [vmem:[%s2979 + $0x1d4] sm:$0xff]
      %v3046 = vld [vmem:[%s2979 + $0x1dc] sm:$0xff]
      %v3047 = vld [vmem:[%s2979 + $0x1e4] sm:$0xff]
      %v3048 = vld [vmem:[%s2979 + $0x1ec] sm:$0xff]
      %v3049 = vld [vmem:[%s2979 + $0x1f4] sm:$0xf]
      %v3050 = vld [vmem:[%s2979 + $0x1f8] sm:$0xff]
      %v3051 = vld [vmem:[%s2979 + $0x200] sm:$0xff]
      %v3052 = vld [vmem:[%s2979 + $0x208] sm:$0xff]
      %v3053 = vld [vmem:[%s2979 + $0x210] sm:$0xff]
      %v3054 = vld [vmem:[%s2979 + $0x218] sm:$0xf]
      %v3055 = vld [vmem:[%s2979 + $0x21c] sm:$0xff]
      %v3056 = vld [vmem:[%s2979 + $0x224] sm:$0xff]
      %v3057 = vld [vmem:[%s2979 + $0x22c] sm:$0xff]
      %v3058 = vld [vmem:[%s2979 + $0x234] sm:$0xff]
      %v3059 = vld [vmem:[%s2979 + $0x23c] sm:$0xf]
      %v3060 = vld [vmem:[%s2979 + $0x240] sm:$0xff]
      %v3061 = vld [vmem:[%s2979 + $0x248] sm:$0xff]
      %v3062 = vld [vmem:[%s2979 + $0x250] sm:$0xff]
      %v3063 = vld [vmem:[%s2979 + $0x258] sm:$0xff]
      %v3064 = vld [vmem:[%s2979 + $0x260] sm:$0xf]
      %v3065 = vld [vmem:[%s2979 + $0x264] sm:$0xff]
      %v3066 = vld [vmem:[%s2979 + $0x26c] sm:$0xff]
      %v3067 = vld [vmem:[%s2979 + $0x274] sm:$0xff]
      %v3068 = vld [vmem:[%s2979 + $0x27c] sm:$0xff]
      %v3069 = vld [vmem:[%s2979 + $0x284] sm:$0xf]
      %v3070 = vld [vmem:[%s2979 + $0x288] sm:$0xff]
      %v3071 = vld [vmem:[%s2979 + $0x290] sm:$0xff]
      %v3072 = vld [vmem:[%s2979 + $0x298] sm:$0xff]
      %v3073 = vld [vmem:[%s2979 + $0x2a0] sm:$0xff]
      %v3074 = vld [vmem:[%s2979 + $0x2a8] sm:$0xf]
      %v3075 = vld [vmem:[%s2979 + $0x2ac] sm:$0xff]
      %v3076 = vld [vmem:[%s2979 + $0x2b4] sm:$0xff]
      %v3077 = vld [vmem:[%s2979 + $0x2bc] sm:$0xff]
      %v3078 = vld [vmem:[%s2979 + $0x2c4] sm:$0xff]
      %v3079 = vld [vmem:[%s2979 + $0x2cc] sm:$0xf]
      %v3080 = vld [vmem:[%s2979 + $0x2d0] sm:$0xff]
      %v3081 = vld [vmem:[%s2979 + $0x2d8] sm:$0xff]
      %v3082 = vld [vmem:[%s2979 + $0x2e0] sm:$0xff]
      %v3083 = vld [vmem:[%s2979 + $0x2e8] sm:$0xff]
      %v3084 = vld [vmem:[%s2979 + $0x2f0] sm:$0xf]
      %v3085 = vld [vmem:[%s2979 + $0x2f4] sm:$0xff]
      %v3086 = vld [vmem:[%s2979 + $0x2fc] sm:$0xff]
      %v3087 = vld [vmem:[%s2979 + $0x304] sm:$0xff]
      %v3088 = vld [vmem:[%s2979 + $0x30c] sm:$0xff]
      %v3089 = vld [vmem:[%s2979 + $0x314] sm:$0xf]
      %v3090 = vld [vmem:[%s2979 + $0x318] sm:$0xff]
      %v3091 = vld [vmem:[%s2979 + $0x320] sm:$0xff]
      %v3092 = vld [vmem:[%s2979 + $0x328] sm:$0xff]
      %v3093 = vld [vmem:[%s2979 + $0x330] sm:$0xff]
      %v3094 = vld [vmem:[%s2979 + $0x338] sm:$0xf]
      %v3095 = vld [vmem:[%s2979 + $0x33c] sm:$0xff]
      %v3096 = vld [vmem:[%s2979 + $0x344] sm:$0xff]
      %v3097 = vld [vmem:[%s2979 + $0x34c] sm:$0xff]
      %v3098 = vld [vmem:[%s2979 + $0x354] sm:$0xff]
      %v3099 = vld [vmem:[%s2979 + $0x35c] sm:$0xf]
      %v3100 = vld [vmem:[%s2979 + $0x360] sm:$0xff]
      %v3101 = vld [vmem:[%s2979 + $0x368] sm:$0xff]
      %v3102 = vld [vmem:[%s2979 + $0x370] sm:$0xff]
      %v3103 = vld [vmem:[%s2979 + $0x378] sm:$0xff]
      %v3104 = vld [vmem:[%s2979 + $0x380] sm:$0xf]
      %v3230 = vunpack.c.l.b16 %v2980
      %v3231 = vunpack.c.h.b16 %v2980
      %v3232 = vunpack.c.l.b16 %v2981
      %v3233 = vunpack.c.h.b16 %v2981
      %v3234 = vunpack.c.l.b16 %v2982
      %v3235 = vunpack.c.h.b16 %v2982
      %v3236 = vunpack.c.l.b16 %v2983
      %v3237 = vunpack.c.h.b16 %v2983
      %v3238 = vunpack.c.l.b16 %v2984
      %v3239 = vunpack.c.l.b16 %v2985
      %v3240 = vunpack.c.h.b16 %v2985
      %v3241 = vunpack.c.l.b16 %v2986
      %v3242 = vunpack.c.h.b16 %v2986
      %v3243 = vunpack.c.l.b16 %v2987
      %v3244 = vunpack.c.h.b16 %v2987
      %v3245 = vunpack.c.l.b16 %v2988
      %v3246 = vunpack.c.h.b16 %v2988
      %v3247 = vunpack.c.l.b16 %v2989
      %v3248 = vunpack.c.l.b16 %v2990
      %v3249 = vunpack.c.h.b16 %v2990
      %v3250 = vunpack.c.l.b16 %v2991
      %v3251 = vunpack.c.h.b16 %v2991
      %v3252 = vunpack.c.l.b16 %v2992
      %v3253 = vunpack.c.h.b16 %v2992
      %v3254 = vunpack.c.l.b16 %v2993
      %v3255 = vunpack.c.h.b16 %v2993
      %v3256 = vunpack.c.l.b16 %v2994
      %v3257 = vunpack.c.l.b16 %v2995
      %v3258 = vunpack.c.h.b16 %v2995
      %v3259 = vunpack.c.l.b16 %v2996
      %v3260 = vunpack.c.h.b16 %v2996
      %v3261 = vunpack.c.l.b16 %v2997
      %v3262 = vunpack.c.h.b16 %v2997
      %v3263 = vunpack.c.l.b16 %v2998
      %v3264 = vunpack.c.h.b16 %v2998
      %v3265 = vunpack.c.l.b16 %v2999
      %v3266 = vunpack.c.l.b16 %v3000
      %v3267 = vunpack.c.h.b16 %v3000
      %v3268 = vunpack.c.l.b16 %v3001
      %v3269 = vunpack.c.h.b16 %v3001
      %v3270 = vunpack.c.l.b16 %v3002
      %v3271 = vunpack.c.h.b16 %v3002
      %v3272 = vunpack.c.l.b16 %v3003
      %v3273 = vunpack.c.h.b16 %v3003
      %v3274 = vunpack.c.l.b16 %v3004
      %v3275 = vunpack.c.l.b16 %v3005
      %v3276 = vunpack.c.h.b16 %v3005
      %v3277 = vunpack.c.l.b16 %v3006
      %v3278 = vunpack.c.h.b16 %v3006
      %v3279 = vunpack.c.l.b16 %v3007
      %v3280 = vunpack.c.h.b16 %v3007
      %v3281 = vunpack.c.l.b16 %v3008
      %v3282 = vunpack.c.h.b16 %v3008
      %v3283 = vunpack.c.l.b16 %v3009
      %v3284 = vunpack.c.l.b16 %v3010
      %v3285 = vunpack.c.h.b16 %v3010
      %v3286 = vunpack.c.l.b16 %v3011
      %v3287 = vunpack.c.h.b16 %v3011
      %v3288 = vunpack.c.l.b16 %v3012
      %v3289 = vunpack.c.h.b16 %v3012
      %v3290 = vunpack.c.l.b16 %v3013
      %v3291 = vunpack.c.h.b16 %v3013
      %v3292 = vunpack.c.l.b16 %v3014
      %v3293 = vunpack.c.l.b16 %v3015
      %v3294 = vunpack.c.h.b16 %v3015
      %v3295 = vunpack.c.l.b16 %v3016
      %v3296 = vunpack.c.h.b16 %v3016
      %v3297 = vunpack.c.l.b16 %v3017
      %v3298 = vunpack.c.h.b16 %v3017
      %v3299 = vunpack.c.l.b16 %v3018
      %v3300 = vunpack.c.h.b16 %v3018
      %v3301 = vunpack.c.l.b16 %v3019
      %v3302 = vunpack.c.l.b16 %v3020
      %v3303 = vunpack.c.h.b16 %v3020
      %v3304 = vunpack.c.l.b16 %v3021
      %v3305 = vunpack.c.h.b16 %v3021
      %v3306 = vunpack.c.l.b16 %v3022
      %v3307 = vunpack.c.h.b16 %v3022
      %v3308 = vunpack.c.l.b16 %v3023
      %v3309 = vunpack.c.h.b16 %v3023
      %v3310 = vunpack.c.l.b16 %v3024
      %v3311 = vunpack.c.l.b16 %v3025
      %v3312 = vunpack.c.h.b16 %v3025
      %v3313 = vunpack.c.l.b16 %v3026
      %v3314 = vunpack.c.h.b16 %v3026
      %v3315 = vunpack.c.l.b16 %v3027
      %v3316 = vunpack.c.h.b16 %v3027
      %v3317 = vunpack.c.l.b16 %v3028
      %v3318 = vunpack.c.h.b16 %v3028
      %v3319 = vunpack.c.l.b16 %v3029
      %v3320 = vunpack.c.l.b16 %v3030
      %v3321 = vunpack.c.h.b16 %v3030
      %v3322 = vunpack.c.l.b16 %v3031
      %v3323 = vunpack.c.h.b16 %v3031
      %v3324 = vunpack.c.l.b16 %v3032
      %v3325 = vunpack.c.h.b16 %v3032
      %v3326 = vunpack.c.l.b16 %v3033
      %v3327 = vunpack.c.h.b16 %v3033
      %v3328 = vunpack.c.l.b16 %v3034
      %v3329 = vunpack.c.l.b16 %v3035
      %v3330 = vunpack.c.h.b16 %v3035
      %v3331 = vunpack.c.l.b16 %v3036
      %v3332 = vunpack.c.h.b16 %v3036
      %v3333 = vunpack.c.l.b16 %v3037
      %v3334 = vunpack.c.h.b16 %v3037
      %v3335 = vunpack.c.l.b16 %v3038
      %v3336 = vunpack.c.h.b16 %v3038
      %v3337 = vunpack.c.l.b16 %v3039
      %v3338 = vunpack.c.l.b16 %v3040
      %v3339 = vunpack.c.h.b16 %v3040
      %v3340 = vunpack.c.l.b16 %v3041
      %v3341 = vunpack.c.h.b16 %v3041
      %v3342 = vunpack.c.l.b16 %v3042
      %v3343 = vunpack.c.h.b16 %v3042
      %v3344 = vunpack.c.l.b16 %v3043
      %v3345 = vunpack.c.h.b16 %v3043
      %v3346 = vunpack.c.l.b16 %v3044
      %v3347 = vunpack.c.l.b16 %v3045
      %v3348 = vunpack.c.h.b16 %v3045
      %v3349 = vunpack.c.l.b16 %v3046
      %v3350 = vunpack.c.h.b16 %v3046
      %v3351 = vunpack.c.l.b16 %v3047
      %v3352 = vunpack.c.h.b16 %v3047
      %v3353 = vunpack.c.l.b16 %v3048
      %v3354 = vunpack.c.h.b16 %v3048
      %v3355 = vunpack.c.l.b16 %v3049
      %v3356 = vunpack.c.l.b16 %v3050
      %v3357 = vunpack.c.h.b16 %v3050
      %v3358 = vunpack.c.l.b16 %v3051
      %v3359 = vunpack.c.h.b16 %v3051
      %v3360 = vunpack.c.l.b16 %v3052
      %v3361 = vunpack.c.h.b16 %v3052
      %v3362 = vunpack.c.l.b16 %v3053
      %v3363 = vunpack.c.h.b16 %v3053
      %v3364 = vunpack.c.l.b16 %v3054
      %v3365 = vunpack.c.l.b16 %v3055
      %v3366 = vunpack.c.h.b16 %v3055
      %v3367 = vunpack.c.l.b16 %v3056
      %v3368 = vunpack.c.h.b16 %v3056
      %v3369 = vunpack.c.l.b16 %v3057
      %v3370 = vunpack.c.h.b16 %v3057
      %v3371 = vunpack.c.l.b16 %v3058
      %v3372 = vunpack.c.h.b16 %v3058
      %v3373 = vunpack.c.l.b16 %v3059
      %v3374 = vunpack.c.l.b16 %v3060
      %v3375 = vunpack.c.h.b16 %v3060
      %v3376 = vunpack.c.l.b16 %v3061
      %v3377 = vunpack.c.h.b16 %v3061
      %v3378 = vunpack.c.l.b16 %v3062
      %v3379 = vunpack.c.h.b16 %v3062
      %v3380 = vunpack.c.l.b16 %v3063
      %v3381 = vunpack.c.h.b16 %v3063
      %v3382 = vunpack.c.l.b16 %v3064
      %v3383 = vunpack.c.l.b16 %v3065
      %v3384 = vunpack.c.h.b16 %v3065
      %v3385 = vunpack.c.l.b16 %v3066
      %v3386 = vunpack.c.h.b16 %v3066
      %v3387 = vunpack.c.l.b16 %v3067
      %v3388 = vunpack.c.h.b16 %v3067
      %v3389 = vunpack.c.l.b16 %v3068
      %v3390 = vunpack.c.h.b16 %v3068
      %v3391 = vunpack.c.l.b16 %v3069
      %v3392 = vunpack.c.l.b16 %v3070
      %v3393 = vunpack.c.h.b16 %v3070
      %v3394 = vunpack.c.l.b16 %v3071
      %v3395 = vunpack.c.h.b16 %v3071
      %v3396 = vunpack.c.l.b16 %v3072
      %v3397 = vunpack.c.h.b16 %v3072
      %v3398 = vunpack.c.l.b16 %v3073
      %v3399 = vunpack.c.h.b16 %v3073
      %v3400 = vunpack.c.l.b16 %v3074
      %v3401 = vunpack.c.l.b16 %v3075
      %v3402 = vunpack.c.h.b16 %v3075
      %v3403 = vunpack.c.l.b16 %v3076
      %v3404 = vunpack.c.h.b16 %v3076
      %v3405 = vunpack.c.l.b16 %v3077
      %v3406 = vunpack.c.h.b16 %v3077
      %v3407 = vunpack.c.l.b16 %v3078
      %v3408 = vunpack.c.h.b16 %v3078
      %v3409 = vunpack.c.l.b16 %v3079
      %v3410 = vunpack.c.l.b16 %v3080
      %v3411 = vunpack.c.h.b16 %v3080
      %v3412 = vunpack.c.l.b16 %v3081
      %v3413 = vunpack.c.h.b16 %v3081
      %v3414 = vunpack.c.l.b16 %v3082
      %v3415 = vunpack.c.h.b16 %v3082
      %v3416 = vunpack.c.l.b16 %v3083
      %v3417 = vunpack.c.h.b16 %v3083
      %v3418 = vunpack.c.l.b16 %v3084
      %v3419 = vunpack.c.l.b16 %v3085
      %v3420 = vunpack.c.h.b16 %v3085
      %v3421 = vunpack.c.l.b16 %v3086
      %v3422 = vunpack.c.h.b16 %v3086
      %v3423 = vunpack.c.l.b16 %v3087
      %v3424 = vunpack.c.h.b16 %v3087
      %v3425 = vunpack.c.l.b16 %v3088
      %v3426 = vunpack.c.h.b16 %v3088
      %v3427 = vunpack.c.l.b16 %v3089
      %v3428 = vunpack.c.l.b16 %v3090
      %v3429 = vunpack.c.h.b16 %v3090
      %v3430 = vunpack.c.l.b16 %v3091
      %v3431 = vunpack.c.h.b16 %v3091
      %v3432 = vunpack.c.l.b16 %v3092
      %v3433 = vunpack.c.h.b16 %v3092
      %v3434 = vunpack.c.l.b16 %v3093
      %v3435 = vunpack.c.h.b16 %v3093
      %v3436 = vunpack.c.l.b16 %v3094
      %v3437 = vunpack.c.l.b16 %v3095
      %v3438 = vunpack.c.h.b16 %v3095
      %v3439 = vunpack.c.l.b16 %v3096
      %v3440 = vunpack.c.h.b16 %v3096
      %v3441 = vunpack.c.l.b16 %v3097
      %v3442 = vunpack.c.h.b16 %v3097
      %v3443 = vunpack.c.l.b16 %v3098
      %v3444 = vunpack.c.h.b16 %v3098
      %v3445 = vunpack.c.l.b16 %v3099
      %v3446 = vunpack.c.l.b16 %v3100
      %v3447 = vunpack.c.h.b16 %v3100
      %v3448 = vunpack.c.l.b16 %v3101
      %v3449 = vunpack.c.h.b16 %v3101
      %v3450 = vunpack.c.l.b16 %v3102
      %v3451 = vunpack.c.h.b16 %v3102
      %v3452 = vunpack.c.l.b16 %v3103
      %v3453 = vunpack.c.h.b16 %v3103
      %v3454 = vunpack.c.l.b16 %v3104
      %v3455 = vpack.c.b16 %v3239, %v3230
      %v3456 = vpack.c.b16 %v3240, %v3231
      %v3457 = vpack.c.b16 %v3241, %v3232
      %v3458 = vpack.c.b16 %v3242, %v3233
      %v3459 = vpack.c.b16 %v3243, %v3234
      %v3460 = vpack.c.b16 %v3244, %v3235
      %v3461 = vpack.c.b16 %v3245, %v3236
      %v3462 = vpack.c.b16 %v3246, %v3237
      %v3463 = vpack.c.b16 %v3247, %v3238
      %v3464 = vpack.c.b16 %v3257, %v3248
      %v3465 = vpack.c.b16 %v3258, %v3249
      %v3466 = vpack.c.b16 %v3259, %v3250
      %v3467 = vpack.c.b16 %v3260, %v3251
      %v3468 = vpack.c.b16 %v3261, %v3252
      %v3469 = vpack.c.b16 %v3262, %v3253
      %v3470 = vpack.c.b16 %v3263, %v3254
      %v3471 = vpack.c.b16 %v3264, %v3255
      %v3472 = vpack.c.b16 %v3265, %v3256
      %v3473 = vpack.c.b16 %v3275, %v3266
      %v3474 = vpack.c.b16 %v3276, %v3267
      %v3475 = vpack.c.b16 %v3277, %v3268
      %v3476 = vpack.c.b16 %v3278, %v3269
      %v3477 = vpack.c.b16 %v3279, %v3270
      %v3478 = vpack.c.b16 %v3280, %v3271
      %v3479 = vpack.c.b16 %v3281, %v3272
      %v3480 = vpack.c.b16 %v3282, %v3273
      %v3481 = vpack.c.b16 %v3283, %v3274
      %v3482 = vpack.c.b16 %v3293, %v3284
      %v3483 = vpack.c.b16 %v3294, %v3285
      %v3484 = vpack.c.b16 %v3295, %v3286
      %v3485 = vpack.c.b16 %v3296, %v3287
      %v3486 = vpack.c.b16 %v3297, %v3288
      %v3487 = vpack.c.b16 %v3298, %v3289
      %v3488 = vpack.c.b16 %v3299, %v3290
      %v3489 = vpack.c.b16 %v3300, %v3291
      %v3490 = vpack.c.b16 %v3301, %v3292
      %v3491 = vpack.c.b16 %v3311, %v3302
      %v3492 = vpack.c.b16 %v3312, %v3303
      %v3493 = vpack.c.b16 %v3313, %v3304
      %v3494 = vpack.c.b16 %v3314, %v3305
      %v3495 = vpack.c.b16 %v3315, %v3306
      %v3496 = vpack.c.b16 %v3316, %v3307
      %v3497 = vpack.c.b16 %v3317, %v3308
      %v3498 = vpack.c.b16 %v3318, %v3309
      %v3499 = vpack.c.b16 %v3319, %v3310
      %v3500 = vpack.c.b16 %v3329, %v3320
      %v3501 = vpack.c.b16 %v3330, %v3321
      %v3502 = vpack.c.b16 %v3331, %v3322
      %v3503 = vpack.c.b16 %v3332, %v3323
      %v3504 = vpack.c.b16 %v3333, %v3324
      %v3505 = vpack.c.b16 %v3334, %v3325
      %v3506 = vpack.c.b16 %v3335, %v3326
      %v3507 = vpack.c.b16 %v3336, %v3327
      %v3508 = vpack.c.b16 %v3337, %v3328
      %v3509 = vpack.c.b16 %v3347, %v3338
      %v3510 = vpack.c.b16 %v3348, %v3339
      %v3511 = vpack.c.b16 %v3349, %v3340
      %v3512 = vpack.c.b16 %v3350, %v3341
      %v3513 = vpack.c.b16 %v3351, %v3342
      %v3514 = vpack.c.b16 %v3352, %v3343
      %v3515 = vpack.c.b16 %v3353, %v3344
      %v3516 = vpack.c.b16 %v3354, %v3345
      %v3517 = vpack.c.b16 %v3355, %v3346
      %v3518 = vpack.c.b16 %v3365, %v3356
      %v3519 = vpack.c.b16 %v3366, %v3357
      %v3520 = vpack.c.b16 %v3367, %v3358
      %v3521 = vpack.c.b16 %v3368, %v3359
      %v3522 = vpack.c.b16 %v3369, %v3360
      %v3523 = vpack.c.b16 %v3370, %v3361
      %v3524 = vpack.c.b16 %v3371, %v3362
      %v3525 = vpack.c.b16 %v3372, %v3363
      %v3526 = vpack.c.b16 %v3373, %v3364
      %v3527 = vpack.c.b16 %v3383, %v3374
      %v3528 = vpack.c.b16 %v3384, %v3375
      %v3529 = vpack.c.b16 %v3385, %v3376
      %v3530 = vpack.c.b16 %v3386, %v3377
      %v3531 = vpack.c.b16 %v3387, %v3378
      %v3532 = vpack.c.b16 %v3388, %v3379
      %v3533 = vpack.c.b16 %v3389, %v3380
      %v3534 = vpack.c.b16 %v3390, %v3381
      %v3535 = vpack.c.b16 %v3391, %v3382
      %v3536 = vpack.c.b16 %v3401, %v3392
      %v3537 = vpack.c.b16 %v3402, %v3393
      %v3538 = vpack.c.b16 %v3403, %v3394
      %v3539 = vpack.c.b16 %v3404, %v3395
      %v3540 = vpack.c.b16 %v3405, %v3396
      %v3541 = vpack.c.b16 %v3406, %v3397
      %v3542 = vpack.c.b16 %v3407, %v3398
      %v3543 = vpack.c.b16 %v3408, %v3399
      %v3544 = vpack.c.b16 %v3409, %v3400
      %v3545 = vpack.c.b16 %v3419, %v3410
      %v3546 = vpack.c.b16 %v3420, %v3411
      %v3547 = vpack.c.b16 %v3421, %v3412
      %v3548 = vpack.c.b16 %v3422, %v3413
      %v3549 = vpack.c.b16 %v3423, %v3414
      %v3550 = vpack.c.b16 %v3424, %v3415
      %v3551 = vpack.c.b16 %v3425, %v3416
      %v3552 = vpack.c.b16 %v3426, %v3417
      %v3553 = vpack.c.b16 %v3427, %v3418
      %v3554 = vpack.c.b16 %v3437, %v3428
      %v3555 = vpack.c.b16 %v3438, %v3429
      %v3556 = vpack.c.b16 %v3439, %v3430
      %v3557 = vpack.c.b16 %v3440, %v3431
      %v3558 = vpack.c.b16 %v3441, %v3432
      %v3559 = vpack.c.b16 %v3442, %v3433
      %v3560 = vpack.c.b16 %v3443, %v3434
      %v3561 = vpack.c.b16 %v3444, %v3435
      %v3562 = vpack.c.b16 %v3445, %v3436
      %v3563 = vpack.c.b16 %v3446, %v3446
      %v3564 = vpack.c.b16 %v3447, %v3447
      %v3565 = vpack.c.b16 %v3448, %v3448
      %v3566 = vpack.c.b16 %v3449, %v3449
      %v3567 = vpack.c.b16 %v3450, %v3450
      %v3568 = vpack.c.b16 %v3451, %v3451
      %v3569 = vpack.c.b16 %v3452, %v3452
      %v3570 = vpack.c.b16 %v3453, %v3453
      %v3571 = vpack.c.b16 %v3454, %v3454
      %v3681 = vsel %vm883, %v3563, 0
      %v3684 = vsel %vm883, %v3564, 0
      %v3687 = vsel %vm883, %v3565, 0
      %v3690 = vsel %vm883, %v3566, 0
      %v3693 = vsel %vm883, %v3567, 0
      %v3696 = vsel %vm883, %v3568, 0
      %v3699 = vsel %vm883, %v3569, 0
      %v3702 = vsel %vm883, %v3570, 0
      %v3705 = vsel %vm883, %v3571, 0
      %3707 = vmatprep.subr.bf16.mxu0 %v3456
      %3708 = vmatpush1.bf16.msra.mxu0 %v3455
      %3709 = vmatprep.subr.bf16.mxu0 %v3465
      %3710 = vmatpush1.bf16.msra.mxu0 %v3464
      %3711 = vmatprep.subr.bf16.mxu0 %v3474
      %3712 = vmatpush1.bf16.msra.mxu0 %v3473
      %3713 = vmatprep.subr.bf16.mxu0 %v3483
      %3714 = vmatpush1.bf16.msra.mxu0 %v3482
      %3715 = vmatprep.subr.bf16.mxu0 %v3492
      %3716 = vmatpush1.bf16.msra.mxu0 %v3491
      %3717 = vmatprep.subr.bf16.mxu0 %v3501
      %3718 = vmatpush1.bf16.msra.mxu0 %v3500
      %3719 = vmatprep.subr.bf16.mxu0 %v3510
      %3720 = vmatpush1.bf16.msra.mxu0 %v3509
      %3721 = vmatprep.subr.bf16.mxu0 %v3519
      %3722 = vmatpush1.bf16.msra.mxu0 %v3518
      %3723 = vmatprep.subr.bf16.mxu0 %v3528
      %3724 = vmatpush1.bf16.msra.mxu0 %v3527
      %3725 = vmatprep.subr.bf16.mxu0 %v3537
      %3726 = vmatpush1.bf16.msra.mxu0 %v3536
      %3727 = vmatprep.subr.bf16.mxu0 %v3546
      %3728 = vmatpush1.bf16.msra.mxu0 %v3545
      %3729 = vmatprep.subr.bf16.mxu0 %v3555
      %3730 = vmatpush1.bf16.msra.mxu0 %v3554
      %3731 = vmatprep.subr.bf16.mxu0 %v3684
      %3732 = vmatpush1.bf16.msra.mxu0 %v3681
      %3733 = vmatprep.subr.bf16.mxu0 0
      %3734 = vmatpush1.bf16.msra.mxu0 0
      %3735 = vmatprep.subr.bf16.mxu0 0
      %3736 = vmatpush1.bf16.msra.mxu0 0
      %3737 = vmatprep.subr.bf16.mxu0 0
      %3738 = vmatpush1.bf16.msra.mxu0 0
      %3739 = vmatprep.mubr.bf16.mxu0 %v881
      %3740 = vmatmul.mubr.bf16.gmra.mrb[0].mxu0 %v301
      %v3741 = vpop.f32.mrb[0].mxu0
      %v3742 = vadd.f32 0.0, %v3741
      %v3743 = vpop.f32.mrb[0].mxu0
      %v3744 = vadd.f32 0.0, %v3743
      %v3745 = vpop.f32.mrb[0].mxu0
      %v3746 = vpop.f32.mrb[0].mxu0
      %3747 = vdwg.mxu0
      %3748 = vmatprep.subr.bf16.mxu0 %v3458
      %3749 = vmatpush1.bf16.msra.mxu0 %v3457
      %3750 = vmatprep.subr.bf16.mxu0 %v3467
      %3751 = vmatpush1.bf16.msra.mxu0 %v3466
      %3752 = vmatprep.subr.bf16.mxu0 %v3476
      %3753 = vmatpush1.bf16.msra.mxu0 %v3475
      %3754 = vmatprep.subr.bf16.mxu0 %v3485
      %3755 = vmatpush1.bf16.msra.mxu0 %v3484
      %3756 = vmatprep.subr.bf16.mxu0 %v3494
      %3757 = vmatpush1.bf16.msra.mxu0 %v3493
      %3758 = vmatprep.subr.bf16.mxu0 %v3503
      %3759 = vmatpush1.bf16.msra.mxu0 %v3502
      %3760 = vmatprep.subr.bf16.mxu0 %v3512
      %3761 = vmatpush1.bf16.msra.mxu0 %v3511
      %3762 = vmatprep.subr.bf16.mxu0 %v3521
      %3763 = vmatpush1.bf16.msra.mxu0 %v3520
      %3764 = vmatprep.subr.bf16.mxu0 %v3530
      %3765 = vmatpush1.bf16.msra.mxu0 %v3529
      %3766 = vmatprep.subr.bf16.mxu0 %v3539
      %3767 = vmatpush1.bf16.msra.mxu0 %v3538
      %3768 = vmatprep.subr.bf16.mxu0 %v3548
      %3769 = vmatpush1.bf16.msra.mxu0 %v3547
      %3770 = vmatprep.subr.bf16.mxu0 %v3557
      %3771 = vmatpush1.bf16.msra.mxu0 %v3556
      %3772 = vmatprep.subr.bf16.mxu0 %v3690
      %3773 = vmatpush1.bf16.msra.mxu0 %v3687
      %3774 = vmatprep.subr.bf16.mxu0 0
      %3775 = vmatpush1.bf16.msra.mxu0 0
      %3776 = vmatprep.subr.bf16.mxu0 0
      %3777 = vmatpush1.bf16.msra.mxu0 0
      %3778 = vmatprep.subr.bf16.mxu0 0
      %3779 = vmatpush1.bf16.msra.mxu0 0
      %3780 = vmatprep.mubr.bf16.mxu0 %v881
      %3781 = vmatmul.mubr.bf16.gmra.mrb[0].mxu0 %v301
      %v3782 = vpop.f32.mrb[0].mxu0
      %v3783 = vadd.f32 0.0, %v3782
      %v3784 = vpop.f32.mrb[0].mxu0
      %v3785 = vadd.f32 0.0, %v3784
      %v3786 = vpop.f32.mrb[0].mxu0
      %v3787 = vpop.f32.mrb[0].mxu0
      %3788 = vdwg.mxu0
      %3789 = vmatprep.subr.bf16.mxu0 %v3460
      %3790 = vmatpush1.bf16.msra.mxu0 %v3459
      %3791 = vmatprep.subr.bf16.mxu0 %v3469
      %3792 = vmatpush1.bf16.msra.mxu0 %v3468
      %3793 = vmatprep.subr.bf16.mxu0 %v3478
      %3794 = vmatpush1.bf16.msra.mxu0 %v3477
      %3795 = vmatprep.subr.bf16.mxu0 %v3487
      %3796 = vmatpush1.bf16.msra.mxu0 %v3486
      %3797 = vmatprep.subr.bf16.mxu0 %v3496
      %3798 = vmatpush1.bf16.msra.mxu0 %v3495
      %3799 = vmatprep.subr.bf16.mxu0 %v3505
      %3800 = vmatpush1.bf16.msra.mxu0 %v3504
      %3801 = vmatprep.subr.bf16.mxu0 %v3514
      %3802 = vmatpush1.bf16.msra.mxu0 %v3513
      %3803 = vmatprep.subr.bf16.mxu0 %v3523
      %3804 = vmatpush1.bf16.msra.mxu0 %v3522
      %3805 = vmatprep.subr.bf16.mxu0 %v3532
      %3806 = vmatpush1.bf16.msra.mxu0 %v3531
      %3807 = vmatprep.subr.bf16.mxu0 %v3541
      %3808 = vmatpush1.bf16.msra.mxu0 %v3540
      %3809 = vmatprep.subr.bf16.mxu0 %v3550
      %3810 = vmatpush1.bf16.msra.mxu0 %v3549
      %3811 = vmatprep.subr.bf16.mxu0 %v3559
      %3812 = vmatpush1.bf16.msra.mxu0 %v3558
      %3813 = vmatprep.subr.bf16.mxu0 %v3696
      %3814 = vmatpush1.bf16.msra.mxu0 %v3693
      %3815 = vmatprep.subr.bf16.mxu0 0
      %3816 = vmatpush1.bf16.msra.mxu0 0
      %3817 = vmatprep.subr.bf16.mxu0 0
      %3818 = vmatpush1.bf16.msra.mxu0 0
      %3819 = vmatprep.subr.bf16.mxu0 0
      %3820 = vmatpush1.bf16.msra.mxu0 0
      %3821 = vmatprep.mubr.bf16.mxu0 %v881
      %3822 = vmatmul.mubr.bf16.gmra.mrb[0].mxu0 %v301
      %v3823 = vpop.f32.mrb[0].mxu0
      %v3824 = vadd.f32 0.0, %v3823
      %v3825 = vpop.f32.mrb[0].mxu0
      %v3826 = vadd.f32 0.0, %v3825
      %v3827 = vpop.f32.mrb[0].mxu0
      %v3828 = vpop.f32.mrb[0].mxu0
      %3829 = vdwg.mxu0
      %3830 = vmatprep.subr.bf16.mxu0 %v3462
      %3831 = vmatpush1.bf16.msra.mxu0 %v3461
      %3832 = vmatprep.subr.bf16.mxu0 %v3471
      %3833 = vmatpush1.bf16.msra.mxu0 %v3470
      %3834 = vmatprep.subr.bf16.mxu0 %v3480
      %3835 = vmatpush1.bf16.msra.mxu0 %v3479
      %3836 = vmatprep.subr.bf16.mxu0 %v3489
      %3837 = vmatpush1.bf16.msra.mxu0 %v3488
      %3838 = vmatprep.subr.bf16.mxu0 %v3498
      %3839 = vmatpush1.bf16.msra.mxu0 %v3497
      %3840 = vmatprep.subr.bf16.mxu0 %v3507
      %3841 = vmatpush1.bf16.msra.mxu0 %v3506
      %3842 = vmatprep.subr.bf16.mxu0 %v3516
      %3843 = vmatpush1.bf16.msra.mxu0 %v3515
      %3844 = vmatprep.subr.bf16.mxu0 %v3525
      %3845 = vmatpush1.bf16.msra.mxu0 %v3524
      %3846 = vmatprep.subr.bf16.mxu0 %v3534
      %3847 = vmatpush1.bf16.msra.mxu0 %v3533
      %3848 = vmatprep.subr.bf16.mxu0 %v3543
      %3849 = vmatpush1.bf16.msra.mxu0 %v3542
      %3850 = vmatprep.subr.bf16.mxu0 %v3552
      %3851 = vmatpush1.bf16.msra.mxu0 %v3551
      %3852 = vmatprep.subr.bf16.mxu0 %v3561
      %3853 = vmatpush1.bf16.msra.mxu0 %v3560
      %3854 = vmatprep.subr.bf16.mxu0 %v3702
      %3855 = vmatpush1.bf16.msra.mxu0 %v3699
      %3856 = vmatprep.subr.bf16.mxu0 0
      %3857 = vmatpush1.bf16.msra.mxu0 0
      %3858 = vmatprep.subr.bf16.mxu0 0
      %3859 = vmatpush1.bf16.msra.mxu0 0
      %3860 = vmatprep.subr.bf16.mxu0 0
      %3861 = vmatpush1.bf16.msra.mxu0 0
      %3862 = vmatprep.mubr.bf16.mxu0 %v881
      %3863 = vmatmul.mubr.bf16.gmra.mrb[0].mxu0 %v301
      %v3864 = vpop.f32.mrb[0].mxu0
      %v3865 = vadd.f32 0.0, %v3864
      %v3866 = vpop.f32.mrb[0].mxu0
      %v3867 = vadd.f32 0.0, %v3866
      %v3868 = vpop.f32.mrb[0].mxu0
      %v3869 = vpop.f32.mrb[0].mxu0
      %3870 = vdwg.mxu0
      %3871 = vmatprep.subr.bf16.mxu0 0
      %3872 = vmatpush1.bf16.msra.mxu0 %v3463
      %3873 = vmatprep.subr.bf16.mxu0 0
      %3874 = vmatpush1.bf16.msra.mxu0 %v3472
      %3875 = vmatprep.subr.bf16.mxu0 0
      %3876 = vmatpush1.bf16.msra.mxu0 %v3481
      %3877 = vmatprep.subr.bf16.mxu0 0
      %3878 = vmatpush1.bf16.msra.mxu0 %v3490
      %3879 = vmatprep.subr.bf16.mxu0 0
      %3880 = vmatpush1.bf16.msra.mxu0 %v3499
      %3881 = vmatprep.subr.bf16.mxu0 0
      %3882 = vmatpush1.bf16.msra.mxu0 %v3508
      %3883 = vmatprep.subr.bf16.mxu0 0
      %3884 = vmatpush1.bf16.msra.mxu0 %v3517
      %3885 = vmatprep.subr.bf16.mxu0 0
      %3886 = vmatpush1.bf16.msra.mxu0 %v3526
      %3887 = vmatprep.subr.bf16.mxu0 0
      %3888 = vmatpush1.bf16.msra.mxu0 %v3535
      %3889 = vmatprep.subr.bf16.mxu0 0
      %3890 = vmatpush1.bf16.msra.mxu0 %v3544
      %3891 = vmatprep.subr.bf16.mxu0 0
      %3892 = vmatpush1.bf16.msra.mxu0 %v3553
      %3893 = vmatprep.subr.bf16.mxu0 0
      %3894 = vmatpush1.bf16.msra.mxu0 %v3562
      %3895 = vmatprep.subr.bf16.mxu0 0
      %3896 = vmatpush1.bf16.msra.mxu0 %v3705
      %3897 = vmatprep.subr.bf16.mxu0 0
      %3898 = vmatpush1.bf16.msra.mxu0 0
      %3899 = vmatprep.subr.bf16.mxu0 0
      %3900 = vmatpush1.bf16.msra.mxu0 0
      %3901 = vmatprep.subr.bf16.mxu0 0
      %3902 = vmatpush1.bf16.msra.mxu0 0
      %3903 = vmatprep.mubr.bf16.mxu0 %v881
      %3904 = vmatmul.mubr.bf16.gmra.mrb[0].mxu0 %v301
      %v3905 = vpop.f32.mrb[0].mxu0
      %v3906 = vadd.f32 0.0, %v3905
      %v3907 = vpop.f32.mrb[0].mxu0
      %v3908 = vpop.f32.mrb[0].mxu0
      %v3909 = vpop.f32.mrb[0].mxu0
      %3910 = vdwg.mxu0
      %v3911 = vmax.f32 %v946, %v1878
      %v3912 = vmax.f32 %v948, %v1880
      %v3913 = vmax.f32 %v987, %v1919
      %v3914 = vmax.f32 %v989, %v1921
      %v3915 = vmax.f32 %v1028, %v1960
      %v3916 = vmax.f32 %v1030, %v1962
      %v3917 = vmax.f32 %v1069, %v2001
      %v3918 = vmax.f32 %v1071, %v2003
      %v3919 = vmax.f32 %v1110, %v2042
      %v3920 = vmax.f32 %v2810, %v3742
      %v3921 = vmax.f32 %v2812, %v3744
      %v3922 = vmax.f32 %v2851, %v3783
      %v3923 = vmax.f32 %v2853, %v3785
      %v3924 = vmax.f32 %v2892, %v3824
      %v3925 = vmax.f32 %v2894, %v3826
      %v3926 = vmax.f32 %v2933, %v3865
      %v3927 = vmax.f32 %v2935, %v3867
      %v3928 = vmax.f32 %v2974, %v3906
      %v3929 = vmax.f32 %v3911, %v3920
      %v3930 = vmax.f32 %v3912, %v3921
      %v3931 = vmax.f32 %v3913, %v3922
      %v3932 = vmax.f32 %v3914, %v3923
      %v3933 = vmax.f32 %v3915, %v3924
      %v3934 = vmax.f32 %v3916, %v3925
      %v3935 = vmax.f32 %v3917, %v3926
      %v3936 = vmax.f32 %v3918, %v3927
      %v3937 = vmax.f32 %v3919, %v3928
      %v3938 = vld [vmem:[%s2] sm:$0x1f]
      %3940 = vset.pattern.permute.xlu0 0
      %3941 = vperm.xlu0 %3940, %v3938
      %v3942 = vpop.permute.xlu0 %3941
      %v3944 = vadd.f32 %v3929, %v3942
      %v3945 = vadd.f32 %v3930, %v3942
      %v3946 = vadd.f32 %v3931, %v3942
      %v3947 = vadd.f32 %v3932, %v3942
      %v3948 = vadd.f32 %v3933, %v3942
      %v3949 = vadd.f32 %v3934, %v3942
      %v3950 = vadd.f32 %v3935, %v3942
      %v3951 = vadd.f32 %v3936, %v3942
      %v3952 = vadd.f32 %v3937, %v3942
      %v3953 = vmax.f32 %v3944, 0.0
      %v3954 = vmax.f32 %v3945, 0.0
      %v3955 = vmax.f32 %v3946, 0.0
      %v3956 = vmax.f32 %v3947, 0.0
      %v3957 = vmax.f32 %v3948, 0.0
      %v3958 = vmax.f32 %v3949, 0.0
      %v3959 = vmax.f32 %v3950, 0.0
      %v3960 = vmax.f32 %v3951, 0.0
      %v3961 = vmax.f32 %v3952, 0.0
      %3962 = vst [vmem:[%s170] sm:$0x1f] %v3953
      %3963 = vst [vmem:[%s170 + $0x8] sm:$0x1f] %v3954
      %3964 = vst [vmem:[%s170 + $0x10] sm:$0x1f] %v3955
      %3965 = vst [vmem:[%s170 + $0x18] sm:$0x1f] %v3956
      %3966 = vst [vmem:[%s170 + $0x20] sm:$0x1f] %v3957
      %3967 = vst [vmem:[%s170 + $0x28] sm:$0x1f] %v3958
      %3968 = vst [vmem:[%s170 + $0x30] sm:$0x1f] %v3959
      %3969 = vst [vmem:[%s170 + $0x38] sm:$0x1f] %v3960
      %vm3970 = vcmask 45056
      %3971 = vst.msk [vmem:[%s170 + $0x40] sm:$0x1f] %vm3970, %v3961
      %p3972 = scmp.lt.s32.totalorder %s14, 1
      %s3973 = scalar_select %p3972, %s14, 1
      %s3974 = smul.addr %s3973, 9
      %s3975 = smul.addr %s3974, 8
      %s3976 = scalar_lea.vmem %s3, %s3975
      // Predicated region
      $region33: #{net_forward.3} parent=31 // pred_check
        %p3977 = pneg %p100
      $region34: #{net_forward.3} parent=31 // pred_check_branch
        %3979 = sbr.rel (%p3977) target = $region36
      $region35: #{net_forward.3} parent=31 // pred_region
        _
      $region36: #{net_forward.3} parent=31 // pred_fallthru
        _
    $region32: #{net_forward.3} parent=5 // pred_fallthru
      _
    %p3980 = scmp.le.s32.totalorder 2, %s9
    // Predicated region
    $region37: #{net_forward.3} parent=5 // pred_check
      %p3981 = pneg %p3980
    $region38: #{net_forward.3} parent=5 // pred_check_branch
      %3983 = sbr.rel (%p3981) target = $region40
    $region39: #{net_forward.3} parent=5 // pred_region
      %s3984 = ssub.s32 %s9, 2
      // Predicated region
      $region41: #{net_forward.3} parent=39 // pred_check
        %p3985 = pneg %p106
      $region42: #{net_forward.3} parent=39 // pred_check_branch
        %3987 = sbr.rel (%p3985) target = $region44
      $region43: #{net_forward.3} parent=39 // pred_region
        %p3988 = scmp.lt.s32.totalorder %s15, 1
        %s3989 = scalar_select %p3988, %s15, 1
        %s3990 = smul.addr %s3989, 9
        %s3991 = smul.addr %s3990, 8
        %s3992 = scalar_lea.vmem %s3, %s3991
      $region44: #{net_forward.3} parent=39 // pred_fallthru
        _
    $region40: #{net_forward.3} parent=5 // pred_fallthru
      _
  $region6: #{net_forward.3} parent=0 // loop_footer
    %s13 = sadd.s32 1, %s9
  $region7: #{net_forward.3} parent=0 // loop_footer_branch
    %8 = sbr.rel target = $region3
  $region8: #{net_forward.3} parent=0 // loop_exit
    _

// kernel: net_forward.4
$region0: #{net_forward.4}
  #allocation0 [shape = 'u32[]', space=smem, size = 0x4, offset = 0x4, fixed_abs, tag = 'smem constant byte address 0x4 - core index']
  #allocation1 [shape = 'u32[144,128]{1,0:T(1,128)}', space=vmem, size = 0x12000, scoped, tag = 'internal scratch']
  %s0 = inlined_call_operand.vmem [shape: bf16[2,4,1000,106], index: 0, kind: input, shape index: {}]
  %s1 = inlined_call_operand.vmem [shape: bf16[10,1000], index: 1, kind: input, shape index: {}]
  %s2 = inlined_call_operand.vmem [shape: f32[10,1], index: 2, kind: input, shape index: {}]
  %s3 = inlined_call_operand.vmem [shape: f32[2,10,106], index: 3, kind: output, shape index: {}]
  %s4 = sld [smem:[#allocation0]]
  $region45: #{net_forward.4} parent=0
    _
  %s6 = ssub.s32 1, %s4
  %s7 = scalar_select 0, %s6, %s4
  loop: start=0, step=1, limit=4
  $region2: #{net_forward.4} parent=0 // loop_pre_header
    _
  $region3: #{net_forward.4} parent=0 // loop_header
    %s9 = sphi 0, %s13
    %p10 = scmp.ge.s32.totalorder %s9, 4
    %s19 = sphi 0, %s21
    %s22 = sphi 0, %s19
    %s23 = sphi 0, %s22
    %s39 = sphi 0, %s23
    %s43 = sphi 0, %s43
    %s45 = sphi 0, %s43
    %s46 = sphi 0, %s45
    %s60 = sphi 0, %s46
    %s64 = sphi 0, %s64
    %s66 = sphi 0, %s64
    %s67 = sphi 0, %s66
    %s81 = sphi 0, %s67
    %s87 = sphi 0, %s89
    %s90 = sphi 0, %s87
    %s91 = sphi 0, %s90
    %s107 = sphi 0, %s91
  $region4: #{net_forward.4} parent=0 // loop_header_branch
    %12 = sbr.rel (%p10) target = $region8
  $region5: #{net_forward.4} parent=0 // loop_body
    %s14 = ssub.s32 %s9, 1
    %s15 = ssub.s32 %s9, 2
    %s16 = sadd.s32 %s9, 1
    %s17 = ssub.s32 %s9, %s16
    %p18 = scmp.eq.s32.totalorder %s17, 0
    %s20 = sadd.s32 %s19, 1
    %s21 = scalar_select %p18, %s19, %s20
    %p24 = pneg %p18
    %p25 = scmp.eq.s32.totalorder %s9, 1
    %p26 = por %p24, %p25
    %p27 = scmp.ne.s32.totalorder %s19, %s22
    %p28 = scmp.eq.s32.totalorder %s9, 0
    %p29 = por %p27, %p28
    %p30 = scmp.ne.s32.totalorder %s19, %s22
    %p31 = scmp.eq.s32.totalorder %s14, 1
    %p32 = por %p30, %p31
    %p33 = scmp.ne.s32.totalorder %s22, %s23
    %p34 = scmp.eq.s32.totalorder %s14, 0
    %p35 = por %p33, %p34
    %p36 = scmp.ne.s32.totalorder %s22, %s23
    %p37 = scmp.eq.s32.totalorder %s15, 1
    %p38 = por %p36, %p37
    %p40 = scmp.ne.s32.totalorder %s23, %s39
    %p41 = scmp.eq.s32.totalorder %s15, 0
    %p42 = por %p40, %p41
    %s44 = sadd.s32 %s43, 1
    %p47 = scmp.eq.s32.totalorder %s9, 1
    %p48 = scmp.ne.s32.totalorder %s43, %s45
    %p49 = scmp.eq.s32.totalorder %s9, 0
    %p50 = por %p48, %p49
    %p51 = scmp.ne.s32.totalorder %s43, %s45
    %p52 = scmp.eq.s32.totalorder %s14, 1
    %p53 = por %p51, %p52
    %p54 = scmp.ne.s32.totalorder %s45, %s46
    %p55 = scmp.eq.s32.totalorder %s14, 0
    %p56 = por %p54, %p55
    %p57 = scmp.ne.s32.totalorder %s45, %s46
    %p58 = scmp.eq.s32.totalorder %s15, 1
    %p59 = por %p57, %p58
    %p61 = scmp.ne.s32.totalorder %s46, %s60
    %p62 = scmp.eq.s32.totalorder %s15, 0
    %p63 = por %p61, %p62
    %s65 = sadd.s32 %s64, 1
    %p68 = scmp.eq.s32.totalorder %s9, 1
    %p69 = scmp.ne.s32.totalorder %s64, %s66
    %p70 = scmp.eq.s32.totalorder %s9, 0
    %p71 = por %p69, %p70
    %p72 = scmp.ne.s32.totalorder %s64, %s66
    %p73 = scmp.eq.s32.totalorder %s14, 1
    %p74 = por %p72, %p73
    %p75 = scmp.ne.s32.totalorder %s66, %s67
    %p76 = scmp.eq.s32.totalorder %s14, 0
    %p77 = por %p75, %p76
    %p78 = scmp.ne.s32.totalorder %s66, %s67
    %p79 = scmp.eq.s32.totalorder %s15, 1
    %p80 = por %p78, %p79
    %p82 = scmp.ne.s32.totalorder %s67, %s81
    %p83 = scmp.eq.s32.totalorder %s15, 0
    %p84 = por %p82, %p83
    %s85 = ssub.s32 %s9, %s16
    %p86 = scmp.eq.s32.totalorder %s85, 0
    %s88 = sadd.s32 %s87, 1
    %s89 = scalar_select %p86, %s87, %s88
    %p92 = pneg %p86
    %p93 = scmp.eq.s32.totalorder %s9, 1
    %p94 = por %p92, %p93
    %p95 = scmp.ne.s32.totalorder %s87, %s90
    %p96 = scmp.eq.s32.totalorder %s9, 0
    %p97 = por %p95, %p96
    %p98 = scmp.ne.s32.totalorder %s87, %s90
    %p99 = scmp.eq.s32.totalorder %s14, 1
    %p100 = por %p98, %p99
    %p101 = scmp.ne.s32.totalorder %s90, %s91
    %p102 = scmp.eq.s32.totalorder %s14, 0
    %p103 = por %p101, %p102
    %p104 = scmp.ne.s32.totalorder %s90, %s91
    %p105 = scmp.eq.s32.totalorder %s15, 1
    %p106 = por %p104, %p105
    %p108 = scmp.ne.s32.totalorder %s91, %s107
    %p109 = scmp.eq.s32.totalorder %s15, 0
    %p110 = por %p108, %p109
    %p111 = scmp.le.s32.totalorder 1, %s9
    %p112 = scmp.lt.s32.totalorder %s9, 3
    %p113 = pnand %p111, %p112
    %p114 = pneg %p113
    // Predicated region
    $region9: #{net_forward.4} parent=5 // pred_check
      _
    $region10: #{net_forward.4} parent=5 // pred_check_branch
      %116 = sbr.rel (%p113) target = $region12
    $region11: #{net_forward.4} parent=5 // pred_region
      %s117 = ssub.s32 %s9, 1
      // Predicated region
      $region13: #{net_forward.4} parent=11 // pred_check
        %p118 = pneg %p56
      $region14: #{net_forward.4} parent=11 // pred_check_branch
        %120 = sbr.rel (%p118) target = $region16
      $region15: #{net_forward.4} parent=11 // pred_region
        _
      $region16: #{net_forward.4} parent=11 // pred_fallthru
        _
      // Predicated region
      $region17: #{net_forward.4} parent=11 // pred_check
        %p121 = pneg %p77
      $region18: #{net_forward.4} parent=11 // pred_check_branch
        %123 = sbr.rel (%p121) target = $region20
      $region19: #{net_forward.4} parent=11 // pred_region
        _
      $region20: #{net_forward.4} parent=11 // pred_fallthru
        _
    $region12: #{net_forward.4} parent=5 // pred_fallthru
      _
    %p124 = scmp.lt.s32.totalorder %s9, 2
    // Predicated region
    $region21: #{net_forward.4} parent=5 // pred_check
      %p125 = pneg %p124
    $region22: #{net_forward.4} parent=5 // pred_check_branch
      %127 = sbr.rel (%p125) target = $region24
    $region23: #{net_forward.4} parent=5 // pred_region
      // Predicated region
      $region25: #{net_forward.4} parent=23 // pred_check
        %p128 = pneg %p29
      $region26: #{net_forward.4} parent=23 // pred_check_branch
        %130 = sbr.rel (%p128) target = $region28
      $region27: #{net_forward.4} parent=23 // pred_region
        %p131 = scmp.lt.s32.totalorder %s9, 1
        %s132 = scalar_select %p131, %s9, 1
        %s133 = smul.addr %s132, 500
        %s134 = smul.addr %s133, 4
        %s135 = scalar_lea.vmem %s0, %s134
      $region28: #{net_forward.4} parent=23 // pred_fallthru
        _
    $region24: #{net_forward.4} parent=5 // pred_fallthru
      _
    %p136 = scmp.le.s32.totalorder 1, %s9
    %p137 = scmp.lt.s32.totalorder %s9, 3
    %p138 = pnand %p136, %p137
    %p139 = pneg %p138
    // Predicated region
    $region29: #{net_forward.4} parent=5 // pred_check
      _
    $region30: #{net_forward.4} parent=5 // pred_check_branch
      %141 = sbr.rel (%p138) target = $region32
    $region31: #{net_forward.4} parent=5 // pred_region
      %s142 = ssub.s32 %s9, 1
      %p143 = scmp.lt.s32.totalorder %s14, 1
      %s144 = scalar_select %p143, %s14, 1
      %s145 = smul.addr %s144, 500
      %s146 = smul.addr %s145, 4
      %s147 = scalar_lea.vmem %s0, %s146
      %p148 = pneg %p35
      %p149 = pneg %p32
      %p150 = pneg %p56
      %p151 = pneg %p53
      %p152 = pneg %p77
      %p153 = pneg %p74
      %p154 = pneg %p103
      %p155 = pneg %p100
      %p156 = scmp.lt.s32.totalorder %s14, 1
      %s157 = scalar_select %p156, %s14, 1
      %s158 = smul.addr %s157, 2
      %s159 = smul.addr %s158, 8
      %s160 = scalar_lea.vmem %s3, %s159
      %p161 = scmp.lt.s32.totalorder %s14, 1
      %s162 = scalar_select %p161, %s14, 1
      %s163 = smul.addr %s162, 500
      %s164 = smul.addr %s163, 4
      %s165 = scalar_lea.vmem %s0, %s164
      %p166 = scmp.lt.s32.totalorder %s14, 1
      %s167 = scalar_select %p166, %s14, 1
      %s168 = smul.addr %s167, 2
      %s169 = smul.addr %s168, 8
      %s170 = scalar_lea.vmem %s3, %s169
      %v172 = vld [vmem:[%s1] sm:$0xff]
      %v173 = vld [vmem:[%s1 + $0x8] sm:$0xff]
      %v174 = vld [vmem:[%s1 + $0x10] sm:$0xff]
      %v175 = vld [vmem:[%s1 + $0x18] sm:$0xff]
      %v176 = vld [vmem:[%s1 + $0x20] sm:$0x11]
      %v177 = vld [vmem:[%s1 + $0x28] sm:$0x11]
      %v178 = vld [vmem:[%s1 + $0x30] sm:$0x11]
      %v179 = vld [vmem:[%s1 + $0x38] sm:$0x11]
      %v180 = vld [vmem:[%s165] sm:$0xf]
      %v181 = vld [vmem:[%s165 + $0x4] sm:$0xf]
      %v182 = vld [vmem:[%s165 + $0x8] sm:$0xf]
      %v183 = vld [vmem:[%s165 + $0xc] sm:$0xf]
      %v184 = vld [vmem:[%s165 + $0x10] sm:$0xf]
      %v185 = vld [vmem:[%s165 + $0x14] sm:$0xf]
      %v186 = vld [vmem:[%s165 + $0x18] sm:$0xf]
      %v187 = vld [vmem:[%s165 + $0x1c] sm:$0xf]
      %v188 = vld [vmem:[%s165 + $0x20] sm:$0xf]
      %v189 = vld [vmem:[%s165 + $0x24] sm:$0xf]
      %v190 = vld [vmem:[%s165 + $0x28] sm:$0xf]
      %v191 = vld [vmem:[%s165 + $0x2c] sm:$0xf]
      %v192 = vld [vmem:[%s165 + $0x30] sm:$0xf]
      %v193 = vld [vmem:[%s165 + $0x34] sm:$0xf]
      %v194 = vld [vmem:[%s165 + $0x38] sm:$0xf]
      %v195 = vld [vmem:[%s165 + $0x3c] sm:$0xf]
      %v196 = vld [vmem:[%s165 + $0x40] sm:$0xf]
      %v197 = vld [vmem:[%s165 + $0x44] sm:$0xf]
      %v198 = vld [vmem:[%s165 + $0x48] sm:$0xf]
      %v199 = vld [vmem:[%s165 + $0x4c] sm:$0xf]
      %v200 = vld [vmem:[%s165 + $0x50] sm:$0xf]
      %v201 = vld [vmem:[%s165 + $0x54] sm:$0xf]
      %v202 = vld [vmem:[%s165 + $0x58] sm:$0xf]
      %v203 = vld [vmem:[%s165 + $0x5c] sm:$0xf]
      %v204 = vld [vmem:[%s165 + $0x60] sm:$0xf]
      %v205 = vld [vmem:[%s165 + $0x64] sm:$0xf]
      %v206 = vld [vmem:[%s165 + $0x68] sm:$0xf]
      %v207 = vld [vmem:[%s165 + $0x6c] sm:$0xf]
      %v208 = vld [vmem:[%s165 + $0x70] sm:$0xf]
      %v209 = vld [vmem:[%s165 + $0x74] sm:$0xf]
      %v210 = vld [vmem:[%s165 + $0x78] sm:$0xf]
      %v211 = vld [vmem:[%s165 + $0x7c] sm:$0xf]
      %v212 = vld [vmem:[%s165 + $0x80] sm:$0xf]
      %v213 = vld [vmem:[%s165 + $0x84] sm:$0xf]
      %v214 = vld [vmem:[%s165 + $0x88] sm:$0xf]
      %v215 = vld [vmem:[%s165 + $0x8c] sm:$0xf]
      %v216 = vld [vmem:[%s165 + $0x90] sm:$0xf]
      %v217 = vld [vmem:[%s165 + $0x94] sm:$0xf]
      %v218 = vld [vmem:[%s165 + $0x98] sm:$0xf]
      %v219 = vld [vmem:[%s165 + $0x9c] sm:$0xf]
      %v220 = vld [vmem:[%s165 + $0xa0] sm:$0xf]
      %v221 = vld [vmem:[%s165 + $0xa4] sm:$0xf]
      %v222 = vld [vmem:[%s165 + $0xa8] sm:$0xf]
      %v223 = vld [vmem:[%s165 + $0xac] sm:$0xf]
      %v224 = vld [vmem:[%s165 + $0xb0] sm:$0xf]
      %v225 = vld [vmem:[%s165 + $0xb4] sm:$0xf]
      %v226 = vld [vmem:[%s165 + $0xb8] sm:$0xf]
      %v227 = vld [vmem:[%s165 + $0xbc] sm:$0xf]
      %v228 = vld [vmem:[%s165 + $0xc0] sm:$0xf]
      %v229 = vld [vmem:[%s165 + $0xc4] sm:$0xf]
      %v230 = vld [vmem:[%s165 + $0xc8] sm:$0xf]
      %v231 = vld [vmem:[%s165 + $0xcc] sm:$0xf]
      %v232 = vld [vmem:[%s165 + $0xd0] sm:$0xf]
      %v233 = vld [vmem:[%s165 + $0xd4] sm:$0xf]
      %v234 = vld [vmem:[%s165 + $0xd8] sm:$0xf]
      %v235 = vld [vmem:[%s165 + $0xdc] sm:$0xf]
      %v236 = vld [vmem:[%s165 + $0xe0] sm:$0xf]
      %v237 = vld [vmem:[%s165 + $0xe4] sm:$0xf]
      %v238 = vld [vmem:[%s165 + $0xe8] sm:$0xf]
      %v239 = vld [vmem:[%s165 + $0xec] sm:$0xf]
      %v240 = vld [vmem:[%s165 + $0xf0] sm:$0xf]
      %v241 = vld [vmem:[%s165 + $0xf4] sm:$0xf]
      %v242 = vld [vmem:[%s165 + $0xf8] sm:$0xf]
      %v243 = vld [vmem:[%s165 + $0xfc] sm:$0xf]
      %v244 = vld [vmem:[%s165 + $0x100] sm:$0xf]
      %v245 = vld [vmem:[%s165 + $0x104] sm:$0xf]
      %v246 = vld [vmem:[%s165 + $0x108] sm:$0xf]
      %v247 = vld [vmem:[%s165 + $0x10c] sm:$0xf]
      %v248 = vld [vmem:[%s165 + $0x110] sm:$0xf]
      %v249 = vld [vmem:[%s165 + $0x114] sm:$0xf]
      %v250 = vld [vmem:[%s165 + $0x118] sm:$0xf]
      %v251 = vld [vmem:[%s165 + $0x11c] sm:$0xf]
      %v252 = vld [vmem:[%s165 + $0x120] sm:$0xf]
      %v253 = vld [vmem:[%s165 + $0x124] sm:$0xf]
      %v254 = vld [vmem:[%s165 + $0x128] sm:$0xf]
      %v255 = vld [vmem:[%s165 + $0x12c] sm:$0xf]
      %v256 = vld [vmem:[%s165 + $0x130] sm:$0xf]
      %v257 = vld [vmem:[%s165 + $0x134] sm:$0xf]
      %v258 = vld [vmem:[%s165 + $0x138] sm:$0xf]
      %v259 = vld [vmem:[%s165 + $0x13c] sm:$0xf]
      %v260 = vld [vmem:[%s165 + $0x140] sm:$0xf]
      %v261 = vld [vmem:[%s165 + $0x144] sm:$0xf]
      %v262 = vld [vmem:[%s165 + $0x148] sm:$0xf]
      %v263 = vld [vmem:[%s165 + $0x14c] sm:$0xf]
      %v264 = vld [vmem:[%s165 + $0x150] sm:$0xf]
      %v265 = vld [vmem:[%s165 + $0x154] sm:$0xf]
      %v266 = vld [vmem:[%s165 + $0x158] sm:$0xf]
      %v267 = vld [vmem:[%s165 + $0x15c] sm:$0xf]
      %v268 = vld [vmem:[%s165 + $0x160] sm:$0xf]
      %v269 = vld [vmem:[%s165 + $0x164] sm:$0xf]
      %v270 = vld [vmem:[%s165 + $0x168] sm:$0xf]
      %v271 = vld [vmem:[%s165 + $0x16c] sm:$0xf]
      %v272 = vld [vmem:[%s165 + $0x170] sm:$0xf]
      %v273 = vld [vmem:[%s165 + $0x174] sm:$0xf]
      %v274 = vld [vmem:[%s165 + $0x178] sm:$0xf]
      %v275 = vld [vmem:[%s165 + $0x17c] sm:$0xf]
      %v276 = vld [vmem:[%s165 + $0x180] sm:$0xf]
      %v277 = vld [vmem:[%s165 + $0x184] sm:$0xf]
      %v278 = vld [vmem:[%s165 + $0x188] sm:$0xf]
      %v279 = vld [vmem:[%s165 + $0x18c] sm:$0xf]
      %v280 = vld [vmem:[%s165 + $0x190] sm:$0xf]
      %v281 = vld [vmem:[%s165 + $0x194] sm:$0xf]
      %v282 = vld [vmem:[%s165 + $0x198] sm:$0xf]
      %v283 = vld [vmem:[%s165 + $0x19c] sm:$0xf]
      %v284 = vld [vmem:[%s165 + $0x1a0] sm:$0xf]
      %v285 = vld [vmem:[%s165 + $0x1a4] sm:$0xf]
      %v286 = vld [vmem:[%s165 + $0x1a8] sm:$0xf]
      %v287 = vld [vmem:[%s165 + $0x1ac] sm:$0xf]
      %v288 = vld [vmem:[%s165 + $0x1b0] sm:$0xf]
      %v289 = vld [vmem:[%s165 + $0x1b4] sm:$0xf]
      %v290 = vld [vmem:[%s165 + $0x1b8] sm:$0xf]
      %v291 = vld [vmem:[%s165 + $0x1bc] sm:$0xf]
      %v292 = vld [vmem:[%s165 + $0x1c0] sm:$0xf]
      %v293 = vld [vmem:[%s165 + $0x1c4] sm:$0xf]
      %v294 = vld [vmem:[%s165 + $0x1c8] sm:$0xf]
      %v295 = vld [vmem:[%s165 + $0x1cc] sm:$0xf]
      %v296 = vld [vmem:[%s165 + $0x1d0] sm:$0xf]
      %v297 = vld [vmem:[%s165 + $0x1d4] sm:$0xf]
      %v298 = vld [vmem:[%s165 + $0x1d8] sm:$0xf]
      %v299 = vld [vmem:[%s165 + $0x1dc] sm:$0xf]
      %v300 = vld [vmem:[%s165 + $0x1e0] sm:$0xf]
      %v301 = vld [vmem:[%s165 + $0x1e4] sm:$0xf]
      %v302 = vld [vmem:[%s165 + $0x1e8] sm:$0xf]
      %v303 = vld [vmem:[%s165 + $0x1ec] sm:$0xf]
      %v304 = vld [vmem:[%s165 + $0x1f0] sm:$0xf]
      %v313 = vunpack.c.l.b16 %v172
      %v314 = vunpack.c.h.b16 %v172
      %v315 = vunpack.c.l.b16 %v173
      %v316 = vunpack.c.h.b16 %v173
      %v317 = vunpack.c.l.b16 %v174
      %v318 = vunpack.c.h.b16 %v174
      %v319 = vunpack.c.l.b16 %v175
      %v320 = vunpack.c.h.b16 %v175
      %v321 = vunpack.c.l.b16 %v176
      %v322 = vunpack.c.h.b16 %v176
      %v323 = vunpack.c.l.b16 %v177
      %v324 = vunpack.c.h.b16 %v177
      %v325 = vunpack.c.l.b16 %v178
      %v326 = vunpack.c.h.b16 %v178
      %v327 = vunpack.c.l.b16 %v179
      %v328 = vunpack.c.h.b16 %v179
      %v329 = vpack.c.b16 %v321, %v313
      %v330 = vpack.c.b16 %v322, %v314
      %v331 = vpack.c.b16 %v323, %v315
      %v332 = vpack.c.b16 %v324, %v316
      %v333 = vpack.c.b16 %v325, %v317
      %v334 = vpack.c.b16 %v326, %v318
      %v335 = vpack.c.b16 %v327, %v319
      %v336 = vpack.c.b16 %v328, %v320
      %v469 = vunpack.c.l.b16 %v180
      %v470 = vunpack.c.l.b16 %v181
      %v471 = vunpack.c.l.b16 %v182
      %v472 = vunpack.c.l.b16 %v183
      %v473 = vunpack.c.l.b16 %v184
      %v474 = vunpack.c.l.b16 %v185
      %v475 = vunpack.c.l.b16 %v186
      %v476 = vunpack.c.l.b16 %v187
      %v477 = vunpack.c.l.b16 %v188
      %v478 = vunpack.c.l.b16 %v189
      %v479 = vunpack.c.l.b16 %v190
      %v480 = vunpack.c.l.b16 %v191
      %v481 = vunpack.c.l.b16 %v192
      %v482 = vunpack.c.l.b16 %v193
      %v483 = vunpack.c.l.b16 %v194
      %v484 = vunpack.c.l.b16 %v195
      %v485 = vunpack.c.l.b16 %v196
      %v486 = vunpack.c.l.b16 %v197
      %v487 = vunpack.c.l.b16 %v198
      %v488 = vunpack.c.l.b16 %v199
      %v489 = vunpack.c.l.b16 %v200
      %v490 = vunpack.c.l.b16 %v201
      %v491 = vunpack.c.l.b16 %v202
      %v492 = vunpack.c.l.b16 %v203
      %v493 = vunpack.c.l.b16 %v204
      %v494 = vunpack.c.l.b16 %v205
      %v495 = vunpack.c.l.b16 %v206
      %v496 = vunpack.c.l.b16 %v207
      %v497 = vunpack.c.l.b16 %v208
      %v498 = vunpack.c.l.b16 %v209
      %v499 = vunpack.c.l.b16 %v210
      %v500 = vunpack.c.l.b16 %v211
      %v501 = vunpack.c.l.b16 %v212
      %v502 = vunpack.c.l.b16 %v213
      %v503 = vunpack.c.l.b16 %v214
      %v504 = vunpack.c.l.b16 %v215
      %v505 = vunpack.c.l.b16 %v216
      %v506 = vunpack.c.l.b16 %v217
      %v507 = vunpack.c.l.b16 %v218
      %v508 = vunpack.c.l.b16 %v219
      %v509 = vunpack.c.l.b16 %v220
      %v510 = vunpack.c.l.b16 %v221
      %v511 = vunpack.c.l.b16 %v222
      %v512 = vunpack.c.l.b16 %v223
      %v513 = vunpack.c.l.b16 %v224
      %v514 = vunpack.c.l.b16 %v225
      %v515 = vunpack.c.l.b16 %v226
      %v516 = vunpack.c.l.b16 %v227
      %v517 = vunpack.c.l.b16 %v228
      %v518 = vunpack.c.l.b16 %v229
      %v519 = vunpack.c.l.b16 %v230
      %v520 = vunpack.c.l.b16 %v231
      %v521 = vunpack.c.l.b16 %v232
      %v522 = vunpack.c.l.b16 %v233
      %v523 = vunpack.c.l.b16 %v234
      %v524 = vunpack.c.l.b16 %v235
      %v525 = vunpack.c.l.b16 %v236
      %v526 = vunpack.c.l.b16 %v237
      %v527 = vunpack.c.l.b16 %v238
      %v528 = vunpack.c.l.b16 %v239
      %v529 = vunpack.c.l.b16 %v240
      %v530 = vunpack.c.l.b16 %v241
      %v531 = vunpack.c.l.b16 %v242
      %v532 = vunpack.c.l.b16 %v243
      %v533 = vunpack.c.l.b16 %v244
      %v534 = vunpack.c.l.b16 %v245
      %v535 = vunpack.c.l.b16 %v246
      %v536 = vunpack.c.l.b16 %v247
      %v537 = vunpack.c.l.b16 %v248
      %v538 = vunpack.c.l.b16 %v249
      %v539 = vunpack.c.l.b16 %v250
      %v540 = vunpack.c.l.b16 %v251
      %v541 = vunpack.c.l.b16 %v252
      %v542 = vunpack.c.l.b16 %v253
      %v543 = vunpack.c.l.b16 %v254
      %v544 = vunpack.c.l.b16 %v255
      %v545 = vunpack.c.l.b16 %v256
      %v546 = vunpack.c.l.b16 %v257
      %v547 = vunpack.c.l.b16 %v258
      %v548 = vunpack.c.l.b16 %v259
      %v549 = vunpack.c.l.b16 %v260
      %v550 = vunpack.c.l.b16 %v261
      %v551 = vunpack.c.l.b16 %v262
      %v552 = vunpack.c.l.b16 %v263
      %v553 = vunpack.c.l.b16 %v264
      %v554 = vunpack.c.l.b16 %v265
      %v555 = vunpack.c.l.b16 %v266
      %v556 = vunpack.c.l.b16 %v267
      %v557 = vunpack.c.l.b16 %v268
      %v558 = vunpack.c.l.b16 %v269
      %v559 = vunpack.c.l.b16 %v270
      %v560 = vunpack.c.l.b16 %v271
      %v561 = vunpack.c.l.b16 %v272
      %v562 = vunpack.c.l.b16 %v273
      %v563 = vunpack.c.l.b16 %v274
      %v564 = vunpack.c.l.b16 %v275
      %v565 = vunpack.c.l.b16 %v276
      %v566 = vunpack.c.l.b16 %v277
      %v567 = vunpack.c.l.b16 %v278
      %v568 = vunpack.c.l.b16 %v279
      %v569 = vunpack.c.l.b16 %v280
      %v570 = vunpack.c.l.b16 %v281
      %v571 = vunpack.c.l.b16 %v282
      %v572 = vunpack.c.l.b16 %v283
      %v573 = vunpack.c.l.b16 %v284
      %v574 = vunpack.c.l.b16 %v285
      %v575 = vunpack.c.l.b16 %v286
      %v576 = vunpack.c.l.b16 %v287
      %v577 = vunpack.c.l.b16 %v288
      %v578 = vunpack.c.l.b16 %v289
      %v579 = vunpack.c.l.b16 %v290
      %v580 = vunpack.c.l.b16 %v291
      %v581 = vunpack.c.l.b16 %v292
      %v582 = vunpack.c.l.b16 %v293
      %v583 = vunpack.c.l.b16 %v294
      %v584 = vunpack.c.l.b16 %v295
      %v585 = vunpack.c.l.b16 %v296
      %v586 = vunpack.c.l.b16 %v297
      %v587 = vunpack.c.l.b16 %v298
      %v588 = vunpack.c.l.b16 %v299
      %v589 = vunpack.c.l.b16 %v300
      %v590 = vunpack.c.l.b16 %v301
      %v591 = vunpack.c.l.b16 %v302
      %v592 = vunpack.c.l.b16 %v303
      %v593 = vunpack.c.l.b16 %v304
      %v594 = vpack.c.b16 %v470, %v469
      %v595 = vpack.c.b16 %v472, %v471
      %v596 = vpack.c.b16 %v474, %v473
      %v597 = vpack.c.b16 %v476, %v475
      %v598 = vpack.c.b16 %v478, %v477
      %v599 = vpack.c.b16 %v480, %v479
      %v600 = vpack.c.b16 %v482, %v481
      %v601 = vpack.c.b16 %v484, %v483
      %v602 = vpack.c.b16 %v486, %v485
      %v603 = vpack.c.b16 %v488, %v487
      %v604 = vpack.c.b16 %v490, %v489
      %v605 = vpack.c.b16 %v492, %v491
      %v606 = vpack.c.b16 %v494, %v493
      %v607 = vpack.c.b16 %v496, %v495
      %v608 = vpack.c.b16 %v498, %v497
      %v609 = vpack.c.b16 %v500, %v499
      %v610 = vpack.c.b16 %v502, %v501
      %v611 = vpack.c.b16 %v504, %v503
      %v612 = vpack.c.b16 %v506, %v505
      %v613 = vpack.c.b16 %v508, %v507
      %v614 = vpack.c.b16 %v510, %v509
      %v615 = vpack.c.b16 %v512, %v511
      %v616 = vpack.c.b16 %v514, %v513
      %v617 = vpack.c.b16 %v516, %v515
      %v618 = vpack.c.b16 %v518, %v517
      %v619 = vpack.c.b16 %v520, %v519
      %v620 = vpack.c.b16 %v522, %v521
      %v621 = vpack.c.b16 %v524, %v523
      %v622 = vpack.c.b16 %v526, %v525
      %v623 = vpack.c.b16 %v528, %v527
      %v624 = vpack.c.b16 %v530, %v529
      %v625 = vpack.c.b16 %v532, %v531
      %v626 = vpack.c.b16 %v534, %v533
      %v627 = vpack.c.b16 %v536, %v535
      %v628 = vpack.c.b16 %v538, %v537
      %v629 = vpack.c.b16 %v540, %v539
      %v630 = vpack.c.b16 %v542, %v541
      %v631 = vpack.c.b16 %v544, %v543
      %v632 = vpack.c.b16 %v546, %v545
      %v633 = vpack.c.b16 %v548, %v547
      %v634 = vpack.c.b16 %v550, %v549
      %v635 = vpack.c.b16 %v552, %v551
      %v636 = vpack.c.b16 %v554, %v553
      %v637 = vpack.c.b16 %v556, %v555
      %v638 = vpack.c.b16 %v558, %v557
      %v639 = vpack.c.b16 %v560, %v559
      %v640 = vpack.c.b16 %v562, %v561
      %v641 = vpack.c.b16 %v564, %v563
      %v642 = vpack.c.b16 %v566, %v565
      %v643 = vpack.c.b16 %v568, %v567
      %v644 = vpack.c.b16 %v570, %v569
      %v645 = vpack.c.b16 %v572, %v571
      %v646 = vpack.c.b16 %v574, %v573
      %v647 = vpack.c.b16 %v576, %v575
      %v648 = vpack.c.b16 %v578, %v577
      %v649 = vpack.c.b16 %v580, %v579
      %v650 = vpack.c.b16 %v582, %v581
      %v651 = vpack.c.b16 %v584, %v583
      %v652 = vpack.c.b16 %v586, %v585
      %v653 = vpack.c.b16 %v588, %v587
      %v654 = vpack.c.b16 %v590, %v589
      %v655 = vpack.c.b16 %v592, %v591
      %v656 = vpack.c.b16 %v593, %v593
      %vm719 = vcmask 850944
      %v721 = vsel %vm719, %v336, 0
      %vm723 = vcmask 1043456
      %v725 = vsel %vm723, %v656, 0
      %727 = vmatprep.subr.bf16.mxu0 0
      %728 = vmatpush1.bf16.msra.mxu0 %v594
      %729 = vmatprep.subr.bf16.mxu0 0
      %730 = vmatpush1.bf16.msra.mxu0 %v595
      %731 = vmatprep.subr.bf16.mxu0 0
      %732 = vmatpush1.bf16.msra.mxu0 %v596
      %733 = vmatprep.subr.bf16.mxu0 0
      %734 = vmatpush1.bf16.msra.mxu0 %v597
      %735 = vmatprep.subr.bf16.mxu0 0
      %736 = vmatpush1.bf16.msra.mxu0 %v598
      %737 = vmatprep.subr.bf16.mxu0 0
      %738 = vmatpush1.bf16.msra.mxu0 %v599
      %739 = vmatprep.subr.bf16.mxu0 0
      %740 = vmatpush1.bf16.msra.mxu0 %v600
      %741 = vmatprep.subr.bf16.mxu0 0
      %742 = vmatpush1.bf16.msra.mxu0 %v601
      %743 = vmatprep.subr.bf16.mxu0 0
      %744 = vmatpush1.bf16.msra.mxu0 %v602
      %745 = vmatprep.subr.bf16.mxu0 0
      %746 = vmatpush1.bf16.msra.mxu0 %v603
      %747 = vmatprep.subr.bf16.mxu0 0
      %748 = vmatpush1.bf16.msra.mxu0 %v604
      %749 = vmatprep.subr.bf16.mxu0 0
      %750 = vmatpush1.bf16.msra.mxu0 %v605
      %751 = vmatprep.subr.bf16.mxu0 0
      %752 = vmatpush1.bf16.msra.mxu0 %v606
      %753 = vmatprep.subr.bf16.mxu0 0
      %754 = vmatpush1.bf16.msra.mxu0 %v607
      %755 = vmatprep.subr.bf16.mxu0 0
      %756 = vmatpush1.bf16.msra.mxu0 %v608
      %757 = vmatprep.subr.bf16.mxu0 0
      %758 = vmatpush1.bf16.msra.mxu0 %v609
      %759 = vmatprep.mubr.bf16.mxu0 %v330
      %760 = vmatmul.mubr.bf16.gmra.mrb[0].mxu0 %v329
      %v761 = vpop.f32.mrb[0].mxu0
      %v762 = vadd.f32 0.0, %v761
      %v763 = vpop.f32.mrb[0].mxu0
      %v764 = vpop.f32.mrb[0].mxu0
      %v765 = vadd.f32 0.0, %v764
      %v766 = vpop.f32.mrb[0].mxu0
      %767 = vdwg.mxu0
      %768 = vmatprep.subr.bf16.mxu0 0
      %769 = vmatpush1.bf16.msra.mxu0 %v610
      %770 = vmatprep.subr.bf16.mxu0 0
      %771 = vmatpush1.bf16.msra.mxu0 %v611
      %772 = vmatprep.subr.bf16.mxu0 0
      %773 = vmatpush1.bf16.msra.mxu0 %v612
      %774 = vmatprep.subr.bf16.mxu0 0
      %775 = vmatpush1.bf16.msra.mxu0 %v613
      %776 = vmatprep.subr.bf16.mxu0 0
      %777 = vmatpush1.bf16.msra.mxu0 %v614
      %778 = vmatprep.subr.bf16.mxu0 0
      %779 = vmatpush1.bf16.msra.mxu0 %v615
      %780 = vmatprep.subr.bf16.mxu0 0
      %781 = vmatpush1.bf16.msra.mxu0 %v616
      %782 = vmatprep.subr.bf16.mxu0 0
      %783 = vmatpush1.bf16.msra.mxu0 %v617
      %784 = vmatprep.subr.bf16.mxu0 0
      %785 = vmatpush1.bf16.msra.mxu0 %v618
      %786 = vmatprep.subr.bf16.mxu0 0
      %787 = vmatpush1.bf16.msra.mxu0 %v619
      %788 = vmatprep.subr.bf16.mxu0 0
      %789 = vmatpush1.bf16.msra.mxu0 %v620
      %790 = vmatprep.subr.bf16.mxu0 0
      %791 = vmatpush1.bf16.msra.mxu0 %v621
      %792 = vmatprep.subr.bf16.mxu0 0
      %793 = vmatpush1.bf16.msra.mxu0 %v622
      %794 = vmatprep.subr.bf16.mxu0 0
      %795 = vmatpush1.bf16.msra.mxu0 %v623
      %796 = vmatprep.subr.bf16.mxu0 0
      %797 = vmatpush1.bf16.msra.mxu0 %v624
      %798 = vmatprep.subr.bf16.mxu0 0
      %799 = vmatpush1.bf16.msra.mxu0 %v625
      %800 = vmatprep.mubr.bf16.mxu0 %v332
      %801 = vmatmul.mubr.bf16.gmra.mrb[0].mxu0 %v331
      %v802 = vpop.f32.mrb[0].mxu0
      %v803 = vadd.f32 %v762, %v802
      %v804 = vpop.f32.mrb[0].mxu0
      %v805 = vpop.f32.mrb[0].mxu0
      %v806 = vadd.f32 %v765, %v805
      %v807 = vpop.f32.mrb[0].mxu0
      %808 = vdwg.mxu0
      %809 = vmatprep.subr.bf16.mxu0 0
      %810 = vmatpush1.bf16.msra.mxu0 %v626
      %811 = vmatprep.subr.bf16.mxu0 0
      %812 = vmatpush1.bf16.msra.mxu0 %v627
      %813 = vmatprep.subr.bf16.mxu0 0
      %814 = vmatpush1.bf16.msra.mxu0 %v628
      %815 = vmatprep.subr.bf16.mxu0 0
      %816 = vmatpush1.bf16.msra.mxu0 %v629
      %817 = vmatprep.subr.bf16.mxu0 0
      %818 = vmatpush1.bf16.msra.mxu0 %v630
      %819 = vmatprep.subr.bf16.mxu0 0
      %820 = vmatpush1.bf16.msra.mxu0 %v631
      %821 = vmatprep.subr.bf16.mxu0 0
      %822 = vmatpush1.bf16.msra.mxu0 %v632
      %823 = vmatprep.subr.bf16.mxu0 0
      %824 = vmatpush1.bf16.msra.mxu0 %v633
      %825 = vmatprep.subr.bf16.mxu0 0
      %826 = vmatpush1.bf16.msra.mxu0 %v634
      %827 = vmatprep.subr.bf16.mxu0 0
      %828 = vmatpush1.bf16.msra.mxu0 %v635
      %829 = vmatprep.subr.bf16.mxu0 0
      %830 = vmatpush1.bf16.msra.mxu0 %v636
      %831 = vmatprep.subr.bf16.mxu0 0
      %832 = vmatpush1.bf16.msra.mxu0 %v637
      %833 = vmatprep.subr.bf16.mxu0 0
      %834 = vmatpush1.bf16.msra.mxu0 %v638
      %835 = vmatprep.subr.bf16.mxu0 0
      %836 = vmatpush1.bf16.msra.mxu0 %v639
      %837 = vmatprep.subr.bf16.mxu0 0
      %838 = vmatpush1.bf16.msra.mxu0 %v640
      %839 = vmatprep.subr.bf16.mxu0 0
      %840 = vmatpush1.bf16.msra.mxu0 %v641
      %841 = vmatprep.mubr.bf16.mxu0 %v334
      %842 = vmatmul.mubr.bf16.gmra.mrb[0].mxu0 %v333
      %v843 = vpop.f32.mrb[0].mxu0
      %v844 = vadd.f32 %v803, %v843
      %v845 = vpop.f32.mrb[0].mxu0
      %v846 = vpop.f32.mrb[0].mxu0
      %v847 = vadd.f32 %v806, %v846
      %v848 = vpop.f32.mrb[0].mxu0
      %849 = vdwg.mxu0
      %850 = vmatprep.subr.bf16.mxu0 0
      %851 = vmatpush1.bf16.msra.mxu0 %v642
      %852 = vmatprep.subr.bf16.mxu0 0
      %853 = vmatpush1.bf16.msra.mxu0 %v643
      %854 = vmatprep.subr.bf16.mxu0 0
      %855 = vmatpush1.bf16.msra.mxu0 %v644
      %856 = vmatprep.subr.bf16.mxu0 0
      %857 = vmatpush1.bf16.msra.mxu0 %v645
      %858 = vmatprep.subr.bf16.mxu0 0
      %859 = vmatpush1.bf16.msra.mxu0 %v646
      %860 = vmatprep.subr.bf16.mxu0 0
      %861 = vmatpush1.bf16.msra.mxu0 %v647
      %862 = vmatprep.subr.bf16.mxu0 0
      %863 = vmatpush1.bf16.msra.mxu0 %v648
      %864 = vmatprep.subr.bf16.mxu0 0
      %865 = vmatpush1.bf16.msra.mxu0 %v649
      %866 = vmatprep.subr.bf16.mxu0 0
      %867 = vmatpush1.bf16.msra.mxu0 %v650
      %868 = vmatprep.subr.bf16.mxu0 0
      %869 = vmatpush1.bf16.msra.mxu0 %v651
      %870 = vmatprep.subr.bf16.mxu0 0
      %871 = vmatpush1.bf16.msra.mxu0 %v652
      %872 = vmatprep.subr.bf16.mxu0 0
      %873 = vmatpush1.bf16.msra.mxu0 %v653
      %874 = vmatprep.subr.bf16.mxu0 0
      %875 = vmatpush1.bf16.msra.mxu0 %v654
      %876 = vmatprep.subr.bf16.mxu0 0
      %877 = vmatpush1.bf16.msra.mxu0 %v655
      %878 = vmatprep.subr.bf16.mxu0 0
      %879 = vmatpush1.bf16.msra.mxu0 %v725
      %880 = vmatprep.subr.bf16.mxu0 0
      %881 = vmatpush1.bf16.msra.mxu0 0
      %882 = vmatprep.mubr.bf16.mxu0 %v721
      %883 = vmatmul.mubr.bf16.gmra.mrb[0].mxu0 %v335
      %v884 = vpop.f32.mrb[0].mxu0
      %v885 = vadd.f32 %v844, %v884
      %v886 = vpop.f32.mrb[0].mxu0
      %v887 = vpop.f32.mrb[0].mxu0
      %v888 = vadd.f32 %v847, %v887
      %v889 = vpop.f32.mrb[0].mxu0
      %890 = vdwg.mxu0
      %s891 = scalar_lea.vmem %s165, 500
      %v892 = vld [vmem:[%s891] sm:$0xf]
      %v893 = vld [vmem:[%s891 + $0x4] sm:$0xf]
      %v894 = vld [vmem:[%s891 + $0x8] sm:$0xf]
      %v895 = vld [vmem:[%s891 + $0xc] sm:$0xf]
      %v896 = vld [vmem:[%s891 + $0x10] sm:$0xf]
      %v897 = vld [vmem:[%s891 + $0x14] sm:$0xf]
      %v898 = vld [vmem:[%s891 + $0x18] sm:$0xf]
      %v899 = vld [vmem:[%s891 + $0x1c] sm:$0xf]
      %v900 = vld [vmem:[%s891 + $0x20] sm:$0xf]
      %v901 = vld [vmem:[%s891 + $0x24] sm:$0xf]
      %v902 = vld [vmem:[%s891 + $0x28] sm:$0xf]
      %v903 = vld [vmem:[%s891 + $0x2c] sm:$0xf]
      %v904 = vld [vmem:[%s891 + $0x30] sm:$0xf]
      %v905 = vld [vmem:[%s891 + $0x34] sm:$0xf]
      %v906 = vld [vmem:[%s891 + $0x38] sm:$0xf]
      %v907 = vld [vmem:[%s891 + $0x3c] sm:$0xf]
      %v908 = vld [vmem:[%s891 + $0x40] sm:$0xf]
      %v909 = vld [vmem:[%s891 + $0x44] sm:$0xf]
      %v910 = vld [vmem:[%s891 + $0x48] sm:$0xf]
      %v911 = vld [vmem:[%s891 + $0x4c] sm:$0xf]
      %v912 = vld [vmem:[%s891 + $0x50] sm:$0xf]
      %v913 = vld [vmem:[%s891 + $0x54] sm:$0xf]
      %v914 = vld [vmem:[%s891 + $0x58] sm:$0xf]
      %v915 = vld [vmem:[%s891 + $0x5c] sm:$0xf]
      %v916 = vld [vmem:[%s891 + $0x60] sm:$0xf]
      %v917 = vld [vmem:[%s891 + $0x64] sm:$0xf]
      %v918 = vld [vmem:[%s891 + $0x68] sm:$0xf]
      %v919 = vld [vmem:[%s891 + $0x6c] sm:$0xf]
      %v920 = vld [vmem:[%s891 + $0x70] sm:$0xf]
      %v921 = vld [vmem:[%s891 + $0x74] sm:$0xf]
      %v922 = vld [vmem:[%s891 + $0x78] sm:$0xf]
      %v923 = vld [vmem:[%s891 + $0x7c] sm:$0xf]
      %v924 = vld [vmem:[%s891 + $0x80] sm:$0xf]
      %v925 = vld [vmem:[%s891 + $0x84] sm:$0xf]
      %v926 = vld [vmem:[%s891 + $0x88] sm:$0xf]
      %v927 = vld [vmem:[%s891 + $0x8c] sm:$0xf]
      %v928 = vld [vmem:[%s891 + $0x90] sm:$0xf]
      %v929 = vld [vmem:[%s891 + $0x94] sm:$0xf]
      %v930 = vld [vmem:[%s891 + $0x98] sm:$0xf]
      %v931 = vld [vmem:[%s891 + $0x9c] sm:$0xf]
      %v932 = vld [vmem:[%s891 + $0xa0] sm:$0xf]
      %v933 = vld [vmem:[%s891 + $0xa4] sm:$0xf]
      %v934 = vld [vmem:[%s891 + $0xa8] sm:$0xf]
      %v935 = vld [vmem:[%s891 + $0xac] sm:$0xf]
      %v936 = vld [vmem:[%s891 + $0xb0] sm:$0xf]
      %v937 = vld [vmem:[%s891 + $0xb4] sm:$0xf]
      %v938 = vld [vmem:[%s891 + $0xb8] sm:$0xf]
      %v939 = vld [vmem:[%s891 + $0xbc] sm:$0xf]
      %v940 = vld [vmem:[%s891 + $0xc0] sm:$0xf]
      %v941 = vld [vmem:[%s891 + $0xc4] sm:$0xf]
      %v942 = vld [vmem:[%s891 + $0xc8] sm:$0xf]
      %v943 = vld [vmem:[%s891 + $0xcc] sm:$0xf]
      %v944 = vld [vmem:[%s891 + $0xd0] sm:$0xf]
      %v945 = vld [vmem:[%s891 + $0xd4] sm:$0xf]
      %v946 = vld [vmem:[%s891 + $0xd8] sm:$0xf]
      %v947 = vld [vmem:[%s891 + $0xdc] sm:$0xf]
      %v948 = vld [vmem:[%s891 + $0xe0] sm:$0xf]
      %v949 = vld [vmem:[%s891 + $0xe4] sm:$0xf]
      %v950 = vld [vmem:[%s891 + $0xe8] sm:$0xf]
      %v951 = vld [vmem:[%s891 + $0xec] sm:$0xf]
      %v952 = vld [vmem:[%s891 + $0xf0] sm:$0xf]
      %v953 = vld [vmem:[%s891 + $0xf4] sm:$0xf]
      %v954 = vld [vmem:[%s891 + $0xf8] sm:$0xf]
      %v955 = vld [vmem:[%s891 + $0xfc] sm:$0xf]
      %v956 = vld [vmem:[%s891 + $0x100] sm:$0xf]
      %v957 = vld [vmem:[%s891 + $0x104] sm:$0xf]
      %v958 = vld [vmem:[%s891 + $0x108] sm:$0xf]
      %v959 = vld [vmem:[%s891 + $0x10c] sm:$0xf]
      %v960 = vld [vmem:[%s891 + $0x110] sm:$0xf]
      %v961 = vld [vmem:[%s891 + $0x114] sm:$0xf]
      %v962 = vld [vmem:[%s891 + $0x118] sm:$0xf]
      %v963 = vld [vmem:[%s891 + $0x11c] sm:$0xf]
      %v964 = vld [vmem:[%s891 + $0x120] sm:$0xf]
      %v965 = vld [vmem:[%s891 + $0x124] sm:$0xf]
      %v966 = vld [vmem:[%s891 + $0x128] sm:$0xf]
      %v967 = vld [vmem:[%s891 + $0x12c] sm:$0xf]
      %v968 = vld [vmem:[%s891 + $0x130] sm:$0xf]
      %v969 = vld [vmem:[%s891 + $0x134] sm:$0xf]
      %v970 = vld [vmem:[%s891 + $0x138] sm:$0xf]
      %v971 = vld [vmem:[%s891 + $0x13c] sm:$0xf]
      %v972 = vld [vmem:[%s891 + $0x140] sm:$0xf]
      %v973 = vld [vmem:[%s891 + $0x144] sm:$0xf]
      %v974 = vld [vmem:[%s891 + $0x148] sm:$0xf]
      %v975 = vld [vmem:[%s891 + $0x14c] sm:$0xf]
      %v976 = vld [vmem:[%s891 + $0x150] sm:$0xf]
      %v977 = vld [vmem:[%s891 + $0x154] sm:$0xf]
      %v978 = vld [vmem:[%s891 + $0x158] sm:$0xf]
      %v979 = vld [vmem:[%s891 + $0x15c] sm:$0xf]
      %v980 = vld [vmem:[%s891 + $0x160] sm:$0xf]
      %v981 = vld [vmem:[%s891 + $0x164] sm:$0xf]
      %v982 = vld [vmem:[%s891 + $0x168] sm:$0xf]
      %v983 = vld [vmem:[%s891 + $0x16c] sm:$0xf]
      %v984 = vld [vmem:[%s891 + $0x170] sm:$0xf]
      %v985 = vld [vmem:[%s891 + $0x174] sm:$0xf]
      %v986 = vld [vmem:[%s891 + $0x178] sm:$0xf]
      %v987 = vld [vmem:[%s891 + $0x17c] sm:$0xf]
      %v988 = vld [vmem:[%s891 + $0x180] sm:$0xf]
      %v989 = vld [vmem:[%s891 + $0x184] sm:$0xf]
      %v990 = vld [vmem:[%s891 + $0x188] sm:$0xf]
      %v991 = vld [vmem:[%s891 + $0x18c] sm:$0xf]
      %v992 = vld [vmem:[%s891 + $0x190] sm:$0xf]
      %v993 = vld [vmem:[%s891 + $0x194] sm:$0xf]
      %v994 = vld [vmem:[%s891 + $0x198] sm:$0xf]
      %v995 = vld [vmem:[%s891 + $0x19c] sm:$0xf]
      %v996 = vld [vmem:[%s891 + $0x1a0] sm:$0xf]
      %v997 = vld [vmem:[%s891 + $0x1a4] sm:$0xf]
      %v998 = vld [vmem:[%s891 + $0x1a8] sm:$0xf]
      %v999 = vld [vmem:[%s891 + $0x1ac] sm:$0xf]
      %v1000 = vld [vmem:[%s891 + $0x1b0] sm:$0xf]
      %v1001 = vld [vmem:[%s891 + $0x1b4] sm:$0xf]
      %v1002 = vld [vmem:[%s891 + $0x1b8] sm:$0xf]
      %v1003 = vld [vmem:[%s891 + $0x1bc] sm:$0xf]
      %v1004 = vld [vmem:[%s891 + $0x1c0] sm:$0xf]
      %v1005 = vld [vmem:[%s891 + $0x1c4] sm:$0xf]
      %v1006 = vld [vmem:[%s891 + $0x1c8] sm:$0xf]
      %v1007 = vld [vmem:[%s891 + $0x1cc] sm:$0xf]
      %v1008 = vld [vmem:[%s891 + $0x1d0] sm:$0xf]
      %v1009 = vld [vmem:[%s891 + $0x1d4] sm:$0xf]
      %v1010 = vld [vmem:[%s891 + $0x1d8] sm:$0xf]
      %v1011 = vld [vmem:[%s891 + $0x1dc] sm:$0xf]
      %v1012 = vld [vmem:[%s891 + $0x1e0] sm:$0xf]
      %v1013 = vld [vmem:[%s891 + $0x1e4] sm:$0xf]
      %v1014 = vld [vmem:[%s891 + $0x1e8] sm:$0xf]
      %v1015 = vld [vmem:[%s891 + $0x1ec] sm:$0xf]
      %v1016 = vld [vmem:[%s891 + $0x1f0] sm:$0xf]
      %v1142 = vunpack.c.l.b16 %v892
      %v1143 = vunpack.c.l.b16 %v893
      %v1144 = vunpack.c.l.b16 %v894
      %v1145 = vunpack.c.l.b16 %v895
      %v1146 = vunpack.c.l.b16 %v896
      %v1147 = vunpack.c.l.b16 %v897
      %v1148 = vunpack.c.l.b16 %v898
      %v1149 = vunpack.c.l.b16 %v899
      %v1150 = vunpack.c.l.b16 %v900
      %v1151 = vunpack.c.l.b16 %v901
      %v1152 = vunpack.c.l.b16 %v902
      %v1153 = vunpack.c.l.b16 %v903
      %v1154 = vunpack.c.l.b16 %v904
      %v1155 = vunpack.c.l.b16 %v905
      %v1156 = vunpack.c.l.b16 %v906
      %v1157 = vunpack.c.l.b16 %v907
      %v1158 = vunpack.c.l.b16 %v908
      %v1159 = vunpack.c.l.b16 %v909
      %v1160 = vunpack.c.l.b16 %v910
      %v1161 = vunpack.c.l.b16 %v911
      %v1162 = vunpack.c.l.b16 %v912
      %v1163 = vunpack.c.l.b16 %v913
      %v1164 = vunpack.c.l.b16 %v914
      %v1165 = vunpack.c.l.b16 %v915
      %v1166 = vunpack.c.l.b16 %v916
      %v1167 = vunpack.c.l.b16 %v917
      %v1168 = vunpack.c.l.b16 %v918
      %v1169 = vunpack.c.l.b16 %v919
      %v1170 = vunpack.c.l.b16 %v920
      %v1171 = vunpack.c.l.b16 %v921
      %v1172 = vunpack.c.l.b16 %v922
      %v1173 = vunpack.c.l.b16 %v923
      %v1174 = vunpack.c.l.b16 %v924
      %v1175 = vunpack.c.l.b16 %v925
      %v1176 = vunpack.c.l.b16 %v926
      %v1177 = vunpack.c.l.b16 %v927
      %v1178 = vunpack.c.l.b16 %v928
      %v1179 = vunpack.c.l.b16 %v929
      %v1180 = vunpack.c.l.b16 %v930
      %v1181 = vunpack.c.l.b16 %v931
      %v1182 = vunpack.c.l.b16 %v932
      %v1183 = vunpack.c.l.b16 %v933
      %v1184 = vunpack.c.l.b16 %v934
      %v1185 = vunpack.c.l.b16 %v935
      %v1186 = vunpack.c.l.b16 %v936
      %v1187 = vunpack.c.l.b16 %v937
      %v1188 = vunpack.c.l.b16 %v938
      %v1189 = vunpack.c.l.b16 %v939
      %v1190 = vunpack.c.l.b16 %v940
      %v1191 = vunpack.c.l.b16 %v941
      %v1192 = vunpack.c.l.b16 %v942
      %v1193 = vunpack.c.l.b16 %v943
      %v1194 = vunpack.c.l.b16 %v944
      %v1195 = vunpack.c.l.b16 %v945
      %v1196 = vunpack.c.l.b16 %v946
      %v1197 = vunpack.c.l.b16 %v947
      %v1198 = vunpack.c.l.b16 %v948
      %v1199 = vunpack.c.l.b16 %v949
      %v1200 = vunpack.c.l.b16 %v950
      %v1201 = vunpack.c.l.b16 %v951
      %v1202 = vunpack.c.l.b16 %v952
      %v1203 = vunpack.c.l.b16 %v953
      %v1204 = vunpack.c.l.b16 %v954
      %v1205 = vunpack.c.l.b16 %v955
      %v1206 = vunpack.c.l.b16 %v956
      %v1207 = vunpack.c.l.b16 %v957
      %v1208 = vunpack.c.l.b16 %v958
      %v1209 = vunpack.c.l.b16 %v959
      %v1210 = vunpack.c.l.b16 %v960
      %v1211 = vunpack.c.l.b16 %v961
      %v1212 = vunpack.c.l.b16 %v962
      %v1213 = vunpack.c.l.b16 %v963
      %v1214 = vunpack.c.l.b16 %v964
      %v1215 = vunpack.c.l.b16 %v965
      %v1216 = vunpack.c.l.b16 %v966
      %v1217 = vunpack.c.l.b16 %v967
      %v1218 = vunpack.c.l.b16 %v968
      %v1219 = vunpack.c.l.b16 %v969
      %v1220 = vunpack.c.l.b16 %v970
      %v1221 = vunpack.c.l.b16 %v971
      %v1222 = vunpack.c.l.b16 %v972
      %v1223 = vunpack.c.l.b16 %v973
      %v1224 = vunpack.c.l.b16 %v974
      %v1225 = vunpack.c.l.b16 %v975
      %v1226 = vunpack.c.l.b16 %v976
      %v1227 = vunpack.c.l.b16 %v977
      %v1228 = vunpack.c.l.b16 %v978
      %v1229 = vunpack.c.l.b16 %v979
      %v1230 = vunpack.c.l.b16 %v980
      %v1231 = vunpack.c.l.b16 %v981
      %v1232 = vunpack.c.l.b16 %v982
      %v1233 = vunpack.c.l.b16 %v983
      %v1234 = vunpack.c.l.b16 %v984
      %v1235 = vunpack.c.l.b16 %v985
      %v1236 = vunpack.c.l.b16 %v986
      %v1237 = vunpack.c.l.b16 %v987
      %v1238 = vunpack.c.l.b16 %v988
      %v1239 = vunpack.c.l.b16 %v989
      %v1240 = vunpack.c.l.b16 %v990
      %v1241 = vunpack.c.l.b16 %v991
      %v1242 = vunpack.c.l.b16 %v992
      %v1243 = vunpack.c.l.b16 %v993
      %v1244 = vunpack.c.l.b16 %v994
      %v1245 = vunpack.c.l.b16 %v995
      %v1246 = vunpack.c.l.b16 %v996
      %v1247 = vunpack.c.l.b16 %v997
      %v1248 = vunpack.c.l.b16 %v998
      %v1249 = vunpack.c.l.b16 %v999
      %v1250 = vunpack.c.l.b16 %v1000
      %v1251 = vunpack.c.l.b16 %v1001
      %v1252 = vunpack.c.l.b16 %v1002
      %v1253 = vunpack.c.l.b16 %v1003
      %v1254 = vunpack.c.l.b16 %v1004
      %v1255 = vunpack.c.l.b16 %v1005
      %v1256 = vunpack.c.l.b16 %v1006
      %v1257 = vunpack.c.l.b16 %v1007
      %v1258 = vunpack.c.l.b16 %v1008
      %v1259 = vunpack.c.l.b16 %v1009
      %v1260 = vunpack.c.l.b16 %v1010
      %v1261 = vunpack.c.l.b16 %v1011
      %v1262 = vunpack.c.l.b16 %v1012
      %v1263 = vunpack.c.l.b16 %v1013
      %v1264 = vunpack.c.l.b16 %v1014
      %v1265 = vunpack.c.l.b16 %v1015
      %v1266 = vunpack.c.l.b16 %v1016
      %v1267 = vpack.c.b16 %v1143, %v1142
      %v1268 = vpack.c.b16 %v1145, %v1144
      %v1269 = vpack.c.b16 %v1147, %v1146
      %v1270 = vpack.c.b16 %v1149, %v1148
      %v1271 = vpack.c.b16 %v1151, %v1150
      %v1272 = vpack.c.b16 %v1153, %v1152
      %v1273 = vpack.c.b16 %v1155, %v1154
      %v1274 = vpack.c.b16 %v1157, %v1156
      %v1275 = vpack.c.b16 %v1159, %v1158
      %v1276 = vpack.c.b16 %v1161, %v1160
      %v1277 = vpack.c.b16 %v1163, %v1162
      %v1278 = vpack.c.b16 %v1165, %v1164
      %v1279 = vpack.c.b16 %v1167, %v1166
      %v1280 = vpack.c.b16 %v1169, %v1168
      %v1281 = vpack.c.b16 %v1171, %v1170
      %v1282 = vpack.c.b16 %v1173, %v1172
      %v1283 = vpack.c.b16 %v1175, %v1174
      %v1284 = vpack.c.b16 %v1177, %v1176
      %v1285 = vpack.c.b16 %v1179, %v1178
      %v1286 = vpack.c.b16 %v1181, %v1180
      %v1287 = vpack.c.b16 %v1183, %v1182
      %v1288 = vpack.c.b16 %v1185, %v1184
      %v1289 = vpack.c.b16 %v1187, %v1186
      %v1290 = vpack.c.b16 %v1189, %v1188
      %v1291 = vpack.c.b16 %v1191, %v1190
      %v1292 = vpack.c.b16 %v1193, %v1192
      %v1293 = vpack.c.b16 %v1195, %v1194
      %v1294 = vpack.c.b16 %v1197, %v1196
      %v1295 = vpack.c.b16 %v1199, %v1198
      %v1296 = vpack.c.b16 %v1201, %v1200
      %v1297 = vpack.c.b16 %v1203, %v1202
      %v1298 = vpack.c.b16 %v1205, %v1204
      %v1299 = vpack.c.b16 %v1207, %v1206
      %v1300 = vpack.c.b16 %v1209, %v1208
      %v1301 = vpack.c.b16 %v1211, %v1210
      %v1302 = vpack.c.b16 %v1213, %v1212
      %v1303 = vpack.c.b16 %v1215, %v1214
      %v1304 = vpack.c.b16 %v1217, %v1216
      %v1305 = vpack.c.b16 %v1219, %v1218
      %v1306 = vpack.c.b16 %v1221, %v1220
      %v1307 = vpack.c.b16 %v1223, %v1222
      %v1308 = vpack.c.b16 %v1225, %v1224
      %v1309 = vpack.c.b16 %v1227, %v1226
      %v1310 = vpack.c.b16 %v1229, %v1228
      %v1311 = vpack.c.b16 %v1231, %v1230
      %v1312 = vpack.c.b16 %v1233, %v1232
      %v1313 = vpack.c.b16 %v1235, %v1234
      %v1314 = vpack.c.b16 %v1237, %v1236
      %v1315 = vpack.c.b16 %v1239, %v1238
      %v1316 = vpack.c.b16 %v1241, %v1240
      %v1317 = vpack.c.b16 %v1243, %v1242
      %v1318 = vpack.c.b16 %v1245, %v1244
      %v1319 = vpack.c.b16 %v1247, %v1246
      %v1320 = vpack.c.b16 %v1249, %v1248
      %v1321 = vpack.c.b16 %v1251, %v1250
      %v1322 = vpack.c.b16 %v1253, %v1252
      %v1323 = vpack.c.b16 %v1255, %v1254
      %v1324 = vpack.c.b16 %v1257, %v1256
      %v1325 = vpack.c.b16 %v1259, %v1258
      %v1326 = vpack.c.b16 %v1261, %v1260
      %v1327 = vpack.c.b16 %v1263, %v1262
      %v1328 = vpack.c.b16 %v1265, %v1264
      %v1329 = vpack.c.b16 %v1266, %v1266
      %v1393 = vsel %vm723, %v1329, 0
      %1395 = vmatprep.subr.bf16.mxu0 0
      %1396 = vmatpush1.bf16.msra.mxu0 %v1267
      %1397 = vmatprep.subr.bf16.mxu0 0
      %1398 = vmatpush1.bf16.msra.mxu0 %v1268
      %1399 = vmatprep.subr.bf16.mxu0 0
      %1400 = vmatpush1.bf16.msra.mxu0 %v1269
      %1401 = vmatprep.subr.bf16.mxu0 0
      %1402 = vmatpush1.bf16.msra.mxu0 %v1270
      %1403 = vmatprep.subr.bf16.mxu0 0
      %1404 = vmatpush1.bf16.msra.mxu0 %v1271
      %1405 = vmatprep.subr.bf16.mxu0 0
      %1406 = vmatpush1.bf16.msra.mxu0 %v1272
      %1407 = vmatprep.subr.bf16.mxu0 0
      %1408 = vmatpush1.bf16.msra.mxu0 %v1273
      %1409 = vmatprep.subr.bf16.mxu0 0
      %1410 = vmatpush1.bf16.msra.mxu0 %v1274
      %1411 = vmatprep.subr.bf16.mxu0 0
      %1412 = vmatpush1.bf16.msra.mxu0 %v1275
      %1413 = vmatprep.subr.bf16.mxu0 0
      %1414 = vmatpush1.bf16.msra.mxu0 %v1276
      %1415 = vmatprep.subr.bf16.mxu0 0
      %1416 = vmatpush1.bf16.msra.mxu0 %v1277
      %1417 = vmatprep.subr.bf16.mxu0 0
      %1418 = vmatpush1.bf16.msra.mxu0 %v1278
      %1419 = vmatprep.subr.bf16.mxu0 0
      %1420 = vmatpush1.bf16.msra.mxu0 %v1279
      %1421 = vmatprep.subr.bf16.mxu0 0
      %1422 = vmatpush1.bf16.msra.mxu0 %v1280
      %1423 = vmatprep.subr.bf16.mxu0 0
      %1424 = vmatpush1.bf16.msra.mxu0 %v1281
      %1425 = vmatprep.subr.bf16.mxu0 0
      %1426 = vmatpush1.bf16.msra.mxu0 %v1282
      %1427 = vmatprep.mubr.bf16.mxu0 %v330
      %1428 = vmatmul.mubr.bf16.gmra.mrb[0].mxu0 %v329
      %v1429 = vpop.f32.mrb[0].mxu0
      %v1430 = vadd.f32 0.0, %v1429
      %v1431 = vpop.f32.mrb[0].mxu0
      %v1432 = vpop.f32.mrb[0].mxu0
      %v1433 = vadd.f32 0.0, %v1432
      %v1434 = vpop.f32.mrb[0].mxu0
      %1435 = vdwg.mxu0
      %1436 = vmatprep.subr.bf16.mxu0 0
      %1437 = vmatpush1.bf16.msra.mxu0 %v1283
      %1438 = vmatprep.subr.bf16.mxu0 0
      %1439 = vmatpush1.bf16.msra.mxu0 %v1284
      %1440 = vmatprep.subr.bf16.mxu0 0
      %1441 = vmatpush1.bf16.msra.mxu0 %v1285
      %1442 = vmatprep.subr.bf16.mxu0 0
      %1443 = vmatpush1.bf16.msra.mxu0 %v1286
      %1444 = vmatprep.subr.bf16.mxu0 0
      %1445 = vmatpush1.bf16.msra.mxu0 %v1287
      %1446 = vmatprep.subr.bf16.mxu0 0
      %1447 = vmatpush1.bf16.msra.mxu0 %v1288
      %1448 = vmatprep.subr.bf16.mxu0 0
      %1449 = vmatpush1.bf16.msra.mxu0 %v1289
      %1450 = vmatprep.subr.bf16.mxu0 0
      %1451 = vmatpush1.bf16.msra.mxu0 %v1290
      %1452 = vmatprep.subr.bf16.mxu0 0
      %1453 = vmatpush1.bf16.msra.mxu0 %v1291
      %1454 = vmatprep.subr.bf16.mxu0 0
      %1455 = vmatpush1.bf16.msra.mxu0 %v1292
      %1456 = vmatprep.subr.bf16.mxu0 0
      %1457 = vmatpush1.bf16.msra.mxu0 %v1293
      %1458 = vmatprep.subr.bf16.mxu0 0
      %1459 = vmatpush1.bf16.msra.mxu0 %v1294
      %1460 = vmatprep.subr.bf16.mxu0 0
      %1461 = vmatpush1.bf16.msra.mxu0 %v1295
      %1462 = vmatprep.subr.bf16.mxu0 0
      %1463 = vmatpush1.bf16.msra.mxu0 %v1296
      %1464 = vmatprep.subr.bf16.mxu0 0
      %1465 = vmatpush1.bf16.msra.mxu0 %v1297
      %1466 = vmatprep.subr.bf16.mxu0 0
      %1467 = vmatpush1.bf16.msra.mxu0 %v1298
      %1468 = vmatprep.mubr.bf16.mxu0 %v332
      %1469 = vmatmul.mubr.bf16.gmra.mrb[0].mxu0 %v331
      %v1470 = vpop.f32.mrb[0].mxu0
      %v1471 = vadd.f32 %v1430, %v1470
      %v1472 = vpop.f32.mrb[0].mxu0
      %v1473 = vpop.f32.mrb[0].mxu0
      %v1474 = vadd.f32 %v1433, %v1473
      %v1475 = vpop.f32.mrb[0].mxu0
      %1476 = vdwg.mxu0
      %1477 = vmatprep.subr.bf16.mxu0 0
      %1478 = vmatpush1.bf16.msra.mxu0 %v1299
      %1479 = vmatprep.subr.bf16.mxu0 0
      %1480 = vmatpush1.bf16.msra.mxu0 %v1300
      %1481 = vmatprep.subr.bf16.mxu0 0
      %1482 = vmatpush1.bf16.msra.mxu0 %v1301
      %1483 = vmatprep.subr.bf16.mxu0 0
      %1484 = vmatpush1.bf16.msra.mxu0 %v1302
      %1485 = vmatprep.subr.bf16.mxu0 0
      %1486 = vmatpush1.bf16.msra.mxu0 %v1303
      %1487 = vmatprep.subr.bf16.mxu0 0
      %1488 = vmatpush1.bf16.msra.mxu0 %v1304
      %1489 = vmatprep.subr.bf16.mxu0 0
      %1490 = vmatpush1.bf16.msra.mxu0 %v1305
      %1491 = vmatprep.subr.bf16.mxu0 0
      %1492 = vmatpush1.bf16.msra.mxu0 %v1306
      %1493 = vmatprep.subr.bf16.mxu0 0
      %1494 = vmatpush1.bf16.msra.mxu0 %v1307
      %1495 = vmatprep.subr.bf16.mxu0 0
      %1496 = vmatpush1.bf16.msra.mxu0 %v1308
      %1497 = vmatprep.subr.bf16.mxu0 0
      %1498 = vmatpush1.bf16.msra.mxu0 %v1309
      %1499 = vmatprep.subr.bf16.mxu0 0
      %1500 = vmatpush1.bf16.msra.mxu0 %v1310
      %1501 = vmatprep.subr.bf16.mxu0 0
      %1502 = vmatpush1.bf16.msra.mxu0 %v1311
      %1503 = vmatprep.subr.bf16.mxu0 0
      %1504 = vmatpush1.bf16.msra.mxu0 %v1312
      %1505 = vmatprep.subr.bf16.mxu0 0
      %1506 = vmatpush1.bf16.msra.mxu0 %v1313
      %1507 = vmatprep.subr.bf16.mxu0 0
      %1508 = vmatpush1.bf16.msra.mxu0 %v1314
      %1509 = vmatprep.mubr.bf16.mxu0 %v334
      %1510 = vmatmul.mubr.bf16.gmra.mrb[0].mxu0 %v333
      %v1511 = vpop.f32.mrb[0].mxu0
      %v1512 = vadd.f32 %v1471, %v1511
      %v1513 = vpop.f32.mrb[0].mxu0
      %v1514 = vpop.f32.mrb[0].mxu0
      %v1515 = vadd.f32 %v1474, %v1514
      %v1516 = vpop.f32.mrb[0].mxu0
      %1517 = vdwg.mxu0
      %1518 = vmatprep.subr.bf16.mxu0 0
      %1519 = vmatpush1.bf16.msra.mxu0 %v1315
      %1520 = vmatprep.subr.bf16.mxu0 0
      %1521 = vmatpush1.bf16.msra.mxu0 %v1316
      %1522 = vmatprep.subr.bf16.mxu0 0
      %1523 = vmatpush1.bf16.msra.mxu0 %v1317
      %1524 = vmatprep.subr.bf16.mxu0 0
      %1525 = vmatpush1.bf16.msra.mxu0 %v1318
      %1526 = vmatprep.subr.bf16.mxu0 0
      %1527 = vmatpush1.bf16.msra.mxu0 %v1319
      %1528 = vmatprep.subr.bf16.mxu0 0
      %1529 = vmatpush1.bf16.msra.mxu0 %v1320
      %1530 = vmatprep.subr.bf16.mxu0 0
      %1531 = vmatpush1.bf16.msra.mxu0 %v1321
      %1532 = vmatprep.subr.bf16.mxu0 0
      %1533 = vmatpush1.bf16.msra.mxu0 %v1322
      %1534 = vmatprep.subr.bf16.mxu0 0
      %1535 = vmatpush1.bf16.msra.mxu0 %v1323
      %1536 = vmatprep.subr.bf16.mxu0 0
      %1537 = vmatpush1.bf16.msra.mxu0 %v1324
      %1538 = vmatprep.subr.bf16.mxu0 0
      %1539 = vmatpush1.bf16.msra.mxu0 %v1325
      %1540 = vmatprep.subr.bf16.mxu0 0
      %1541 = vmatpush1.bf16.msra.mxu0 %v1326
      %1542 = vmatprep.subr.bf16.mxu0 0
      %1543 = vmatpush1.bf16.msra.mxu0 %v1327
      %1544 = vmatprep.subr.bf16.mxu0 0
      %1545 = vmatpush1.bf16.msra.mxu0 %v1328
      %1546 = vmatprep.subr.bf16.mxu0 0
      %1547 = vmatpush1.bf16.msra.mxu0 %v1393
      %1548 = vmatprep.subr.bf16.mxu0 0
      %1549 = vmatpush1.bf16.msra.mxu0 0
      %1550 = vmatprep.mubr.bf16.mxu0 %v721
      %1551 = vmatmul.mubr.bf16.gmra.mrb[0].mxu0 %v335
      %v1552 = vpop.f32.mrb[0].mxu0
      %v1553 = vadd.f32 %v1512, %v1552
      %v1554 = vpop.f32.mrb[0].mxu0
      %v1555 = vpop.f32.mrb[0].mxu0
      %v1556 = vadd.f32 %v1515, %v1555
      %v1557 = vpop.f32.mrb[0].mxu0
      %1558 = vdwg.mxu0
      %s1559 = scalar_lea.vmem %s165, 1000
      %v1560 = vld [vmem:[%s1559] sm:$0xf]
      %v1561 = vld [vmem:[%s1559 + $0x4] sm:$0xf]
      %v1562 = vld [vmem:[%s1559 + $0x8] sm:$0xf]
      %v1563 = vld [vmem:[%s1559 + $0xc] sm:$0xf]
      %v1564 = vld [vmem:[%s1559 + $0x10] sm:$0xf]
      %v1565 = vld [vmem:[%s1559 + $0x14] sm:$0xf]
      %v1566 = vld [vmem:[%s1559 + $0x18] sm:$0xf]
      %v1567 = vld [vmem:[%s1559 + $0x1c] sm:$0xf]
      %v1568 = vld [vmem:[%s1559 + $0x20] sm:$0xf]
      %v1569 = vld [vmem:[%s1559 + $0x24] sm:$0xf]
      %v1570 = vld [vmem:[%s1559 + $0x28] sm:$0xf]
      %v1571 = vld [vmem:[%s1559 + $0x2c] sm:$0xf]
      %v1572 = vld [vmem:[%s1559 + $0x30] sm:$0xf]
      %v1573 = vld [vmem:[%s1559 + $0x34] sm:$0xf]
      %v1574 = vld [vmem:[%s1559 + $0x38] sm:$0xf]
      %v1575 = vld [vmem:[%s1559 + $0x3c] sm:$0xf]
      %v1576 = vld [vmem:[%s1559 + $0x40] sm:$0xf]
      %v1577 = vld [vmem:[%s1559 + $0x44] sm:$0xf]
      %v1578 = vld [vmem:[%s1559 + $0x48] sm:$0xf]
      %v1579 = vld [vmem:[%s1559 + $0x4c] sm:$0xf]
      %v1580 = vld [vmem:[%s1559 + $0x50] sm:$0xf]
      %v1581 = vld [vmem:[%s1559 + $0x54] sm:$0xf]
      %v1582 = vld [vmem:[%s1559 + $0x58] sm:$0xf]
      %v1583 = vld [vmem:[%s1559 + $0x5c] sm:$0xf]
      %v1584 = vld [vmem:[%s1559 + $0x60] sm:$0xf]
      %v1585 = vld [vmem:[%s1559 + $0x64] sm:$0xf]
      %v1586 = vld [vmem:[%s1559 + $0x68] sm:$0xf]
      %v1587 = vld [vmem:[%s1559 + $0x6c] sm:$0xf]
      %v1588 = vld [vmem:[%s1559 + $0x70] sm:$0xf]
      %v1589 = vld [vmem:[%s1559 + $0x74] sm:$0xf]
      %v1590 = vld [vmem:[%s1559 + $0x78] sm:$0xf]
      %v1591 = vld [vmem:[%s1559 + $0x7c] sm:$0xf]
      %v1592 = vld [vmem:[%s1559 + $0x80] sm:$0xf]
      %v1593 = vld [vmem:[%s1559 + $0x84] sm:$0xf]
      %v1594 = vld [vmem:[%s1559 + $0x88] sm:$0xf]
      %v1595 = vld [vmem:[%s1559 + $0x8c] sm:$0xf]
      %v1596 = vld [vmem:[%s1559 + $0x90] sm:$0xf]
      %v1597 = vld [vmem:[%s1559 + $0x94] sm:$0xf]
      %v1598 = vld [vmem:[%s1559 + $0x98] sm:$0xf]
      %v1599 = vld [vmem:[%s1559 + $0x9c] sm:$0xf]
      %v1600 = vld [vmem:[%s1559 + $0xa0] sm:$0xf]
      %v1601 = vld [vmem:[%s1559 + $0xa4] sm:$0xf]
      %v1602 = vld [vmem:[%s1559 + $0xa8] sm:$0xf]
      %v1603 = vld [vmem:[%s1559 + $0xac] sm:$0xf]
      %v1604 = vld [vmem:[%s1559 + $0xb0] sm:$0xf]
      %v1605 = vld [vmem:[%s1559 + $0xb4] sm:$0xf]
      %v1606 = vld [vmem:[%s1559 + $0xb8] sm:$0xf]
      %v1607 = vld [vmem:[%s1559 + $0xbc] sm:$0xf]
      %v1608 = vld [vmem:[%s1559 + $0xc0] sm:$0xf]
      %v1609 = vld [vmem:[%s1559 + $0xc4] sm:$0xf]
      %v1610 = vld [vmem:[%s1559 + $0xc8] sm:$0xf]
      %v1611 = vld [vmem:[%s1559 + $0xcc] sm:$0xf]
      %v1612 = vld [vmem:[%s1559 + $0xd0] sm:$0xf]
      %v1613 = vld [vmem:[%s1559 + $0xd4] sm:$0xf]
      %v1614 = vld [vmem:[%s1559 + $0xd8] sm:$0xf]
      %v1615 = vld [vmem:[%s1559 + $0xdc] sm:$0xf]
      %v1616 = vld [vmem:[%s1559 + $0xe0] sm:$0xf]
      %v1617 = vld [vmem:[%s1559 + $0xe4] sm:$0xf]
      %v1618 = vld [vmem:[%s1559 + $0xe8] sm:$0xf]
      %v1619 = vld [vmem:[%s1559 + $0xec] sm:$0xf]
      %v1620 = vld [vmem:[%s1559 + $0xf0] sm:$0xf]
      %v1621 = vld [vmem:[%s1559 + $0xf4] sm:$0xf]
      %v1622 = vld [vmem:[%s1559 + $0xf8] sm:$0xf]
      %v1623 = vld [vmem:[%s1559 + $0xfc] sm:$0xf]
      %v1624 = vld [vmem:[%s1559 + $0x100] sm:$0xf]
      %v1625 = vld [vmem:[%s1559 + $0x104] sm:$0xf]
      %v1626 = vld [vmem:[%s1559 + $0x108] sm:$0xf]
      %v1627 = vld [vmem:[%s1559 + $0x10c] sm:$0xf]
      %v1628 = vld [vmem:[%s1559 + $0x110] sm:$0xf]
      %v1629 = vld [vmem:[%s1559 + $0x114] sm:$0xf]
      %v1630 = vld [vmem:[%s1559 + $0x118] sm:$0xf]
      %v1631 = vld [vmem:[%s1559 + $0x11c] sm:$0xf]
      %v1632 = vld [vmem:[%s1559 + $0x120] sm:$0xf]
      %v1633 = vld [vmem:[%s1559 + $0x124] sm:$0xf]
      %v1634 = vld [vmem:[%s1559 + $0x128] sm:$0xf]
      %v1635 = vld [vmem:[%s1559 + $0x12c] sm:$0xf]
      %v1636 = vld [vmem:[%s1559 + $0x130] sm:$0xf]
      %v1637 = vld [vmem:[%s1559 + $0x134] sm:$0xf]
      %v1638 = vld [vmem:[%s1559 + $0x138] sm:$0xf]
      %v1639 = vld [vmem:[%s1559 + $0x13c] sm:$0xf]
      %v1640 = vld [vmem:[%s1559 + $0x140] sm:$0xf]
      %v1641 = vld [vmem:[%s1559 + $0x144] sm:$0xf]
      %v1642 = vld [vmem:[%s1559 + $0x148] sm:$0xf]
      %v1643 = vld [vmem:[%s1559 + $0x14c] sm:$0xf]
      %v1644 = vld [vmem:[%s1559 + $0x150] sm:$0xf]
      %v1645 = vld [vmem:[%s1559 + $0x154] sm:$0xf]
      %v1646 = vld [vmem:[%s1559 + $0x158] sm:$0xf]
      %v1647 = vld [vmem:[%s1559 + $0x15c] sm:$0xf]
      %v1648 = vld [vmem:[%s1559 + $0x160] sm:$0xf]
      %v1649 = vld [vmem:[%s1559 + $0x164] sm:$0xf]
      %v1650 = vld [vmem:[%s1559 + $0x168] sm:$0xf]
      %v1651 = vld [vmem:[%s1559 + $0x16c] sm:$0xf]
      %v1652 = vld [vmem:[%s1559 + $0x170] sm:$0xf]
      %v1653 = vld [vmem:[%s1559 + $0x174] sm:$0xf]
      %v1654 = vld [vmem:[%s1559 + $0x178] sm:$0xf]
      %v1655 = vld [vmem:[%s1559 + $0x17c] sm:$0xf]
      %v1656 = vld [vmem:[%s1559 + $0x180] sm:$0xf]
      %v1657 = vld [vmem:[%s1559 + $0x184] sm:$0xf]
      %v1658 = vld [vmem:[%s1559 + $0x188] sm:$0xf]
      %v1659 = vld [vmem:[%s1559 + $0x18c] sm:$0xf]
      %v1660 = vld [vmem:[%s1559 + $0x190] sm:$0xf]
      %v1661 = vld [vmem:[%s1559 + $0x194] sm:$0xf]
      %v1662 = vld [vmem:[%s1559 + $0x198] sm:$0xf]
      %v1663 = vld [vmem:[%s1559 + $0x19c] sm:$0xf]
      %v1664 = vld [vmem:[%s1559 + $0x1a0] sm:$0xf]
      %v1665 = vld [vmem:[%s1559 + $0x1a4] sm:$0xf]
      %v1666 = vld [vmem:[%s1559 + $0x1a8] sm:$0xf]
      %v1667 = vld [vmem:[%s1559 + $0x1ac] sm:$0xf]
      %v1668 = vld [vmem:[%s1559 + $0x1b0] sm:$0xf]
      %v1669 = vld [vmem:[%s1559 + $0x1b4] sm:$0xf]
      %v1670 = vld [vmem:[%s1559 + $0x1b8] sm:$0xf]
      %v1671 = vld [vmem:[%s1559 + $0x1bc] sm:$0xf]
      %v1672 = vld [vmem:[%s1559 + $0x1c0] sm:$0xf]
      %v1673 = vld [vmem:[%s1559 + $0x1c4] sm:$0xf]
      %v1674 = vld [vmem:[%s1559 + $0x1c8] sm:$0xf]
      %v1675 = vld [vmem:[%s1559 + $0x1cc] sm:$0xf]
      %v1676 = vld [vmem:[%s1559 + $0x1d0] sm:$0xf]
      %v1677 = vld [vmem:[%s1559 + $0x1d4] sm:$0xf]
      %v1678 = vld [vmem:[%s1559 + $0x1d8] sm:$0xf]
      %v1679 = vld [vmem:[%s1559 + $0x1dc] sm:$0xf]
      %v1680 = vld [vmem:[%s1559 + $0x1e0] sm:$0xf]
      %v1681 = vld [vmem:[%s1559 + $0x1e4] sm:$0xf]
      %v1682 = vld [vmem:[%s1559 + $0x1e8] sm:$0xf]
      %v1683 = vld [vmem:[%s1559 + $0x1ec] sm:$0xf]
      %v1684 = vld [vmem:[%s1559 + $0x1f0] sm:$0xf]
      %v1810 = vunpack.c.l.b16 %v1560
      %v1811 = vunpack.c.l.b16 %v1561
      %v1812 = vunpack.c.l.b16 %v1562
      %v1813 = vunpack.c.l.b16 %v1563
      %v1814 = vunpack.c.l.b16 %v1564
      %v1815 = vunpack.c.l.b16 %v1565
      %v1816 = vunpack.c.l.b16 %v1566
      %v1817 = vunpack.c.l.b16 %v1567
      %v1818 = vunpack.c.l.b16 %v1568
      %v1819 = vunpack.c.l.b16 %v1569
      %v1820 = vunpack.c.l.b16 %v1570
      %v1821 = vunpack.c.l.b16 %v1571
      %v1822 = vunpack.c.l.b16 %v1572
      %v1823 = vunpack.c.l.b16 %v1573
      %v1824 = vunpack.c.l.b16 %v1574
      %v1825 = vunpack.c.l.b16 %v1575
      %v1826 = vunpack.c.l.b16 %v1576
      %v1827 = vunpack.c.l.b16 %v1577
      %v1828 = vunpack.c.l.b16 %v1578
      %v1829 = vunpack.c.l.b16 %v1579
      %v1830 = vunpack.c.l.b16 %v1580
      %v1831 = vunpack.c.l.b16 %v1581
      %v1832 = vunpack.c.l.b16 %v1582
      %v1833 = vunpack.c.l.b16 %v1583
      %v1834 = vunpack.c.l.b16 %v1584
      %v1835 = vunpack.c.l.b16 %v1585
      %v1836 = vunpack.c.l.b16 %v1586
      %v1837 = vunpack.c.l.b16 %v1587
      %v1838 = vunpack.c.l.b16 %v1588
      %v1839 = vunpack.c.l.b16 %v1589
      %v1840 = vunpack.c.l.b16 %v1590
      %v1841 = vunpack.c.l.b16 %v1591
      %v1842 = vunpack.c.l.b16 %v1592
      %v1843 = vunpack.c.l.b16 %v1593
      %v1844 = vunpack.c.l.b16 %v1594
      %v1845 = vunpack.c.l.b16 %v1595
      %v1846 = vunpack.c.l.b16 %v1596
      %v1847 = vunpack.c.l.b16 %v1597
      %v1848 = vunpack.c.l.b16 %v1598
      %v1849 = vunpack.c.l.b16 %v1599
      %v1850 = vunpack.c.l.b16 %v1600
      %v1851 = vunpack.c.l.b16 %v1601
      %v1852 = vunpack.c.l.b16 %v1602
      %v1853 = vunpack.c.l.b16 %v1603
      %v1854 = vunpack.c.l.b16 %v1604
      %v1855 = vunpack.c.l.b16 %v1605
      %v1856 = vunpack.c.l.b16 %v1606
      %v1857 = vunpack.c.l.b16 %v1607
      %v1858 = vunpack.c.l.b16 %v1608
      %v1859 = vunpack.c.l.b16 %v1609
      %v1860 = vunpack.c.l.b16 %v1610
      %v1861 = vunpack.c.l.b16 %v1611
      %v1862 = vunpack.c.l.b16 %v1612
      %v1863 = vunpack.c.l.b16 %v1613
      %v1864 = vunpack.c.l.b16 %v1614
      %v1865 = vunpack.c.l.b16 %v1615
      %v1866 = vunpack.c.l.b16 %v1616
      %v1867 = vunpack.c.l.b16 %v1617
      %v1868 = vunpack.c.l.b16 %v1618
      %v1869 = vunpack.c.l.b16 %v1619
      %v1870 = vunpack.c.l.b16 %v1620
      %v1871 = vunpack.c.l.b16 %v1621
      %v1872 = vunpack.c.l.b16 %v1622
      %v1873 = vunpack.c.l.b16 %v1623
      %v1874 = vunpack.c.l.b16 %v1624
      %v1875 = vunpack.c.l.b16 %v1625
      %v1876 = vunpack.c.l.b16 %v1626
      %v1877 = vunpack.c.l.b16 %v1627
      %v1878 = vunpack.c.l.b16 %v1628
      %v1879 = vunpack.c.l.b16 %v1629
      %v1880 = vunpack.c.l.b16 %v1630
      %v1881 = vunpack.c.l.b16 %v1631
      %v1882 = vunpack.c.l.b16 %v1632
      %v1883 = vunpack.c.l.b16 %v1633
      %v1884 = vunpack.c.l.b16 %v1634
      %v1885 = vunpack.c.l.b16 %v1635
      %v1886 = vunpack.c.l.b16 %v1636
      %v1887 = vunpack.c.l.b16 %v1637
      %v1888 = vunpack.c.l.b16 %v1638
      %v1889 = vunpack.c.l.b16 %v1639
      %v1890 = vunpack.c.l.b16 %v1640
      %v1891 = vunpack.c.l.b16 %v1641
      %v1892 = vunpack.c.l.b16 %v1642
      %v1893 = vunpack.c.l.b16 %v1643
      %v1894 = vunpack.c.l.b16 %v1644
      %v1895 = vunpack.c.l.b16 %v1645
      %v1896 = vunpack.c.l.b16 %v1646
      %v1897 = vunpack.c.l.b16 %v1647
      %v1898 = vunpack.c.l.b16 %v1648
      %v1899 = vunpack.c.l.b16 %v1649
      %v1900 = vunpack.c.l.b16 %v1650
      %v1901 = vunpack.c.l.b16 %v1651
      %v1902 = vunpack.c.l.b16 %v1652
      %v1903 = vunpack.c.l.b16 %v1653
      %v1904 = vunpack.c.l.b16 %v1654
      %v1905 = vunpack.c.l.b16 %v1655
      %v1906 = vunpack.c.l.b16 %v1656
      %v1907 = vunpack.c.l.b16 %v1657
      %v1908 = vunpack.c.l.b16 %v1658
      %v1909 = vunpack.c.l.b16 %v1659
      %v1910 = vunpack.c.l.b16 %v1660
      %v1911 = vunpack.c.l.b16 %v1661
      %v1912 = vunpack.c.l.b16 %v1662
      %v1913 = vunpack.c.l.b16 %v1663
      %v1914 = vunpack.c.l.b16 %v1664
      %v1915 = vunpack.c.l.b16 %v1665
      %v1916 = vunpack.c.l.b16 %v1666
      %v1917 = vunpack.c.l.b16 %v1667
      %v1918 = vunpack.c.l.b16 %v1668
      %v1919 = vunpack.c.l.b16 %v1669
      %v1920 = vunpack.c.l.b16 %v1670
      %v1921 = vunpack.c.l.b16 %v1671
      %v1922 = vunpack.c.l.b16 %v1672
      %v1923 = vunpack.c.l.b16 %v1673
      %v1924 = vunpack.c.l.b16 %v1674
      %v1925 = vunpack.c.l.b16 %v1675
      %v1926 = vunpack.c.l.b16 %v1676
      %v1927 = vunpack.c.l.b16 %v1677
      %v1928 = vunpack.c.l.b16 %v1678
      %v1929 = vunpack.c.l.b16 %v1679
      %v1930 = vunpack.c.l.b16 %v1680
      %v1931 = vunpack.c.l.b16 %v1681
      %v1932 = vunpack.c.l.b16 %v1682
      %v1933 = vunpack.c.l.b16 %v1683
      %v1934 = vunpack.c.l.b16 %v1684
      %v1935 = vpack.c.b16 %v1811, %v1810
      %v1936 = vpack.c.b16 %v1813, %v1812
      %v1937 = vpack.c.b16 %v1815, %v1814
      %v1938 = vpack.c.b16 %v1817, %v1816
      %v1939 = vpack.c.b16 %v1819, %v1818
      %v1940 = vpack.c.b16 %v1821, %v1820
      %v1941 = vpack.c.b16 %v1823, %v1822
      %v1942 = vpack.c.b16 %v1825, %v1824
      %v1943 = vpack.c.b16 %v1827, %v1826
      %v1944 = vpack.c.b16 %v1829, %v1828
      %v1945 = vpack.c.b16 %v1831, %v1830
      %v1946 = vpack.c.b16 %v1833, %v1832
      %v1947 = vpack.c.b16 %v1835, %v1834
      %v1948 = vpack.c.b16 %v1837, %v1836
      %v1949 = vpack.c.b16 %v1839, %v1838
      %v1950 = vpack.c.b16 %v1841, %v1840
      %v1951 = vpack.c.b16 %v1843, %v1842
      %v1952 = vpack.c.b16 %v1845, %v1844
      %v1953 = vpack.c.b16 %v1847, %v1846
      %v1954 = vpack.c.b16 %v1849, %v1848
      %v1955 = vpack.c.b16 %v1851, %v1850
      %v1956 = vpack.c.b16 %v1853, %v1852
      %v1957 = vpack.c.b16 %v1855, %v1854
      %v1958 = vpack.c.b16 %v1857, %v1856
      %v1959 = vpack.c.b16 %v1859, %v1858
      %v1960 = vpack.c.b16 %v1861, %v1860
      %v1961 = vpack.c.b16 %v1863, %v1862
      %v1962 = vpack.c.b16 %v1865, %v1864
      %v1963 = vpack.c.b16 %v1867, %v1866
      %v1964 = vpack.c.b16 %v1869, %v1868
      %v1965 = vpack.c.b16 %v1871, %v1870
      %v1966 = vpack.c.b16 %v1873, %v1872
      %v1967 = vpack.c.b16 %v1875, %v1874
      %v1968 = vpack.c.b16 %v1877, %v1876
      %v1969 = vpack.c.b16 %v1879, %v1878
      %v1970 = vpack.c.b16 %v1881, %v1880
      %v1971 = vpack.c.b16 %v1883, %v1882
      %v1972 = vpack.c.b16 %v1885, %v1884
      %v1973 = vpack.c.b16 %v1887, %v1886
      %v1974 = vpack.c.b16 %v1889, %v1888
      %v1975 = vpack.c.b16 %v1891, %v1890
      %v1976 = vpack.c.b16 %v1893, %v1892
      %v1977 = vpack.c.b16 %v1895, %v1894
      %v1978 = vpack.c.b16 %v1897, %v1896
      %v1979 = vpack.c.b16 %v1899, %v1898
      %v1980 = vpack.c.b16 %v1901, %v1900
      %v1981 = vpack.c.b16 %v1903, %v1902
      %v1982 = vpack.c.b16 %v1905, %v1904
      %v1983 = vpack.c.b16 %v1907, %v1906
      %v1984 = vpack.c.b16 %v1909, %v1908
      %v1985 = vpack.c.b16 %v1911, %v1910
      %v1986 = vpack.c.b16 %v1913, %v1912
      %v1987 = vpack.c.b16 %v1915, %v1914
      %v1988 = vpack.c.b16 %v1917, %v1916
      %v1989 = vpack.c.b16 %v1919, %v1918
      %v1990 = vpack.c.b16 %v1921, %v1920
      %v1991 = vpack.c.b16 %v1923, %v1922
      %v1992 = vpack.c.b16 %v1925, %v1924
      %v1993 = vpack.c.b16 %v1927, %v1926
      %v1994 = vpack.c.b16 %v1929, %v1928
      %v1995 = vpack.c.b16 %v1931, %v1930
      %v1996 = vpack.c.b16 %v1933, %v1932
      %v1997 = vpack.c.b16 %v1934, %v1934
      %v2061 = vsel %vm723, %v1997, 0
      %2063 = vmatprep.subr.bf16.mxu0 0
      %2064 = vmatpush1.bf16.msra.mxu0 %v1935
      %2065 = vmatprep.subr.bf16.mxu0 0
      %2066 = vmatpush1.bf16.msra.mxu0 %v1936
      %2067 = vmatprep.subr.bf16.mxu0 0
      %2068 = vmatpush1.bf16.msra.mxu0 %v1937
      %2069 = vmatprep.subr.bf16.mxu0 0
      %2070 = vmatpush1.bf16.msra.mxu0 %v1938
      %2071 = vmatprep.subr.bf16.mxu0 0
      %2072 = vmatpush1.bf16.msra.mxu0 %v1939
      %2073 = vmatprep.subr.bf16.mxu0 0
      %2074 = vmatpush1.bf16.msra.mxu0 %v1940
      %2075 = vmatprep.subr.bf16.mxu0 0
      %2076 = vmatpush1.bf16.msra.mxu0 %v1941
      %2077 = vmatprep.subr.bf16.mxu0 0
      %2078 = vmatpush1.bf16.msra.mxu0 %v1942
      %2079 = vmatprep.subr.bf16.mxu0 0
      %2080 = vmatpush1.bf16.msra.mxu0 %v1943
      %2081 = vmatprep.subr.bf16.mxu0 0
      %2082 = vmatpush1.bf16.msra.mxu0 %v1944
      %2083 = vmatprep.subr.bf16.mxu0 0
      %2084 = vmatpush1.bf16.msra.mxu0 %v1945
      %2085 = vmatprep.subr.bf16.mxu0 0
      %2086 = vmatpush1.bf16.msra.mxu0 %v1946
      %2087 = vmatprep.subr.bf16.mxu0 0
      %2088 = vmatpush1.bf16.msra.mxu0 %v1947
      %2089 = vmatprep.subr.bf16.mxu0 0
      %2090 = vmatpush1.bf16.msra.mxu0 %v1948
      %2091 = vmatprep.subr.bf16.mxu0 0
      %2092 = vmatpush1.bf16.msra.mxu0 %v1949
      %2093 = vmatprep.subr.bf16.mxu0 0
      %2094 = vmatpush1.bf16.msra.mxu0 %v1950
      %2095 = vmatprep.mubr.bf16.mxu0 %v330
      %2096 = vmatmul.mubr.bf16.gmra.mrb[0].mxu0 %v329
      %v2097 = vpop.f32.mrb[0].mxu0
      %v2098 = vadd.f32 0.0, %v2097
      %v2099 = vpop.f32.mrb[0].mxu0
      %v2100 = vpop.f32.mrb[0].mxu0
      %v2101 = vadd.f32 0.0, %v2100
      %v2102 = vpop.f32.mrb[0].mxu0
      %2103 = vdwg.mxu0
      %2104 = vmatprep.subr.bf16.mxu0 0
      %2105 = vmatpush1.bf16.msra.mxu0 %v1951
      %2106 = vmatprep.subr.bf16.mxu0 0
      %2107 = vmatpush1.bf16.msra.mxu0 %v1952
      %2108 = vmatprep.subr.bf16.mxu0 0
      %2109 = vmatpush1.bf16.msra.mxu0 %v1953
      %2110 = vmatprep.subr.bf16.mxu0 0
      %2111 = vmatpush1.bf16.msra.mxu0 %v1954
      %2112 = vmatprep.subr.bf16.mxu0 0
      %2113 = vmatpush1.bf16.msra.mxu0 %v1955
      %2114 = vmatprep.subr.bf16.mxu0 0
      %2115 = vmatpush1.bf16.msra.mxu0 %v1956
      %2116 = vmatprep.subr.bf16.mxu0 0
      %2117 = vmatpush1.bf16.msra.mxu0 %v1957
      %2118 = vmatprep.subr.bf16.mxu0 0
      %2119 = vmatpush1.bf16.msra.mxu0 %v1958
      %2120 = vmatprep.subr.bf16.mxu0 0
      %2121 = vmatpush1.bf16.msra.mxu0 %v1959
      %2122 = vmatprep.subr.bf16.mxu0 0
      %2123 = vmatpush1.bf16.msra.mxu0 %v1960
      %2124 = vmatprep.subr.bf16.mxu0 0
      %2125 = vmatpush1.bf16.msra.mxu0 %v1961
      %2126 = vmatprep.subr.bf16.mxu0 0
      %2127 = vmatpush1.bf16.msra.mxu0 %v1962
      %2128 = vmatprep.subr.bf16.mxu0 0
      %2129 = vmatpush1.bf16.msra.mxu0 %v1963
      %2130 = vmatprep.subr.bf16.mxu0 0
      %2131 = vmatpush1.bf16.msra.mxu0 %v1964
      %2132 = vmatprep.subr.bf16.mxu0 0
      %2133 = vmatpush1.bf16.msra.mxu0 %v1965
      %2134 = vmatprep.subr.bf16.mxu0 0
      %2135 = vmatpush1.bf16.msra.mxu0 %v1966
      %2136 = vmatprep.mubr.bf16.mxu0 %v332
      %2137 = vmatmul.mubr.bf16.gmra.mrb[0].mxu0 %v331
      %v2138 = vpop.f32.mrb[0].mxu0
      %v2139 = vadd.f32 %v2098, %v2138
      %v2140 = vpop.f32.mrb[0].mxu0
      %v2141 = vpop.f32.mrb[0].mxu0
      %v2142 = vadd.f32 %v2101, %v2141
      %v2143 = vpop.f32.mrb[0].mxu0
      %2144 = vdwg.mxu0
      %2145 = vmatprep.subr.bf16.mxu0 0
      %2146 = vmatpush1.bf16.msra.mxu0 %v1967
      %2147 = vmatprep.subr.bf16.mxu0 0
      %2148 = vmatpush1.bf16.msra.mxu0 %v1968
      %2149 = vmatprep.subr.bf16.mxu0 0
      %2150 = vmatpush1.bf16.msra.mxu0 %v1969
      %2151 = vmatprep.subr.bf16.mxu0 0
      %2152 = vmatpush1.bf16.msra.mxu0 %v1970
      %2153 = vmatprep.subr.bf16.mxu0 0
      %2154 = vmatpush1.bf16.msra.mxu0 %v1971
      %2155 = vmatprep.subr.bf16.mxu0 0
      %2156 = vmatpush1.bf16.msra.mxu0 %v1972
      %2157 = vmatprep.subr.bf16.mxu0 0
      %2158 = vmatpush1.bf16.msra.mxu0 %v1973
      %2159 = vmatprep.subr.bf16.mxu0 0
      %2160 = vmatpush1.bf16.msra.mxu0 %v1974
      %2161 = vmatprep.subr.bf16.mxu0 0
      %2162 = vmatpush1.bf16.msra.mxu0 %v1975
      %2163 = vmatprep.subr.bf16.mxu0 0
      %2164 = vmatpush1.bf16.msra.mxu0 %v1976
      %2165 = vmatprep.subr.bf16.mxu0 0
      %2166 = vmatpush1.bf16.msra.mxu0 %v1977
      %2167 = vmatprep.subr.bf16.mxu0 0
      %2168 = vmatpush1.bf16.msra.mxu0 %v1978
      %2169 = vmatprep.subr.bf16.mxu0 0
      %2170 = vmatpush1.bf16.msra.mxu0 %v1979
      %2171 = vmatprep.subr.bf16.mxu0 0
      %2172 = vmatpush1.bf16.msra.mxu0 %v1980
      %2173 = vmatprep.subr.bf16.mxu0 0
      %2174 = vmatpush1.bf16.msra.mxu0 %v1981
      %2175 = vmatprep.subr.bf16.mxu0 0
      %2176 = vmatpush1.bf16.msra.mxu0 %v1982
      %2177 = vmatprep.mubr.bf16.mxu0 %v334
      %2178 = vmatmul.mubr.bf16.gmra.mrb[0].mxu0 %v333
      %v2179 = vpop.f32.mrb[0].mxu0
      %v2180 = vadd.f32 %v2139, %v2179
      %v2181 = vpop.f32.mrb[0].mxu0
      %v2182 = vpop.f32.mrb[0].mxu0
      %v2183 = vadd.f32 %v2142, %v2182
      %v2184 = vpop.f32.mrb[0].mxu0
      %2185 = vdwg.mxu0
      %2186 = vmatprep.subr.bf16.mxu0 0
      %2187 = vmatpush1.bf16.msra.mxu0 %v1983
      %2188 = vmatprep.subr.bf16.mxu0 0
      %2189 = vmatpush1.bf16.msra.mxu0 %v1984
      %2190 = vmatprep.subr.bf16.mxu0 0
      %2191 = vmatpush1.bf16.msra.mxu0 %v1985
      %2192 = vmatprep.subr.bf16.mxu0 0
      %2193 = vmatpush1.bf16.msra.mxu0 %v1986
      %2194 = vmatprep.subr.bf16.mxu0 0
      %2195 = vmatpush1.bf16.msra.mxu0 %v1987
      %2196 = vmatprep.subr.bf16.mxu0 0
      %2197 = vmatpush1.bf16.msra.mxu0 %v1988
      %2198 = vmatprep.subr.bf16.mxu0 0
      %2199 = vmatpush1.bf16.msra.mxu0 %v1989
      %2200 = vmatprep.subr.bf16.mxu0 0
      %2201 = vmatpush1.bf16.msra.mxu0 %v1990
      %2202 = vmatprep.subr.bf16.mxu0 0
      %2203 = vmatpush1.bf16.msra.mxu0 %v1991
      %2204 = vmatprep.subr.bf16.mxu0 0
      %2205 = vmatpush1.bf16.msra.mxu0 %v1992
      %2206 = vmatprep.subr.bf16.mxu0 0
      %2207 = vmatpush1.bf16.msra.mxu0 %v1993
      %2208 = vmatprep.subr.bf16.mxu0 0
      %2209 = vmatpush1.bf16.msra.mxu0 %v1994
      %2210 = vmatprep.subr.bf16.mxu0 0
      %2211 = vmatpush1.bf16.msra.mxu0 %v1995
      %2212 = vmatprep.subr.bf16.mxu0 0
      %2213 = vmatpush1.bf16.msra.mxu0 %v1996
      %2214 = vmatprep.subr.bf16.mxu0 0
      %2215 = vmatpush1.bf16.msra.mxu0 %v2061
      %2216 = vmatprep.subr.bf16.mxu0 0
      %2217 = vmatpush1.bf16.msra.mxu0 0
      %2218 = vmatprep.mubr.bf16.mxu0 %v721
      %2219 = vmatmul.mubr.bf16.gmra.mrb[0].mxu0 %v335
      %v2220 = vpop.f32.mrb[0].mxu0
      %v2221 = vadd.f32 %v2180, %v2220
      %v2222 = vpop.f32.mrb[0].mxu0
      %v2223 = vpop.f32.mrb[0].mxu0
      %v2224 = vadd.f32 %v2183, %v2223
      %v2225 = vpop.f32.mrb[0].mxu0
      %2226 = vdwg.mxu0
      %s2227 = scalar_lea.vmem %s165, 1500
      %v2228 = vld [vmem:[%s2227] sm:$0xf]
      %v2229 = vld [vmem:[%s2227 + $0x4] sm:$0xf]
      %v2230 = vld [vmem:[%s2227 + $0x8] sm:$0xf]
      %v2231 = vld [vmem:[%s2227 + $0xc] sm:$0xf]
      %v2232 = vld [vmem:[%s2227 + $0x10] sm:$0xf]
      %v2233 = vld [vmem:[%s2227 + $0x14] sm:$0xf]
      %v2234 = vld [vmem:[%s2227 + $0x18] sm:$0xf]
      %v2235 = vld [vmem:[%s2227 + $0x1c] sm:$0xf]
      %v2236 = vld [vmem:[%s2227 + $0x20] sm:$0xf]
      %v2237 = vld [vmem:[%s2227 + $0x24] sm:$0xf]
      %v2238 = vld [vmem:[%s2227 + $0x28] sm:$0xf]
      %v2239 = vld [vmem:[%s2227 + $0x2c] sm:$0xf]
      %v2240 = vld [vmem:[%s2227 + $0x30] sm:$0xf]
      %v2241 = vld [vmem:[%s2227 + $0x34] sm:$0xf]
      %v2242 = vld [vmem:[%s2227 + $0x38] sm:$0xf]
      %v2243 = vld [vmem:[%s2227 + $0x3c] sm:$0xf]
      %v2244 = vld [vmem:[%s2227 + $0x40] sm:$0xf]
      %v2245 = vld [vmem:[%s2227 + $0x44] sm:$0xf]
      %v2246 = vld [vmem:[%s2227 + $0x48] sm:$0xf]
      %v2247 = vld [vmem:[%s2227 + $0x4c] sm:$0xf]
      %v2248 = vld [vmem:[%s2227 + $0x50] sm:$0xf]
      %v2249 = vld [vmem:[%s2227 + $0x54] sm:$0xf]
      %v2250 = vld [vmem:[%s2227 + $0x58] sm:$0xf]
      %v2251 = vld [vmem:[%s2227 + $0x5c] sm:$0xf]
      %v2252 = vld [vmem:[%s2227 + $0x60] sm:$0xf]
      %v2253 = vld [vmem:[%s2227 + $0x64] sm:$0xf]
      %v2254 = vld [vmem:[%s2227 + $0x68] sm:$0xf]
      %v2255 = vld [vmem:[%s2227 + $0x6c] sm:$0xf]
      %v2256 = vld [vmem:[%s2227 + $0x70] sm:$0xf]
      %v2257 = vld [vmem:[%s2227 + $0x74] sm:$0xf]
      %v2258 = vld [vmem:[%s2227 + $0x78] sm:$0xf]
      %v2259 = vld [vmem:[%s2227 + $0x7c] sm:$0xf]
      %v2260 = vld [vmem:[%s2227 + $0x80] sm:$0xf]
      %v2261 = vld [vmem:[%s2227 + $0x84] sm:$0xf]
      %v2262 = vld [vmem:[%s2227 + $0x88] sm:$0xf]
      %v2263 = vld [vmem:[%s2227 + $0x8c] sm:$0xf]
      %v2264 = vld [vmem:[%s2227 + $0x90] sm:$0xf]
      %v2265 = vld [vmem:[%s2227 + $0x94] sm:$0xf]
      %v2266 = vld [vmem:[%s2227 + $0x98] sm:$0xf]
      %v2267 = vld [vmem:[%s2227 + $0x9c] sm:$0xf]
      %v2268 = vld [vmem:[%s2227 + $0xa0] sm:$0xf]
      %v2269 = vld [vmem:[%s2227 + $0xa4] sm:$0xf]
      %v2270 = vld [vmem:[%s2227 + $0xa8] sm:$0xf]
      %v2271 = vld [vmem:[%s2227 + $0xac] sm:$0xf]
      %v2272 = vld [vmem:[%s2227 + $0xb0] sm:$0xf]
      %v2273 = vld [vmem:[%s2227 + $0xb4] sm:$0xf]
      %v2274 = vld [vmem:[%s2227 + $0xb8] sm:$0xf]
      %v2275 = vld [vmem:[%s2227 + $0xbc] sm:$0xf]
      %v2276 = vld [vmem:[%s2227 + $0xc0] sm:$0xf]
      %v2277 = vld [vmem:[%s2227 + $0xc4] sm:$0xf]
      %v2278 = vld [vmem:[%s2227 + $0xc8] sm:$0xf]
      %v2279 = vld [vmem:[%s2227 + $0xcc] sm:$0xf]
      %v2280 = vld [vmem:[%s2227 + $0xd0] sm:$0xf]
      %v2281 = vld [vmem:[%s2227 + $0xd4] sm:$0xf]
      %v2282 = vld [vmem:[%s2227 + $0xd8] sm:$0xf]
      %v2283 = vld [vmem:[%s2227 + $0xdc] sm:$0xf]
      %v2284 = vld [vmem:[%s2227 + $0xe0] sm:$0xf]
      %v2285 = vld [vmem:[%s2227 + $0xe4] sm:$0xf]
      %v2286 = vld [vmem:[%s2227 + $0xe8] sm:$0xf]
      %v2287 = vld [vmem:[%s2227 + $0xec] sm:$0xf]
      %v2288 = vld [vmem:[%s2227 + $0xf0] sm:$0xf]
      %v2289 = vld [vmem:[%s2227 + $0xf4] sm:$0xf]
      %v2290 = vld [vmem:[%s2227 + $0xf8] sm:$0xf]
      %v2291 = vld [vmem:[%s2227 + $0xfc] sm:$0xf]
      %v2292 = vld [vmem:[%s2227 + $0x100] sm:$0xf]
      %v2293 = vld [vmem:[%s2227 + $0x104] sm:$0xf]
      %v2294 = vld [vmem:[%s2227 + $0x108] sm:$0xf]
      %v2295 = vld [vmem:[%s2227 + $0x10c] sm:$0xf]
      %v2296 = vld [vmem:[%s2227 + $0x110] sm:$0xf]
      %v2297 = vld [vmem:[%s2227 + $0x114] sm:$0xf]
      %v2298 = vld [vmem:[%s2227 + $0x118] sm:$0xf]
      %v2299 = vld [vmem:[%s2227 + $0x11c] sm:$0xf]
      %v2300 = vld [vmem:[%s2227 + $0x120] sm:$0xf]
      %v2301 = vld [vmem:[%s2227 + $0x124] sm:$0xf]
      %v2302 = vld [vmem:[%s2227 + $0x128] sm:$0xf]
      %v2303 = vld [vmem:[%s2227 + $0x12c] sm:$0xf]
      %v2304 = vld [vmem:[%s2227 + $0x130] sm:$0xf]
      %v2305 = vld [vmem:[%s2227 + $0x134] sm:$0xf]
      %v2306 = vld [vmem:[%s2227 + $0x138] sm:$0xf]
      %v2307 = vld [vmem:[%s2227 + $0x13c] sm:$0xf]
      %v2308 = vld [vmem:[%s2227 + $0x140] sm:$0xf]
      %v2309 = vld [vmem:[%s2227 + $0x144] sm:$0xf]
      %v2310 = vld [vmem:[%s2227 + $0x148] sm:$0xf]
      %v2311 = vld [vmem:[%s2227 + $0x14c] sm:$0xf]
      %v2312 = vld [vmem:[%s2227 + $0x150] sm:$0xf]
      %v2313 = vld [vmem:[%s2227 + $0x154] sm:$0xf]
      %v2314 = vld [vmem:[%s2227 + $0x158] sm:$0xf]
      %v2315 = vld [vmem:[%s2227 + $0x15c] sm:$0xf]
      %v2316 = vld [vmem:[%s2227 + $0x160] sm:$0xf]
      %v2317 = vld [vmem:[%s2227 + $0x164] sm:$0xf]
      %v2318 = vld [vmem:[%s2227 + $0x168] sm:$0xf]
      %v2319 = vld [vmem:[%s2227 + $0x16c] sm:$0xf]
      %v2320 = vld [vmem:[%s2227 + $0x170] sm:$0xf]
      %v2321 = vld [vmem:[%s2227 + $0x174] sm:$0xf]
      %v2322 = vld [vmem:[%s2227 + $0x178] sm:$0xf]
      %v2323 = vld [vmem:[%s2227 + $0x17c] sm:$0xf]
      %v2324 = vld [vmem:[%s2227 + $0x180] sm:$0xf]
      %v2325 = vld [vmem:[%s2227 + $0x184] sm:$0xf]
      %v2326 = vld [vmem:[%s2227 + $0x188] sm:$0xf]
      %v2327 = vld [vmem:[%s2227 + $0x18c] sm:$0xf]
      %v2328 = vld [vmem:[%s2227 + $0x190] sm:$0xf]
      %v2329 = vld [vmem:[%s2227 + $0x194] sm:$0xf]
      %v2330 = vld [vmem:[%s2227 + $0x198] sm:$0xf]
      %v2331 = vld [vmem:[%s2227 + $0x19c] sm:$0xf]
      %v2332 = vld [vmem:[%s2227 + $0x1a0] sm:$0xf]
      %v2333 = vld [vmem:[%s2227 + $0x1a4] sm:$0xf]
      %v2334 = vld [vmem:[%s2227 + $0x1a8] sm:$0xf]
      %v2335 = vld [vmem:[%s2227 + $0x1ac] sm:$0xf]
      %v2336 = vld [vmem:[%s2227 + $0x1b0] sm:$0xf]
      %v2337 = vld [vmem:[%s2227 + $0x1b4] sm:$0xf]
      %v2338 = vld [vmem:[%s2227 + $0x1b8] sm:$0xf]
      %v2339 = vld [vmem:[%s2227 + $0x1bc] sm:$0xf]
      %v2340 = vld [vmem:[%s2227 + $0x1c0] sm:$0xf]
      %v2341 = vld [vmem:[%s2227 + $0x1c4] sm:$0xf]
      %v2342 = vld [vmem:[%s2227 + $0x1c8] sm:$0xf]
      %v2343 = vld [vmem:[%s2227 + $0x1cc] sm:$0xf]
      %v2344 = vld [vmem:[%s2227 + $0x1d0] sm:$0xf]
      %v2345 = vld [vmem:[%s2227 + $0x1d4] sm:$0xf]
      %v2346 = vld [vmem:[%s2227 + $0x1d8] sm:$0xf]
      %v2347 = vld [vmem:[%s2227 + $0x1dc] sm:$0xf]
      %v2348 = vld [vmem:[%s2227 + $0x1e0] sm:$0xf]
      %v2349 = vld [vmem:[%s2227 + $0x1e4] sm:$0xf]
      %v2350 = vld [vmem:[%s2227 + $0x1e8] sm:$0xf]
      %v2351 = vld [vmem:[%s2227 + $0x1ec] sm:$0xf]
      %v2352 = vld [vmem:[%s2227 + $0x1f0] sm:$0xf]
      %v2478 = vunpack.c.l.b16 %v2228
      %v2479 = vunpack.c.l.b16 %v2229
      %v2480 = vunpack.c.l.b16 %v2230
      %v2481 = vunpack.c.l.b16 %v2231
      %v2482 = vunpack.c.l.b16 %v2232
      %v2483 = vunpack.c.l.b16 %v2233
      %v2484 = vunpack.c.l.b16 %v2234
      %v2485 = vunpack.c.l.b16 %v2235
      %v2486 = vunpack.c.l.b16 %v2236
      %v2487 = vunpack.c.l.b16 %v2237
      %v2488 = vunpack.c.l.b16 %v2238
      %v2489 = vunpack.c.l.b16 %v2239
      %v2490 = vunpack.c.l.b16 %v2240
      %v2491 = vunpack.c.l.b16 %v2241
      %v2492 = vunpack.c.l.b16 %v2242
      %v2493 = vunpack.c.l.b16 %v2243
      %v2494 = vunpack.c.l.b16 %v2244
      %v2495 = vunpack.c.l.b16 %v2245
      %v2496 = vunpack.c.l.b16 %v2246
      %v2497 = vunpack.c.l.b16 %v2247
      %v2498 = vunpack.c.l.b16 %v2248
      %v2499 = vunpack.c.l.b16 %v2249
      %v2500 = vunpack.c.l.b16 %v2250
      %v2501 = vunpack.c.l.b16 %v2251
      %v2502 = vunpack.c.l.b16 %v2252
      %v2503 = vunpack.c.l.b16 %v2253
      %v2504 = vunpack.c.l.b16 %v2254
      %v2505 = vunpack.c.l.b16 %v2255
      %v2506 = vunpack.c.l.b16 %v2256
      %v2507 = vunpack.c.l.b16 %v2257
      %v2508 = vunpack.c.l.b16 %v2258
      %v2509 = vunpack.c.l.b16 %v2259
      %v2510 = vunpack.c.l.b16 %v2260
      %v2511 = vunpack.c.l.b16 %v2261
      %v2512 = vunpack.c.l.b16 %v2262
      %v2513 = vunpack.c.l.b16 %v2263
      %v2514 = vunpack.c.l.b16 %v2264
      %v2515 = vunpack.c.l.b16 %v2265
      %v2516 = vunpack.c.l.b16 %v2266
      %v2517 = vunpack.c.l.b16 %v2267
      %v2518 = vunpack.c.l.b16 %v2268
      %v2519 = vunpack.c.l.b16 %v2269
      %v2520 = vunpack.c.l.b16 %v2270
      %v2521 = vunpack.c.l.b16 %v2271
      %v2522 = vunpack.c.l.b16 %v2272
      %v2523 = vunpack.c.l.b16 %v2273
      %v2524 = vunpack.c.l.b16 %v2274
      %v2525 = vunpack.c.l.b16 %v2275
      %v2526 = vunpack.c.l.b16 %v2276
      %v2527 = vunpack.c.l.b16 %v2277
      %v2528 = vunpack.c.l.b16 %v2278
      %v2529 = vunpack.c.l.b16 %v2279
      %v2530 = vunpack.c.l.b16 %v2280
      %v2531 = vunpack.c.l.b16 %v2281
      %v2532 = vunpack.c.l.b16 %v2282
      %v2533 = vunpack.c.l.b16 %v2283
      %v2534 = vunpack.c.l.b16 %v2284
      %v2535 = vunpack.c.l.b16 %v2285
      %v2536 = vunpack.c.l.b16 %v2286
      %v2537 = vunpack.c.l.b16 %v2287
      %v2538 = vunpack.c.l.b16 %v2288
      %v2539 = vunpack.c.l.b16 %v2289
      %v2540 = vunpack.c.l.b16 %v2290
      %v2541 = vunpack.c.l.b16 %v2291
      %v2542 = vunpack.c.l.b16 %v2292
      %v2543 = vunpack.c.l.b16 %v2293
      %v2544 = vunpack.c.l.b16 %v2294
      %v2545 = vunpack.c.l.b16 %v2295
      %v2546 = vunpack.c.l.b16 %v2296
      %v2547 = vunpack.c.l.b16 %v2297
      %v2548 = vunpack.c.l.b16 %v2298
      %v2549 = vunpack.c.l.b16 %v2299
      %v2550 = vunpack.c.l.b16 %v2300
      %v2551 = vunpack.c.l.b16 %v2301
      %v2552 = vunpack.c.l.b16 %v2302
      %v2553 = vunpack.c.l.b16 %v2303
      %v2554 = vunpack.c.l.b16 %v2304
      %v2555 = vunpack.c.l.b16 %v2305
      %v2556 = vunpack.c.l.b16 %v2306
      %v2557 = vunpack.c.l.b16 %v2307
      %v2558 = vunpack.c.l.b16 %v2308
      %v2559 = vunpack.c.l.b16 %v2309
      %v2560 = vunpack.c.l.b16 %v2310
      %v2561 = vunpack.c.l.b16 %v2311
      %v2562 = vunpack.c.l.b16 %v2312
      %v2563 = vunpack.c.l.b16 %v2313
      %v2564 = vunpack.c.l.b16 %v2314
      %v2565 = vunpack.c.l.b16 %v2315
      %v2566 = vunpack.c.l.b16 %v2316
      %v2567 = vunpack.c.l.b16 %v2317
      %v2568 = vunpack.c.l.b16 %v2318
      %v2569 = vunpack.c.l.b16 %v2319
      %v2570 = vunpack.c.l.b16 %v2320
      %v2571 = vunpack.c.l.b16 %v2321
      %v2572 = vunpack.c.l.b16 %v2322
      %v2573 = vunpack.c.l.b16 %v2323
      %v2574 = vunpack.c.l.b16 %v2324
      %v2575 = vunpack.c.l.b16 %v2325
      %v2576 = vunpack.c.l.b16 %v2326
      %v2577 = vunpack.c.l.b16 %v2327
      %v2578 = vunpack.c.l.b16 %v2328
      %v2579 = vunpack.c.l.b16 %v2329
      %v2580 = vunpack.c.l.b16 %v2330
      %v2581 = vunpack.c.l.b16 %v2331
      %v2582 = vunpack.c.l.b16 %v2332
      %v2583 = vunpack.c.l.b16 %v2333
      %v2584 = vunpack.c.l.b16 %v2334
      %v2585 = vunpack.c.l.b16 %v2335
      %v2586 = vunpack.c.l.b16 %v2336
      %v2587 = vunpack.c.l.b16 %v2337
      %v2588 = vunpack.c.l.b16 %v2338
      %v2589 = vunpack.c.l.b16 %v2339
      %v2590 = vunpack.c.l.b16 %v2340
      %v2591 = vunpack.c.l.b16 %v2341
      %v2592 = vunpack.c.l.b16 %v2342
      %v2593 = vunpack.c.l.b16 %v2343
      %v2594 = vunpack.c.l.b16 %v2344
      %v2595 = vunpack.c.l.b16 %v2345
      %v2596 = vunpack.c.l.b16 %v2346
      %v2597 = vunpack.c.l.b16 %v2347
      %v2598 = vunpack.c.l.b16 %v2348
      %v2599 = vunpack.c.l.b16 %v2349
      %v2600 = vunpack.c.l.b16 %v2350
      %v2601 = vunpack.c.l.b16 %v2351
      %v2602 = vunpack.c.l.b16 %v2352
      %v2603 = vpack.c.b16 %v2479, %v2478
      %v2604 = vpack.c.b16 %v2481, %v2480
      %v2605 = vpack.c.b16 %v2483, %v2482
      %v2606 = vpack.c.b16 %v2485, %v2484
      %v2607 = vpack.c.b16 %v2487, %v2486
      %v2608 = vpack.c.b16 %v2489, %v2488
      %v2609 = vpack.c.b16 %v2491, %v2490
      %v2610 = vpack.c.b16 %v2493, %v2492
      %v2611 = vpack.c.b16 %v2495, %v2494
      %v2612 = vpack.c.b16 %v2497, %v2496
      %v2613 = vpack.c.b16 %v2499, %v2498
      %v2614 = vpack.c.b16 %v2501, %v2500
      %v2615 = vpack.c.b16 %v2503, %v2502
      %v2616 = vpack.c.b16 %v2505, %v2504
      %v2617 = vpack.c.b16 %v2507, %v2506
      %v2618 = vpack.c.b16 %v2509, %v2508
      %v2619 = vpack.c.b16 %v2511, %v2510
      %v2620 = vpack.c.b16 %v2513, %v2512
      %v2621 = vpack.c.b16 %v2515, %v2514
      %v2622 = vpack.c.b16 %v2517, %v2516
      %v2623 = vpack.c.b16 %v2519, %v2518
      %v2624 = vpack.c.b16 %v2521, %v2520
      %v2625 = vpack.c.b16 %v2523, %v2522
      %v2626 = vpack.c.b16 %v2525, %v2524
      %v2627 = vpack.c.b16 %v2527, %v2526
      %v2628 = vpack.c.b16 %v2529, %v2528
      %v2629 = vpack.c.b16 %v2531, %v2530
      %v2630 = vpack.c.b16 %v2533, %v2532
      %v2631 = vpack.c.b16 %v2535, %v2534
      %v2632 = vpack.c.b16 %v2537, %v2536
      %v2633 = vpack.c.b16 %v2539, %v2538
      %v2634 = vpack.c.b16 %v2541, %v2540
      %v2635 = vpack.c.b16 %v2543, %v2542
      %v2636 = vpack.c.b16 %v2545, %v2544
      %v2637 = vpack.c.b16 %v2547, %v2546
      %v2638 = vpack.c.b16 %v2549, %v2548
      %v2639 = vpack.c.b16 %v2551, %v2550
      %v2640 = vpack.c.b16 %v2553, %v2552
      %v2641 = vpack.c.b16 %v2555, %v2554
      %v2642 = vpack.c.b16 %v2557, %v2556
      %v2643 = vpack.c.b16 %v2559, %v2558
      %v2644 = vpack.c.b16 %v2561, %v2560
      %v2645 = vpack.c.b16 %v2563, %v2562
      %v2646 = vpack.c.b16 %v2565, %v2564
      %v2647 = vpack.c.b16 %v2567, %v2566
      %v2648 = vpack.c.b16 %v2569, %v2568
      %v2649 = vpack.c.b16 %v2571, %v2570
      %v2650 = vpack.c.b16 %v2573, %v2572
      %v2651 = vpack.c.b16 %v2575, %v2574
      %v2652 = vpack.c.b16 %v2577, %v2576
      %v2653 = vpack.c.b16 %v2579, %v2578
      %v2654 = vpack.c.b16 %v2581, %v2580
      %v2655 = vpack.c.b16 %v2583, %v2582
      %v2656 = vpack.c.b16 %v2585, %v2584
      %v2657 = vpack.c.b16 %v2587, %v2586
      %v2658 = vpack.c.b16 %v2589, %v2588
      %v2659 = vpack.c.b16 %v2591, %v2590
      %v2660 = vpack.c.b16 %v2593, %v2592
      %v2661 = vpack.c.b16 %v2595, %v2594
      %v2662 = vpack.c.b16 %v2597, %v2596
      %v2663 = vpack.c.b16 %v2599, %v2598
      %v2664 = vpack.c.b16 %v2601, %v2600
      %v2665 = vpack.c.b16 %v2602, %v2602
      %v2729 = vsel %vm723, %v2665, 0
      %2731 = vmatprep.subr.bf16.mxu0 0
      %2732 = vmatpush1.bf16.msra.mxu0 %v2603
      %2733 = vmatprep.subr.bf16.mxu0 0
      %2734 = vmatpush1.bf16.msra.mxu0 %v2604
      %2735 = vmatprep.subr.bf16.mxu0 0
      %2736 = vmatpush1.bf16.msra.mxu0 %v2605
      %2737 = vmatprep.subr.bf16.mxu0 0
      %2738 = vmatpush1.bf16.msra.mxu0 %v2606
      %2739 = vmatprep.subr.bf16.mxu0 0
      %2740 = vmatpush1.bf16.msra.mxu0 %v2607
      %2741 = vmatprep.subr.bf16.mxu0 0
      %2742 = vmatpush1.bf16.msra.mxu0 %v2608
      %2743 = vmatprep.subr.bf16.mxu0 0
      %2744 = vmatpush1.bf16.msra.mxu0 %v2609
      %2745 = vmatprep.subr.bf16.mxu0 0
      %2746 = vmatpush1.bf16.msra.mxu0 %v2610
      %2747 = vmatprep.subr.bf16.mxu0 0
      %2748 = vmatpush1.bf16.msra.mxu0 %v2611
      %2749 = vmatprep.subr.bf16.mxu0 0
      %2750 = vmatpush1.bf16.msra.mxu0 %v2612
      %2751 = vmatprep.subr.bf16.mxu0 0
      %2752 = vmatpush1.bf16.msra.mxu0 %v2613
      %2753 = vmatprep.subr.bf16.mxu0 0
      %2754 = vmatpush1.bf16.msra.mxu0 %v2614
      %2755 = vmatprep.subr.bf16.mxu0 0
      %2756 = vmatpush1.bf16.msra.mxu0 %v2615
      %2757 = vmatprep.subr.bf16.mxu0 0
      %2758 = vmatpush1.bf16.msra.mxu0 %v2616
      %2759 = vmatprep.subr.bf16.mxu0 0
      %2760 = vmatpush1.bf16.msra.mxu0 %v2617
      %2761 = vmatprep.subr.bf16.mxu0 0
      %2762 = vmatpush1.bf16.msra.mxu0 %v2618
      %2763 = vmatprep.mubr.bf16.mxu0 %v330
      %2764 = vmatmul.mubr.bf16.gmra.mrb[0].mxu0 %v329
      %v2765 = vpop.f32.mrb[0].mxu0
      %v2766 = vadd.f32 0.0, %v2765
      %v2767 = vpop.f32.mrb[0].mxu0
      %v2768 = vpop.f32.mrb[0].mxu0
      %v2769 = vadd.f32 0.0, %v2768
      %v2770 = vpop.f32.mrb[0].mxu0
      %2771 = vdwg.mxu0
      %2772 = vmatprep.subr.bf16.mxu0 0
      %2773 = vmatpush1.bf16.msra.mxu0 %v2619
      %2774 = vmatprep.subr.bf16.mxu0 0
      %2775 = vmatpush1.bf16.msra.mxu0 %v2620
      %2776 = vmatprep.subr.bf16.mxu0 0
      %2777 = vmatpush1.bf16.msra.mxu0 %v2621
      %2778 = vmatprep.subr.bf16.mxu0 0
      %2779 = vmatpush1.bf16.msra.mxu0 %v2622
      %2780 = vmatprep.subr.bf16.mxu0 0
      %2781 = vmatpush1.bf16.msra.mxu0 %v2623
      %2782 = vmatprep.subr.bf16.mxu0 0
      %2783 = vmatpush1.bf16.msra.mxu0 %v2624
      %2784 = vmatprep.subr.bf16.mxu0 0
      %2785 = vmatpush1.bf16.msra.mxu0 %v2625
      %2786 = vmatprep.subr.bf16.mxu0 0
      %2787 = vmatpush1.bf16.msra.mxu0 %v2626
      %2788 = vmatprep.subr.bf16.mxu0 0
      %2789 = vmatpush1.bf16.msra.mxu0 %v2627
      %2790 = vmatprep.subr.bf16.mxu0 0
      %2791 = vmatpush1.bf16.msra.mxu0 %v2628
      %2792 = vmatprep.subr.bf16.mxu0 0
      %2793 = vmatpush1.bf16.msra.mxu0 %v2629
      %2794 = vmatprep.subr.bf16.mxu0 0
      %2795 = vmatpush1.bf16.msra.mxu0 %v2630
      %2796 = vmatprep.subr.bf16.mxu0 0
      %2797 = vmatpush1.bf16.msra.mxu0 %v2631
      %2798 = vmatprep.subr.bf16.mxu0 0
      %2799 = vmatpush1.bf16.msra.mxu0 %v2632
      %2800 = vmatprep.subr.bf16.mxu0 0
      %2801 = vmatpush1.bf16.msra.mxu0 %v2633
      %2802 = vmatprep.subr.bf16.mxu0 0
      %2803 = vmatpush1.bf16.msra.mxu0 %v2634
      %2804 = vmatprep.mubr.bf16.mxu0 %v332
      %2805 = vmatmul.mubr.bf16.gmra.mrb[0].mxu0 %v331
      %v2806 = vpop.f32.mrb[0].mxu0
      %v2807 = vadd.f32 %v2766, %v2806
      %v2808 = vpop.f32.mrb[0].mxu0
      %v2809 = vpop.f32.mrb[0].mxu0
      %v2810 = vadd.f32 %v2769, %v2809
      %v2811 = vpop.f32.mrb[0].mxu0
      %2812 = vdwg.mxu0
      %2813 = vmatprep.subr.bf16.mxu0 0
      %2814 = vmatpush1.bf16.msra.mxu0 %v2635
      %2815 = vmatprep.subr.bf16.mxu0 0
      %2816 = vmatpush1.bf16.msra.mxu0 %v2636
      %2817 = vmatprep.subr.bf16.mxu0 0
      %2818 = vmatpush1.bf16.msra.mxu0 %v2637
      %2819 = vmatprep.subr.bf16.mxu0 0
      %2820 = vmatpush1.bf16.msra.mxu0 %v2638
      %2821 = vmatprep.subr.bf16.mxu0 0
      %2822 = vmatpush1.bf16.msra.mxu0 %v2639
      %2823 = vmatprep.subr.bf16.mxu0 0
      %2824 = vmatpush1.bf16.msra.mxu0 %v2640
      %2825 = vmatprep.subr.bf16.mxu0 0
      %2826 = vmatpush1.bf16.msra.mxu0 %v2641
      %2827 = vmatprep.subr.bf16.mxu0 0
      %2828 = vmatpush1.bf16.msra.mxu0 %v2642
      %2829 = vmatprep.subr.bf16.mxu0 0
      %2830 = vmatpush1.bf16.msra.mxu0 %v2643
      %2831 = vmatprep.subr.bf16.mxu0 0
      %2832 = vmatpush1.bf16.msra.mxu0 %v2644
      %2833 = vmatprep.subr.bf16.mxu0 0
      %2834 = vmatpush1.bf16.msra.mxu0 %v2645
      %2835 = vmatprep.subr.bf16.mxu0 0
      %2836 = vmatpush1.bf16.msra.mxu0 %v2646
      %2837 = vmatprep.subr.bf16.mxu0 0
      %2838 = vmatpush1.bf16.msra.mxu0 %v2647
      %2839 = vmatprep.subr.bf16.mxu0 0
      %2840 = vmatpush1.bf16.msra.mxu0 %v2648
      %2841 = vmatprep.subr.bf16.mxu0 0
      %2842 = vmatpush1.bf16.msra.mxu0 %v2649
      %2843 = vmatprep.subr.bf16.mxu0 0
      %2844 = vmatpush1.bf16.msra.mxu0 %v2650
      %2845 = vmatprep.mubr.bf16.mxu0 %v334
      %2846 = vmatmul.mubr.bf16.gmra.mrb[0].mxu0 %v333
      %v2847 = vpop.f32.mrb[0].mxu0
      %v2848 = vadd.f32 %v2807, %v2847
      %v2849 = vpop.f32.mrb[0].mxu0
      %v2850 = vpop.f32.mrb[0].mxu0
      %v2851 = vadd.f32 %v2810, %v2850
      %v2852 = vpop.f32.mrb[0].mxu0
      %2853 = vdwg.mxu0
      %2854 = vmatprep.subr.bf16.mxu0 0
      %2855 = vmatpush1.bf16.msra.mxu0 %v2651
      %2856 = vmatprep.subr.bf16.mxu0 0
      %2857 = vmatpush1.bf16.msra.mxu0 %v2652
      %2858 = vmatprep.subr.bf16.mxu0 0
      %2859 = vmatpush1.bf16.msra.mxu0 %v2653
      %2860 = vmatprep.subr.bf16.mxu0 0
      %2861 = vmatpush1.bf16.msra.mxu0 %v2654
      %2862 = vmatprep.subr.bf16.mxu0 0
      %2863 = vmatpush1.bf16.msra.mxu0 %v2655
      %2864 = vmatprep.subr.bf16.mxu0 0
      %2865 = vmatpush1.bf16.msra.mxu0 %v2656
      %2866 = vmatprep.subr.bf16.mxu0 0
      %2867 = vmatpush1.bf16.msra.mxu0 %v2657
      %2868 = vmatprep.subr.bf16.mxu0 0
      %2869 = vmatpush1.bf16.msra.mxu0 %v2658
      %2870 = vmatprep.subr.bf16.mxu0 0
      %2871 = vmatpush1.bf16.msra.mxu0 %v2659
      %2872 = vmatprep.subr.bf16.mxu0 0
      %2873 = vmatpush1.bf16.msra.mxu0 %v2660
      %2874 = vmatprep.subr.bf16.mxu0 0
      %2875 = vmatpush1.bf16.msra.mxu0 %v2661
      %2876 = vmatprep.subr.bf16.mxu0 0
      %2877 = vmatpush1.bf16.msra.mxu0 %v2662
      %2878 = vmatprep.subr.bf16.mxu0 0
      %2879 = vmatpush1.bf16.msra.mxu0 %v2663
      %2880 = vmatprep.subr.bf16.mxu0 0
      %2881 = vmatpush1.bf16.msra.mxu0 %v2664
      %2882 = vmatprep.subr.bf16.mxu0 0
      %2883 = vmatpush1.bf16.msra.mxu0 %v2729
      %2884 = vmatprep.subr.bf16.mxu0 0
      %2885 = vmatpush1.bf16.msra.mxu0 0
      %2886 = vmatprep.mubr.bf16.mxu0 %v721
      %2887 = vmatmul.mubr.bf16.gmra.mrb[0].mxu0 %v335
      %v2888 = vpop.f32.mrb[0].mxu0
      %v2889 = vadd.f32 %v2848, %v2888
      %v2890 = vpop.f32.mrb[0].mxu0
      %v2891 = vpop.f32.mrb[0].mxu0
      %v2892 = vadd.f32 %v2851, %v2891
      %v2893 = vpop.f32.mrb[0].mxu0
      %2894 = vdwg.mxu0
      %v2895 = vmax.f32 %v885, %v1553
      %v2896 = vmax.f32 %v888, %v1556
      %v2897 = vmax.f32 %v2221, %v2889
      %v2898 = vmax.f32 %v2224, %v2892
      %v2899 = vmax.f32 %v2895, %v2897
      %v2900 = vmax.f32 %v2896, %v2898
      %v2901 = vld [vmem:[%s2] sm:$0xff]
      %v2902 = vld [vmem:[%s2 + $0x8] sm:$0x3]
      %2904 = vset.pattern.permute.xlu0 0
      %2905 = vperm.xlu0 %2904, %v2901
      %v2906 = vpop.permute.xlu0 %2905
      %2909 = vset.pattern.permute.xlu0 0
      %2910 = vperm.xlu0 %2909, %v2902
      %v2911 = vpop.permute.xlu0 %2910
      %v2913 = vadd.f32 %v2899, %v2906
      %v2914 = vadd.f32 %v2900, %v2911
      %v2915 = vmax.f32 %v2913, 0.0
      %v2916 = vmax.f32 %v2914, 0.0
      %vm2917 = vcmask 867328
      %2918 = vst.msk [vmem:[%s170] sm:$0xff] %vm2917, %v2915
      %vm2919 = vcmask 861184
      %2920 = vst.msk [vmem:[%s170 + $0x8] sm:$0x3] %vm2919, %v2916
      %p2921 = scmp.lt.s32.totalorder %s14, 1
      %s2922 = scalar_select %p2921, %s14, 1
      %s2923 = smul.addr %s2922, 2
      %s2924 = smul.addr %s2923, 8
      %s2925 = scalar_lea.vmem %s3, %s2924
      // Predicated region
      $region33: #{net_forward.4} parent=31 // pred_check
        %p2926 = pneg %p100
      $region34: #{net_forward.4} parent=31 // pred_check_branch
        %2928 = sbr.rel (%p2926) target = $region36
      $region35: #{net_forward.4} parent=31 // pred_region
        _
      $region36: #{net_forward.4} parent=31 // pred_fallthru
        _
    $region32: #{net_forward.4} parent=5 // pred_fallthru
      _
    %p2929 = scmp.le.s32.totalorder 2, %s9
    // Predicated region
    $region37: #{net_forward.4} parent=5 // pred_check
      %p2930 = pneg %p2929
    $region38: #{net_forward.4} parent=5 // pred_check_branch
      %2932 = sbr.rel (%p2930) target = $region40
    $region39: #{net_forward.4} parent=5 // pred_region
      %s2933 = ssub.s32 %s9, 2
      // Predicated region
      $region41: #{net_forward.4} parent=39 // pred_check
        %p2934 = pneg %p106
      $region42: #{net_forward.4} parent=39 // pred_check_branch
        %2936 = sbr.rel (%p2934) target = $region44
      $region43: #{net_forward.4} parent=39 // pred_region
        %p2937 = scmp.lt.s32.totalorder %s15, 1
        %s2938 = scalar_select %p2937, %s15, 1
        %s2939 = smul.addr %s2938, 2
        %s2940 = smul.addr %s2939, 8
        %s2941 = scalar_lea.vmem %s3, %s2940
      $region44: #{net_forward.4} parent=39 // pred_fallthru
        _
    $region40: #{net_forward.4} parent=5 // pred_fallthru
      _
  $region6: #{net_forward.4} parent=0 // loop_footer
    %s13 = sadd.s32 1, %s9
  $region7: #{net_forward.4} parent=0 // loop_footer_branch
    %8 = sbr.rel target = $region3
  $region8: #{net_forward.4} parent=0 // loop_exit
    _

// kernel: net_forward.5
$region0: #{net_forward.5}
  #allocation0 [shape = 'u32[]', space=smem, size = 0x4, offset = 0x4, fixed_abs, tag = 'smem constant byte address 0x4 - core index']
  #allocation1 [shape = 'u32[144,128]{1,0:T(1,128)}', space=vmem, size = 0x12000, scoped, tag = 'internal scratch']
  #allocation2 [shape = 'f32[8,120]{1,0:T(8,128)}', space=vmem, size = 0x1000, scoped, tag = 'scratch operand']
  %s0 = inlined_call_operand.vmem [shape: bf16[8,1280], index: 0, kind: input, shape index: {}]
  %s1 = inlined_call_operand.vmem [shape: bf16[1280,120], index: 1, kind: input, shape index: {}]
  %s2 = inlined_call_operand.vmem [shape: f32[1,120], index: 2, kind: input, shape index: {}]
  %s3 = inlined_call_operand.vmem [shape: bf16[120,84], index: 3, kind: input, shape index: {}]
  %s4 = inlined_call_operand.vmem [shape: f32[1,84], index: 4, kind: input, shape index: {}]
  %s5 = inlined_call_operand.vmem [shape: bf16[84,2], index: 5, kind: input, shape index: {}]
  %s6 = inlined_call_operand.vmem [shape: f32[1,2], index: 6, kind: input, shape index: {}]
  %s7 = inlined_call_operand.vmem [shape: f32[8,2], index: 7, kind: output, shape index: {}]
  %s8 = sld [smem:[#allocation0]]
  $region69: #{net_forward.5} parent=0
    _
  %s10 = ssub.s32 1, %s8
  %s11 = scalar_select 0, %s10, %s8
  loop: start=0, step=1, limit=7
  $region2: #{net_forward.5} parent=0 // loop_pre_header
    _
  $region3: #{net_forward.5} parent=0 // loop_header
    %s13 = sphi 0, %s17
    %p14 = scmp.ge.s32.totalorder %s13, 7
    %s23 = sphi 0, %s25
    %s26 = sphi 0, %s23
    %s27 = sphi 0, %s26
    %s43 = sphi 0, %s27
    %s49 = sphi 0, %s51
    %s52 = sphi 0, %s49
    %s53 = sphi 0, %s52
    %s69 = sphi 0, %s53
    %s73 = sphi 0, %s73
    %s75 = sphi 0, %s73
    %s76 = sphi 0, %s75
    %s90 = sphi 0, %s76
    %s94 = sphi 0, %s94
    %s96 = sphi 0, %s94
    %s97 = sphi 0, %s96
    %s111 = sphi 0, %s97
    %s115 = sphi 0, %s115
    %s117 = sphi 0, %s115
    %s118 = sphi 0, %s117
    %s132 = sphi 0, %s118
    %s136 = sphi 0, %s136
    %s138 = sphi 0, %s136
    %s139 = sphi 0, %s138
    %s153 = sphi 0, %s139
    %s157 = sphi 0, %s157
    %s159 = sphi 0, %s157
    %s160 = sphi 0, %s159
    %s174 = sphi 0, %s160
    %s178 = sphi 0, %s178
    %s180 = sphi 0, %s178
    %s181 = sphi 0, %s180
    %s195 = sphi 0, %s181
  $region4: #{net_forward.5} parent=0 // loop_header_branch
    %16 = sbr.rel (%p14) target = $region8
  $region5: #{net_forward.5} parent=0 // loop_body
    %s18 = ssub.s32 %s13, 1
    %s19 = ssub.s32 %s13, 2
    %s20 = sadd.s32 %s13, 1
    %s21 = ssub.s32 %s13, %s20
    %p22 = scmp.eq.s32.totalorder %s21, 0
    %s24 = sadd.s32 %s23, 1
    %s25 = scalar_select %p22, %s23, %s24
    %p28 = pneg %p22
    %p29 = scmp.eq.s32.totalorder %s13, 4
    %p30 = por %p28, %p29
    %p31 = scmp.ne.s32.totalorder %s23, %s26
    %p32 = scmp.eq.s32.totalorder %s13, 0
    %p33 = por %p31, %p32
    %p34 = scmp.ne.s32.totalorder %s23, %s26
    %p35 = scmp.eq.s32.totalorder %s18, 4
    %p36 = por %p34, %p35
    %p37 = scmp.ne.s32.totalorder %s26, %s27
    %p38 = scmp.eq.s32.totalorder %s18, 0
    %p39 = por %p37, %p38
    %p40 = scmp.ne.s32.totalorder %s26, %s27
    %p41 = scmp.eq.s32.totalorder %s19, 4
    %p42 = por %p40, %p41
    %p44 = scmp.ne.s32.totalorder %s27, %s43
    %p45 = scmp.eq.s32.totalorder %s19, 0
    %p46 = por %p44, %p45
    %s47 = ssub.s32 %s13, %s20
    %p48 = scmp.eq.s32.totalorder %s47, 0
    %s50 = sadd.s32 %s49, 1
    %s51 = scalar_select %p48, %s49, %s50
    %p54 = pneg %p48
    %p55 = scmp.eq.s32.totalorder %s13, 4
    %p56 = por %p54, %p55
    %p57 = scmp.ne.s32.totalorder %s49, %s52
    %p58 = scmp.eq.s32.totalorder %s13, 0
    %p59 = por %p57, %p58
    %p60 = scmp.ne.s32.totalorder %s49, %s52
    %p61 = scmp.eq.s32.totalorder %s18, 4
    %p62 = por %p60, %p61
    %p63 = scmp.ne.s32.totalorder %s52, %s53
    %p64 = scmp.eq.s32.totalorder %s18, 0
    %p65 = por %p63, %p64
    %p66 = scmp.ne.s32.totalorder %s52, %s53
    %p67 = scmp.eq.s32.totalorder %s19, 4
    %p68 = por %p66, %p67
    %p70 = scmp.ne.s32.totalorder %s53, %s69
    %p71 = scmp.eq.s32.totalorder %s19, 0
    %p72 = por %p70, %p71
    %s74 = sadd.s32 %s73, 1
    %p77 = scmp.eq.s32.totalorder %s13, 4
    %p78 = scmp.ne.s32.totalorder %s73, %s75
    %p79 = scmp.eq.s32.totalorder %s13, 0
    %p80 = por %p78, %p79
    %p81 = scmp.ne.s32.totalorder %s73, %s75
    %p82 = scmp.eq.s32.totalorder %s18, 4
    %p83 = por %p81, %p82
    %p84 = scmp.ne.s32.totalorder %s75, %s76
    %p85 = scmp.eq.s32.totalorder %s18, 0
    %p86 = por %p84, %p85
    %p87 = scmp.ne.s32.totalorder %s75, %s76
    %p88 = scmp.eq.s32.totalorder %s19, 4
    %p89 = por %p87, %p88
    %p91 = scmp.ne.s32.totalorder %s76, %s90
    %p92 = scmp.eq.s32.totalorder %s19, 0
    %p93 = por %p91, %p92
    %s95 = sadd.s32 %s94, 1
    %p98 = scmp.eq.s32.totalorder %s13, 4
    %p99 = scmp.ne.s32.totalorder %s94, %s96
    %p100 = scmp.eq.s32.totalorder %s13, 0
    %p101 = por %p99, %p100
    %p102 = scmp.ne.s32.totalorder %s94, %s96
    %p103 = scmp.eq.s32.totalorder %s18, 4
    %p104 = por %p102, %p103
    %p105 = scmp.ne.s32.totalorder %s96, %s97
    %p106 = scmp.eq.s32.totalorder %s18, 0
    %p107 = por %p105, %p106
    %p108 = scmp.ne.s32.totalorder %s96, %s97
    %p109 = scmp.eq.s32.totalorder %s19, 4
    %p110 = por %p108, %p109
    %p112 = scmp.ne.s32.totalorder %s97, %s111
    %p113 = scmp.eq.s32.totalorder %s19, 0
    %p114 = por %p112, %p113
    %s116 = sadd.s32 %s115, 1
    %p119 = scmp.eq.s32.totalorder %s13, 4
    %p120 = scmp.ne.s32.totalorder %s115, %s117
    %p121 = scmp.eq.s32.totalorder %s13, 0
    %p122 = por %p120, %p121
    %p123 = scmp.ne.s32.totalorder %s115, %s117
    %p124 = scmp.eq.s32.totalorder %s18, 4
    %p125 = por %p123, %p124
    %p126 = scmp.ne.s32.totalorder %s117, %s118
    %p127 = scmp.eq.s32.totalorder %s18, 0
    %p128 = por %p126, %p127
    %p129 = scmp.ne.s32.totalorder %s117, %s118
    %p130 = scmp.eq.s32.totalorder %s19, 4
    %p131 = por %p129, %p130
    %p133 = scmp.ne.s32.totalorder %s118, %s132
    %p134 = scmp.eq.s32.totalorder %s19, 0
    %p135 = por %p133, %p134
    %s137 = sadd.s32 %s136, 1
    %p140 = scmp.eq.s32.totalorder %s13, 4
    %p141 = scmp.ne.s32.totalorder %s136, %s138
    %p142 = scmp.eq.s32.totalorder %s13, 0
    %p143 = por %p141, %p142
    %p144 = scmp.ne.s32.totalorder %s136, %s138
    %p145 = scmp.eq.s32.totalorder %s18, 4
    %p146 = por %p144, %p145
    %p147 = scmp.ne.s32.totalorder %s138, %s139
    %p148 = scmp.eq.s32.totalorder %s18, 0
    %p149 = por %p147, %p148
    %p150 = scmp.ne.s32.totalorder %s138, %s139
    %p151 = scmp.eq.s32.totalorder %s19, 4
    %p152 = por %p150, %p151
    %p154 = scmp.ne.s32.totalorder %s139, %s153
    %p155 = scmp.eq.s32.totalorder %s19, 0
    %p156 = por %p154, %p155
    %s158 = sadd.s32 %s157, 1
    %p161 = scmp.eq.s32.totalorder %s13, 4
    %p162 = scmp.ne.s32.totalorder %s157, %s159
    %p163 = scmp.eq.s32.totalorder %s13, 0
    %p164 = por %p162, %p163
    %p165 = scmp.ne.s32.totalorder %s157, %s159
    %p166 = scmp.eq.s32.totalorder %s18, 4
    %p167 = por %p165, %p166
    %p168 = scmp.ne.s32.totalorder %s159, %s160
    %p169 = scmp.eq.s32.totalorder %s18, 0
    %p170 = por %p168, %p169
    %p171 = scmp.ne.s32.totalorder %s159, %s160
    %p172 = scmp.eq.s32.totalorder %s19, 4
    %p173 = por %p171, %p172
    %p175 = scmp.ne.s32.totalorder %s160, %s174
    %p176 = scmp.eq.s32.totalorder %s19, 0
    %p177 = por %p175, %p176
    %s179 = sadd.s32 %s178, 1
    %p182 = scmp.eq.s32.totalorder %s13, 4
    %p183 = scmp.ne.s32.totalorder %s178, %s180
    %p184 = scmp.eq.s32.totalorder %s13, 0
    %p185 = por %p183, %p184
    %p186 = scmp.ne.s32.totalorder %s178, %s180
    %p187 = scmp.eq.s32.totalorder %s18, 4
    %p188 = por %p186, %p187
    %p189 = scmp.ne.s32.totalorder %s180, %s181
    %p190 = scmp.eq.s32.totalorder %s18, 0
    %p191 = por %p189, %p190
    %p192 = scmp.ne.s32.totalorder %s180, %s181
    %p193 = scmp.eq.s32.totalorder %s19, 4
    %p194 = por %p192, %p193
    %p196 = scmp.ne.s32.totalorder %s181, %s195
    %p197 = scmp.eq.s32.totalorder %s19, 0
    %p198 = por %p196, %p197
    %p199 = scmp.le.s32.totalorder 1, %s13
    %p200 = scmp.lt.s32.totalorder %s13, 6
    %p201 = pnand %p199, %p200
    %p202 = pneg %p201
    // Predicated region
    $region9: #{net_forward.5} parent=5 // pred_check
      _
    $region10: #{net_forward.5} parent=5 // pred_check_branch
      %204 = sbr.rel (%p201) target = $region12
    $region11: #{net_forward.5} parent=5 // pred_region
      %s205 = ssub.s32 %s13, 1
      // Predicated region
      $region13: #{net_forward.5} parent=11 // pred_check
        %p206 = pneg %p86
      $region14: #{net_forward.5} parent=11 // pred_check_branch
        %208 = sbr.rel (%p206) target = $region16
      $region15: #{net_forward.5} parent=11 // pred_region
        _
      $region16: #{net_forward.5} parent=11 // pred_fallthru
        _
      // Predicated region
      $region17: #{net_forward.5} parent=11 // pred_check
        %p209 = pneg %p107
      $region18: #{net_forward.5} parent=11 // pred_check_branch
        %211 = sbr.rel (%p209) target = $region20
      $region19: #{net_forward.5} parent=11 // pred_region
        _
      $region20: #{net_forward.5} parent=11 // pred_fallthru
        _
      // Predicated region
      $region21: #{net_forward.5} parent=11 // pred_check
        %p212 = pneg %p128
      $region22: #{net_forward.5} parent=11 // pred_check_branch
        %214 = sbr.rel (%p212) target = $region24
      $region23: #{net_forward.5} parent=11 // pred_region
        _
      $region24: #{net_forward.5} parent=11 // pred_fallthru
        _
      // Predicated region
      $region25: #{net_forward.5} parent=11 // pred_check
        %p215 = pneg %p149
      $region26: #{net_forward.5} parent=11 // pred_check_branch
        %217 = sbr.rel (%p215) target = $region28
      $region27: #{net_forward.5} parent=11 // pred_region
        _
      $region28: #{net_forward.5} parent=11 // pred_fallthru
        _
      // Predicated region
      $region29: #{net_forward.5} parent=11 // pred_check
        %p218 = pneg %p170
      $region30: #{net_forward.5} parent=11 // pred_check_branch
        %220 = sbr.rel (%p218) target = $region32
      $region31: #{net_forward.5} parent=11 // pred_region
        _
      $region32: #{net_forward.5} parent=11 // pred_fallthru
        _
    $region12: #{net_forward.5} parent=5 // pred_fallthru
      _
    %p221 = scmp.lt.s32.totalorder %s13, 5
    // Predicated region
    $region33: #{net_forward.5} parent=5 // pred_check
      %p222 = pneg %p221
    $region34: #{net_forward.5} parent=5 // pred_check_branch
      %224 = sbr.rel (%p222) target = $region36
    $region35: #{net_forward.5} parent=5 // pred_region
      // Predicated region
      $region37: #{net_forward.5} parent=35 // pred_check
        %p225 = pneg %p33
      $region38: #{net_forward.5} parent=35 // pred_check_branch
        %227 = sbr.rel (%p225) target = $region40
      $region39: #{net_forward.5} parent=35 // pred_region
        %s228 = smul.u32 2, %s13
        %p229 = scmp.lt.s32.totalorder %s228, 9
        %s230 = scalar_select %p229, %s228, 9
        %s231 = smul.addr %s230, 4
        %s232 = scalar_lea.vmem %s0, %s231
        %s233 = smul.u32 2, %s13
      $region40: #{net_forward.5} parent=35 // pred_fallthru
        _
      // Predicated region
      $region41: #{net_forward.5} parent=35 // pred_check
        %p234 = pneg %p59
      $region42: #{net_forward.5} parent=35 // pred_check_branch
        %236 = sbr.rel (%p234) target = $region44
      $region43: #{net_forward.5} parent=35 // pred_region
        %s237 = smul.u32 32, %s13
        %p238 = scmp.lt.s32.totalorder %s237, 159
        %s239 = scalar_select %p238, %s237, 159
        %s240 = smul.addr %s239, 4
        %s241 = scalar_lea.vmem %s1, %s240
        %s242 = smul.u32 32, %s13
      $region44: #{net_forward.5} parent=35 // pred_fallthru
        _
    $region36: #{net_forward.5} parent=5 // pred_fallthru
      _
    %p243 = scmp.le.s32.totalorder 1, %s13
    %p244 = scmp.lt.s32.totalorder %s13, 6
    %p245 = pnand %p243, %p244
    %p246 = pneg %p245
    // Predicated region
    $region45: #{net_forward.5} parent=5 // pred_check
      _
    $region46: #{net_forward.5} parent=5 // pred_check_branch
      %248 = sbr.rel (%p245) target = $region48
    $region47: #{net_forward.5} parent=5 // pred_region
      %s249 = ssub.s32 %s13, 1
      %s250 = smul.u32 2, %s18
      %p251 = scmp.lt.s32.totalorder %s250, 9
      %s252 = scalar_select %p251, %s250, 9
      %s253 = smul.addr %s252, 4
      %s254 = scalar_lea.vmem %s0, %s253
      %p255 = pneg %p39
      %p256 = pneg %p36
      %s257 = smul.u32 32, %s18
      %p258 = scmp.lt.s32.totalorder %s257, 159
      %s259 = scalar_select %p258, %s257, 159
      %s260 = smul.addr %s259, 4
      %s261 = scalar_lea.vmem %s1, %s260
      %p262 = pneg %p65
      %p263 = pneg %p62
      %p264 = pneg %p86
      %p265 = pneg %p83
      %p266 = pneg %p107
      %p267 = pneg %p104
      %p268 = pneg %p128
      %p269 = pneg %p125
      %p270 = pneg %p149
      %p271 = pneg %p146
      %p272 = pneg %p170
      %p273 = pneg %p167
      %p274 = pneg %p191
      %p275 = pneg %p188
      %s276 = smul.u32 2, %s18
      %p277 = scmp.lt.s32.totalorder %s276, 9
      %s278 = scalar_select %p277, %s276, 9
      %s279 = smul.addr %s278, 4
      %s280 = scalar_lea.vmem %s0, %s279
      %s281 = smul.u32 2, %s18
      %s282 = smul.u32 32, %s18
      %p283 = scmp.lt.s32.totalorder %s282, 159
      %s284 = scalar_select %p283, %s282, 159
      %s285 = smul.addr %s284, 4
      %s286 = scalar_lea.vmem %s1, %s285
      %s287 = smul.u32 32, %s18
      %p289 = scmp.eq.s32.totalorder %s18, 0
      // Predicated region
      $region49: #{net_forward.5} parent=47 // pred_check
        %p290 = pneg %p289
      $region50: #{net_forward.5} parent=47 // pred_check_branch
        %292 = sbr.rel (%p290) target = $region52
      $region51: #{net_forward.5} parent=47 // pred_region
        %vm293 = vcmask 982016
        %294 = vst.msk [vmem:[#allocation2] sm:$0xff] %vm293, 0.0
      $region52: #{net_forward.5} parent=47 // pred_fallthru
        _
      %v295 = vld [vmem:[#allocation2] sm:$0xff]
      %v296 = vld [vmem:[%s280] sm:$0xff]
      %v297 = vld [vmem:[%s286] sm:$0xf]
      %v298 = vld [vmem:[%s286 + $0x4] sm:$0xf]
      %v299 = vld [vmem:[%s286 + $0x8] sm:$0xf]
      %v300 = vld [vmem:[%s286 + $0xc] sm:$0xf]
      %v301 = vld [vmem:[%s286 + $0x10] sm:$0xf]
      %v302 = vld [vmem:[%s286 + $0x14] sm:$0xf]
      %v303 = vld [vmem:[%s286 + $0x18] sm:$0xf]
      %v304 = vld [vmem:[%s286 + $0x1c] sm:$0xf]
      %v305 = vld [vmem:[%s286 + $0x20] sm:$0xf]
      %v306 = vld [vmem:[%s286 + $0x24] sm:$0xf]
      %v307 = vld [vmem:[%s286 + $0x28] sm:$0xf]
      %v308 = vld [vmem:[%s286 + $0x2c] sm:$0xf]
      %v309 = vld [vmem:[%s286 + $0x30] sm:$0xf]
      %v310 = vld [vmem:[%s286 + $0x34] sm:$0xf]
      %v311 = vld [vmem:[%s286 + $0x38] sm:$0xf]
      %v312 = vld [vmem:[%s286 + $0x3c] sm:$0xf]
      %v313 = vld [vmem:[%s286 + $0x40] sm:$0xf]
      %v314 = vld [vmem:[%s286 + $0x44] sm:$0xf]
      %v315 = vld [vmem:[%s286 + $0x48] sm:$0xf]
      %v316 = vld [vmem:[%s286 + $0x4c] sm:$0xf]
      %v317 = vld [vmem:[%s286 + $0x50] sm:$0xf]
      %v318 = vld [vmem:[%s286 + $0x54] sm:$0xf]
      %v319 = vld [vmem:[%s286 + $0x58] sm:$0xf]
      %v320 = vld [vmem:[%s286 + $0x5c] sm:$0xf]
      %v321 = vld [vmem:[%s286 + $0x60] sm:$0xf]
      %v322 = vld [vmem:[%s286 + $0x64] sm:$0xf]
      %v323 = vld [vmem:[%s286 + $0x68] sm:$0xf]
      %v324 = vld [vmem:[%s286 + $0x6c] sm:$0xf]
      %v325 = vld [vmem:[%s286 + $0x70] sm:$0xf]
      %v326 = vld [vmem:[%s286 + $0x74] sm:$0xf]
      %v327 = vld [vmem:[%s286 + $0x78] sm:$0xf]
      %v328 = vld [vmem:[%s286 + $0x7c] sm:$0xf]
      %v330 = vunpack.c.l.b16 %v296
      %v331 = vunpack.c.h.b16 %v296
      %v332 = vpack.c.b16 %v330, %v330
      %v333 = vpack.c.b16 %v331, %v331
      %v368 = vunpack.c.l.b16 %v297
      %v369 = vunpack.c.l.b16 %v298
      %v370 = vunpack.c.l.b16 %v299
      %v371 = vunpack.c.l.b16 %v300
      %v372 = vunpack.c.l.b16 %v301
      %v373 = vunpack.c.l.b16 %v302
      %v374 = vunpack.c.l.b16 %v303
      %v375 = vunpack.c.l.b16 %v304
      %v376 = vunpack.c.l.b16 %v305
      %v377 = vunpack.c.l.b16 %v306
      %v378 = vunpack.c.l.b16 %v307
      %v379 = vunpack.c.l.b16 %v308
      %v380 = vunpack.c.l.b16 %v309
      %v381 = vunpack.c.l.b16 %v310
      %v382 = vunpack.c.l.b16 %v311
      %v383 = vunpack.c.l.b16 %v312
      %v384 = vunpack.c.l.b16 %v313
      %v385 = vunpack.c.l.b16 %v314
      %v386 = vunpack.c.l.b16 %v315
      %v387 = vunpack.c.l.b16 %v316
      %v388 = vunpack.c.l.b16 %v317
      %v389 = vunpack.c.l.b16 %v318
      %v390 = vunpack.c.l.b16 %v319
      %v391 = vunpack.c.l.b16 %v320
      %v392 = vunpack.c.l.b16 %v321
      %v393 = vunpack.c.l.b16 %v322
      %v394 = vunpack.c.l.b16 %v323
      %v395 = vunpack.c.l.b16 %v324
      %v396 = vunpack.c.l.b16 %v325
      %v397 = vunpack.c.l.b16 %v326
      %v398 = vunpack.c.l.b16 %v327
      %v399 = vunpack.c.l.b16 %v328
      %v400 = vpack.c.b16 %v369, %v368
      %v401 = vpack.c.b16 %v371, %v370
      %v402 = vpack.c.b16 %v373, %v372
      %v403 = vpack.c.b16 %v375, %v374
      %v404 = vpack.c.b16 %v377, %v376
      %v405 = vpack.c.b16 %v379, %v378
      %v406 = vpack.c.b16 %v381, %v380
      %v407 = vpack.c.b16 %v383, %v382
      %v408 = vpack.c.b16 %v385, %v384
      %v409 = vpack.c.b16 %v387, %v386
      %v410 = vpack.c.b16 %v389, %v388
      %v411 = vpack.c.b16 %v391, %v390
      %v412 = vpack.c.b16 %v393, %v392
      %v413 = vpack.c.b16 %v395, %v394
      %v414 = vpack.c.b16 %v397, %v396
      %v415 = vpack.c.b16 %v399, %v398
      %432 = vmatprep.subr.bf16.mxu0 0
      %433 = vmatpush1.bf16.msra.mxu0 %v400
      %434 = vmatprep.subr.bf16.mxu0 0
      %435 = vmatpush1.bf16.msra.mxu0 %v401
      %436 = vmatprep.subr.bf16.mxu0 0
      %437 = vmatpush1.bf16.msra.mxu0 %v402
      %438 = vmatprep.subr.bf16.mxu0 0
      %439 = vmatpush1.bf16.msra.mxu0 %v403
      %440 = vmatprep.subr.bf16.mxu0 0
      %441 = vmatpush1.bf16.msra.mxu0 %v404
      %442 = vmatprep.subr.bf16.mxu0 0
      %443 = vmatpush1.bf16.msra.mxu0 %v405
      %444 = vmatprep.subr.bf16.mxu0 0
      %445 = vmatpush1.bf16.msra.mxu0 %v406
      %446 = vmatprep.subr.bf16.mxu0 0
      %447 = vmatpush1.bf16.msra.mxu0 %v407
      %448 = vmatprep.subr.bf16.mxu0 0
      %449 = vmatpush1.bf16.msra.mxu0 %v408
      %450 = vmatprep.subr.bf16.mxu0 0
      %451 = vmatpush1.bf16.msra.mxu0 %v409
      %452 = vmatprep.subr.bf16.mxu0 0
      %453 = vmatpush1.bf16.msra.mxu0 %v410
      %454 = vmatprep.subr.bf16.mxu0 0
      %455 = vmatpush1.bf16.msra.mxu0 %v411
      %456 = vmatprep.subr.bf16.mxu0 0
      %457 = vmatpush1.bf16.msra.mxu0 %v412
      %458 = vmatprep.subr.bf16.mxu0 0
      %459 = vmatpush1.bf16.msra.mxu0 %v413
      %460 = vmatprep.subr.bf16.mxu0 0
      %461 = vmatpush1.bf16.msra.mxu0 %v414
      %462 = vmatprep.subr.bf16.mxu0 0
      %463 = vmatpush1.bf16.msra.mxu0 %v415
      %464 = vmatprep.mubr.bf16.mxu0 %v333
      %465 = vmatmul.mubr.bf16.gmra.mrb[0].mxu0 %v332
      %v466 = vpop.f32.mrb[0].mxu0
      %v467 = vadd.f32 0.0, %v466
      %v468 = vpop.f32.mrb[0].mxu0
      %v469 = vpop.f32.mrb[0].mxu0
      %v470 = vpop.f32.mrb[0].mxu0
      %471 = vdwg.mxu0
      %v472 = vadd.f32 %v295, %v467
      %vm473 = vcmask 982016
      %474 = vst.msk [vmem:[#allocation2] sm:$0xff] %vm473, %v472
      %p475 = scmp.eq.s32.totalorder %s18, 4
      // Predicated region
      $region53: #{net_forward.5} parent=47 // pred_check
        %p476 = pneg %p475
      $region54: #{net_forward.5} parent=47 // pred_check_branch
        %478 = sbr.rel (%p476) target = $region56
      $region55: #{net_forward.5} parent=47 // pred_region
        %v479 = vld [vmem:[#allocation2] sm:$0xff]
        %v480 = vld [vmem:[%s2] sm:$0x1]
        %v482 = vlaneseq
        %v483 = vshrl.u32 %v482, 7
        %v484 = vsub.s32 0, %v483
        %v485 = vrot.slane %v480, %v484
        %v487 = vadd.f32 %v479, %v485
        %v488 = vmax.f32 %v487, 0.0
        %v489 = vpack.c.bf16 %v488, %v488
        %v490 = vld [vmem:[%s3] sm:$0xf]
        %v491 = vld [vmem:[%s3 + $0x4] sm:$0xf]
        %v492 = vld [vmem:[%s3 + $0x8] sm:$0xf]
        %v493 = vld [vmem:[%s3 + $0xc] sm:$0xf]
        %v494 = vld [vmem:[%s3 + $0x10] sm:$0xf]
        %v495 = vld [vmem:[%s3 + $0x14] sm:$0xf]
        %v496 = vld [vmem:[%s3 + $0x18] sm:$0xf]
        %v497 = vld [vmem:[%s3 + $0x1c] sm:$0xf]
        %v498 = vld [vmem:[%s3 + $0x20] sm:$0xf]
        %v499 = vld [vmem:[%s3 + $0x24] sm:$0xf]
        %v500 = vld [vmem:[%s3 + $0x28] sm:$0xf]
        %v501 = vld [vmem:[%s3 + $0x2c] sm:$0xf]
        %v502 = vld [vmem:[%s3 + $0x30] sm:$0xf]
        %v503 = vld [vmem:[%s3 + $0x34] sm:$0xf]
        %v504 = vld [vmem:[%s3 + $0x38] sm:$0xf]
        %v505 = vld [vmem:[%s4] sm:$0x1]
        %v507 = vlaneseq
        %v508 = vshrl.u32 %v507, 7
        %v509 = vsub.s32 0, %v508
        %v510 = vrot.slane %v505, %v509
        %v527 = vunpack.c.l.b16 %v490
        %v528 = vunpack.c.l.b16 %v491
        %v529 = vunpack.c.l.b16 %v492
        %v530 = vunpack.c.l.b16 %v493
        %v531 = vunpack.c.l.b16 %v494
        %v532 = vunpack.c.l.b16 %v495
        %v533 = vunpack.c.l.b16 %v496
        %v534 = vunpack.c.l.b16 %v497
        %v535 = vunpack.c.l.b16 %v498
        %v536 = vunpack.c.l.b16 %v499
        %v537 = vunpack.c.l.b16 %v500
        %v538 = vunpack.c.l.b16 %v501
        %v539 = vunpack.c.l.b16 %v502
        %v540 = vunpack.c.l.b16 %v503
        %v541 = vunpack.c.l.b16 %v504
        %v542 = vpack.c.b16 %v528, %v527
        %v543 = vpack.c.b16 %v530, %v529
        %v544 = vpack.c.b16 %v532, %v531
        %v545 = vpack.c.b16 %v534, %v533
        %v546 = vpack.c.b16 %v536, %v535
        %v547 = vpack.c.b16 %v538, %v537
        %v548 = vpack.c.b16 %v540, %v539
        %v549 = vpack.c.b16 %v541, %v541
        %v558 = vsel %vm473, %v489, 0
        %vm560 = vcmask 1043456
        %v562 = vsel %vm560, %v549, 0
        %564 = vmatprep.subr.bf16.mxu0 0
        %565 = vmatpush1.bf16.msra.mxu0 %v542
        %566 = vmatprep.subr.bf16.mxu0 0
        %567 = vmatpush1.bf16.msra.mxu0 %v543
        %568 = vmatprep.subr.bf16.mxu0 0
        %569 = vmatpush1.bf16.msra.mxu0 %v544
        %570 = vmatprep.subr.bf16.mxu0 0
        %571 = vmatpush1.bf16.msra.mxu0 %v545
        %572 = vmatprep.subr.bf16.mxu0 0
        %573 = vmatpush1.bf16.msra.mxu0 %v546
        %574 = vmatprep.subr.bf16.mxu0 0
        %575 = vmatpush1.bf16.msra.mxu0 %v547
        %576 = vmatprep.subr.bf16.mxu0 0
        %577 = vmatpush1.bf16.msra.mxu0 %v548
        %578 = vmatprep.subr.bf16.mxu0 0
        %579 = vmatpush1.bf16.msra.mxu0 %v562
        %580 = vmatprep.subr.bf16.mxu0 0
        %581 = vmatpush1.bf16.msra.mxu0 0
        %582 = vmatprep.subr.bf16.mxu0 0
        %583 = vmatpush1.bf16.msra.mxu0 0
        %584 = vmatprep.subr.bf16.mxu0 0
        %585 = vmatpush1.bf16.msra.mxu0 0
        %586 = vmatprep.subr.bf16.mxu0 0
        %587 = vmatpush1.bf16.msra.mxu0 0
        %588 = vmatprep.subr.bf16.mxu0 0
        %589 = vmatpush1.bf16.msra.mxu0 0
        %590 = vmatprep.subr.bf16.mxu0 0
        %591 = vmatpush1.bf16.msra.mxu0 0
        %592 = vmatprep.subr.bf16.mxu0 0
        %593 = vmatpush1.bf16.msra.mxu0 0
        %594 = vmatprep.subr.bf16.mxu0 0
        %595 = vmatpush1.bf16.msra.mxu0 0
        %596 = vmatprep.mubr.bf16.mxu0 0
        %597 = vmatmul.mubr.bf16.gmra.mrb[0].mxu0 %v558
        %v598 = vpop.f32.mrb[0].mxu0
        %v599 = vadd.f32 %v510, %v598
        %v600 = vpop.f32.mrb[0].mxu0
        %v601 = vpop.f32.mrb[0].mxu0
        %v602 = vpop.f32.mrb[0].mxu0
        %603 = vdwg.mxu0
        %v604 = vmax.f32 %v599, 0.0
        %v605 = vpack.c.bf16 %v604, %v604
        %v606 = vld [vmem:[%s5] sm:$0xf]
        %v607 = vld [vmem:[%s5 + $0x4] sm:$0xf]
        %v608 = vld [vmem:[%s5 + $0x8] sm:$0xf]
        %v609 = vld [vmem:[%s5 + $0xc] sm:$0xf]
        %v610 = vld [vmem:[%s5 + $0x10] sm:$0xf]
        %v611 = vld [vmem:[%s5 + $0x14] sm:$0xf]
        %v612 = vld [vmem:[%s5 + $0x18] sm:$0xf]
        %v613 = vld [vmem:[%s5 + $0x1c] sm:$0xf]
        %v614 = vld [vmem:[%s5 + $0x20] sm:$0xf]
        %v615 = vld [vmem:[%s5 + $0x24] sm:$0xf]
        %v616 = vld [vmem:[%s5 + $0x28] sm:$0x3]
        %v617 = vld [vmem:[%s6] sm:$0x1]
        %v619 = vlaneseq
        %v620 = vshrl.u32 %v619, 7
        %v621 = vsub.s32 0, %v620
        %v622 = vrot.slane %v617, %v621
        %v635 = vunpack.c.l.b16 %v606
        %v636 = vunpack.c.l.b16 %v607
        %v637 = vunpack.c.l.b16 %v608
        %v638 = vunpack.c.l.b16 %v609
        %v639 = vunpack.c.l.b16 %v610
        %v640 = vunpack.c.l.b16 %v611
        %v641 = vunpack.c.l.b16 %v612
        %v642 = vunpack.c.l.b16 %v613
        %v643 = vunpack.c.l.b16 %v614
        %v644 = vunpack.c.l.b16 %v615
        %v645 = vunpack.c.l.b16 %v616
        %v646 = vpack.c.b16 %v636, %v635
        %v647 = vpack.c.b16 %v638, %v637
        %v648 = vpack.c.b16 %v640, %v639
        %v649 = vpack.c.b16 %v642, %v641
        %v650 = vpack.c.b16 %v644, %v643
        %v651 = vpack.c.b16 %v645, %v645
        %vm657 = vcmask 687104
        %v659 = vsel %vm657, %v605, 0
        %vm661 = vcmask 1041408
        %v663 = vsel %vm661, %v651, 0
        %665 = vmatprep.subr.bf16.mxu0 0
        %666 = vmatpush1.bf16.msra.mxu0 %v646
        %667 = vmatprep.subr.bf16.mxu0 0
        %668 = vmatpush1.bf16.msra.mxu0 %v647
        %669 = vmatprep.subr.bf16.mxu0 0
        %670 = vmatpush1.bf16.msra.mxu0 %v648
        %671 = vmatprep.subr.bf16.mxu0 0
        %672 = vmatpush1.bf16.msra.mxu0 %v649
        %673 = vmatprep.subr.bf16.mxu0 0
        %674 = vmatpush1.bf16.msra.mxu0 %v650
        %675 = vmatprep.subr.bf16.mxu0 0
        %676 = vmatpush1.bf16.msra.mxu0 %v663
        %677 = vmatprep.subr.bf16.mxu0 0
        %678 = vmatpush1.bf16.msra.mxu0 0
        %679 = vmatprep.subr.bf16.mxu0 0
        %680 = vmatpush1.bf16.msra.mxu0 0
        %681 = vmatprep.subr.bf16.mxu0 0
        %682 = vmatpush1.bf16.msra.mxu0 0
        %683 = vmatprep.subr.bf16.mxu0 0
        %684 = vmatpush1.bf16.msra.mxu0 0
        %685 = vmatprep.subr.bf16.mxu0 0
        %686 = vmatpush1.bf16.msra.mxu0 0
        %687 = vmatprep.subr.bf16.mxu0 0
        %688 = vmatpush1.bf16.msra.mxu0 0
        %689 = vmatprep.subr.bf16.mxu0 0
        %690 = vmatpush1.bf16.msra.mxu0 0
        %691 = vmatprep.subr.bf16.mxu0 0
        %692 = vmatpush1.bf16.msra.mxu0 0
        %693 = vmatprep.subr.bf16.mxu0 0
        %694 = vmatpush1.bf16.msra.mxu0 0
        %695 = vmatprep.subr.bf16.mxu0 0
        %696 = vmatpush1.bf16.msra.mxu0 0
        %697 = vmatprep.mubr.bf16.mxu0 0
        %698 = vmatmul.mubr.bf16.gmra.mrb[0].mxu0 %v659
        %v699 = vpop.f32.mrb[0].mxu0
        %v700 = vadd.f32 %v622, %v699
        %v701 = vpop.f32.mrb[0].mxu0
        %v702 = vpop.f32.mrb[0].mxu0
        %v703 = vpop.f32.mrb[0].mxu0
        %704 = vdwg.mxu0
        %vm705 = vcmask 15360
        %706 = vst.msk [vmem:[%s7] sm:$0xff] %vm705, %v700
      $region56: #{net_forward.5} parent=47 // pred_fallthru
        _
      // Predicated region
      $region57: #{net_forward.5} parent=47 // pred_check
        %p707 = pneg %p188
      $region58: #{net_forward.5} parent=47 // pred_check_branch
        %709 = sbr.rel (%p707) target = $region60
      $region59: #{net_forward.5} parent=47 // pred_region
        _
      $region60: #{net_forward.5} parent=47 // pred_fallthru
        _
      // Predicated region
      $region61: #{net_forward.5} parent=47 // pred_check
        %p710 = pneg %p188
      $region62: #{net_forward.5} parent=47 // pred_check_branch
        %712 = sbr.rel (%p710) target = $region64
      $region63: #{net_forward.5} parent=47 // pred_region
        _
      $region64: #{net_forward.5} parent=47 // pred_fallthru
        _
    $region48: #{net_forward.5} parent=5 // pred_fallthru
      _
    %p713 = scmp.le.s32.totalorder 2, %s13
    // Predicated region
    $region65: #{net_forward.5} parent=5 // pred_check
      %p714 = pneg %p713
    $region66: #{net_forward.5} parent=5 // pred_check_branch
      %716 = sbr.rel (%p714) target = $region68
    $region67: #{net_forward.5} parent=5 // pred_region
      %s717 = ssub.s32 %s13, 2
    $region68: #{net_forward.5} parent=5 // pred_fallthru
      _
  $region6: #{net_forward.5} parent=0 // loop_footer
    %s17 = sadd.s32 1, %s13
  $region7: #{net_forward.5} parent=0 // loop_footer_branch
    %12 = sbr.rel target = $region3
  $region8: #{net_forward.5} parent=0 // loop_exit
    _

</llo_original>
